<compile_context>
chip_gen: v7x
topology: tpu7x:2x2x1
jax: 0.10.0
libtpu: 0.0.40
codegen_flags: <defaults>
</compile_context>

<pallas_src>
import jax
import jax.numpy as jnp
from jax.experimental import pallas as pl
from jax.experimental.pallas import tpu as pltpu

BN_EPS = 1e-5
LANE = 128                      # TPU lane width; all channel dims padded to this
USE_BF16_MATMUL = True          # bf16 MXU inputs, f32 accumulate (v6e/v7x friendly)


# ------------------------------ kernel helpers ------------------------------ #
def _bn_fold(z, gamma, beta):
    """One-pass batch stats -> per-channel (scale, shift) so y = z*scale + shift."""
    m = z.shape[0]
    s = jnp.sum(z, axis=0, keepdims=True)
    ss = jnp.sum(z * z, axis=0, keepdims=True)
    mean = s * (1.0 / m)
    var = ss * (1.0 / m) - mean * mean
    scale = gamma * jax.lax.rsqrt(var + BN_EPS)
    shift = beta - mean * scale
    return scale, shift


def _make_bottleneck_kernel(N, H, W):
    M = N * H * W
    C = LANE

    def kernel(x_ref, w1_ref, w2_ref, w3_ref, bn_ref, o_ref, pad_ref, acc_ref):
        cdt = w1_ref.dtype                      # matmul input dtype (bf16 or f32)

        # ---- conv1 (1x1) + bn1 + relu (bias cancelled by batch-stat BN) ----
        z1 = jnp.dot(x_ref[...].astype(cdt), w1_ref[...],
                     preferred_element_type=jnp.float32)
        sc1, sh1 = _bn_fold(z1, bn_ref[0:1, :], bn_ref[1:2, :])
        y1 = jnp.maximum(z1 * sc1 + sh1, 0.0)

        # ---- conv2 (3x3, pad=1) as 9 shifted matmuls from a VMEM halo ------
        pad_ref[...] = jnp.zeros_like(pad_ref)                 # zero halo border
        pad_ref[:, 1:H + 1, 1:W + 1, :] = y1.reshape(N, H, W, C)
        acc_ref[...] = jnp.zeros_like(acc_ref)
        for ky in range(3):
            for kx in range(3):
                tap = pad_ref[:, ky:ky + H, kx:kx + W, :].reshape(M, C)
                acc_ref[...] += jnp.dot(tap.astype(cdt), w2_ref[3 * ky + kx],
                                        preferred_element_type=jnp.float32)
        z2 = acc_ref[...]
        sc2, sh2 = _bn_fold(z2, bn_ref[2:3, :], bn_ref[3:4, :])
        y2 = jnp.maximum(z2 * sc2 + sh2, 0.0)

        # ---- conv3 (1x1) + bn3 + residual add + relu -----------------------
        z3 = jnp.dot(y2.astype(cdt), w3_ref[...],
                     preferred_element_type=jnp.float32)
        sc3, sh3 = _bn_fold(z3, bn_ref[4:5, :], bn_ref[5:6, :])
        y3 = z3 * sc3 + sh3 + x_ref[...]                       # residual in f32
        o_ref[...] = jnp.maximum(y3, 0.0)

    return kernel


# -------------------------------- wrapper ----------------------------------- #
def _pad_lane(a, axis=-1):
    pad = [(0, 0)] * a.ndim
    pad[axis] = (0, LANE - a.shape[axis])
    return jnp.pad(a, pad)


def bottleneck_forward(x_nchw, p):
    """Pallas implementation of Bottleneck.forward (stride=1, no downsample)."""
    N, Cin, H, W = x_nchw.shape
    Cout = p["w3"].shape[0]
    assert Cin == Cout, "identity residual requires in_channels == out_channels*expansion"
    M = N * H * W
    cdt = jnp.bfloat16 if USE_BF16_MATMUL else jnp.float32

    # NCHW -> lane-dense (M, 128) slab (layout plumbing; exact zero channel pad).
    x_flat = jnp.transpose(x_nchw, (0, 2, 3, 1)).reshape(M, Cin)
    x_p = _pad_lane(x_flat).astype(jnp.float32)

    # Conv weights -> (K, C) matmul form, zero-padded to 128x128.
    # Conv biases are intentionally dropped: training-mode BN cancels them exactly.
    w1m = _pad_lane(_pad_lane(p["w1"][:, :, 0, 0].T, axis=0), axis=1).astype(cdt)
    w2taps = jnp.stack([p["w2"][:, :, ky, kx].T for ky in range(3) for kx in range(3)])
    w2m = _pad_lane(_pad_lane(w2taps, axis=1), axis=2).astype(cdt)       # (9,128,128)
    w3m = _pad_lane(_pad_lane(p["w3"][:, :, 0, 0].T, axis=0), axis=1).astype(cdt)

    # BN affine params packed into one (6,128) array: [g1, be1, g2, be2, g3, be3].
    bn = jnp.stack([
        _pad_lane(p["g1"]), _pad_lane(p["be1"]),
        _pad_lane(p["g2"]), _pad_lane(p["be2"]),
        _pad_lane(p["g3"]), _pad_lane(p["be3"]),
    ]).astype(jnp.float32)

    kernel = _make_bottleneck_kernel(N, H, W)
    y3_p = pl.pallas_call(
        kernel,
        out_shape=jax.ShapeDtypeStruct((M, LANE), jnp.float32),
        grid=(1,),
        in_specs=[
            pl.BlockSpec((M, LANE), lambda i: (0, 0)),            # x (also residual)
            pl.BlockSpec((LANE, LANE), lambda i: (0, 0)),         # w1
            pl.BlockSpec((9, LANE, LANE), lambda i: (0, 0, 0)),   # w2 (9 taps)
            pl.BlockSpec((LANE, LANE), lambda i: (0, 0)),         # w3
            pl.BlockSpec((6, LANE), lambda i: (0, 0)),            # packed BN params
        ],
        out_specs=pl.BlockSpec((M, LANE), lambda i: (0, 0)),
        scratch_shapes=[
            pltpu.VMEM((N, H + 2, W + 2, LANE), jnp.float32),     # y1 halo buffer
            pltpu.VMEM((M, LANE), jnp.float32),                   # conv2 f32 accumulator
        ],
        compiler_params=pltpu.CompilerParams(
            dimension_semantics=("arbitrary",),
            vmem_limit_bytes=64 * 1024 * 1024,
        ),
    )(x_p, w1m, w2m, w3m, bn)

    out = y3_p[:, :Cout].reshape(N, H, W, Cout)
    return jnp.transpose(out, (0, 3, 1, 2))                      # NHWC -> NCHW


# --------------------------- pure-JAX reference ------------------------------ #
def _reference_forward(x_nchw, p):
    def bn(z, g, b):
        mean = jnp.mean(z, axis=(0, 2, 3), keepdims=True)
        var = jnp.mean(jnp.square(z - mean), axis=(0, 2, 3), keepdims=True)
        return (z - mean) * jax.lax.rsqrt(var + BN_EPS) * g[None, :, None, None] \
               + b[None, :, None, None]

    def conv(x, w, b, pad):
        y = jax.lax.conv_general_dilated(
            x, w, window_strides=(1, 1), padding=pad,
            dimension_numbers=("NCHW", "OIHW", "NCHW"))
        return y + b[None, :, None, None]

    y = jax.nn.relu(bn(conv(x_nchw, p["w1"], p["b1"], "VALID"), p["g1"], p["be1"]))
    y = jax.nn.relu(bn(conv(y, p["w2"], p["b2"], [(1, 1), (1, 1)]), p["g2"], p["be2"]))
    y = bn(conv(y, p["w3"], p["b3"], "VALID"), p["g3"], p["be3"])
    return jax.nn.relu(y + x_nchw)


# ---------------------------------- main ------------------------------------- #
if __name__ == "__main__":
    key = jax.random.PRNGKey(0)
    N, H, W = 2, 16, 16
    out_channels = 4
    expansion = 4
    in_channels = out_channels * expansion      # 16 -> identity add valid w/o downsample

    ks = jax.random.split(key, 7)
    x_nchw = jax.random.normal(ks[0], (N, in_channels, H, W), jnp.float32)

    params = {
        # conv weights in PyTorch (Cout, Cin, kh, kw) layout, deterministic init
        "w1": jax.random.normal(ks[1], (out_channels, in_channels, 1, 1), jnp.float32)
              / jnp.sqrt(in_channels),
        "b1": 0.1 * jax.random.normal(ks[2], (out_channels,), jnp.float32),
        "w2": jax.random.normal(ks[3], (out_channels, out_channels, 3, 3), jnp.float32)
              / jnp.sqrt(9.0 * out_channels),
        "b2": 0.1 * jax.random.normal(ks[4], (out_channels,), jnp.float32),
        "w3": jax.random.normal(ks[5], (out_channels * expansion, out_channels, 1, 1),
                                jnp.float32) / jnp.sqrt(out_channels),
        "b3": 0.1 * jax.random.normal(ks[6], (out_channels * expansion,), jnp.float32),
        # BatchNorm affine params: PyTorch defaults weight=1, bias=0
        "g1": jnp.ones((out_channels,), jnp.float32),
        "be1": jnp.zeros((out_channels,), jnp.float32),
        "g2": jnp.ones((out_channels,), jnp.float32),
        "be2": jnp.zeros((out_channels,), jnp.float32),
        "g3": jnp.ones((out_channels * expansion,), jnp.float32),
        "be3": jnp.zeros((out_channels * expansion,), jnp.float32),
    }

    out = jax.block_until_ready(bottleneck_forward(x_nchw, params))
    ref = jax.block_until_ready(_reference_forward(x_nchw, params))

    assert out.shape == (N, in_channels, H, W), out.shape
    # bf16 MXU inputs vs f32 reference -> relax tolerance; f32 path is much tighter.
    tol = 3e-2 if USE_BF16_MATMUL else 2e-3
    max_err = float(jnp.max(jnp.abs(out - ref)))
    assert jnp.allclose(out, ref, rtol=tol, atol=tol), f"max abs err = {max_err}"
    print("KERNEL_OK")
</pallas_src>

<mosaic_0001>
module attributes {stable_mosaic.version = 11 : i64} {
  func.func @kernel(%arg0: i32, %arg1: memref<512x128xf32, #tpu.memory_space<vmem>>, %arg2: memref<128x128xbf16, #tpu.memory_space<vmem>>, %arg3: memref<9x128x128xbf16, #tpu.memory_space<vmem>>, %arg4: memref<128x128xbf16, #tpu.memory_space<vmem>>, %arg5: memref<6x128xf32, #tpu.memory_space<vmem>>, %arg6: memref<512x128xf32, #tpu.memory_space<vmem>>, %arg7: memref<2x18x18x128xf32, #tpu.memory_space<vmem>>, %arg8: memref<512x128xf32, #tpu.memory_space<vmem>>) attributes {dimension_semantics = [#tpu.dimension_semantics<arbitrary>], iteration_bounds = array<i64: 1>, scalar_prefetch = 0 : i64, scratch_operands = 2 : i64, tpu.core_type = #tpu.core_type<tc>, window_params = [{pipeline_mode = #tpu.pipeline_mode<synchronous>, transform_indices = @transform_0, window_bounds = array<i64: 512, 128>}, {pipeline_mode = #tpu.pipeline_mode<synchronous>, transform_indices = @transform_1, window_bounds = array<i64: 128, 128>}, {pipeline_mode = #tpu.pipeline_mode<synchronous>, transform_indices = @transform_2, window_bounds = array<i64: 9, 128, 128>}, {pipeline_mode = #tpu.pipeline_mode<synchronous>, transform_indices = @transform_3, window_bounds = array<i64: 128, 128>}, {pipeline_mode = #tpu.pipeline_mode<synchronous>, transform_indices = @transform_4, window_bounds = array<i64: 6, 128>}, {pipeline_mode = #tpu.pipeline_mode<synchronous>, transform_indices = @transform_5, window_bounds = array<i64: 512, 128>}]} {
    %c0 = arith.constant 0 : index
    %c0_0 = arith.constant 0 : index
    %0 = vector.load %arg1[%c0, %c0_0] : memref<512x128xf32, #tpu.memory_space<vmem>>, vector<512x128xf32>
    %1 = arith.truncf %0 : vector<512x128xf32> to vector<512x128xbf16>
    %c0_1 = arith.constant 0 : index
    %c0_2 = arith.constant 0 : index
    %2 = vector.load %arg2[%c0_1, %c0_2] : memref<128x128xbf16, #tpu.memory_space<vmem>>, vector<128x128xbf16>
    %cst = arith.constant dense<0.000000e+00> : vector<512x128xf32>
    %3 = tpu.matmul %1, %2, %cst {dimension_numbers = #tpu.dot_dimension_numbers<[1], [0], [0], [1], [0, 0, 1, 1], [], []>} : vector<512x128xbf16>, vector<128x128xbf16>, vector<512x128xf32> -> vector<512x128xf32>
    %c0_3 = arith.constant 0 : index
    %c0_4 = arith.constant 0 : index
    %4 = vector.load %arg5[%c0_3, %c0_4] : memref<6x128xf32, #tpu.memory_space<vmem>>, vector<1x128xf32>
    %c1 = arith.constant 1 : index
    %c0_5 = arith.constant 0 : index
    %5 = vector.load %arg5[%c1, %c0_5] : memref<6x128xf32, #tpu.memory_space<vmem>>, vector<1x128xf32>
    %cst_6 = arith.constant dense<0.000000e+00> : vector<128xf32>
    %6 = vector.multi_reduction <add>, %3, %cst_6 [0] : vector<512x128xf32> to vector<128xf32>
    %7 = vector.shape_cast %6 : vector<128xf32> to vector<1x128xf32>
    %8 = arith.mulf %3, %3 : vector<512x128xf32>
    %cst_7 = arith.constant dense<0.000000e+00> : vector<128xf32>
    %9 = vector.multi_reduction <add>, %8, %cst_7 [0] : vector<512x128xf32> to vector<128xf32>
    %10 = vector.shape_cast %9 : vector<128xf32> to vector<1x128xf32>
    %cst_8 = arith.constant 0.001953125 : f32
    %11 = vector.broadcast %cst_8 : f32 to vector<1x128xf32>
    %12 = arith.mulf %7, %11 : vector<1x128xf32>
    %cst_9 = arith.constant 0.001953125 : f32
    %13 = vector.broadcast %cst_9 : f32 to vector<1x128xf32>
    %14 = arith.mulf %10, %13 : vector<1x128xf32>
    %15 = arith.mulf %12, %12 : vector<1x128xf32>
    %16 = arith.subf %14, %15 : vector<1x128xf32>
    %cst_10 = arith.constant 9.99999974E-6 : f32
    %17 = vector.broadcast %cst_10 : f32 to vector<1x128xf32>
    %18 = arith.addf %16, %17 : vector<1x128xf32>
    %19 = math.rsqrt %18 : vector<1x128xf32>
    %20 = arith.mulf %4, %19 : vector<1x128xf32>
    %21 = arith.mulf %12, %20 : vector<1x128xf32>
    %22 = arith.subf %5, %21 : vector<1x128xf32>
    %23 = vector.broadcast %20 : vector<1x128xf32> to vector<512x128xf32>
    %24 = arith.mulf %3, %23 : vector<512x128xf32>
    %25 = vector.broadcast %22 : vector<1x128xf32> to vector<512x128xf32>
    %26 = arith.addf %24, %25 : vector<512x128xf32>
    %cst_11 = arith.constant 0.000000e+00 : f32
    %27 = vector.broadcast %cst_11 : f32 to vector<512x128xf32>
    %28 = arith.maximumf %26, %27 : vector<512x128xf32>
    %cst_12 = arith.constant 0.000000e+00 : f32
    %29 = vector.broadcast %cst_12 : f32 to vector<2x18x18x128xf32>
    %c0_13 = arith.constant 0 : index
    %c0_14 = arith.constant 0 : index
    %c0_15 = arith.constant 0 : index
    %c0_16 = arith.constant 0 : index
    %30 = vector.load %arg7[%c0_13, %c0_14, %c0_15, %c0_16] : memref<2x18x18x128xf32, #tpu.memory_space<vmem>>, vector<2x18x18x128xf32>
    tpu.vector_store %arg7[%c0_13, %c0_14, %c0_15, %c0_16], %29 {strides = array<i32>} : memref<2x18x18x128xf32, #tpu.memory_space<vmem>>, vector<2x18x18x128xf32>,
    %31 = vector.shape_cast %28 : vector<512x128xf32> to vector<2x16x16x128xf32>
    %c0_17 = arith.constant 0 : index
    %c1_18 = arith.constant 1 : index
    %c1_19 = arith.constant 1 : index
    %c0_20 = arith.constant 0 : index
    %32 = vector.load %arg7[%c0_17, %c1_18, %c1_19, %c0_20] : memref<2x18x18x128xf32, #tpu.memory_space<vmem>>, vector<2x16x16x128xf32>
    tpu.vector_store %arg7[%c0_17, %c1_18, %c1_19, %c0_20], %31 {strides = array<i32>} : memref<2x18x18x128xf32, #tpu.memory_space<vmem>>, vector<2x16x16x128xf32>,
    %cst_21 = arith.constant 0.000000e+00 : f32
    %33 = vector.broadcast %cst_21 : f32 to vector<512x128xf32>
    %c0_22 = arith.constant 0 : index
    %c0_23 = arith.constant 0 : index
    %34 = vector.load %arg8[%c0_22, %c0_23] : memref<512x128xf32, #tpu.memory_space<vmem>>, vector<512x128xf32>
    tpu.vector_store %arg8[%c0_22, %c0_23], %33 {strides = array<i32>} : memref<512x128xf32, #tpu.memory_space<vmem>>, vector<512x128xf32>,
    %c0_24 = arith.constant 0 : index
    %c0_25 = arith.constant 0 : index
    %c0_26 = arith.constant 0 : index
    %c0_27 = arith.constant 0 : index
    %35 = vector.load %arg7[%c0_24, %c0_25, %c0_26, %c0_27] : memref<2x18x18x128xf32, #tpu.memory_space<vmem>>, vector<2x16x16x128xf32>
    %36 = vector.shape_cast %35 : vector<2x16x16x128xf32> to vector<512x128xf32>
    %c0_28 = arith.constant 0 : index
    %c0_29 = arith.constant 0 : index
    %37 = vector.load %arg8[%c0_28, %c0_29] : memref<512x128xf32, #tpu.memory_space<vmem>>, vector<512x128xf32>
    %38 = arith.truncf %36 : vector<512x128xf32> to vector<512x128xbf16>
    %c0_30 = arith.constant 0 : index
    %c0_31 = arith.constant 0 : index
    %c0_32 = arith.constant 0 : index
    %39 = vector.load %arg3[%c0_30, %c0_31, %c0_32] : memref<9x128x128xbf16, #tpu.memory_space<vmem>>, vector<1x128x128xbf16>
    %40 = vector.shape_cast %39 : vector<1x128x128xbf16> to vector<128x128xbf16>
    %cst_33 = arith.constant dense<0.000000e+00> : vector<512x128xf32>
    %41 = tpu.matmul %38, %40, %cst_33 {dimension_numbers = #tpu.dot_dimension_numbers<[1], [0], [0], [1], [0, 0, 1, 1], [], []>} : vector<512x128xbf16>, vector<128x128xbf16>, vector<512x128xf32> -> vector<512x128xf32>
    %42 = arith.addf %37, %41 : vector<512x128xf32>
    %c0_34 = arith.constant 0 : index
    %c0_35 = arith.constant 0 : index
    %43 = vector.load %arg8[%c0_34, %c0_35] : memref<512x128xf32, #tpu.memory_space<vmem>>, vector<512x128xf32>
    tpu.vector_store %arg8[%c0_34, %c0_35], %42 {strides = array<i32>} : memref<512x128xf32, #tpu.memory_space<vmem>>, vector<512x128xf32>,
    %c0_36 = arith.constant 0 : index
    %c0_37 = arith.constant 0 : index
    %c1_38 = arith.constant 1 : index
    %c0_39 = arith.constant 0 : index
    %44 = vector.load %arg7[%c0_36, %c0_37, %c1_38, %c0_39] : memref<2x18x18x128xf32, #tpu.memory_space<vmem>>, vector<2x16x16x128xf32>
    %45 = vector.shape_cast %44 : vector<2x16x16x128xf32> to vector<512x128xf32>
    %c0_40 = arith.constant 0 : index
    %c0_41 = arith.constant 0 : index
    %46 = vector.load %arg8[%c0_40, %c0_41] : memref<512x128xf32, #tpu.memory_space<vmem>>, vector<512x128xf32>
    %47 = arith.truncf %45 : vector<512x128xf32> to vector<512x128xbf16>
    %c1_42 = arith.constant 1 : index
    %c0_43 = arith.constant 0 : index
    %c0_44 = arith.constant 0 : index
    %48 = vector.load %arg3[%c1_42, %c0_43, %c0_44] : memref<9x128x128xbf16, #tpu.memory_space<vmem>>, vector<1x128x128xbf16>
    %49 = vector.shape_cast %48 : vector<1x128x128xbf16> to vector<128x128xbf16>
    %cst_45 = arith.constant dense<0.000000e+00> : vector<512x128xf32>
    %50 = tpu.matmul %47, %49, %cst_45 {dimension_numbers = #tpu.dot_dimension_numbers<[1], [0], [0], [1], [0, 0, 1, 1], [], []>} : vector<512x128xbf16>, vector<128x128xbf16>, vector<512x128xf32> -> vector<512x128xf32>
    %51 = arith.addf %46, %50 : vector<512x128xf32>
    %c0_46 = arith.constant 0 : index
    %c0_47 = arith.constant 0 : index
    %52 = vector.load %arg8[%c0_46, %c0_47] : memref<512x128xf32, #tpu.memory_space<vmem>>, vector<512x128xf32>
    tpu.vector_store %arg8[%c0_46, %c0_47], %51 {strides = array<i32>} : memref<512x128xf32, #tpu.memory_space<vmem>>, vector<512x128xf32>,
    %c0_48 = arith.constant 0 : index
    %c0_49 = arith.constant 0 : index
    %c2 = arith.constant 2 : index
    %c0_50 = arith.constant 0 : index
    %53 = vector.load %arg7[%c0_48, %c0_49, %c2, %c0_50] : memref<2x18x18x128xf32, #tpu.memory_space<vmem>>, vector<2x16x16x128xf32>
    %54 = vector.shape_cast %53 : vector<2x16x16x128xf32> to vector<512x128xf32>
    %c0_51 = arith.constant 0 : index
    %c0_52 = arith.constant 0 : index
    %55 = vector.load %arg8[%c0_51, %c0_52] : memref<512x128xf32, #tpu.memory_space<vmem>>, vector<512x128xf32>
    %56 = arith.truncf %54 : vector<512x128xf32> to vector<512x128xbf16>
    %c2_53 = arith.constant 2 : index
    %c0_54 = arith.constant 0 : index
    %c0_55 = arith.constant 0 : index
    %57 = vector.load %arg3[%c2_53, %c0_54, %c0_55] : memref<9x128x128xbf16, #tpu.memory_space<vmem>>, vector<1x128x128xbf16>
    %58 = vector.shape_cast %57 : vector<1x128x128xbf16> to vector<128x128xbf16>
    %cst_56 = arith.constant dense<0.000000e+00> : vector<512x128xf32>
    %59 = tpu.matmul %56, %58, %cst_56 {dimension_numbers = #tpu.dot_dimension_numbers<[1], [0], [0], [1], [0, 0, 1, 1], [], []>} : vector<512x128xbf16>, vector<128x128xbf16>, vector<512x128xf32> -> vector<512x128xf32>
    %60 = arith.addf %55, %59 : vector<512x128xf32>
    %c0_57 = arith.constant 0 : index
    %c0_58 = arith.constant 0 : index
    %61 = vector.load %arg8[%c0_57, %c0_58] : memref<512x128xf32, #tpu.memory_space<vmem>>, vector<512x128xf32>
    tpu.vector_store %arg8[%c0_57, %c0_58], %60 {strides = array<i32>} : memref<512x128xf32, #tpu.memory_space<vmem>>, vector<512x128xf32>,
    %c0_59 = arith.constant 0 : index
    %c1_60 = arith.constant 1 : index
    %c0_61 = arith.constant 0 : index
    %c0_62 = arith.constant 0 : index
    %62 = vector.load %arg7[%c0_59, %c1_60, %c0_61, %c0_62] : memref<2x18x18x128xf32, #tpu.memory_space<vmem>>, vector<2x16x16x128xf32>
    %63 = vector.shape_cast %62 : vector<2x16x16x128xf32> to vector<512x128xf32>
    %c0_63 = arith.constant 0 : index
    %c0_64 = arith.constant 0 : index
    %64 = vector.load %arg8[%c0_63, %c0_64] : memref<512x128xf32, #tpu.memory_space<vmem>>, vector<512x128xf32>
    %65 = arith.truncf %63 : vector<512x128xf32> to vector<512x128xbf16>
    %c3 = arith.constant 3 : index
    %c0_65 = arith.constant 0 : index
    %c0_66 = arith.constant 0 : index
    %66 = vector.load %arg3[%c3, %c0_65, %c0_66] : memref<9x128x128xbf16, #tpu.memory_space<vmem>>, vector<1x128x128xbf16>
    %67 = vector.shape_cast %66 : vector<1x128x128xbf16> to vector<128x128xbf16>
    %cst_67 = arith.constant dense<0.000000e+00> : vector<512x128xf32>
    %68 = tpu.matmul %65, %67, %cst_67 {dimension_numbers = #tpu.dot_dimension_numbers<[1], [0], [0], [1], [0, 0, 1, 1], [], []>} : vector<512x128xbf16>, vector<128x128xbf16>, vector<512x128xf32> -> vector<512x128xf32>
    %69 = arith.addf %64, %68 : vector<512x128xf32>
    %c0_68 = arith.constant 0 : index
    %c0_69 = arith.constant 0 : index
    %70 = vector.load %arg8[%c0_68, %c0_69] : memref<512x128xf32, #tpu.memory_space<vmem>>, vector<512x128xf32>
    tpu.vector_store %arg8[%c0_68, %c0_69], %69 {strides = array<i32>} : memref<512x128xf32, #tpu.memory_space<vmem>>, vector<512x128xf32>,
    %c0_70 = arith.constant 0 : index
    %c1_71 = arith.constant 1 : index
    %c1_72 = arith.constant 1 : index
    %c0_73 = arith.constant 0 : index
    %71 = vector.load %arg7[%c0_70, %c1_71, %c1_72, %c0_73] : memref<2x18x18x128xf32, #tpu.memory_space<vmem>>, vector<2x16x16x128xf32>
    %72 = vector.shape_cast %71 : vector<2x16x16x128xf32> to vector<512x128xf32>
    %c0_74 = arith.constant 0 : index
    %c0_75 = arith.constant 0 : index
    %73 = vector.load %arg8[%c0_74, %c0_75] : memref<512x128xf32, #tpu.memory_space<vmem>>, vector<512x128xf32>
    %74 = arith.truncf %72 : vector<512x128xf32> to vector<512x128xbf16>
    %c4 = arith.constant 4 : index
    %c0_76 = arith.constant 0 : index
    %c0_77 = arith.constant 0 : index
    %75 = vector.load %arg3[%c4, %c0_76, %c0_77] : memref<9x128x128xbf16, #tpu.memory_space<vmem>>, vector<1x128x128xbf16>
    %76 = vector.shape_cast %75 : vector<1x128x128xbf16> to vector<128x128xbf16>
    %cst_78 = arith.constant dense<0.000000e+00> : vector<512x128xf32>
    %77 = tpu.matmul %74, %76, %cst_78 {dimension_numbers = #tpu.dot_dimension_numbers<[1], [0], [0], [1], [0, 0, 1, 1], [], []>} : vector<512x128xbf16>, vector<128x128xbf16>, vector<512x128xf32> -> vector<512x128xf32>
    %78 = arith.addf %73, %77 : vector<512x128xf32>
    %c0_79 = arith.constant 0 : index
    %c0_80 = arith.constant 0 : index
    %79 = vector.load %arg8[%c0_79, %c0_80] : memref<512x128xf32, #tpu.memory_space<vmem>>, vector<512x128xf32>
    tpu.vector_store %arg8[%c0_79, %c0_80], %78 {strides = array<i32>} : memref<512x128xf32, #tpu.memory_space<vmem>>, vector<512x128xf32>,
    %c0_81 = arith.constant 0 : index
    %c1_82 = arith.constant 1 : index
    %c2_83 = arith.constant 2 : index
    %c0_84 = arith.constant 0 : index
    %80 = vector.load %arg7[%c0_81, %c1_82, %c2_83, %c0_84] : memref<2x18x18x128xf32, #tpu.memory_space<vmem>>, vector<2x16x16x128xf32>
    %81 = vector.shape_cast %80 : vector<2x16x16x128xf32> to vector<512x128xf32>
    %c0_85 = arith.constant 0 : index
    %c0_86 = arith.constant 0 : index
    %82 = vector.load %arg8[%c0_85, %c0_86] : memref<512x128xf32, #tpu.memory_space<vmem>>, vector<512x128xf32>
    %83 = arith.truncf %81 : vector<512x128xf32> to vector<512x128xbf16>
    %c5 = arith.constant 5 : index
    %c0_87 = arith.constant 0 : index
    %c0_88 = arith.constant 0 : index
    %84 = vector.load %arg3[%c5, %c0_87, %c0_88] : memref<9x128x128xbf16, #tpu.memory_space<vmem>>, vector<1x128x128xbf16>
    %85 = vector.shape_cast %84 : vector<1x128x128xbf16> to vector<128x128xbf16>
    %cst_89 = arith.constant dense<0.000000e+00> : vector<512x128xf32>
    %86 = tpu.matmul %83, %85, %cst_89 {dimension_numbers = #tpu.dot_dimension_numbers<[1], [0], [0], [1], [0, 0, 1, 1], [], []>} : vector<512x128xbf16>, vector<128x128xbf16>, vector<512x128xf32> -> vector<512x128xf32>
    %87 = arith.addf %82, %86 : vector<512x128xf32>
    %c0_90 = arith.constant 0 : index
    %c0_91 = arith.constant 0 : index
    %88 = vector.load %arg8[%c0_90, %c0_91] : memref<512x128xf32, #tpu.memory_space<vmem>>, vector<512x128xf32>
    tpu.vector_store %arg8[%c0_90, %c0_91], %87 {strides = array<i32>} : memref<512x128xf32, #tpu.memory_space<vmem>>, vector<512x128xf32>,
    %c0_92 = arith.constant 0 : index
    %c2_93 = arith.constant 2 : index
    %c0_94 = arith.constant 0 : index
    %c0_95 = arith.constant 0 : index
    %89 = vector.load %arg7[%c0_92, %c2_93, %c0_94, %c0_95] : memref<2x18x18x128xf32, #tpu.memory_space<vmem>>, vector<2x16x16x128xf32>
    %90 = vector.shape_cast %89 : vector<2x16x16x128xf32> to vector<512x128xf32>
    %c0_96 = arith.constant 0 : index
    %c0_97 = arith.constant 0 : index
    %91 = vector.load %arg8[%c0_96, %c0_97] : memref<512x128xf32, #tpu.memory_space<vmem>>, vector<512x128xf32>
    %92 = arith.truncf %90 : vector<512x128xf32> to vector<512x128xbf16>
    %c6 = arith.constant 6 : index
    %c0_98 = arith.constant 0 : index
    %c0_99 = arith.constant 0 : index
    %93 = vector.load %arg3[%c6, %c0_98, %c0_99] : memref<9x128x128xbf16, #tpu.memory_space<vmem>>, vector<1x128x128xbf16>
    %94 = vector.shape_cast %93 : vector<1x128x128xbf16> to vector<128x128xbf16>
    %cst_100 = arith.constant dense<0.000000e+00> : vector<512x128xf32>
    %95 = tpu.matmul %92, %94, %cst_100 {dimension_numbers = #tpu.dot_dimension_numbers<[1], [0], [0], [1], [0, 0, 1, 1], [], []>} : vector<512x128xbf16>, vector<128x128xbf16>, vector<512x128xf32> -> vector<512x128xf32>
    %96 = arith.addf %91, %95 : vector<512x128xf32>
    %c0_101 = arith.constant 0 : index
    %c0_102 = arith.constant 0 : index
    %97 = vector.load %arg8[%c0_101, %c0_102] : memref<512x128xf32, #tpu.memory_space<vmem>>, vector<512x128xf32>
    tpu.vector_store %arg8[%c0_101, %c0_102], %96 {strides = array<i32>} : memref<512x128xf32, #tpu.memory_space<vmem>>, vector<512x128xf32>,
    %c0_103 = arith.constant 0 : index
    %c2_104 = arith.constant 2 : index
    %c1_105 = arith.constant 1 : index
    %c0_106 = arith.constant 0 : index
    %98 = vector.load %arg7[%c0_103, %c2_104, %c1_105, %c0_106] : memref<2x18x18x128xf32, #tpu.memory_space<vmem>>, vector<2x16x16x128xf32>
    %99 = vector.shape_cast %98 : vector<2x16x16x128xf32> to vector<512x128xf32>
    %c0_107 = arith.constant 0 : index
    %c0_108 = arith.constant 0 : index
    %100 = vector.load %arg8[%c0_107, %c0_108] : memref<512x128xf32, #tpu.memory_space<vmem>>, vector<512x128xf32>
    %101 = arith.truncf %99 : vector<512x128xf32> to vector<512x128xbf16>
    %c7 = arith.constant 7 : index
    %c0_109 = arith.constant 0 : index
    %c0_110 = arith.constant 0 : index
    %102 = vector.load %arg3[%c7, %c0_109, %c0_110] : memref<9x128x128xbf16, #tpu.memory_space<vmem>>, vector<1x128x128xbf16>
    %103 = vector.shape_cast %102 : vector<1x128x128xbf16> to vector<128x128xbf16>
    %cst_111 = arith.constant dense<0.000000e+00> : vector<512x128xf32>
    %104 = tpu.matmul %101, %103, %cst_111 {dimension_numbers = #tpu.dot_dimension_numbers<[1], [0], [0], [1], [0, 0, 1, 1], [], []>} : vector<512x128xbf16>, vector<128x128xbf16>, vector<512x128xf32> -> vector<512x128xf32>
    %105 = arith.addf %100, %104 : vector<512x128xf32>
    %c0_112 = arith.constant 0 : index
    %c0_113 = arith.constant 0 : index
    %106 = vector.load %arg8[%c0_112, %c0_113] : memref<512x128xf32, #tpu.memory_space<vmem>>, vector<512x128xf32>
    tpu.vector_store %arg8[%c0_112, %c0_113], %105 {strides = array<i32>} : memref<512x128xf32, #tpu.memory_space<vmem>>, vector<512x128xf32>,
    %c0_114 = arith.constant 0 : index
    %c2_115 = arith.constant 2 : index
    %c2_116 = arith.constant 2 : index
    %c0_117 = arith.constant 0 : index
    %107 = vector.load %arg7[%c0_114, %c2_115, %c2_116, %c0_117] : memref<2x18x18x128xf32, #tpu.memory_space<vmem>>, vector<2x16x16x128xf32>
    %108 = vector.shape_cast %107 : vector<2x16x16x128xf32> to vector<512x128xf32>
    %c0_118 = arith.constant 0 : index
    %c0_119 = arith.constant 0 : index
    %109 = vector.load %arg8[%c0_118, %c0_119] : memref<512x128xf32, #tpu.memory_space<vmem>>, vector<512x128xf32>
    %110 = arith.truncf %108 : vector<512x128xf32> to vector<512x128xbf16>
    %c8 = arith.constant 8 : index
    %c0_120 = arith.constant 0 : index
    %c0_121 = arith.constant 0 : index
    %111 = vector.load %arg3[%c8, %c0_120, %c0_121] : memref<9x128x128xbf16, #tpu.memory_space<vmem>>, vector<1x128x128xbf16>
    %112 = vector.shape_cast %111 : vector<1x128x128xbf16> to vector<128x128xbf16>
    %cst_122 = arith.constant dense<0.000000e+00> : vector<512x128xf32>
    %113 = tpu.matmul %110, %112, %cst_122 {dimension_numbers = #tpu.dot_dimension_numbers<[1], [0], [0], [1], [0, 0, 1, 1], [], []>} : vector<512x128xbf16>, vector<128x128xbf16>, vector<512x128xf32> -> vector<512x128xf32>
    %114 = arith.addf %109, %113 : vector<512x128xf32>
    %c0_123 = arith.constant 0 : index
    %c0_124 = arith.constant 0 : index
    %115 = vector.load %arg8[%c0_123, %c0_124] : memref<512x128xf32, #tpu.memory_space<vmem>>, vector<512x128xf32>
    tpu.vector_store %arg8[%c0_123, %c0_124], %114 {strides = array<i32>} : memref<512x128xf32, #tpu.memory_space<vmem>>, vector<512x128xf32>,
    %c0_125 = arith.constant 0 : index
    %c0_126 = arith.constant 0 : index
    %116 = vector.load %arg8[%c0_125, %c0_126] : memref<512x128xf32, #tpu.memory_space<vmem>>, vector<512x128xf32>
    %c2_127 = arith.constant 2 : index
    %c0_128 = arith.constant 0 : index
    %117 = vector.load %arg5[%c2_127, %c0_128] : memref<6x128xf32, #tpu.memory_space<vmem>>, vector<1x128xf32>
    %c3_129 = arith.constant 3 : index
    %c0_130 = arith.constant 0 : index
    %118 = vector.load %arg5[%c3_129, %c0_130] : memref<6x128xf32, #tpu.memory_space<vmem>>, vector<1x128xf32>
    %cst_131 = arith.constant dense<0.000000e+00> : vector<128xf32>
    %119 = vector.multi_reduction <add>, %116, %cst_131 [0] : vector<512x128xf32> to vector<128xf32>
    %120 = vector.shape_cast %119 : vector<128xf32> to vector<1x128xf32>
    %121 = arith.mulf %116, %116 : vector<512x128xf32>
    %cst_132 = arith.constant dense<0.000000e+00> : vector<128xf32>
    %122 = vector.multi_reduction <add>, %121, %cst_132 [0] : vector<512x128xf32> to vector<128xf32>
    %123 = vector.shape_cast %122 : vector<128xf32> to vector<1x128xf32>
    %cst_133 = arith.constant 0.001953125 : f32
    %124 = vector.broadcast %cst_133 : f32 to vector<1x128xf32>
    %125 = arith.mulf %120, %124 : vector<1x128xf32>
    %cst_134 = arith.constant 0.001953125 : f32
    %126 = vector.broadcast %cst_134 : f32 to vector<1x128xf32>
    %127 = arith.mulf %123, %126 : vector<1x128xf32>
    %128 = arith.mulf %125, %125 : vector<1x128xf32>
    %129 = arith.subf %127, %128 : vector<1x128xf32>
    %cst_135 = arith.constant 9.99999974E-6 : f32
    %130 = vector.broadcast %cst_135 : f32 to vector<1x128xf32>
    %131 = arith.addf %129, %130 : vector<1x128xf32>
    %132 = math.rsqrt %131 : vector<1x128xf32>
    %133 = arith.mulf %117, %132 : vector<1x128xf32>
    %134 = arith.mulf %125, %133 : vector<1x128xf32>
    %135 = arith.subf %118, %134 : vector<1x128xf32>
    %136 = vector.broadcast %133 : vector<1x128xf32> to vector<512x128xf32>
    %137 = arith.mulf %116, %136 : vector<512x128xf32>
    %138 = vector.broadcast %135 : vector<1x128xf32> to vector<512x128xf32>
    %139 = arith.addf %137, %138 : vector<512x128xf32>
    %cst_136 = arith.constant 0.000000e+00 : f32
    %140 = vector.broadcast %cst_136 : f32 to vector<512x128xf32>
    %141 = arith.maximumf %139, %140 : vector<512x128xf32>
    %142 = arith.truncf %141 : vector<512x128xf32> to vector<512x128xbf16>
    %c0_137 = arith.constant 0 : index
    %c0_138 = arith.constant 0 : index
    %143 = vector.load %arg4[%c0_137, %c0_138] : memref<128x128xbf16, #tpu.memory_space<vmem>>, vector<128x128xbf16>
    %cst_139 = arith.constant dense<0.000000e+00> : vector<512x128xf32>
    %144 = tpu.matmul %142, %143, %cst_139 {dimension_numbers = #tpu.dot_dimension_numbers<[1], [0], [0], [1], [0, 0, 1, 1], [], []>} : vector<512x128xbf16>, vector<128x128xbf16>, vector<512x128xf32> -> vector<512x128xf32>
    %c4_140 = arith.constant 4 : index
    %c0_141 = arith.constant 0 : index
    %145 = vector.load %arg5[%c4_140, %c0_141] : memref<6x128xf32, #tpu.memory_space<vmem>>, vector<1x128xf32>
    %c5_142 = arith.constant 5 : index
    %c0_143 = arith.constant 0 : index
    %146 = vector.load %arg5[%c5_142, %c0_143] : memref<6x128xf32, #tpu.memory_space<vmem>>, vector<1x128xf32>
    %cst_144 = arith.constant dense<0.000000e+00> : vector<128xf32>
    %147 = vector.multi_reduction <add>, %144, %cst_144 [0] : vector<512x128xf32> to vector<128xf32>
    %148 = vector.shape_cast %147 : vector<128xf32> to vector<1x128xf32>
    %149 = arith.mulf %144, %144 : vector<512x128xf32>
    %cst_145 = arith.constant dense<0.000000e+00> : vector<128xf32>
    %150 = vector.multi_reduction <add>, %149, %cst_145 [0] : vector<512x128xf32> to vector<128xf32>
    %151 = vector.shape_cast %150 : vector<128xf32> to vector<1x128xf32>
    %cst_146 = arith.constant 0.001953125 : f32
    %152 = vector.broadcast %cst_146 : f32 to vector<1x128xf32>
    %153 = arith.mulf %148, %152 : vector<1x128xf32>
    %cst_147 = arith.constant 0.001953125 : f32
    %154 = vector.broadcast %cst_147 : f32 to vector<1x128xf32>
    %155 = arith.mulf %151, %154 : vector<1x128xf32>
    %156 = arith.mulf %153, %153 : vector<1x128xf32>
    %157 = arith.subf %155, %156 : vector<1x128xf32>
    %cst_148 = arith.constant 9.99999974E-6 : f32
    %158 = vector.broadcast %cst_148 : f32 to vector<1x128xf32>
    %159 = arith.addf %157, %158 : vector<1x128xf32>
    %160 = math.rsqrt %159 : vector<1x128xf32>
    %161 = arith.mulf %145, %160 : vector<1x128xf32>
    %162 = arith.mulf %153, %161 : vector<1x128xf32>
    %163 = arith.subf %146, %162 : vector<1x128xf32>
    %164 = vector.broadcast %161 : vector<1x128xf32> to vector<512x128xf32>
    %165 = arith.mulf %144, %164 : vector<512x128xf32>
    %166 = vector.broadcast %163 : vector<1x128xf32> to vector<512x128xf32>
    %167 = arith.addf %165, %166 : vector<512x128xf32>
    %c0_149 = arith.constant 0 : index
    %c0_150 = arith.constant 0 : index
    %168 = vector.load %arg1[%c0_149, %c0_150] : memref<512x128xf32, #tpu.memory_space<vmem>>, vector<512x128xf32>
    %169 = arith.addf %167, %168 : vector<512x128xf32>
    %cst_151 = arith.constant 0.000000e+00 : f32
    %170 = vector.broadcast %cst_151 : f32 to vector<512x128xf32>
    %171 = arith.maximumf %169, %170 : vector<512x128xf32>
    %c0_152 = arith.constant 0 : index
    %c0_153 = arith.constant 0 : index
    %172 = vector.load %arg6[%c0_152, %c0_153] : memref<512x128xf32, #tpu.memory_space<vmem>>, vector<512x128xf32>
    tpu.vector_store %arg6[%c0_152, %c0_153], %171 {strides = array<i32>} : memref<512x128xf32, #tpu.memory_space<vmem>>, vector<512x128xf32>,
    return
  }
  func.func @transform_0(%arg0: i32) -> (i32, i32) {
    %c0_i32 = arith.constant 0 : i32
    %c0_i32_0 = arith.constant 0 : i32
    %c0_i32_1 = arith.constant 0 : i32
    return %c0_i32, %c0_i32_0 : i32, i32
  }
  func.func @transform_1(%arg0: i32) -> (i32, i32) {
    %c0_i32 = arith.constant 0 : i32
    %c0_i32_0 = arith.constant 0 : i32
    %c0_i32_1 = arith.constant 0 : i32
    return %c0_i32, %c0_i32_0 : i32, i32
  }
  func.func @transform_2(%arg0: i32) -> (i32, i32, i32) {
    %c0_i32 = arith.constant 0 : i32
    %c0_i32_0 = arith.constant 0 : i32
    %c0_i32_1 = arith.constant 0 : i32
    %c0_i32_2 = arith.constant 0 : i32
    return %c0_i32, %c0_i32_0, %c0_i32_1 : i32, i32, i32
  }
  func.func @transform_3(%arg0: i32) -> (i32, i32) {
    %c0_i32 = arith.constant 0 : i32
    %c0_i32_0 = arith.constant 0 : i32
    %c0_i32_1 = arith.constant 0 : i32
    return %c0_i32, %c0_i32_0 : i32, i32
  }
  func.func @transform_4(%arg0: i32) -> (i32, i32) {
    %c0_i32 = arith.constant 0 : i32
    %c0_i32_0 = arith.constant 0 : i32
    %c0_i32_1 = arith.constant 0 : i32
    return %c0_i32, %c0_i32_0 : i32, i32
  }
  func.func @transform_5(%arg0: i32) -> (i32, i32) {
    %c0_i32 = arith.constant 0 : i32
    %c0_i32_0 = arith.constant 0 : i32
    %c0_i32_1 = arith.constant 0 : i32
    return %c0_i32, %c0_i32_0 : i32, i32
  }
}

</mosaic_0001>

<llo_original>
// kernel: tpu_custom_call.1
$region0: #{tpu_custom_call.1}
  #allocation0 [shape = 'u32[]', space=smem, size = 0x4, offset = 0x4, fixed_abs, tag = 'smem constant byte address 0x4 - core index']
  #allocation1 [shape = 'u32[144,128]{1,0:T(1,128)}', space=vmem, size = 0x12000, scoped, tag = 'internal scratch']
  #allocation2 [shape = 'f32[2,18,18,128]{3,2,1,0:T(8,128)}', space=vmem, size = 0x6c000, scoped, tag = 'scratch operand']
  #allocation3 [shape = 'f32[512,128]{1,0:T(8,128)}', space=vmem, size = 0x40000, scoped, tag = 'scratch operand']
  %s0 = inlined_call_operand.hbm [shape: f32[512,128], index: 0, kind: input, shape index: {}]
  %s1 = inlined_call_operand.hbm [shape: bf16[128,128], index: 1, kind: input, shape index: {}]
  %s2 = inlined_call_operand.hbm [shape: bf16[9,128,128], index: 2, kind: input, shape index: {}]
  %s3 = inlined_call_operand.hbm [shape: bf16[128,128], index: 3, kind: input, shape index: {}]
  %s4 = inlined_call_operand.hbm [shape: f32[6,128], index: 4, kind: input, shape index: {}]
  %s5 = inlined_call_operand.hbm [shape: f32[512,128], index: 5, kind: output, shape index: {}]
  %s6 = sld [smem:[#allocation0]]
  $region50: #{tpu_custom_call.1} parent=0
    _
  %s8 = ssub.s32 1, %s6
  %s9 = scalar_select 0, %s8, %s6
  $region1: #{tpu_custom_call.1} parent=0
    #allocation4 [shape = 'u8[262144]{0}', space=vmem, size = 0x40000, scoped, tag = 'input window, operand 0, single buffered']
    #allocation5 [shape = 's32[1]{0}', space=sflag, size = 0x4, scoped, tag = 'scoped memory for tpu_custom_call.1']
    #allocation6 [shape = 's32[1]{0}', space=sflag, size = 0x4, scoped, tag = 'scoped memory for tpu_custom_call.1']
    #allocation7 [shape = 'u8[32768]{0}', space=vmem, size = 0x8000, scoped, tag = 'input window, operand 1, single buffered']
    #allocation8 [shape = 's32[1]{0}', space=sflag, size = 0x4, scoped, tag = 'scoped memory for tpu_custom_call.1']
    #allocation9 [shape = 'u8[294912]{0}', space=vmem, size = 0x48000, scoped, tag = 'input window, operand 2, single buffered']
    #allocation10 [shape = 'u8[32768]{0}', space=vmem, size = 0x8000, scoped, tag = 'input window, operand 3, single buffered']
    #allocation11 [shape = 's32[1]{0}', space=sflag, size = 0x4, scoped, tag = 'scoped memory for tpu_custom_call.1']
    #allocation12 [shape = 'u8[4096]{0}', space=vmem, size = 0x1000, scoped, tag = 'input window, operand 4, single buffered']
    #allocation13 [shape = 'u8[262144]{0}', space=vmem, size = 0x40000, scoped, tag = 'output window, operand 0, single buffered']
    %10 = vsyncpa [#allocation5], 0
    %11 = vsyncpa [#allocation8], 0
    %12 = vsyncpa [#allocation11], 0
    %13 = vsyncpa [#allocation6], 0
    // Predicated region
    $region2: #{tpu_custom_call.1} parent=1 // pred_check
      _
    $region3: #{tpu_custom_call.1} parent=1 // pred_check_branch
      %15 = sbr.rel (0) target = $region5
    $region4: #{tpu_custom_call.1} parent=1 // pred_region
      %s17 = ssub.s32 8192, 8192
      %18 = vsyncadd [#allocation5], %s17
      %s19 = sshll.u32 [#allocation4], 4
      %s20 = int_to_ptr.vmem [resolvable:$true] %s19
      %25 = dma.hbm_to_vmem [thread:$0]  %s0, 8192, %s20, [#allocation5], 128, 128, 8
    $region5: #{tpu_custom_call.1} parent=1 // pred_fallthru
      _
    // Predicated region
    $region6: #{tpu_custom_call.1} parent=1 // pred_check
      _
    $region7: #{tpu_custom_call.1} parent=1 // pred_check_branch
      %27 = sbr.rel (0) target = $region9
    $region8: #{tpu_custom_call.1} parent=1 // pred_region
      %s29 = ssub.s32 1024, 1024
      %30 = vsyncadd [#allocation8], %s29
      %s31 = sshll.u32 [#allocation7], 4
      %s32 = int_to_ptr.vmem [resolvable:$true] %s31
      %37 = dma.hbm_to_vmem [thread:$0]  %s1, 1024, %s32, [#allocation8], 64, 64, 4
    $region9: #{tpu_custom_call.1} parent=1 // pred_fallthru
      _
    // Predicated region
    $region10: #{tpu_custom_call.1} parent=1 // pred_check
      _
    $region11: #{tpu_custom_call.1} parent=1 // pred_check_branch
      %39 = sbr.rel (0) target = $region13
    $region12: #{tpu_custom_call.1} parent=1 // pred_region
      %s41 = ssub.s32 9216, 9216
      %42 = vsyncadd [#allocation8], %s41
      %s43 = sshll.u32 [#allocation9], 4
      %s44 = int_to_ptr.vmem [resolvable:$true] %s43
      %49 = dma.hbm_to_vmem [thread:$0]  %s2, 9216, %s44, [#allocation8], 64, 64, 4
    $region13: #{tpu_custom_call.1} parent=1 // pred_fallthru
      _
    // Predicated region
    $region14: #{tpu_custom_call.1} parent=1 // pred_check
      _
    $region15: #{tpu_custom_call.1} parent=1 // pred_check_branch
      %51 = sbr.rel (0) target = $region17
    $region16: #{tpu_custom_call.1} parent=1 // pred_region
      %s53 = ssub.s32 1024, 1024
      %54 = vsyncadd [#allocation11], %s53
      %s55 = sshll.u32 [#allocation10], 4
      %s56 = int_to_ptr.vmem [resolvable:$true] %s55
      %61 = dma.hbm_to_vmem [thread:$0]  %s3, 1024, %s56, [#allocation11], 64, 64, 4
    $region17: #{tpu_custom_call.1} parent=1 // pred_fallthru
      _
    // Predicated region
    $region18: #{tpu_custom_call.1} parent=1 // pred_check
      _
    $region19: #{tpu_custom_call.1} parent=1 // pred_check_branch
      %63 = sbr.rel (0) target = $region21
    $region20: #{tpu_custom_call.1} parent=1 // pred_region
      %s65 = ssub.s32 128, 128
      %66 = vsyncadd [#allocation11], %s65
      %s68 = sshll.u32 [#allocation12], 4
      %s69 = int_to_ptr.vmem [resolvable:$true] %s68
      %71 = dma.hbm_to_vmem [thread:$0]  %s4, 128, %s69, [#allocation11]
    $region21: #{tpu_custom_call.1} parent=1 // pred_fallthru
      _
    // Predicated region
    $region22: #{tpu_custom_call.1} parent=1 // pred_check
      _
    $region23: #{tpu_custom_call.1} parent=1 // pred_check_branch
      %73 = sbr.rel (0) target = $region25
    $region24: #{tpu_custom_call.1} parent=1 // pred_region
      %74 = dma.done [#allocation5], 8192
    $region25: #{tpu_custom_call.1} parent=1 // pred_fallthru
      _
    // Predicated region
    $region26: #{tpu_custom_call.1} parent=1 // pred_check
      _
    $region27: #{tpu_custom_call.1} parent=1 // pred_check_branch
      %76 = sbr.rel (0) target = $region29
    $region28: #{tpu_custom_call.1} parent=1 // pred_region
      %77 = dma.done [#allocation8], 1024
    $region29: #{tpu_custom_call.1} parent=1 // pred_fallthru
      _
    // Predicated region
    $region30: #{tpu_custom_call.1} parent=1 // pred_check
      _
    $region31: #{tpu_custom_call.1} parent=1 // pred_check_branch
      %79 = sbr.rel (0) target = $region33
    $region32: #{tpu_custom_call.1} parent=1 // pred_region
      %80 = dma.done [#allocation8], 9216
    $region33: #{tpu_custom_call.1} parent=1 // pred_fallthru
      _
    // Predicated region
    $region34: #{tpu_custom_call.1} parent=1 // pred_check
      _
    $region35: #{tpu_custom_call.1} parent=1 // pred_check_branch
      %82 = sbr.rel (0) target = $region37
    $region36: #{tpu_custom_call.1} parent=1 // pred_region
      %83 = dma.done [#allocation11], 1024
    $region37: #{tpu_custom_call.1} parent=1 // pred_fallthru
      _
    // Predicated region
    $region38: #{tpu_custom_call.1} parent=1 // pred_check
      _
    $region39: #{tpu_custom_call.1} parent=1 // pred_check_branch
      %85 = sbr.rel (0) target = $region41
    $region40: #{tpu_custom_call.1} parent=1 // pred_region
      %86 = dma.done [#allocation11], 128
    $region41: #{tpu_custom_call.1} parent=1 // pred_fallthru
      _
    %v88 = vld [vmem:[#allocation4] sm:$0xff]
    %v89 = vld [vmem:[#allocation4 + $0x8] sm:$0xff]
    %v90 = vld [vmem:[#allocation4 + $0x10] sm:$0xff]
    %v91 = vld [vmem:[#allocation4 + $0x18] sm:$0xff]
    %v92 = vld [vmem:[#allocation4 + $0x20] sm:$0xff]
    %v93 = vld [vmem:[#allocation4 + $0x28] sm:$0xff]
    %v94 = vld [vmem:[#allocation4 + $0x30] sm:$0xff]
    %v95 = vld [vmem:[#allocation4 + $0x38] sm:$0xff]
    %v96 = vld [vmem:[#allocation4 + $0x40] sm:$0xff]
    %v97 = vld [vmem:[#allocation4 + $0x48] sm:$0xff]
    %v98 = vld [vmem:[#allocation4 + $0x50] sm:$0xff]
    %v99 = vld [vmem:[#allocation4 + $0x58] sm:$0xff]
    %v100 = vld [vmem:[#allocation4 + $0x60] sm:$0xff]
    %v101 = vld [vmem:[#allocation4 + $0x68] sm:$0xff]
    %v102 = vld [vmem:[#allocation4 + $0x70] sm:$0xff]
    %v103 = vld [vmem:[#allocation4 + $0x78] sm:$0xff]
    %v104 = vld [vmem:[#allocation4 + $0x80] sm:$0xff]
    %v105 = vld [vmem:[#allocation4 + $0x88] sm:$0xff]
    %v106 = vld [vmem:[#allocation4 + $0x90] sm:$0xff]
    %v107 = vld [vmem:[#allocation4 + $0x98] sm:$0xff]
    %v108 = vld [vmem:[#allocation4 + $0xa0] sm:$0xff]
    %v109 = vld [vmem:[#allocation4 + $0xa8] sm:$0xff]
    %v110 = vld [vmem:[#allocation4 + $0xb0] sm:$0xff]
    %v111 = vld [vmem:[#allocation4 + $0xb8] sm:$0xff]
    %v112 = vld [vmem:[#allocation4 + $0xc0] sm:$0xff]
    %v113 = vld [vmem:[#allocation4 + $0xc8] sm:$0xff]
    %v114 = vld [vmem:[#allocation4 + $0xd0] sm:$0xff]
    %v115 = vld [vmem:[#allocation4 + $0xd8] sm:$0xff]
    %v116 = vld [vmem:[#allocation4 + $0xe0] sm:$0xff]
    %v117 = vld [vmem:[#allocation4 + $0xe8] sm:$0xff]
    %v118 = vld [vmem:[#allocation4 + $0xf0] sm:$0xff]
    %v119 = vld [vmem:[#allocation4 + $0xf8] sm:$0xff]
    %v120 = vld [vmem:[#allocation4 + $0x100] sm:$0xff]
    %v121 = vld [vmem:[#allocation4 + $0x108] sm:$0xff]
    %v122 = vld [vmem:[#allocation4 + $0x110] sm:$0xff]
    %v123 = vld [vmem:[#allocation4 + $0x118] sm:$0xff]
    %v124 = vld [vmem:[#allocation4 + $0x120] sm:$0xff]
    %v125 = vld [vmem:[#allocation4 + $0x128] sm:$0xff]
    %v126 = vld [vmem:[#allocation4 + $0x130] sm:$0xff]
    %v127 = vld [vmem:[#allocation4 + $0x138] sm:$0xff]
    %v128 = vld [vmem:[#allocation4 + $0x140] sm:$0xff]
    %v129 = vld [vmem:[#allocation4 + $0x148] sm:$0xff]
    %v130 = vld [vmem:[#allocation4 + $0x150] sm:$0xff]
    %v131 = vld [vmem:[#allocation4 + $0x158] sm:$0xff]
    %v132 = vld [vmem:[#allocation4 + $0x160] sm:$0xff]
    %v133 = vld [vmem:[#allocation4 + $0x168] sm:$0xff]
    %v134 = vld [vmem:[#allocation4 + $0x170] sm:$0xff]
    %v135 = vld [vmem:[#allocation4 + $0x178] sm:$0xff]
    %v136 = vld [vmem:[#allocation4 + $0x180] sm:$0xff]
    %v137 = vld [vmem:[#allocation4 + $0x188] sm:$0xff]
    %v138 = vld [vmem:[#allocation4 + $0x190] sm:$0xff]
    %v139 = vld [vmem:[#allocation4 + $0x198] sm:$0xff]
    %v140 = vld [vmem:[#allocation4 + $0x1a0] sm:$0xff]
    %v141 = vld [vmem:[#allocation4 + $0x1a8] sm:$0xff]
    %v142 = vld [vmem:[#allocation4 + $0x1b0] sm:$0xff]
    %v143 = vld [vmem:[#allocation4 + $0x1b8] sm:$0xff]
    %v144 = vld [vmem:[#allocation4 + $0x1c0] sm:$0xff]
    %v145 = vld [vmem:[#allocation4 + $0x1c8] sm:$0xff]
    %v146 = vld [vmem:[#allocation4 + $0x1d0] sm:$0xff]
    %v147 = vld [vmem:[#allocation4 + $0x1d8] sm:$0xff]
    %v148 = vld [vmem:[#allocation4 + $0x1e0] sm:$0xff]
    %v149 = vld [vmem:[#allocation4 + $0x1e8] sm:$0xff]
    %v150 = vld [vmem:[#allocation4 + $0x1f0] sm:$0xff]
    %v151 = vld [vmem:[#allocation4 + $0x1f8] sm:$0xff]
    %v152 = vpack.c.bf16 %v89, %v88
    %v153 = vpack.c.bf16 %v91, %v90
    %v154 = vpack.c.bf16 %v93, %v92
    %v155 = vpack.c.bf16 %v95, %v94
    %v156 = vpack.c.bf16 %v97, %v96
    %v157 = vpack.c.bf16 %v99, %v98
    %v158 = vpack.c.bf16 %v101, %v100
    %v159 = vpack.c.bf16 %v103, %v102
    %v160 = vpack.c.bf16 %v105, %v104
    %v161 = vpack.c.bf16 %v107, %v106
    %v162 = vpack.c.bf16 %v109, %v108
    %v163 = vpack.c.bf16 %v111, %v110
    %v164 = vpack.c.bf16 %v113, %v112
    %v165 = vpack.c.bf16 %v115, %v114
    %v166 = vpack.c.bf16 %v117, %v116
    %v167 = vpack.c.bf16 %v119, %v118
    %v168 = vpack.c.bf16 %v121, %v120
    %v169 = vpack.c.bf16 %v123, %v122
    %v170 = vpack.c.bf16 %v125, %v124
    %v171 = vpack.c.bf16 %v127, %v126
    %v172 = vpack.c.bf16 %v129, %v128
    %v173 = vpack.c.bf16 %v131, %v130
    %v174 = vpack.c.bf16 %v133, %v132
    %v175 = vpack.c.bf16 %v135, %v134
    %v176 = vpack.c.bf16 %v137, %v136
    %v177 = vpack.c.bf16 %v139, %v138
    %v178 = vpack.c.bf16 %v141, %v140
    %v179 = vpack.c.bf16 %v143, %v142
    %v180 = vpack.c.bf16 %v145, %v144
    %v181 = vpack.c.bf16 %v147, %v146
    %v182 = vpack.c.bf16 %v149, %v148
    %v183 = vpack.c.bf16 %v151, %v150
    %v184 = vld [vmem:[#allocation7] sm:$0xf]
    %v185 = vld [vmem:[#allocation7 + $0x4] sm:$0xf]
    %v186 = vld [vmem:[#allocation7 + $0x8] sm:$0xf]
    %v187 = vld [vmem:[#allocation7 + $0xc] sm:$0xf]
    %v188 = vld [vmem:[#allocation7 + $0x10] sm:$0xf]
    %v189 = vld [vmem:[#allocation7 + $0x14] sm:$0xf]
    %v190 = vld [vmem:[#allocation7 + $0x18] sm:$0xf]
    %v191 = vld [vmem:[#allocation7 + $0x1c] sm:$0xf]
    %v192 = vld [vmem:[#allocation7 + $0x20] sm:$0xf]
    %v193 = vld [vmem:[#allocation7 + $0x24] sm:$0xf]
    %v194 = vld [vmem:[#allocation7 + $0x28] sm:$0xf]
    %v195 = vld [vmem:[#allocation7 + $0x2c] sm:$0xf]
    %v196 = vld [vmem:[#allocation7 + $0x30] sm:$0xf]
    %v197 = vld [vmem:[#allocation7 + $0x34] sm:$0xf]
    %v198 = vld [vmem:[#allocation7 + $0x38] sm:$0xf]
    %v199 = vld [vmem:[#allocation7 + $0x3c] sm:$0xf]
    %v216 = vunpack.c.l.b16 %v184
    %v217 = vunpack.c.l.b16 %v185
    %v218 = vunpack.c.l.b16 %v186
    %v219 = vunpack.c.l.b16 %v187
    %v220 = vunpack.c.l.b16 %v188
    %v221 = vunpack.c.l.b16 %v189
    %v222 = vunpack.c.l.b16 %v190
    %v223 = vunpack.c.l.b16 %v191
    %v224 = vunpack.c.l.b16 %v192
    %v225 = vunpack.c.l.b16 %v193
    %v226 = vunpack.c.l.b16 %v194
    %v227 = vunpack.c.l.b16 %v195
    %v228 = vunpack.c.l.b16 %v196
    %v229 = vunpack.c.l.b16 %v197
    %v230 = vunpack.c.l.b16 %v198
    %v231 = vunpack.c.l.b16 %v199
    %v232 = vpack.c.b16 %v217, %v216
    %v233 = vpack.c.b16 %v219, %v218
    %v234 = vpack.c.b16 %v221, %v220
    %v235 = vpack.c.b16 %v223, %v222
    %v236 = vpack.c.b16 %v225, %v224
    %v237 = vpack.c.b16 %v227, %v226
    %v238 = vpack.c.b16 %v229, %v228
    %v239 = vpack.c.b16 %v231, %v230
    %248 = vmatprep.subr.bf16.mxu0 0
    %249 = vmatpush1.bf16.msra.mxu0 %v232
    %250 = vmatprep.subr.bf16.mxu0 0
    %251 = vmatpush1.bf16.msra.mxu0 %v233
    %252 = vmatprep.subr.bf16.mxu0 0
    %253 = vmatpush1.bf16.msra.mxu0 %v234
    %254 = vmatprep.subr.bf16.mxu0 0
    %255 = vmatpush1.bf16.msra.mxu0 %v235
    %256 = vmatprep.subr.bf16.mxu0 0
    %257 = vmatpush1.bf16.msra.mxu0 %v236
    %258 = vmatprep.subr.bf16.mxu0 0
    %259 = vmatpush1.bf16.msra.mxu0 %v237
    %260 = vmatprep.subr.bf16.mxu0 0
    %261 = vmatpush1.bf16.msra.mxu0 %v238
    %262 = vmatprep.subr.bf16.mxu0 0
    %263 = vmatpush1.bf16.msra.mxu0 %v239
    %264 = vmatprep.subr.bf16.mxu0 0
    %265 = vmatpush1.bf16.msra.mxu0 0
    %266 = vmatprep.subr.bf16.mxu0 0
    %267 = vmatpush1.bf16.msra.mxu0 0
    %268 = vmatprep.subr.bf16.mxu0 0
    %269 = vmatpush1.bf16.msra.mxu0 0
    %270 = vmatprep.subr.bf16.mxu0 0
    %271 = vmatpush1.bf16.msra.mxu0 0
    %272 = vmatprep.subr.bf16.mxu0 0
    %273 = vmatpush1.bf16.msra.mxu0 0
    %274 = vmatprep.subr.bf16.mxu0 0
    %275 = vmatpush1.bf16.msra.mxu0 0
    %276 = vmatprep.subr.bf16.mxu0 0
    %277 = vmatpush1.bf16.msra.mxu0 0
    %278 = vmatprep.subr.bf16.mxu0 0
    %279 = vmatpush1.bf16.msra.mxu0 0
    %280 = vmatprep.mubr.bf16.mxu0 0
    %281 = vmatmul.mubr.bf16.gmra.mrb[0].mxu0 %v152
    %v282 = vpop.f32.mrb[0].mxu0
    %v283 = vadd.f32 0.0, %v282
    %v284 = vpop.f32.mrb[0].mxu0
    %v285 = vpop.f32.mrb[0].mxu0
    %v286 = vadd.f32 0.0, %v285
    %v287 = vpop.f32.mrb[0].mxu0
    %288 = vmatprep.mubr.bf16.mxu0 0
    %289 = vmatmul.mubr.bf16.gmra.mrb[0].mxu0 %v153
    %v290 = vpop.f32.mrb[0].mxu0
    %v291 = vadd.f32 0.0, %v290
    %v292 = vpop.f32.mrb[0].mxu0
    %v293 = vpop.f32.mrb[0].mxu0
    %v294 = vadd.f32 0.0, %v293
    %v295 = vpop.f32.mrb[0].mxu0
    %296 = vmatprep.mubr.bf16.mxu0 0
    %297 = vmatmul.mubr.bf16.gmra.mrb[0].mxu0 %v154
    %v298 = vpop.f32.mrb[0].mxu0
    %v299 = vadd.f32 0.0, %v298
    %v300 = vpop.f32.mrb[0].mxu0
    %v301 = vpop.f32.mrb[0].mxu0
    %v302 = vadd.f32 0.0, %v301
    %v303 = vpop.f32.mrb[0].mxu0
    %304 = vmatprep.mubr.bf16.mxu0 0
    %305 = vmatmul.mubr.bf16.gmra.mrb[0].mxu0 %v155
    %v306 = vpop.f32.mrb[0].mxu0
    %v307 = vadd.f32 0.0, %v306
    %v308 = vpop.f32.mrb[0].mxu0
    %v309 = vpop.f32.mrb[0].mxu0
    %v310 = vadd.f32 0.0, %v309
    %v311 = vpop.f32.mrb[0].mxu0
    %312 = vmatprep.mubr.bf16.mxu0 0
    %313 = vmatmul.mubr.bf16.gmra.mrb[0].mxu0 %v156
    %v314 = vpop.f32.mrb[0].mxu0
    %v315 = vadd.f32 0.0, %v314
    %v316 = vpop.f32.mrb[0].mxu0
    %v317 = vpop.f32.mrb[0].mxu0
    %v318 = vadd.f32 0.0, %v317
    %v319 = vpop.f32.mrb[0].mxu0
    %320 = vmatprep.mubr.bf16.mxu0 0
    %321 = vmatmul.mubr.bf16.gmra.mrb[0].mxu0 %v157
    %v322 = vpop.f32.mrb[0].mxu0
    %v323 = vadd.f32 0.0, %v322
    %v324 = vpop.f32.mrb[0].mxu0
    %v325 = vpop.f32.mrb[0].mxu0
    %v326 = vadd.f32 0.0, %v325
    %v327 = vpop.f32.mrb[0].mxu0
    %328 = vmatprep.mubr.bf16.mxu0 0
    %329 = vmatmul.mubr.bf16.gmra.mrb[0].mxu0 %v158
    %v330 = vpop.f32.mrb[0].mxu0
    %v331 = vadd.f32 0.0, %v330
    %v332 = vpop.f32.mrb[0].mxu0
    %v333 = vpop.f32.mrb[0].mxu0
    %v334 = vadd.f32 0.0, %v333
    %v335 = vpop.f32.mrb[0].mxu0
    %336 = vmatprep.mubr.bf16.mxu0 0
    %337 = vmatmul.mubr.bf16.gmra.mrb[0].mxu0 %v159
    %v338 = vpop.f32.mrb[0].mxu0
    %v339 = vadd.f32 0.0, %v338
    %v340 = vpop.f32.mrb[0].mxu0
    %v341 = vpop.f32.mrb[0].mxu0
    %v342 = vadd.f32 0.0, %v341
    %v343 = vpop.f32.mrb[0].mxu0
    %344 = vmatprep.mubr.bf16.mxu0 0
    %345 = vmatmul.mubr.bf16.gmra.mrb[0].mxu0 %v160
    %v346 = vpop.f32.mrb[0].mxu0
    %v347 = vadd.f32 0.0, %v346
    %v348 = vpop.f32.mrb[0].mxu0
    %v349 = vpop.f32.mrb[0].mxu0
    %v350 = vadd.f32 0.0, %v349
    %v351 = vpop.f32.mrb[0].mxu0
    %352 = vmatprep.mubr.bf16.mxu0 0
    %353 = vmatmul.mubr.bf16.gmra.mrb[0].mxu0 %v161
    %v354 = vpop.f32.mrb[0].mxu0
    %v355 = vadd.f32 0.0, %v354
    %v356 = vpop.f32.mrb[0].mxu0
    %v357 = vpop.f32.mrb[0].mxu0
    %v358 = vadd.f32 0.0, %v357
    %v359 = vpop.f32.mrb[0].mxu0
    %360 = vmatprep.mubr.bf16.mxu0 0
    %361 = vmatmul.mubr.bf16.gmra.mrb[0].mxu0 %v162
    %v362 = vpop.f32.mrb[0].mxu0
    %v363 = vadd.f32 0.0, %v362
    %v364 = vpop.f32.mrb[0].mxu0
    %v365 = vpop.f32.mrb[0].mxu0
    %v366 = vadd.f32 0.0, %v365
    %v367 = vpop.f32.mrb[0].mxu0
    %368 = vmatprep.mubr.bf16.mxu0 0
    %369 = vmatmul.mubr.bf16.gmra.mrb[0].mxu0 %v163
    %v370 = vpop.f32.mrb[0].mxu0
    %v371 = vadd.f32 0.0, %v370
    %v372 = vpop.f32.mrb[0].mxu0
    %v373 = vpop.f32.mrb[0].mxu0
    %v374 = vadd.f32 0.0, %v373
    %v375 = vpop.f32.mrb[0].mxu0
    %376 = vmatprep.mubr.bf16.mxu0 0
    %377 = vmatmul.mubr.bf16.gmra.mrb[0].mxu0 %v164
    %v378 = vpop.f32.mrb[0].mxu0
    %v379 = vadd.f32 0.0, %v378
    %v380 = vpop.f32.mrb[0].mxu0
    %v381 = vpop.f32.mrb[0].mxu0
    %v382 = vadd.f32 0.0, %v381
    %v383 = vpop.f32.mrb[0].mxu0
    %384 = vmatprep.mubr.bf16.mxu0 0
    %385 = vmatmul.mubr.bf16.gmra.mrb[0].mxu0 %v165
    %v386 = vpop.f32.mrb[0].mxu0
    %v387 = vadd.f32 0.0, %v386
    %v388 = vpop.f32.mrb[0].mxu0
    %v389 = vpop.f32.mrb[0].mxu0
    %v390 = vadd.f32 0.0, %v389
    %v391 = vpop.f32.mrb[0].mxu0
    %392 = vmatprep.mubr.bf16.mxu0 0
    %393 = vmatmul.mubr.bf16.gmra.mrb[0].mxu0 %v166
    %v394 = vpop.f32.mrb[0].mxu0
    %v395 = vadd.f32 0.0, %v394
    %v396 = vpop.f32.mrb[0].mxu0
    %v397 = vpop.f32.mrb[0].mxu0
    %v398 = vadd.f32 0.0, %v397
    %v399 = vpop.f32.mrb[0].mxu0
    %400 = vmatprep.mubr.bf16.mxu0 0
    %401 = vmatmul.mubr.bf16.gmra.mrb[0].mxu0 %v167
    %v402 = vpop.f32.mrb[0].mxu0
    %v403 = vadd.f32 0.0, %v402
    %v404 = vpop.f32.mrb[0].mxu0
    %v405 = vpop.f32.mrb[0].mxu0
    %v406 = vadd.f32 0.0, %v405
    %v407 = vpop.f32.mrb[0].mxu0
    %408 = vmatprep.mubr.bf16.mxu0 0
    %409 = vmatmul.mubr.bf16.gmra.mrb[0].mxu0 %v168
    %v410 = vpop.f32.mrb[0].mxu0
    %v411 = vadd.f32 0.0, %v410
    %v412 = vpop.f32.mrb[0].mxu0
    %v413 = vpop.f32.mrb[0].mxu0
    %v414 = vadd.f32 0.0, %v413
    %v415 = vpop.f32.mrb[0].mxu0
    %416 = vmatprep.mubr.bf16.mxu0 0
    %417 = vmatmul.mubr.bf16.gmra.mrb[0].mxu0 %v169
    %v418 = vpop.f32.mrb[0].mxu0
    %v419 = vadd.f32 0.0, %v418
    %v420 = vpop.f32.mrb[0].mxu0
    %v421 = vpop.f32.mrb[0].mxu0
    %v422 = vadd.f32 0.0, %v421
    %v423 = vpop.f32.mrb[0].mxu0
    %424 = vmatprep.mubr.bf16.mxu0 0
    %425 = vmatmul.mubr.bf16.gmra.mrb[0].mxu0 %v170
    %v426 = vpop.f32.mrb[0].mxu0
    %v427 = vadd.f32 0.0, %v426
    %v428 = vpop.f32.mrb[0].mxu0
    %v429 = vpop.f32.mrb[0].mxu0
    %v430 = vadd.f32 0.0, %v429
    %v431 = vpop.f32.mrb[0].mxu0
    %432 = vmatprep.mubr.bf16.mxu0 0
    %433 = vmatmul.mubr.bf16.gmra.mrb[0].mxu0 %v171
    %v434 = vpop.f32.mrb[0].mxu0
    %v435 = vadd.f32 0.0, %v434
    %v436 = vpop.f32.mrb[0].mxu0
    %v437 = vpop.f32.mrb[0].mxu0
    %v438 = vadd.f32 0.0, %v437
    %v439 = vpop.f32.mrb[0].mxu0
    %440 = vmatprep.mubr.bf16.mxu0 0
    %441 = vmatmul.mubr.bf16.gmra.mrb[0].mxu0 %v172
    %v442 = vpop.f32.mrb[0].mxu0
    %v443 = vadd.f32 0.0, %v442
    %v444 = vpop.f32.mrb[0].mxu0
    %v445 = vpop.f32.mrb[0].mxu0
    %v446 = vadd.f32 0.0, %v445
    %v447 = vpop.f32.mrb[0].mxu0
    %448 = vmatprep.mubr.bf16.mxu0 0
    %449 = vmatmul.mubr.bf16.gmra.mrb[0].mxu0 %v173
    %v450 = vpop.f32.mrb[0].mxu0
    %v451 = vadd.f32 0.0, %v450
    %v452 = vpop.f32.mrb[0].mxu0
    %v453 = vpop.f32.mrb[0].mxu0
    %v454 = vadd.f32 0.0, %v453
    %v455 = vpop.f32.mrb[0].mxu0
    %456 = vmatprep.mubr.bf16.mxu0 0
    %457 = vmatmul.mubr.bf16.gmra.mrb[0].mxu0 %v174
    %v458 = vpop.f32.mrb[0].mxu0
    %v459 = vadd.f32 0.0, %v458
    %v460 = vpop.f32.mrb[0].mxu0
    %v461 = vpop.f32.mrb[0].mxu0
    %v462 = vadd.f32 0.0, %v461
    %v463 = vpop.f32.mrb[0].mxu0
    %464 = vmatprep.mubr.bf16.mxu0 0
    %465 = vmatmul.mubr.bf16.gmra.mrb[0].mxu0 %v175
    %v466 = vpop.f32.mrb[0].mxu0
    %v467 = vadd.f32 0.0, %v466
    %v468 = vpop.f32.mrb[0].mxu0
    %v469 = vpop.f32.mrb[0].mxu0
    %v470 = vadd.f32 0.0, %v469
    %v471 = vpop.f32.mrb[0].mxu0
    %472 = vmatprep.mubr.bf16.mxu0 0
    %473 = vmatmul.mubr.bf16.gmra.mrb[0].mxu0 %v176
    %v474 = vpop.f32.mrb[0].mxu0
    %v475 = vadd.f32 0.0, %v474
    %v476 = vpop.f32.mrb[0].mxu0
    %v477 = vpop.f32.mrb[0].mxu0
    %v478 = vadd.f32 0.0, %v477
    %v479 = vpop.f32.mrb[0].mxu0
    %480 = vmatprep.mubr.bf16.mxu0 0
    %481 = vmatmul.mubr.bf16.gmra.mrb[0].mxu0 %v177
    %v482 = vpop.f32.mrb[0].mxu0
    %v483 = vadd.f32 0.0, %v482
    %v484 = vpop.f32.mrb[0].mxu0
    %v485 = vpop.f32.mrb[0].mxu0
    %v486 = vadd.f32 0.0, %v485
    %v487 = vpop.f32.mrb[0].mxu0
    %488 = vmatprep.mubr.bf16.mxu0 0
    %489 = vmatmul.mubr.bf16.gmra.mrb[0].mxu0 %v178
    %v490 = vpop.f32.mrb[0].mxu0
    %v491 = vadd.f32 0.0, %v490
    %v492 = vpop.f32.mrb[0].mxu0
    %v493 = vpop.f32.mrb[0].mxu0
    %v494 = vadd.f32 0.0, %v493
    %v495 = vpop.f32.mrb[0].mxu0
    %496 = vmatprep.mubr.bf16.mxu0 0
    %497 = vmatmul.mubr.bf16.gmra.mrb[0].mxu0 %v179
    %v498 = vpop.f32.mrb[0].mxu0
    %v499 = vadd.f32 0.0, %v498
    %v500 = vpop.f32.mrb[0].mxu0
    %v501 = vpop.f32.mrb[0].mxu0
    %v502 = vadd.f32 0.0, %v501
    %v503 = vpop.f32.mrb[0].mxu0
    %504 = vmatprep.mubr.bf16.mxu0 0
    %505 = vmatmul.mubr.bf16.gmra.mrb[0].mxu0 %v180
    %v506 = vpop.f32.mrb[0].mxu0
    %v507 = vadd.f32 0.0, %v506
    %v508 = vpop.f32.mrb[0].mxu0
    %v509 = vpop.f32.mrb[0].mxu0
    %v510 = vadd.f32 0.0, %v509
    %v511 = vpop.f32.mrb[0].mxu0
    %512 = vmatprep.mubr.bf16.mxu0 0
    %513 = vmatmul.mubr.bf16.gmra.mrb[0].mxu0 %v181
    %v514 = vpop.f32.mrb[0].mxu0
    %v515 = vadd.f32 0.0, %v514
    %v516 = vpop.f32.mrb[0].mxu0
    %v517 = vpop.f32.mrb[0].mxu0
    %v518 = vadd.f32 0.0, %v517
    %v519 = vpop.f32.mrb[0].mxu0
    %520 = vmatprep.mubr.bf16.mxu0 0
    %521 = vmatmul.mubr.bf16.gmra.mrb[0].mxu0 %v182
    %v522 = vpop.f32.mrb[0].mxu0
    %v523 = vadd.f32 0.0, %v522
    %v524 = vpop.f32.mrb[0].mxu0
    %v525 = vpop.f32.mrb[0].mxu0
    %v526 = vadd.f32 0.0, %v525
    %v527 = vpop.f32.mrb[0].mxu0
    %528 = vmatprep.mubr.bf16.mxu0 0
    %529 = vmatmul.mubr.bf16.gmra.mrb[0].mxu0 %v183
    %v530 = vpop.f32.mrb[0].mxu0
    %v531 = vadd.f32 0.0, %v530
    %v532 = vpop.f32.mrb[0].mxu0
    %v533 = vpop.f32.mrb[0].mxu0
    %v534 = vadd.f32 0.0, %v533
    %v535 = vpop.f32.mrb[0].mxu0
    %536 = vdwg.mxu0
    %v537 = vld [vmem:[#allocation12] sm:$0x1]
    %v538 = vld [vmem:[#allocation12 + $0x1] sm:$0x1]
    %v539 = vadd.f32 %v283, %v286
    %v540 = vadd.f32 %v539, %v291
    %v541 = vadd.f32 %v540, %v294
    %v542 = vadd.f32 %v541, %v299
    %v543 = vadd.f32 %v542, %v302
    %v544 = vadd.f32 %v543, %v307
    %v545 = vadd.f32 %v544, %v310
    %v546 = vadd.f32 %v545, %v315
    %v547 = vadd.f32 %v546, %v318
    %v548 = vadd.f32 %v547, %v323
    %v549 = vadd.f32 %v548, %v326
    %v550 = vadd.f32 %v549, %v331
    %v551 = vadd.f32 %v550, %v334
    %v552 = vadd.f32 %v551, %v339
    %v553 = vadd.f32 %v552, %v342
    %v554 = vadd.f32 %v553, %v347
    %v555 = vadd.f32 %v554, %v350
    %v556 = vadd.f32 %v555, %v355
    %v557 = vadd.f32 %v556, %v358
    %v558 = vadd.f32 %v557, %v363
    %v559 = vadd.f32 %v558, %v366
    %v560 = vadd.f32 %v559, %v371
    %v561 = vadd.f32 %v560, %v374
    %v562 = vadd.f32 %v561, %v379
    %v563 = vadd.f32 %v562, %v382
    %v564 = vadd.f32 %v563, %v387
    %v565 = vadd.f32 %v564, %v390
    %v566 = vadd.f32 %v565, %v395
    %v567 = vadd.f32 %v566, %v398
    %v568 = vadd.f32 %v567, %v403
    %v569 = vadd.f32 %v568, %v406
    %v570 = vadd.f32 %v569, %v411
    %v571 = vadd.f32 %v570, %v414
    %v572 = vadd.f32 %v571, %v419
    %v573 = vadd.f32 %v572, %v422
    %v574 = vadd.f32 %v573, %v427
    %v575 = vadd.f32 %v574, %v430
    %v576 = vadd.f32 %v575, %v435
    %v577 = vadd.f32 %v576, %v438
    %v578 = vadd.f32 %v577, %v443
    %v579 = vadd.f32 %v578, %v446
    %v580 = vadd.f32 %v579, %v451
    %v581 = vadd.f32 %v580, %v454
    %v582 = vadd.f32 %v581, %v459
    %v583 = vadd.f32 %v582, %v462
    %v584 = vadd.f32 %v583, %v467
    %v585 = vadd.f32 %v584, %v470
    %v586 = vadd.f32 %v585, %v475
    %v587 = vadd.f32 %v586, %v478
    %v588 = vadd.f32 %v587, %v483
    %v589 = vadd.f32 %v588, %v486
    %v590 = vadd.f32 %v589, %v491
    %v591 = vadd.f32 %v590, %v494
    %v592 = vadd.f32 %v591, %v499
    %v593 = vadd.f32 %v592, %v502
    %v594 = vadd.f32 %v593, %v507
    %v595 = vadd.f32 %v594, %v510
    %v596 = vadd.f32 %v595, %v515
    %v597 = vadd.f32 %v596, %v518
    %v598 = vadd.f32 %v597, %v523
    %v599 = vadd.f32 %v598, %v526
    %v600 = vadd.f32 %v599, %v531
    %v601 = vadd.f32 %v600, %v534
    %v602 = vrot.slane %v601, 4
    %v603 = vadd.f32 %v601, %v602
    %v604 = vrot.slane %v603, 2
    %v605 = vadd.f32 %v603, %v604
    %v606 = vrot.slane %v605, 1
    %v607 = vadd.f32 %v605, %v606
    %v608 = vmul.f32 %v283, %v283
    %v609 = vmul.f32 %v286, %v286
    %v610 = vmul.f32 %v291, %v291
    %v611 = vmul.f32 %v294, %v294
    %v612 = vmul.f32 %v299, %v299
    %v613 = vmul.f32 %v302, %v302
    %v614 = vmul.f32 %v307, %v307
    %v615 = vmul.f32 %v310, %v310
    %v616 = vmul.f32 %v315, %v315
    %v617 = vmul.f32 %v318, %v318
    %v618 = vmul.f32 %v323, %v323
    %v619 = vmul.f32 %v326, %v326
    %v620 = vmul.f32 %v331, %v331
    %v621 = vmul.f32 %v334, %v334
    %v622 = vmul.f32 %v339, %v339
    %v623 = vmul.f32 %v342, %v342
    %v624 = vmul.f32 %v347, %v347
    %v625 = vmul.f32 %v350, %v350
    %v626 = vmul.f32 %v355, %v355
    %v627 = vmul.f32 %v358, %v358
    %v628 = vmul.f32 %v363, %v363
    %v629 = vmul.f32 %v366, %v366
    %v630 = vmul.f32 %v371, %v371
    %v631 = vmul.f32 %v374, %v374
    %v632 = vmul.f32 %v379, %v379
    %v633 = vmul.f32 %v382, %v382
    %v634 = vmul.f32 %v387, %v387
    %v635 = vmul.f32 %v390, %v390
    %v636 = vmul.f32 %v395, %v395
    %v637 = vmul.f32 %v398, %v398
    %v638 = vmul.f32 %v403, %v403
    %v639 = vmul.f32 %v406, %v406
    %v640 = vmul.f32 %v411, %v411
    %v641 = vmul.f32 %v414, %v414
    %v642 = vmul.f32 %v419, %v419
    %v643 = vmul.f32 %v422, %v422
    %v644 = vmul.f32 %v427, %v427
    %v645 = vmul.f32 %v430, %v430
    %v646 = vmul.f32 %v435, %v435
    %v647 = vmul.f32 %v438, %v438
    %v648 = vmul.f32 %v443, %v443
    %v649 = vmul.f32 %v446, %v446
    %v650 = vmul.f32 %v451, %v451
    %v651 = vmul.f32 %v454, %v454
    %v652 = vmul.f32 %v459, %v459
    %v653 = vmul.f32 %v462, %v462
    %v654 = vmul.f32 %v467, %v467
    %v655 = vmul.f32 %v470, %v470
    %v656 = vmul.f32 %v475, %v475
    %v657 = vmul.f32 %v478, %v478
    %v658 = vmul.f32 %v483, %v483
    %v659 = vmul.f32 %v486, %v486
    %v660 = vmul.f32 %v491, %v491
    %v661 = vmul.f32 %v494, %v494
    %v662 = vmul.f32 %v499, %v499
    %v663 = vmul.f32 %v502, %v502
    %v664 = vmul.f32 %v507, %v507
    %v665 = vmul.f32 %v510, %v510
    %v666 = vmul.f32 %v515, %v515
    %v667 = vmul.f32 %v518, %v518
    %v668 = vmul.f32 %v523, %v523
    %v669 = vmul.f32 %v526, %v526
    %v670 = vmul.f32 %v531, %v531
    %v671 = vmul.f32 %v534, %v534
    %v672 = vadd.f32 %v608, %v609
    %v673 = vadd.f32 %v672, %v610
    %v674 = vadd.f32 %v673, %v611
    %v675 = vadd.f32 %v674, %v612
    %v676 = vadd.f32 %v675, %v613
    %v677 = vadd.f32 %v676, %v614
    %v678 = vadd.f32 %v677, %v615
    %v679 = vadd.f32 %v678, %v616
    %v680 = vadd.f32 %v679, %v617
    %v681 = vadd.f32 %v680, %v618
    %v682 = vadd.f32 %v681, %v619
    %v683 = vadd.f32 %v682, %v620
    %v684 = vadd.f32 %v683, %v621
    %v685 = vadd.f32 %v684, %v622
    %v686 = vadd.f32 %v685, %v623
    %v687 = vadd.f32 %v686, %v624
    %v688 = vadd.f32 %v687, %v625
    %v689 = vadd.f32 %v688, %v626
    %v690 = vadd.f32 %v689, %v627
    %v691 = vadd.f32 %v690, %v628
    %v692 = vadd.f32 %v691, %v629
    %v693 = vadd.f32 %v692, %v630
    %v694 = vadd.f32 %v693, %v631
    %v695 = vadd.f32 %v694, %v632
    %v696 = vadd.f32 %v695, %v633
    %v697 = vadd.f32 %v696, %v634
    %v698 = vadd.f32 %v697, %v635
    %v699 = vadd.f32 %v698, %v636
    %v700 = vadd.f32 %v699, %v637
    %v701 = vadd.f32 %v700, %v638
    %v702 = vadd.f32 %v701, %v639
    %v703 = vadd.f32 %v702, %v640
    %v704 = vadd.f32 %v703, %v641
    %v705 = vadd.f32 %v704, %v642
    %v706 = vadd.f32 %v705, %v643
    %v707 = vadd.f32 %v706, %v644
    %v708 = vadd.f32 %v707, %v645
    %v709 = vadd.f32 %v708, %v646
    %v710 = vadd.f32 %v709, %v647
    %v711 = vadd.f32 %v710, %v648
    %v712 = vadd.f32 %v711, %v649
    %v713 = vadd.f32 %v712, %v650
    %v714 = vadd.f32 %v713, %v651
    %v715 = vadd.f32 %v714, %v652
    %v716 = vadd.f32 %v715, %v653
    %v717 = vadd.f32 %v716, %v654
    %v718 = vadd.f32 %v717, %v655
    %v719 = vadd.f32 %v718, %v656
    %v720 = vadd.f32 %v719, %v657
    %v721 = vadd.f32 %v720, %v658
    %v722 = vadd.f32 %v721, %v659
    %v723 = vadd.f32 %v722, %v660
    %v724 = vadd.f32 %v723, %v661
    %v725 = vadd.f32 %v724, %v662
    %v726 = vadd.f32 %v725, %v663
    %v727 = vadd.f32 %v726, %v664
    %v728 = vadd.f32 %v727, %v665
    %v729 = vadd.f32 %v728, %v666
    %v730 = vadd.f32 %v729, %v667
    %v731 = vadd.f32 %v730, %v668
    %v732 = vadd.f32 %v731, %v669
    %v733 = vadd.f32 %v732, %v670
    %v734 = vadd.f32 %v733, %v671
    %v735 = vrot.slane %v734, 4
    %v736 = vadd.f32 %v734, %v735
    %v737 = vrot.slane %v736, 2
    %v738 = vadd.f32 %v736, %v737
    %v739 = vrot.slane %v738, 1
    %v740 = vadd.f32 %v738, %v739
    %v741 = vmul.f32 %v607, 0.001953125
    %v742 = vmul.f32 %v740, 0.001953125
    %v743 = vmul.f32 %v741, %v741
    %v744 = vsub.f32 %v742, %v743
    %v745 = vadd.f32 %v744, 1e-05
    %v746 = vrsqrt.pop %v745
    %v747 = vmul.f32 %v537, %v746
    %v748 = vmul.f32 %v741, %v747
    %v749 = vsub.f32 %v538, %v748
    %v750 = vlaneseq
    %v751 = vshrl.u32 %v750, 7
    %v752 = vsub.s32 0, %v751
    %v753 = vrot.slane %v747, %v752
    %v754 = vmul.f32 %v283, %v753
    %v755 = vmul.f32 %v286, %v753
    %v756 = vmul.f32 %v291, %v753
    %v757 = vmul.f32 %v294, %v753
    %v758 = vmul.f32 %v299, %v753
    %v759 = vmul.f32 %v302, %v753
    %v760 = vmul.f32 %v307, %v753
    %v761 = vmul.f32 %v310, %v753
    %v762 = vmul.f32 %v315, %v753
    %v763 = vmul.f32 %v318, %v753
    %v764 = vmul.f32 %v323, %v753
    %v765 = vmul.f32 %v326, %v753
    %v766 = vmul.f32 %v331, %v753
    %v767 = vmul.f32 %v334, %v753
    %v768 = vmul.f32 %v339, %v753
    %v769 = vmul.f32 %v342, %v753
    %v770 = vmul.f32 %v347, %v753
    %v771 = vmul.f32 %v350, %v753
    %v772 = vmul.f32 %v355, %v753
    %v773 = vmul.f32 %v358, %v753
    %v774 = vmul.f32 %v363, %v753
    %v775 = vmul.f32 %v366, %v753
    %v776 = vmul.f32 %v371, %v753
    %v777 = vmul.f32 %v374, %v753
    %v778 = vmul.f32 %v379, %v753
    %v779 = vmul.f32 %v382, %v753
    %v780 = vmul.f32 %v387, %v753
    %v781 = vmul.f32 %v390, %v753
    %v782 = vmul.f32 %v395, %v753
    %v783 = vmul.f32 %v398, %v753
    %v784 = vmul.f32 %v403, %v753
    %v785 = vmul.f32 %v406, %v753
    %v786 = vmul.f32 %v411, %v753
    %v787 = vmul.f32 %v414, %v753
    %v788 = vmul.f32 %v419, %v753
    %v789 = vmul.f32 %v422, %v753
    %v790 = vmul.f32 %v427, %v753
    %v791 = vmul.f32 %v430, %v753
    %v792 = vmul.f32 %v435, %v753
    %v793 = vmul.f32 %v438, %v753
    %v794 = vmul.f32 %v443, %v753
    %v795 = vmul.f32 %v446, %v753
    %v796 = vmul.f32 %v451, %v753
    %v797 = vmul.f32 %v454, %v753
    %v798 = vmul.f32 %v459, %v753
    %v799 = vmul.f32 %v462, %v753
    %v800 = vmul.f32 %v467, %v753
    %v801 = vmul.f32 %v470, %v753
    %v802 = vmul.f32 %v475, %v753
    %v803 = vmul.f32 %v478, %v753
    %v804 = vmul.f32 %v483, %v753
    %v805 = vmul.f32 %v486, %v753
    %v806 = vmul.f32 %v491, %v753
    %v807 = vmul.f32 %v494, %v753
    %v808 = vmul.f32 %v499, %v753
    %v809 = vmul.f32 %v502, %v753
    %v810 = vmul.f32 %v507, %v753
    %v811 = vmul.f32 %v510, %v753
    %v812 = vmul.f32 %v515, %v753
    %v813 = vmul.f32 %v518, %v753
    %v814 = vmul.f32 %v523, %v753
    %v815 = vmul.f32 %v526, %v753
    %v816 = vmul.f32 %v531, %v753
    %v817 = vmul.f32 %v534, %v753
    %v818 = vlaneseq
    %v819 = vshrl.u32 %v818, 7
    %v820 = vsub.s32 0, %v819
    %v821 = vrot.slane %v749, %v820
    %v822 = vadd.f32 %v754, %v821
    %v823 = vadd.f32 %v755, %v821
    %v824 = vadd.f32 %v756, %v821
    %v825 = vadd.f32 %v757, %v821
    %v826 = vadd.f32 %v758, %v821
    %v827 = vadd.f32 %v759, %v821
    %v828 = vadd.f32 %v760, %v821
    %v829 = vadd.f32 %v761, %v821
    %v830 = vadd.f32 %v762, %v821
    %v831 = vadd.f32 %v763, %v821
    %v832 = vadd.f32 %v764, %v821
    %v833 = vadd.f32 %v765, %v821
    %v834 = vadd.f32 %v766, %v821
    %v835 = vadd.f32 %v767, %v821
    %v836 = vadd.f32 %v768, %v821
    %v837 = vadd.f32 %v769, %v821
    %v838 = vadd.f32 %v770, %v821
    %v839 = vadd.f32 %v771, %v821
    %v840 = vadd.f32 %v772, %v821
    %v841 = vadd.f32 %v773, %v821
    %v842 = vadd.f32 %v774, %v821
    %v843 = vadd.f32 %v775, %v821
    %v844 = vadd.f32 %v776, %v821
    %v845 = vadd.f32 %v777, %v821
    %v846 = vadd.f32 %v778, %v821
    %v847 = vadd.f32 %v779, %v821
    %v848 = vadd.f32 %v780, %v821
    %v849 = vadd.f32 %v781, %v821
    %v850 = vadd.f32 %v782, %v821
    %v851 = vadd.f32 %v783, %v821
    %v852 = vadd.f32 %v784, %v821
    %v853 = vadd.f32 %v785, %v821
    %v854 = vadd.f32 %v786, %v821
    %v855 = vadd.f32 %v787, %v821
    %v856 = vadd.f32 %v788, %v821
    %v857 = vadd.f32 %v789, %v821
    %v858 = vadd.f32 %v790, %v821
    %v859 = vadd.f32 %v791, %v821
    %v860 = vadd.f32 %v792, %v821
    %v861 = vadd.f32 %v793, %v821
    %v862 = vadd.f32 %v794, %v821
    %v863 = vadd.f32 %v795, %v821
    %v864 = vadd.f32 %v796, %v821
    %v865 = vadd.f32 %v797, %v821
    %v866 = vadd.f32 %v798, %v821
    %v867 = vadd.f32 %v799, %v821
    %v868 = vadd.f32 %v800, %v821
    %v869 = vadd.f32 %v801, %v821
    %v870 = vadd.f32 %v802, %v821
    %v871 = vadd.f32 %v803, %v821
    %v872 = vadd.f32 %v804, %v821
    %v873 = vadd.f32 %v805, %v821
    %v874 = vadd.f32 %v806, %v821
    %v875 = vadd.f32 %v807, %v821
    %v876 = vadd.f32 %v808, %v821
    %v877 = vadd.f32 %v809, %v821
    %v878 = vadd.f32 %v810, %v821
    %v879 = vadd.f32 %v811, %v821
    %v880 = vadd.f32 %v812, %v821
    %v881 = vadd.f32 %v813, %v821
    %v882 = vadd.f32 %v814, %v821
    %v883 = vadd.f32 %v815, %v821
    %v884 = vadd.f32 %v816, %v821
    %v885 = vadd.f32 %v817, %v821
    %v886 = vmax.f32 %v822, 0.0
    %v887 = vmax.f32 %v823, 0.0
    %v888 = vmax.f32 %v824, 0.0
    %v889 = vmax.f32 %v825, 0.0
    %v890 = vmax.f32 %v826, 0.0
    %v891 = vmax.f32 %v827, 0.0
    %v892 = vmax.f32 %v828, 0.0
    %v893 = vmax.f32 %v829, 0.0
    %v894 = vmax.f32 %v830, 0.0
    %v895 = vmax.f32 %v831, 0.0
    %v896 = vmax.f32 %v832, 0.0
    %v897 = vmax.f32 %v833, 0.0
    %v898 = vmax.f32 %v834, 0.0
    %v899 = vmax.f32 %v835, 0.0
    %v900 = vmax.f32 %v836, 0.0
    %v901 = vmax.f32 %v837, 0.0
    %v902 = vmax.f32 %v838, 0.0
    %v903 = vmax.f32 %v839, 0.0
    %v904 = vmax.f32 %v840, 0.0
    %v905 = vmax.f32 %v841, 0.0
    %v906 = vmax.f32 %v842, 0.0
    %v907 = vmax.f32 %v843, 0.0
    %v908 = vmax.f32 %v844, 0.0
    %v909 = vmax.f32 %v845, 0.0
    %v910 = vmax.f32 %v846, 0.0
    %v911 = vmax.f32 %v847, 0.0
    %v912 = vmax.f32 %v848, 0.0
    %v913 = vmax.f32 %v849, 0.0
    %v914 = vmax.f32 %v850, 0.0
    %v915 = vmax.f32 %v851, 0.0
    %v916 = vmax.f32 %v852, 0.0
    %v917 = vmax.f32 %v853, 0.0
    %v918 = vmax.f32 %v854, 0.0
    %v919 = vmax.f32 %v855, 0.0
    %v920 = vmax.f32 %v856, 0.0
    %v921 = vmax.f32 %v857, 0.0
    %v922 = vmax.f32 %v858, 0.0
    %v923 = vmax.f32 %v859, 0.0
    %v924 = vmax.f32 %v860, 0.0
    %v925 = vmax.f32 %v861, 0.0
    %v926 = vmax.f32 %v862, 0.0
    %v927 = vmax.f32 %v863, 0.0
    %v928 = vmax.f32 %v864, 0.0
    %v929 = vmax.f32 %v865, 0.0
    %v930 = vmax.f32 %v866, 0.0
    %v931 = vmax.f32 %v867, 0.0
    %v932 = vmax.f32 %v868, 0.0
    %v933 = vmax.f32 %v869, 0.0
    %v934 = vmax.f32 %v870, 0.0
    %v935 = vmax.f32 %v871, 0.0
    %v936 = vmax.f32 %v872, 0.0
    %v937 = vmax.f32 %v873, 0.0
    %v938 = vmax.f32 %v874, 0.0
    %v939 = vmax.f32 %v875, 0.0
    %v940 = vmax.f32 %v876, 0.0
    %v941 = vmax.f32 %v877, 0.0
    %v942 = vmax.f32 %v878, 0.0
    %v943 = vmax.f32 %v879, 0.0
    %v944 = vmax.f32 %v880, 0.0
    %v945 = vmax.f32 %v881, 0.0
    %v946 = vmax.f32 %v882, 0.0
    %v947 = vmax.f32 %v883, 0.0
    %v948 = vmax.f32 %v884, 0.0
    %v949 = vmax.f32 %v885, 0.0
    %950 = vst [vmem:[#allocation2] sm:$0xff] 0.0
    %951 = vst [vmem:[#allocation2 + $0x8] sm:$0xff] 0.0
    %952 = vst [vmem:[#allocation2 + $0x10] sm:$0x3] 0.0
    %953 = vst [vmem:[#allocation2 + $0x18] sm:$0xff] 0.0
    %954 = vst [vmem:[#allocation2 + $0x20] sm:$0xff] 0.0
    %955 = vst [vmem:[#allocation2 + $0x28] sm:$0x3] 0.0
    %956 = vst [vmem:[#allocation2 + $0x30] sm:$0xff] 0.0
    %957 = vst [vmem:[#allocation2 + $0x38] sm:$0xff] 0.0
    %958 = vst [vmem:[#allocation2 + $0x40] sm:$0x3] 0.0
    %959 = vst [vmem:[#allocation2 + $0x48] sm:$0xff] 0.0
    %960 = vst [vmem:[#allocation2 + $0x50] sm:$0xff] 0.0
    %961 = vst [vmem:[#allocation2 + $0x58] sm:$0x3] 0.0
    %962 = vst [vmem:[#allocation2 + $0x60] sm:$0xff] 0.0
    %963 = vst [vmem:[#allocation2 + $0x68] sm:$0xff] 0.0
    %964 = vst [vmem:[#allocation2 + $0x70] sm:$0x3] 0.0
    %965 = vst [vmem:[#allocation2 + $0x78] sm:$0xff] 0.0
    %966 = vst [vmem:[#allocation2 + $0x80] sm:$0xff] 0.0
    %967 = vst [vmem:[#allocation2 + $0x88] sm:$0x3] 0.0
    %968 = vst [vmem:[#allocation2 + $0x90] sm:$0xff] 0.0
    %969 = vst [vmem:[#allocation2 + $0x98] sm:$0xff] 0.0
    %970 = vst [vmem:[#allocation2 + $0xa0] sm:$0x3] 0.0
    %971 = vst [vmem:[#allocation2 + $0xa8] sm:$0xff] 0.0
    %972 = vst [vmem:[#allocation2 + $0xb0] sm:$0xff] 0.0
    %973 = vst [vmem:[#allocation2 + $0xb8] sm:$0x3] 0.0
    %974 = vst [vmem:[#allocation2 + $0xc0] sm:$0xff] 0.0
    %975 = vst [vmem:[#allocation2 + $0xc8] sm:$0xff] 0.0
    %976 = vst [vmem:[#allocation2 + $0xd0] sm:$0x3] 0.0
    %977 = vst [vmem:[#allocation2 + $0xd8] sm:$0xff] 0.0
    %978 = vst [vmem:[#allocation2 + $0xe0] sm:$0xff] 0.0
    %979 = vst [vmem:[#allocation2 + $0xe8] sm:$0x3] 0.0
    %980 = vst [vmem:[#allocation2 + $0xf0] sm:$0xff] 0.0
    %981 = vst [vmem:[#allocation2 + $0xf8] sm:$0xff] 0.0
    %982 = vst [vmem:[#allocation2 + $0x100] sm:$0x3] 0.0
    %983 = vst [vmem:[#allocation2 + $0x108] sm:$0xff] 0.0
    %984 = vst [vmem:[#allocation2 + $0x110] sm:$0xff] 0.0
    %985 = vst [vmem:[#allocation2 + $0x118] sm:$0x3] 0.0
    %986 = vst [vmem:[#allocation2 + $0x120] sm:$0xff] 0.0
    %987 = vst [vmem:[#allocation2 + $0x128] sm:$0xff] 0.0
    %988 = vst [vmem:[#allocation2 + $0x130] sm:$0x3] 0.0
    %989 = vst [vmem:[#allocation2 + $0x138] sm:$0xff] 0.0
    %990 = vst [vmem:[#allocation2 + $0x140] sm:$0xff] 0.0
    %991 = vst [vmem:[#allocation2 + $0x148] sm:$0x3] 0.0
    %992 = vst [vmem:[#allocation2 + $0x150] sm:$0xff] 0.0
    %993 = vst [vmem:[#allocation2 + $0x158] sm:$0xff] 0.0
    %994 = vst [vmem:[#allocation2 + $0x160] sm:$0x3] 0.0
    %995 = vst [vmem:[#allocation2 + $0x168] sm:$0xff] 0.0
    %996 = vst [vmem:[#allocation2 + $0x170] sm:$0xff] 0.0
    %997 = vst [vmem:[#allocation2 + $0x178] sm:$0x3] 0.0
    %998 = vst [vmem:[#allocation2 + $0x180] sm:$0xff] 0.0
    %999 = vst [vmem:[#allocation2 + $0x188] sm:$0xff] 0.0
    %1000 = vst [vmem:[#allocation2 + $0x190] sm:$0x3] 0.0
    %1001 = vst [vmem:[#allocation2 + $0x198] sm:$0xff] 0.0
    %1002 = vst [vmem:[#allocation2 + $0x1a0] sm:$0xff] 0.0
    %1003 = vst [vmem:[#allocation2 + $0x1a8] sm:$0x3] 0.0
    %1004 = vst [vmem:[#allocation2 + $0x1b0] sm:$0xff] 0.0
    %1005 = vst [vmem:[#allocation2 + $0x1b8] sm:$0xff] 0.0
    %1006 = vst [vmem:[#allocation2 + $0x1c0] sm:$0x3] 0.0
    %1007 = vst [vmem:[#allocation2 + $0x1c8] sm:$0xff] 0.0
    %1008 = vst [vmem:[#allocation2 + $0x1d0] sm:$0xff] 0.0
    %1009 = vst [vmem:[#allocation2 + $0x1d8] sm:$0x3] 0.0
    %1010 = vst [vmem:[#allocation2 + $0x1e0] sm:$0xff] 0.0
    %1011 = vst [vmem:[#allocation2 + $0x1e8] sm:$0xff] 0.0
    %1012 = vst [vmem:[#allocation2 + $0x1f0] sm:$0x3] 0.0
    %1013 = vst [vmem:[#allocation2 + $0x1f8] sm:$0xff] 0.0
    %1014 = vst [vmem:[#allocation2 + $0x200] sm:$0xff] 0.0
    %1015 = vst [vmem:[#allocation2 + $0x208] sm:$0x3] 0.0
    %1016 = vst [vmem:[#allocation2 + $0x210] sm:$0xff] 0.0
    %1017 = vst [vmem:[#allocation2 + $0x218] sm:$0xff] 0.0
    %1018 = vst [vmem:[#allocation2 + $0x220] sm:$0x3] 0.0
    %1019 = vst [vmem:[#allocation2 + $0x228] sm:$0xff] 0.0
    %1020 = vst [vmem:[#allocation2 + $0x230] sm:$0xff] 0.0
    %1021 = vst [vmem:[#allocation2 + $0x238] sm:$0x3] 0.0
    %1022 = vst [vmem:[#allocation2 + $0x240] sm:$0xff] 0.0
    %1023 = vst [vmem:[#allocation2 + $0x248] sm:$0xff] 0.0
    %1024 = vst [vmem:[#allocation2 + $0x250] sm:$0x3] 0.0
    %1025 = vst [vmem:[#allocation2 + $0x258] sm:$0xff] 0.0
    %1026 = vst [vmem:[#allocation2 + $0x260] sm:$0xff] 0.0
    %1027 = vst [vmem:[#allocation2 + $0x268] sm:$0x3] 0.0
    %1028 = vst [vmem:[#allocation2 + $0x270] sm:$0xff] 0.0
    %1029 = vst [vmem:[#allocation2 + $0x278] sm:$0xff] 0.0
    %1030 = vst [vmem:[#allocation2 + $0x280] sm:$0x3] 0.0
    %1031 = vst [vmem:[#allocation2 + $0x288] sm:$0xff] 0.0
    %1032 = vst [vmem:[#allocation2 + $0x290] sm:$0xff] 0.0
    %1033 = vst [vmem:[#allocation2 + $0x298] sm:$0x3] 0.0
    %1034 = vst [vmem:[#allocation2 + $0x2a0] sm:$0xff] 0.0
    %1035 = vst [vmem:[#allocation2 + $0x2a8] sm:$0xff] 0.0
    %1036 = vst [vmem:[#allocation2 + $0x2b0] sm:$0x3] 0.0
    %1037 = vst [vmem:[#allocation2 + $0x2b8] sm:$0xff] 0.0
    %1038 = vst [vmem:[#allocation2 + $0x2c0] sm:$0xff] 0.0
    %1039 = vst [vmem:[#allocation2 + $0x2c8] sm:$0x3] 0.0
    %1040 = vst [vmem:[#allocation2 + $0x2d0] sm:$0xff] 0.0
    %1041 = vst [vmem:[#allocation2 + $0x2d8] sm:$0xff] 0.0
    %1042 = vst [vmem:[#allocation2 + $0x2e0] sm:$0x3] 0.0
    %1043 = vst [vmem:[#allocation2 + $0x2e8] sm:$0xff] 0.0
    %1044 = vst [vmem:[#allocation2 + $0x2f0] sm:$0xff] 0.0
    %1045 = vst [vmem:[#allocation2 + $0x2f8] sm:$0x3] 0.0
    %1046 = vst [vmem:[#allocation2 + $0x300] sm:$0xff] 0.0
    %1047 = vst [vmem:[#allocation2 + $0x308] sm:$0xff] 0.0
    %1048 = vst [vmem:[#allocation2 + $0x310] sm:$0x3] 0.0
    %1049 = vst [vmem:[#allocation2 + $0x318] sm:$0xff] 0.0
    %1050 = vst [vmem:[#allocation2 + $0x320] sm:$0xff] 0.0
    %1051 = vst [vmem:[#allocation2 + $0x328] sm:$0x3] 0.0
    %1052 = vst [vmem:[#allocation2 + $0x330] sm:$0xff] 0.0
    %1053 = vst [vmem:[#allocation2 + $0x338] sm:$0xff] 0.0
    %1054 = vst [vmem:[#allocation2 + $0x340] sm:$0x3] 0.0
    %1055 = vst [vmem:[#allocation2 + $0x348] sm:$0xff] 0.0
    %1056 = vst [vmem:[#allocation2 + $0x350] sm:$0xff] 0.0
    %1057 = vst [vmem:[#allocation2 + $0x358] sm:$0x3] 0.0
    %s1058 = scalar_lea.vmem [#allocation2], 24
    %1059 = vst [vmem:[%s1058 + $0x1] sm:$0xff] %v886
    %1060 = vst [vmem:[%s1058 + $0x9] sm:$0xff] %v887
    %1061 = vst [vmem:[%s1058 + $0x19] sm:$0xff] %v888
    %1062 = vst [vmem:[%s1058 + $0x21] sm:$0xff] %v889
    %1063 = vst [vmem:[%s1058 + $0x31] sm:$0xff] %v890
    %1064 = vst [vmem:[%s1058 + $0x39] sm:$0xff] %v891
    %1065 = vst [vmem:[%s1058 + $0x49] sm:$0xff] %v892
    %1066 = vst [vmem:[%s1058 + $0x51] sm:$0xff] %v893
    %1067 = vst [vmem:[%s1058 + $0x61] sm:$0xff] %v894
    %1068 = vst [vmem:[%s1058 + $0x69] sm:$0xff] %v895
    %1069 = vst [vmem:[%s1058 + $0x79] sm:$0xff] %v896
    %1070 = vst [vmem:[%s1058 + $0x81] sm:$0xff] %v897
    %1071 = vst [vmem:[%s1058 + $0x91] sm:$0xff] %v898
    %1072 = vst [vmem:[%s1058 + $0x99] sm:$0xff] %v899
    %1073 = vst [vmem:[%s1058 + $0xa9] sm:$0xff] %v900
    %1074 = vst [vmem:[%s1058 + $0xb1] sm:$0xff] %v901
    %1075 = vst [vmem:[%s1058 + $0xc1] sm:$0xff] %v902
    %1076 = vst [vmem:[%s1058 + $0xc9] sm:$0xff] %v903
    %1077 = vst [vmem:[%s1058 + $0xd9] sm:$0xff] %v904
    %1078 = vst [vmem:[%s1058 + $0xe1] sm:$0xff] %v905
    %1079 = vst [vmem:[%s1058 + $0xf1] sm:$0xff] %v906
    %1080 = vst [vmem:[%s1058 + $0xf9] sm:$0xff] %v907
    %1081 = vst [vmem:[%s1058 + $0x109] sm:$0xff] %v908
    %1082 = vst [vmem:[%s1058 + $0x111] sm:$0xff] %v909
    %1083 = vst [vmem:[%s1058 + $0x121] sm:$0xff] %v910
    %1084 = vst [vmem:[%s1058 + $0x129] sm:$0xff] %v911
    %1085 = vst [vmem:[%s1058 + $0x139] sm:$0xff] %v912
    %1086 = vst [vmem:[%s1058 + $0x141] sm:$0xff] %v913
    %1087 = vst [vmem:[%s1058 + $0x151] sm:$0xff] %v914
    %1088 = vst [vmem:[%s1058 + $0x159] sm:$0xff] %v915
    %1089 = vst [vmem:[%s1058 + $0x169] sm:$0xff] %v916
    %1090 = vst [vmem:[%s1058 + $0x171] sm:$0xff] %v917
    %1091 = vst [vmem:[%s1058 + $0x1b1] sm:$0xff] %v918
    %1092 = vst [vmem:[%s1058 + $0x1b9] sm:$0xff] %v919
    %1093 = vst [vmem:[%s1058 + $0x1c9] sm:$0xff] %v920
    %1094 = vst [vmem:[%s1058 + $0x1d1] sm:$0xff] %v921
    %1095 = vst [vmem:[%s1058 + $0x1e1] sm:$0xff] %v922
    %1096 = vst [vmem:[%s1058 + $0x1e9] sm:$0xff] %v923
    %1097 = vst [vmem:[%s1058 + $0x1f9] sm:$0xff] %v924
    %1098 = vst [vmem:[%s1058 + $0x201] sm:$0xff] %v925
    %1099 = vst [vmem:[%s1058 + $0x211] sm:$0xff] %v926
    %1100 = vst [vmem:[%s1058 + $0x219] sm:$0xff] %v927
    %1101 = vst [vmem:[%s1058 + $0x229] sm:$0xff] %v928
    %1102 = vst [vmem:[%s1058 + $0x231] sm:$0xff] %v929
    %1103 = vst [vmem:[%s1058 + $0x241] sm:$0xff] %v930
    %1104 = vst [vmem:[%s1058 + $0x249] sm:$0xff] %v931
    %1105 = vst [vmem:[%s1058 + $0x259] sm:$0xff] %v932
    %1106 = vst [vmem:[%s1058 + $0x261] sm:$0xff] %v933
    %1107 = vst [vmem:[%s1058 + $0x271] sm:$0xff] %v934
    %1108 = vst [vmem:[%s1058 + $0x279] sm:$0xff] %v935
    %1109 = vst [vmem:[%s1058 + $0x289] sm:$0xff] %v936
    %1110 = vst [vmem:[%s1058 + $0x291] sm:$0xff] %v937
    %1111 = vst [vmem:[%s1058 + $0x2a1] sm:$0xff] %v938
    %1112 = vst [vmem:[%s1058 + $0x2a9] sm:$0xff] %v939
    %1113 = vst [vmem:[%s1058 + $0x2b9] sm:$0xff] %v940
    %1114 = vst [vmem:[%s1058 + $0x2c1] sm:$0xff] %v941
    %1115 = vst [vmem:[%s1058 + $0x2d1] sm:$0xff] %v942
    %1116 = vst [vmem:[%s1058 + $0x2d9] sm:$0xff] %v943
    %1117 = vst [vmem:[%s1058 + $0x2e9] sm:$0xff] %v944
    %1118 = vst [vmem:[%s1058 + $0x2f1] sm:$0xff] %v945
    %1119 = vst [vmem:[%s1058 + $0x301] sm:$0xff] %v946
    %1120 = vst [vmem:[%s1058 + $0x309] sm:$0xff] %v947
    %1121 = vst [vmem:[%s1058 + $0x319] sm:$0xff] %v948
    %1122 = vst [vmem:[%s1058 + $0x321] sm:$0xff] %v949
    %1123 = vst [vmem:[#allocation3] sm:$0xff] 0.0
    %1124 = vst [vmem:[#allocation3 + $0x8] sm:$0xff] 0.0
    %1125 = vst [vmem:[#allocation3 + $0x10] sm:$0xff] 0.0
    %1126 = vst [vmem:[#allocation3 + $0x18] sm:$0xff] 0.0
    %1127 = vst [vmem:[#allocation3 + $0x20] sm:$0xff] 0.0
    %1128 = vst [vmem:[#allocation3 + $0x28] sm:$0xff] 0.0
    %1129 = vst [vmem:[#allocation3 + $0x30] sm:$0xff] 0.0
    %1130 = vst [vmem:[#allocation3 + $0x38] sm:$0xff] 0.0
    %1131 = vst [vmem:[#allocation3 + $0x40] sm:$0xff] 0.0
    %1132 = vst [vmem:[#allocation3 + $0x48] sm:$0xff] 0.0
    %1133 = vst [vmem:[#allocation3 + $0x50] sm:$0xff] 0.0
    %1134 = vst [vmem:[#allocation3 + $0x58] sm:$0xff] 0.0
    %1135 = vst [vmem:[#allocation3 + $0x60] sm:$0xff] 0.0
    %1136 = vst [vmem:[#allocation3 + $0x68] sm:$0xff] 0.0
    %1137 = vst [vmem:[#allocation3 + $0x70] sm:$0xff] 0.0
    %1138 = vst [vmem:[#allocation3 + $0x78] sm:$0xff] 0.0
    %1139 = vst [vmem:[#allocation3 + $0x80] sm:$0xff] 0.0
    %1140 = vst [vmem:[#allocation3 + $0x88] sm:$0xff] 0.0
    %1141 = vst [vmem:[#allocation3 + $0x90] sm:$0xff] 0.0
    %1142 = vst [vmem:[#allocation3 + $0x98] sm:$0xff] 0.0
    %1143 = vst [vmem:[#allocation3 + $0xa0] sm:$0xff] 0.0
    %1144 = vst [vmem:[#allocation3 + $0xa8] sm:$0xff] 0.0
    %1145 = vst [vmem:[#allocation3 + $0xb0] sm:$0xff] 0.0
    %1146 = vst [vmem:[#allocation3 + $0xb8] sm:$0xff] 0.0
    %1147 = vst [vmem:[#allocation3 + $0xc0] sm:$0xff] 0.0
    %1148 = vst [vmem:[#allocation3 + $0xc8] sm:$0xff] 0.0
    %1149 = vst [vmem:[#allocation3 + $0xd0] sm:$0xff] 0.0
    %1150 = vst [vmem:[#allocation3 + $0xd8] sm:$0xff] 0.0
    %1151 = vst [vmem:[#allocation3 + $0xe0] sm:$0xff] 0.0
    %1152 = vst [vmem:[#allocation3 + $0xe8] sm:$0xff] 0.0
    %1153 = vst [vmem:[#allocation3 + $0xf0] sm:$0xff] 0.0
    %1154 = vst [vmem:[#allocation3 + $0xf8] sm:$0xff] 0.0
    %1155 = vst [vmem:[#allocation3 + $0x100] sm:$0xff] 0.0
    %1156 = vst [vmem:[#allocation3 + $0x108] sm:$0xff] 0.0
    %1157 = vst [vmem:[#allocation3 + $0x110] sm:$0xff] 0.0
    %1158 = vst [vmem:[#allocation3 + $0x118] sm:$0xff] 0.0
    %1159 = vst [vmem:[#allocation3 + $0x120] sm:$0xff] 0.0
    %1160 = vst [vmem:[#allocation3 + $0x128] sm:$0xff] 0.0
    %1161 = vst [vmem:[#allocation3 + $0x130] sm:$0xff] 0.0
    %1162 = vst [vmem:[#allocation3 + $0x138] sm:$0xff] 0.0
    %1163 = vst [vmem:[#allocation3 + $0x140] sm:$0xff] 0.0
    %1164 = vst [vmem:[#allocation3 + $0x148] sm:$0xff] 0.0
    %1165 = vst [vmem:[#allocation3 + $0x150] sm:$0xff] 0.0
    %1166 = vst [vmem:[#allocation3 + $0x158] sm:$0xff] 0.0
    %1167 = vst [vmem:[#allocation3 + $0x160] sm:$0xff] 0.0
    %1168 = vst [vmem:[#allocation3 + $0x168] sm:$0xff] 0.0
    %1169 = vst [vmem:[#allocation3 + $0x170] sm:$0xff] 0.0
    %1170 = vst [vmem:[#allocation3 + $0x178] sm:$0xff] 0.0
    %1171 = vst [vmem:[#allocation3 + $0x180] sm:$0xff] 0.0
    %1172 = vst [vmem:[#allocation3 + $0x188] sm:$0xff] 0.0
    %1173 = vst [vmem:[#allocation3 + $0x190] sm:$0xff] 0.0
    %1174 = vst [vmem:[#allocation3 + $0x198] sm:$0xff] 0.0
    %1175 = vst [vmem:[#allocation3 + $0x1a0] sm:$0xff] 0.0
    %1176 = vst [vmem:[#allocation3 + $0x1a8] sm:$0xff] 0.0
    %1177 = vst [vmem:[#allocation3 + $0x1b0] sm:$0xff] 0.0
    %1178 = vst [vmem:[#allocation3 + $0x1b8] sm:$0xff] 0.0
    %1179 = vst [vmem:[#allocation3 + $0x1c0] sm:$0xff] 0.0
    %1180 = vst [vmem:[#allocation3 + $0x1c8] sm:$0xff] 0.0
    %1181 = vst [vmem:[#allocation3 + $0x1d0] sm:$0xff] 0.0
    %1182 = vst [vmem:[#allocation3 + $0x1d8] sm:$0xff] 0.0
    %1183 = vst [vmem:[#allocation3 + $0x1e0] sm:$0xff] 0.0
    %1184 = vst [vmem:[#allocation3 + $0x1e8] sm:$0xff] 0.0
    %1185 = vst [vmem:[#allocation3 + $0x1f0] sm:$0xff] 0.0
    %1186 = vst [vmem:[#allocation3 + $0x1f8] sm:$0xff] 0.0
    %v1187 = vld [vmem:[#allocation2] sm:$0xff]
    %v1188 = vld [vmem:[#allocation2 + $0x8] sm:$0xff]
    %v1189 = vld [vmem:[#allocation2 + $0x18] sm:$0xff]
    %v1190 = vld [vmem:[#allocation2 + $0x20] sm:$0xff]
    %v1191 = vld [vmem:[#allocation2 + $0x30] sm:$0xff]
    %v1192 = vld [vmem:[#allocation2 + $0x38] sm:$0xff]
    %v1193 = vld [vmem:[#allocation2 + $0x48] sm:$0xff]
    %v1194 = vld [vmem:[#allocation2 + $0x50] sm:$0xff]
    %v1195 = vld [vmem:[#allocation2 + $0x60] sm:$0xff]
    %v1196 = vld [vmem:[#allocation2 + $0x68] sm:$0xff]
    %v1197 = vld [vmem:[#allocation2 + $0x78] sm:$0xff]
    %v1198 = vld [vmem:[#allocation2 + $0x80] sm:$0xff]
    %v1199 = vld [vmem:[#allocation2 + $0x90] sm:$0xff]
    %v1200 = vld [vmem:[#allocation2 + $0x98] sm:$0xff]
    %v1201 = vld [vmem:[#allocation2 + $0xa8] sm:$0xff]
    %v1202 = vld [vmem:[#allocation2 + $0xb0] sm:$0xff]
    %v1203 = vld [vmem:[#allocation2 + $0xc0] sm:$0xff]
    %v1204 = vld [vmem:[#allocation2 + $0xc8] sm:$0xff]
    %v1205 = vld [vmem:[#allocation2 + $0xd8] sm:$0xff]
    %v1206 = vld [vmem:[#allocation2 + $0xe0] sm:$0xff]
    %v1207 = vld [vmem:[#allocation2 + $0xf0] sm:$0xff]
    %v1208 = vld [vmem:[#allocation2 + $0xf8] sm:$0xff]
    %v1209 = vld [vmem:[#allocation2 + $0x108] sm:$0xff]
    %v1210 = vld [vmem:[#allocation2 + $0x110] sm:$0xff]
    %v1211 = vld [vmem:[#allocation2 + $0x120] sm:$0xff]
    %v1212 = vld [vmem:[#allocation2 + $0x128] sm:$0xff]
    %v1213 = vld [vmem:[#allocation2 + $0x138] sm:$0xff]
    %v1214 = vld [vmem:[#allocation2 + $0x140] sm:$0xff]
    %v1215 = vld [vmem:[#allocation2 + $0x150] sm:$0xff]
    %v1216 = vld [vmem:[#allocation2 + $0x158] sm:$0xff]
    %v1217 = vld [vmem:[#allocation2 + $0x168] sm:$0xff]
    %v1218 = vld [vmem:[#allocation2 + $0x170] sm:$0xff]
    %v1219 = vld [vmem:[#allocation2 + $0x1b0] sm:$0xff]
    %v1220 = vld [vmem:[#allocation2 + $0x1b8] sm:$0xff]
    %v1221 = vld [vmem:[#allocation2 + $0x1c8] sm:$0xff]
    %v1222 = vld [vmem:[#allocation2 + $0x1d0] sm:$0xff]
    %v1223 = vld [vmem:[#allocation2 + $0x1e0] sm:$0xff]
    %v1224 = vld [vmem:[#allocation2 + $0x1e8] sm:$0xff]
    %v1225 = vld [vmem:[#allocation2 + $0x1f8] sm:$0xff]
    %v1226 = vld [vmem:[#allocation2 + $0x200] sm:$0xff]
    %v1227 = vld [vmem:[#allocation2 + $0x210] sm:$0xff]
    %v1228 = vld [vmem:[#allocation2 + $0x218] sm:$0xff]
    %v1229 = vld [vmem:[#allocation2 + $0x228] sm:$0xff]
    %v1230 = vld [vmem:[#allocation2 + $0x230] sm:$0xff]
    %v1231 = vld [vmem:[#allocation2 + $0x240] sm:$0xff]
    %v1232 = vld [vmem:[#allocation2 + $0x248] sm:$0xff]
    %v1233 = vld [vmem:[#allocation2 + $0x258] sm:$0xff]
    %v1234 = vld [vmem:[#allocation2 + $0x260] sm:$0xff]
    %v1235 = vld [vmem:[#allocation2 + $0x270] sm:$0xff]
    %v1236 = vld [vmem:[#allocation2 + $0x278] sm:$0xff]
    %v1237 = vld [vmem:[#allocation2 + $0x288] sm:$0xff]
    %v1238 = vld [vmem:[#allocation2 + $0x290] sm:$0xff]
    %v1239 = vld [vmem:[#allocation2 + $0x2a0] sm:$0xff]
    %v1240 = vld [vmem:[#allocation2 + $0x2a8] sm:$0xff]
    %v1241 = vld [vmem:[#allocation2 + $0x2b8] sm:$0xff]
    %v1242 = vld [vmem:[#allocation2 + $0x2c0] sm:$0xff]
    %v1243 = vld [vmem:[#allocation2 + $0x2d0] sm:$0xff]
    %v1244 = vld [vmem:[#allocation2 + $0x2d8] sm:$0xff]
    %v1245 = vld [vmem:[#allocation2 + $0x2e8] sm:$0xff]
    %v1246 = vld [vmem:[#allocation2 + $0x2f0] sm:$0xff]
    %v1247 = vld [vmem:[#allocation2 + $0x300] sm:$0xff]
    %v1248 = vld [vmem:[#allocation2 + $0x308] sm:$0xff]
    %v1249 = vld [vmem:[#allocation2 + $0x318] sm:$0xff]
    %v1250 = vld [vmem:[#allocation2 + $0x320] sm:$0xff]
    %v1251 = vld [vmem:[#allocation3] sm:$0xff]
    %v1252 = vld [vmem:[#allocation3 + $0x8] sm:$0xff]
    %v1253 = vld [vmem:[#allocation3 + $0x10] sm:$0xff]
    %v1254 = vld [vmem:[#allocation3 + $0x18] sm:$0xff]
    %v1255 = vld [vmem:[#allocation3 + $0x20] sm:$0xff]
    %v1256 = vld [vmem:[#allocation3 + $0x28] sm:$0xff]
    %v1257 = vld [vmem:[#allocation3 + $0x30] sm:$0xff]
    %v1258 = vld [vmem:[#allocation3 + $0x38] sm:$0xff]
    %v1259 = vld [vmem:[#allocation3 + $0x40] sm:$0xff]
    %v1260 = vld [vmem:[#allocation3 + $0x48] sm:$0xff]
    %v1261 = vld [vmem:[#allocation3 + $0x50] sm:$0xff]
    %v1262 = vld [vmem:[#allocation3 + $0x58] sm:$0xff]
    %v1263 = vld [vmem:[#allocation3 + $0x60] sm:$0xff]
    %v1264 = vld [vmem:[#allocation3 + $0x68] sm:$0xff]
    %v1265 = vld [vmem:[#allocation3 + $0x70] sm:$0xff]
    %v1266 = vld [vmem:[#allocation3 + $0x78] sm:$0xff]
    %v1267 = vld [vmem:[#allocation3 + $0x80] sm:$0xff]
    %v1268 = vld [vmem:[#allocation3 + $0x88] sm:$0xff]
    %v1269 = vld [vmem:[#allocation3 + $0x90] sm:$0xff]
    %v1270 = vld [vmem:[#allocation3 + $0x98] sm:$0xff]
    %v1271 = vld [vmem:[#allocation3 + $0xa0] sm:$0xff]
    %v1272 = vld [vmem:[#allocation3 + $0xa8] sm:$0xff]
    %v1273 = vld [vmem:[#allocation3 + $0xb0] sm:$0xff]
    %v1274 = vld [vmem:[#allocation3 + $0xb8] sm:$0xff]
    %v1275 = vld [vmem:[#allocation3 + $0xc0] sm:$0xff]
    %v1276 = vld [vmem:[#allocation3 + $0xc8] sm:$0xff]
    %v1277 = vld [vmem:[#allocation3 + $0xd0] sm:$0xff]
    %v1278 = vld [vmem:[#allocation3 + $0xd8] sm:$0xff]
    %v1279 = vld [vmem:[#allocation3 + $0xe0] sm:$0xff]
    %v1280 = vld [vmem:[#allocation3 + $0xe8] sm:$0xff]
    %v1281 = vld [vmem:[#allocation3 + $0xf0] sm:$0xff]
    %v1282 = vld [vmem:[#allocation3 + $0xf8] sm:$0xff]
    %v1283 = vld [vmem:[#allocation3 + $0x100] sm:$0xff]
    %v1284 = vld [vmem:[#allocation3 + $0x108] sm:$0xff]
    %v1285 = vld [vmem:[#allocation3 + $0x110] sm:$0xff]
    %v1286 = vld [vmem:[#allocation3 + $0x118] sm:$0xff]
    %v1287 = vld [vmem:[#allocation3 + $0x120] sm:$0xff]
    %v1288 = vld [vmem:[#allocation3 + $0x128] sm:$0xff]
    %v1289 = vld [vmem:[#allocation3 + $0x130] sm:$0xff]
    %v1290 = vld [vmem:[#allocation3 + $0x138] sm:$0xff]
    %v1291 = vld [vmem:[#allocation3 + $0x140] sm:$0xff]
    %v1292 = vld [vmem:[#allocation3 + $0x148] sm:$0xff]
    %v1293 = vld [vmem:[#allocation3 + $0x150] sm:$0xff]
    %v1294 = vld [vmem:[#allocation3 + $0x158] sm:$0xff]
    %v1295 = vld [vmem:[#allocation3 + $0x160] sm:$0xff]
    %v1296 = vld [vmem:[#allocation3 + $0x168] sm:$0xff]
    %v1297 = vld [vmem:[#allocation3 + $0x170] sm:$0xff]
    %v1298 = vld [vmem:[#allocation3 + $0x178] sm:$0xff]
    %v1299 = vld [vmem:[#allocation3 + $0x180] sm:$0xff]
    %v1300 = vld [vmem:[#allocation3 + $0x188] sm:$0xff]
    %v1301 = vld [vmem:[#allocation3 + $0x190] sm:$0xff]
    %v1302 = vld [vmem:[#allocation3 + $0x198] sm:$0xff]
    %v1303 = vld [vmem:[#allocation3 + $0x1a0] sm:$0xff]
    %v1304 = vld [vmem:[#allocation3 + $0x1a8] sm:$0xff]
    %v1305 = vld [vmem:[#allocation3 + $0x1b0] sm:$0xff]
    %v1306 = vld [vmem:[#allocation3 + $0x1b8] sm:$0xff]
    %v1307 = vld [vmem:[#allocation3 + $0x1c0] sm:$0xff]
    %v1308 = vld [vmem:[#allocation3 + $0x1c8] sm:$0xff]
    %v1309 = vld [vmem:[#allocation3 + $0x1d0] sm:$0xff]
    %v1310 = vld [vmem:[#allocation3 + $0x1d8] sm:$0xff]
    %v1311 = vld [vmem:[#allocation3 + $0x1e0] sm:$0xff]
    %v1312 = vld [vmem:[#allocation3 + $0x1e8] sm:$0xff]
    %v1313 = vld [vmem:[#allocation3 + $0x1f0] sm:$0xff]
    %v1314 = vld [vmem:[#allocation3 + $0x1f8] sm:$0xff]
    %v1315 = vpack.c.bf16 %v1188, %v1187
    %v1316 = vpack.c.bf16 %v1190, %v1189
    %v1317 = vpack.c.bf16 %v1192, %v1191
    %v1318 = vpack.c.bf16 %v1194, %v1193
    %v1319 = vpack.c.bf16 %v1196, %v1195
    %v1320 = vpack.c.bf16 %v1198, %v1197
    %v1321 = vpack.c.bf16 %v1200, %v1199
    %v1322 = vpack.c.bf16 %v1202, %v1201
    %v1323 = vpack.c.bf16 %v1204, %v1203
    %v1324 = vpack.c.bf16 %v1206, %v1205
    %v1325 = vpack.c.bf16 %v1208, %v1207
    %v1326 = vpack.c.bf16 %v1210, %v1209
    %v1327 = vpack.c.bf16 %v1212, %v1211
    %v1328 = vpack.c.bf16 %v1214, %v1213
    %v1329 = vpack.c.bf16 %v1216, %v1215
    %v1330 = vpack.c.bf16 %v1218, %v1217
    %v1331 = vpack.c.bf16 %v1220, %v1219
    %v1332 = vpack.c.bf16 %v1222, %v1221
    %v1333 = vpack.c.bf16 %v1224, %v1223
    %v1334 = vpack.c.bf16 %v1226, %v1225
    %v1335 = vpack.c.bf16 %v1228, %v1227
    %v1336 = vpack.c.bf16 %v1230, %v1229
    %v1337 = vpack.c.bf16 %v1232, %v1231
    %v1338 = vpack.c.bf16 %v1234, %v1233
    %v1339 = vpack.c.bf16 %v1236, %v1235
    %v1340 = vpack.c.bf16 %v1238, %v1237
    %v1341 = vpack.c.bf16 %v1240, %v1239
    %v1342 = vpack.c.bf16 %v1242, %v1241
    %v1343 = vpack.c.bf16 %v1244, %v1243
    %v1344 = vpack.c.bf16 %v1246, %v1245
    %v1345 = vpack.c.bf16 %v1248, %v1247
    %v1346 = vpack.c.bf16 %v1250, %v1249
    %v1347 = vld [vmem:[#allocation9] sm:$0xf]
    %v1348 = vld [vmem:[#allocation9 + $0x4] sm:$0xf]
    %v1349 = vld [vmem:[#allocation9 + $0x8] sm:$0xf]
    %v1350 = vld [vmem:[#allocation9 + $0xc] sm:$0xf]
    %v1351 = vld [vmem:[#allocation9 + $0x10] sm:$0xf]
    %v1352 = vld [vmem:[#allocation9 + $0x14] sm:$0xf]
    %v1353 = vld [vmem:[#allocation9 + $0x18] sm:$0xf]
    %v1354 = vld [vmem:[#allocation9 + $0x1c] sm:$0xf]
    %v1355 = vld [vmem:[#allocation9 + $0x20] sm:$0xf]
    %v1356 = vld [vmem:[#allocation9 + $0x24] sm:$0xf]
    %v1357 = vld [vmem:[#allocation9 + $0x28] sm:$0xf]
    %v1358 = vld [vmem:[#allocation9 + $0x2c] sm:$0xf]
    %v1359 = vld [vmem:[#allocation9 + $0x30] sm:$0xf]
    %v1360 = vld [vmem:[#allocation9 + $0x34] sm:$0xf]
    %v1361 = vld [vmem:[#allocation9 + $0x38] sm:$0xf]
    %v1362 = vld [vmem:[#allocation9 + $0x3c] sm:$0xf]
    %v1379 = vunpack.c.l.b16 %v1347
    %v1380 = vunpack.c.l.b16 %v1348
    %v1381 = vunpack.c.l.b16 %v1349
    %v1382 = vunpack.c.l.b16 %v1350
    %v1383 = vunpack.c.l.b16 %v1351
    %v1384 = vunpack.c.l.b16 %v1352
    %v1385 = vunpack.c.l.b16 %v1353
    %v1386 = vunpack.c.l.b16 %v1354
    %v1387 = vunpack.c.l.b16 %v1355
    %v1388 = vunpack.c.l.b16 %v1356
    %v1389 = vunpack.c.l.b16 %v1357
    %v1390 = vunpack.c.l.b16 %v1358
    %v1391 = vunpack.c.l.b16 %v1359
    %v1392 = vunpack.c.l.b16 %v1360
    %v1393 = vunpack.c.l.b16 %v1361
    %v1394 = vunpack.c.l.b16 %v1362
    %v1395 = vpack.c.b16 %v1380, %v1379
    %v1396 = vpack.c.b16 %v1382, %v1381
    %v1397 = vpack.c.b16 %v1384, %v1383
    %v1398 = vpack.c.b16 %v1386, %v1385
    %v1399 = vpack.c.b16 %v1388, %v1387
    %v1400 = vpack.c.b16 %v1390, %v1389
    %v1401 = vpack.c.b16 %v1392, %v1391
    %v1402 = vpack.c.b16 %v1394, %v1393
    %1411 = vmatprep.subr.bf16.mxu0 0
    %1412 = vmatpush1.bf16.msra.mxu0 %v1395
    %1413 = vmatprep.subr.bf16.mxu0 0
    %1414 = vmatpush1.bf16.msra.mxu0 %v1396
    %1415 = vmatprep.subr.bf16.mxu0 0
    %1416 = vmatpush1.bf16.msra.mxu0 %v1397
    %1417 = vmatprep.subr.bf16.mxu0 0
    %1418 = vmatpush1.bf16.msra.mxu0 %v1398
    %1419 = vmatprep.subr.bf16.mxu0 0
    %1420 = vmatpush1.bf16.msra.mxu0 %v1399
    %1421 = vmatprep.subr.bf16.mxu0 0
    %1422 = vmatpush1.bf16.msra.mxu0 %v1400
    %1423 = vmatprep.subr.bf16.mxu0 0
    %1424 = vmatpush1.bf16.msra.mxu0 %v1401
    %1425 = vmatprep.subr.bf16.mxu0 0
    %1426 = vmatpush1.bf16.msra.mxu0 %v1402
    %1427 = vmatprep.subr.bf16.mxu0 0
    %1428 = vmatpush1.bf16.msra.mxu0 0
    %1429 = vmatprep.subr.bf16.mxu0 0
    %1430 = vmatpush1.bf16.msra.mxu0 0
    %1431 = vmatprep.subr.bf16.mxu0 0
    %1432 = vmatpush1.bf16.msra.mxu0 0
    %1433 = vmatprep.subr.bf16.mxu0 0
    %1434 = vmatpush1.bf16.msra.mxu0 0
    %1435 = vmatprep.subr.bf16.mxu0 0
    %1436 = vmatpush1.bf16.msra.mxu0 0
    %1437 = vmatprep.subr.bf16.mxu0 0
    %1438 = vmatpush1.bf16.msra.mxu0 0
    %1439 = vmatprep.subr.bf16.mxu0 0
    %1440 = vmatpush1.bf16.msra.mxu0 0
    %1441 = vmatprep.subr.bf16.mxu0 0
    %1442 = vmatpush1.bf16.msra.mxu0 0
    %1443 = vmatprep.mubr.bf16.mxu0 0
    %1444 = vmatmul.mubr.bf16.gmra.mrb[0].mxu0 %v1315
    %v1445 = vpop.f32.mrb[0].mxu0
    %v1446 = vadd.f32 0.0, %v1445
    %v1447 = vpop.f32.mrb[0].mxu0
    %v1448 = vpop.f32.mrb[0].mxu0
    %v1449 = vadd.f32 0.0, %v1448
    %v1450 = vpop.f32.mrb[0].mxu0
    %1451 = vmatprep.mubr.bf16.mxu0 0
    %1452 = vmatmul.mubr.bf16.gmra.mrb[0].mxu0 %v1316
    %v1453 = vpop.f32.mrb[0].mxu0
    %v1454 = vadd.f32 0.0, %v1453
    %v1455 = vpop.f32.mrb[0].mxu0
    %v1456 = vpop.f32.mrb[0].mxu0
    %v1457 = vadd.f32 0.0, %v1456
    %v1458 = vpop.f32.mrb[0].mxu0
    %1459 = vmatprep.mubr.bf16.mxu0 0
    %1460 = vmatmul.mubr.bf16.gmra.mrb[0].mxu0 %v1317
    %v1461 = vpop.f32.mrb[0].mxu0
    %v1462 = vadd.f32 0.0, %v1461
    %v1463 = vpop.f32.mrb[0].mxu0
    %v1464 = vpop.f32.mrb[0].mxu0
    %v1465 = vadd.f32 0.0, %v1464
    %v1466 = vpop.f32.mrb[0].mxu0
    %1467 = vmatprep.mubr.bf16.mxu0 0
    %1468 = vmatmul.mubr.bf16.gmra.mrb[0].mxu0 %v1318
    %v1469 = vpop.f32.mrb[0].mxu0
    %v1470 = vadd.f32 0.0, %v1469
    %v1471 = vpop.f32.mrb[0].mxu0
    %v1472 = vpop.f32.mrb[0].mxu0
    %v1473 = vadd.f32 0.0, %v1472
    %v1474 = vpop.f32.mrb[0].mxu0
    %1475 = vmatprep.mubr.bf16.mxu0 0
    %1476 = vmatmul.mubr.bf16.gmra.mrb[0].mxu0 %v1319
    %v1477 = vpop.f32.mrb[0].mxu0
    %v1478 = vadd.f32 0.0, %v1477
    %v1479 = vpop.f32.mrb[0].mxu0
    %v1480 = vpop.f32.mrb[0].mxu0
    %v1481 = vadd.f32 0.0, %v1480
    %v1482 = vpop.f32.mrb[0].mxu0
    %1483 = vmatprep.mubr.bf16.mxu0 0
    %1484 = vmatmul.mubr.bf16.gmra.mrb[0].mxu0 %v1320
    %v1485 = vpop.f32.mrb[0].mxu0
    %v1486 = vadd.f32 0.0, %v1485
    %v1487 = vpop.f32.mrb[0].mxu0
    %v1488 = vpop.f32.mrb[0].mxu0
    %v1489 = vadd.f32 0.0, %v1488
    %v1490 = vpop.f32.mrb[0].mxu0
    %1491 = vmatprep.mubr.bf16.mxu0 0
    %1492 = vmatmul.mubr.bf16.gmra.mrb[0].mxu0 %v1321
    %v1493 = vpop.f32.mrb[0].mxu0
    %v1494 = vadd.f32 0.0, %v1493
    %v1495 = vpop.f32.mrb[0].mxu0
    %v1496 = vpop.f32.mrb[0].mxu0
    %v1497 = vadd.f32 0.0, %v1496
    %v1498 = vpop.f32.mrb[0].mxu0
    %1499 = vmatprep.mubr.bf16.mxu0 0
    %1500 = vmatmul.mubr.bf16.gmra.mrb[0].mxu0 %v1322
    %v1501 = vpop.f32.mrb[0].mxu0
    %v1502 = vadd.f32 0.0, %v1501
    %v1503 = vpop.f32.mrb[0].mxu0
    %v1504 = vpop.f32.mrb[0].mxu0
    %v1505 = vadd.f32 0.0, %v1504
    %v1506 = vpop.f32.mrb[0].mxu0
    %1507 = vmatprep.mubr.bf16.mxu0 0
    %1508 = vmatmul.mubr.bf16.gmra.mrb[0].mxu0 %v1323
    %v1509 = vpop.f32.mrb[0].mxu0
    %v1510 = vadd.f32 0.0, %v1509
    %v1511 = vpop.f32.mrb[0].mxu0
    %v1512 = vpop.f32.mrb[0].mxu0
    %v1513 = vadd.f32 0.0, %v1512
    %v1514 = vpop.f32.mrb[0].mxu0
    %1515 = vmatprep.mubr.bf16.mxu0 0
    %1516 = vmatmul.mubr.bf16.gmra.mrb[0].mxu0 %v1324
    %v1517 = vpop.f32.mrb[0].mxu0
    %v1518 = vadd.f32 0.0, %v1517
    %v1519 = vpop.f32.mrb[0].mxu0
    %v1520 = vpop.f32.mrb[0].mxu0
    %v1521 = vadd.f32 0.0, %v1520
    %v1522 = vpop.f32.mrb[0].mxu0
    %1523 = vmatprep.mubr.bf16.mxu0 0
    %1524 = vmatmul.mubr.bf16.gmra.mrb[0].mxu0 %v1325
    %v1525 = vpop.f32.mrb[0].mxu0
    %v1526 = vadd.f32 0.0, %v1525
    %v1527 = vpop.f32.mrb[0].mxu0
    %v1528 = vpop.f32.mrb[0].mxu0
    %v1529 = vadd.f32 0.0, %v1528
    %v1530 = vpop.f32.mrb[0].mxu0
    %1531 = vmatprep.mubr.bf16.mxu0 0
    %1532 = vmatmul.mubr.bf16.gmra.mrb[0].mxu0 %v1326
    %v1533 = vpop.f32.mrb[0].mxu0
    %v1534 = vadd.f32 0.0, %v1533
    %v1535 = vpop.f32.mrb[0].mxu0
    %v1536 = vpop.f32.mrb[0].mxu0
    %v1537 = vadd.f32 0.0, %v1536
    %v1538 = vpop.f32.mrb[0].mxu0
    %1539 = vmatprep.mubr.bf16.mxu0 0
    %1540 = vmatmul.mubr.bf16.gmra.mrb[0].mxu0 %v1327
    %v1541 = vpop.f32.mrb[0].mxu0
    %v1542 = vadd.f32 0.0, %v1541
    %v1543 = vpop.f32.mrb[0].mxu0
    %v1544 = vpop.f32.mrb[0].mxu0
    %v1545 = vadd.f32 0.0, %v1544
    %v1546 = vpop.f32.mrb[0].mxu0
    %1547 = vmatprep.mubr.bf16.mxu0 0
    %1548 = vmatmul.mubr.bf16.gmra.mrb[0].mxu0 %v1328
    %v1549 = vpop.f32.mrb[0].mxu0
    %v1550 = vadd.f32 0.0, %v1549
    %v1551 = vpop.f32.mrb[0].mxu0
    %v1552 = vpop.f32.mrb[0].mxu0
    %v1553 = vadd.f32 0.0, %v1552
    %v1554 = vpop.f32.mrb[0].mxu0
    %1555 = vmatprep.mubr.bf16.mxu0 0
    %1556 = vmatmul.mubr.bf16.gmra.mrb[0].mxu0 %v1329
    %v1557 = vpop.f32.mrb[0].mxu0
    %v1558 = vadd.f32 0.0, %v1557
    %v1559 = vpop.f32.mrb[0].mxu0
    %v1560 = vpop.f32.mrb[0].mxu0
    %v1561 = vadd.f32 0.0, %v1560
    %v1562 = vpop.f32.mrb[0].mxu0
    %1563 = vmatprep.mubr.bf16.mxu0 0
    %1564 = vmatmul.mubr.bf16.gmra.mrb[0].mxu0 %v1330
    %v1565 = vpop.f32.mrb[0].mxu0
    %v1566 = vadd.f32 0.0, %v1565
    %v1567 = vpop.f32.mrb[0].mxu0
    %v1568 = vpop.f32.mrb[0].mxu0
    %v1569 = vadd.f32 0.0, %v1568
    %v1570 = vpop.f32.mrb[0].mxu0
    %1571 = vmatprep.mubr.bf16.mxu0 0
    %1572 = vmatmul.mubr.bf16.gmra.mrb[0].mxu0 %v1331
    %v1573 = vpop.f32.mrb[0].mxu0
    %v1574 = vadd.f32 0.0, %v1573
    %v1575 = vpop.f32.mrb[0].mxu0
    %v1576 = vpop.f32.mrb[0].mxu0
    %v1577 = vadd.f32 0.0, %v1576
    %v1578 = vpop.f32.mrb[0].mxu0
    %1579 = vmatprep.mubr.bf16.mxu0 0
    %1580 = vmatmul.mubr.bf16.gmra.mrb[0].mxu0 %v1332
    %v1581 = vpop.f32.mrb[0].mxu0
    %v1582 = vadd.f32 0.0, %v1581
    %v1583 = vpop.f32.mrb[0].mxu0
    %v1584 = vpop.f32.mrb[0].mxu0
    %v1585 = vadd.f32 0.0, %v1584
    %v1586 = vpop.f32.mrb[0].mxu0
    %1587 = vmatprep.mubr.bf16.mxu0 0
    %1588 = vmatmul.mubr.bf16.gmra.mrb[0].mxu0 %v1333
    %v1589 = vpop.f32.mrb[0].mxu0
    %v1590 = vadd.f32 0.0, %v1589
    %v1591 = vpop.f32.mrb[0].mxu0
    %v1592 = vpop.f32.mrb[0].mxu0
    %v1593 = vadd.f32 0.0, %v1592
    %v1594 = vpop.f32.mrb[0].mxu0
    %1595 = vmatprep.mubr.bf16.mxu0 0
    %1596 = vmatmul.mubr.bf16.gmra.mrb[0].mxu0 %v1334
    %v1597 = vpop.f32.mrb[0].mxu0
    %v1598 = vadd.f32 0.0, %v1597
    %v1599 = vpop.f32.mrb[0].mxu0
    %v1600 = vpop.f32.mrb[0].mxu0
    %v1601 = vadd.f32 0.0, %v1600
    %v1602 = vpop.f32.mrb[0].mxu0
    %1603 = vmatprep.mubr.bf16.mxu0 0
    %1604 = vmatmul.mubr.bf16.gmra.mrb[0].mxu0 %v1335
    %v1605 = vpop.f32.mrb[0].mxu0
    %v1606 = vadd.f32 0.0, %v1605
    %v1607 = vpop.f32.mrb[0].mxu0
    %v1608 = vpop.f32.mrb[0].mxu0
    %v1609 = vadd.f32 0.0, %v1608
    %v1610 = vpop.f32.mrb[0].mxu0
    %1611 = vmatprep.mubr.bf16.mxu0 0
    %1612 = vmatmul.mubr.bf16.gmra.mrb[0].mxu0 %v1336
    %v1613 = vpop.f32.mrb[0].mxu0
    %v1614 = vadd.f32 0.0, %v1613
    %v1615 = vpop.f32.mrb[0].mxu0
    %v1616 = vpop.f32.mrb[0].mxu0
    %v1617 = vadd.f32 0.0, %v1616
    %v1618 = vpop.f32.mrb[0].mxu0
    %1619 = vmatprep.mubr.bf16.mxu0 0
    %1620 = vmatmul.mubr.bf16.gmra.mrb[0].mxu0 %v1337
    %v1621 = vpop.f32.mrb[0].mxu0
    %v1622 = vadd.f32 0.0, %v1621
    %v1623 = vpop.f32.mrb[0].mxu0
    %v1624 = vpop.f32.mrb[0].mxu0
    %v1625 = vadd.f32 0.0, %v1624
    %v1626 = vpop.f32.mrb[0].mxu0
    %1627 = vmatprep.mubr.bf16.mxu0 0
    %1628 = vmatmul.mubr.bf16.gmra.mrb[0].mxu0 %v1338
    %v1629 = vpop.f32.mrb[0].mxu0
    %v1630 = vadd.f32 0.0, %v1629
    %v1631 = vpop.f32.mrb[0].mxu0
    %v1632 = vpop.f32.mrb[0].mxu0
    %v1633 = vadd.f32 0.0, %v1632
    %v1634 = vpop.f32.mrb[0].mxu0
    %1635 = vmatprep.mubr.bf16.mxu0 0
    %1636 = vmatmul.mubr.bf16.gmra.mrb[0].mxu0 %v1339
    %v1637 = vpop.f32.mrb[0].mxu0
    %v1638 = vadd.f32 0.0, %v1637
    %v1639 = vpop.f32.mrb[0].mxu0
    %v1640 = vpop.f32.mrb[0].mxu0
    %v1641 = vadd.f32 0.0, %v1640
    %v1642 = vpop.f32.mrb[0].mxu0
    %1643 = vmatprep.mubr.bf16.mxu0 0
    %1644 = vmatmul.mubr.bf16.gmra.mrb[0].mxu0 %v1340
    %v1645 = vpop.f32.mrb[0].mxu0
    %v1646 = vadd.f32 0.0, %v1645
    %v1647 = vpop.f32.mrb[0].mxu0
    %v1648 = vpop.f32.mrb[0].mxu0
    %v1649 = vadd.f32 0.0, %v1648
    %v1650 = vpop.f32.mrb[0].mxu0
    %1651 = vmatprep.mubr.bf16.mxu0 0
    %1652 = vmatmul.mubr.bf16.gmra.mrb[0].mxu0 %v1341
    %v1653 = vpop.f32.mrb[0].mxu0
    %v1654 = vadd.f32 0.0, %v1653
    %v1655 = vpop.f32.mrb[0].mxu0
    %v1656 = vpop.f32.mrb[0].mxu0
    %v1657 = vadd.f32 0.0, %v1656
    %v1658 = vpop.f32.mrb[0].mxu0
    %1659 = vmatprep.mubr.bf16.mxu0 0
    %1660 = vmatmul.mubr.bf16.gmra.mrb[0].mxu0 %v1342
    %v1661 = vpop.f32.mrb[0].mxu0
    %v1662 = vadd.f32 0.0, %v1661
    %v1663 = vpop.f32.mrb[0].mxu0
    %v1664 = vpop.f32.mrb[0].mxu0
    %v1665 = vadd.f32 0.0, %v1664
    %v1666 = vpop.f32.mrb[0].mxu0
    %1667 = vmatprep.mubr.bf16.mxu0 0
    %1668 = vmatmul.mubr.bf16.gmra.mrb[0].mxu0 %v1343
    %v1669 = vpop.f32.mrb[0].mxu0
    %v1670 = vadd.f32 0.0, %v1669
    %v1671 = vpop.f32.mrb[0].mxu0
    %v1672 = vpop.f32.mrb[0].mxu0
    %v1673 = vadd.f32 0.0, %v1672
    %v1674 = vpop.f32.mrb[0].mxu0
    %1675 = vmatprep.mubr.bf16.mxu0 0
    %1676 = vmatmul.mubr.bf16.gmra.mrb[0].mxu0 %v1344
    %v1677 = vpop.f32.mrb[0].mxu0
    %v1678 = vadd.f32 0.0, %v1677
    %v1679 = vpop.f32.mrb[0].mxu0
    %v1680 = vpop.f32.mrb[0].mxu0
    %v1681 = vadd.f32 0.0, %v1680
    %v1682 = vpop.f32.mrb[0].mxu0
    %1683 = vmatprep.mubr.bf16.mxu0 0
    %1684 = vmatmul.mubr.bf16.gmra.mrb[0].mxu0 %v1345
    %v1685 = vpop.f32.mrb[0].mxu0
    %v1686 = vadd.f32 0.0, %v1685
    %v1687 = vpop.f32.mrb[0].mxu0
    %v1688 = vpop.f32.mrb[0].mxu0
    %v1689 = vadd.f32 0.0, %v1688
    %v1690 = vpop.f32.mrb[0].mxu0
    %1691 = vmatprep.mubr.bf16.mxu0 0
    %1692 = vmatmul.mubr.bf16.gmra.mrb[0].mxu0 %v1346
    %v1693 = vpop.f32.mrb[0].mxu0
    %v1694 = vadd.f32 0.0, %v1693
    %v1695 = vpop.f32.mrb[0].mxu0
    %v1696 = vpop.f32.mrb[0].mxu0
    %v1697 = vadd.f32 0.0, %v1696
    %v1698 = vpop.f32.mrb[0].mxu0
    %1699 = vdwg.mxu0
    %v1700 = vadd.f32 %v1251, %v1446
    %v1701 = vadd.f32 %v1252, %v1449
    %v1702 = vadd.f32 %v1253, %v1454
    %v1703 = vadd.f32 %v1254, %v1457
    %v1704 = vadd.f32 %v1255, %v1462
    %v1705 = vadd.f32 %v1256, %v1465
    %v1706 = vadd.f32 %v1257, %v1470
    %v1707 = vadd.f32 %v1258, %v1473
    %v1708 = vadd.f32 %v1259, %v1478
    %v1709 = vadd.f32 %v1260, %v1481
    %v1710 = vadd.f32 %v1261, %v1486
    %v1711 = vadd.f32 %v1262, %v1489
    %v1712 = vadd.f32 %v1263, %v1494
    %v1713 = vadd.f32 %v1264, %v1497
    %v1714 = vadd.f32 %v1265, %v1502
    %v1715 = vadd.f32 %v1266, %v1505
    %v1716 = vadd.f32 %v1267, %v1510
    %v1717 = vadd.f32 %v1268, %v1513
    %v1718 = vadd.f32 %v1269, %v1518
    %v1719 = vadd.f32 %v1270, %v1521
    %v1720 = vadd.f32 %v1271, %v1526
    %v1721 = vadd.f32 %v1272, %v1529
    %v1722 = vadd.f32 %v1273, %v1534
    %v1723 = vadd.f32 %v1274, %v1537
    %v1724 = vadd.f32 %v1275, %v1542
    %v1725 = vadd.f32 %v1276, %v1545
    %v1726 = vadd.f32 %v1277, %v1550
    %v1727 = vadd.f32 %v1278, %v1553
    %v1728 = vadd.f32 %v1279, %v1558
    %v1729 = vadd.f32 %v1280, %v1561
    %v1730 = vadd.f32 %v1281, %v1566
    %v1731 = vadd.f32 %v1282, %v1569
    %v1732 = vadd.f32 %v1283, %v1574
    %v1733 = vadd.f32 %v1284, %v1577
    %v1734 = vadd.f32 %v1285, %v1582
    %v1735 = vadd.f32 %v1286, %v1585
    %v1736 = vadd.f32 %v1287, %v1590
    %v1737 = vadd.f32 %v1288, %v1593
    %v1738 = vadd.f32 %v1289, %v1598
    %v1739 = vadd.f32 %v1290, %v1601
    %v1740 = vadd.f32 %v1291, %v1606
    %v1741 = vadd.f32 %v1292, %v1609
    %v1742 = vadd.f32 %v1293, %v1614
    %v1743 = vadd.f32 %v1294, %v1617
    %v1744 = vadd.f32 %v1295, %v1622
    %v1745 = vadd.f32 %v1296, %v1625
    %v1746 = vadd.f32 %v1297, %v1630
    %v1747 = vadd.f32 %v1298, %v1633
    %v1748 = vadd.f32 %v1299, %v1638
    %v1749 = vadd.f32 %v1300, %v1641
    %v1750 = vadd.f32 %v1301, %v1646
    %v1751 = vadd.f32 %v1302, %v1649
    %v1752 = vadd.f32 %v1303, %v1654
    %v1753 = vadd.f32 %v1304, %v1657
    %v1754 = vadd.f32 %v1305, %v1662
    %v1755 = vadd.f32 %v1306, %v1665
    %v1756 = vadd.f32 %v1307, %v1670
    %v1757 = vadd.f32 %v1308, %v1673
    %v1758 = vadd.f32 %v1309, %v1678
    %v1759 = vadd.f32 %v1310, %v1681
    %v1760 = vadd.f32 %v1311, %v1686
    %v1761 = vadd.f32 %v1312, %v1689
    %v1762 = vadd.f32 %v1313, %v1694
    %v1763 = vadd.f32 %v1314, %v1697
    %1764 = vst [vmem:[#allocation3] sm:$0xff] %v1700
    %1765 = vst [vmem:[#allocation3 + $0x8] sm:$0xff] %v1701
    %1766 = vst [vmem:[#allocation3 + $0x10] sm:$0xff] %v1702
    %1767 = vst [vmem:[#allocation3 + $0x18] sm:$0xff] %v1703
    %1768 = vst [vmem:[#allocation3 + $0x20] sm:$0xff] %v1704
    %1769 = vst [vmem:[#allocation3 + $0x28] sm:$0xff] %v1705
    %1770 = vst [vmem:[#allocation3 + $0x30] sm:$0xff] %v1706
    %1771 = vst [vmem:[#allocation3 + $0x38] sm:$0xff] %v1707
    %1772 = vst [vmem:[#allocation3 + $0x40] sm:$0xff] %v1708
    %1773 = vst [vmem:[#allocation3 + $0x48] sm:$0xff] %v1709
    %1774 = vst [vmem:[#allocation3 + $0x50] sm:$0xff] %v1710
    %1775 = vst [vmem:[#allocation3 + $0x58] sm:$0xff] %v1711
    %1776 = vst [vmem:[#allocation3 + $0x60] sm:$0xff] %v1712
    %1777 = vst [vmem:[#allocation3 + $0x68] sm:$0xff] %v1713
    %1778 = vst [vmem:[#allocation3 + $0x70] sm:$0xff] %v1714
    %1779 = vst [vmem:[#allocation3 + $0x78] sm:$0xff] %v1715
    %1780 = vst [vmem:[#allocation3 + $0x80] sm:$0xff] %v1716
    %1781 = vst [vmem:[#allocation3 + $0x88] sm:$0xff] %v1717
    %1782 = vst [vmem:[#allocation3 + $0x90] sm:$0xff] %v1718
    %1783 = vst [vmem:[#allocation3 + $0x98] sm:$0xff] %v1719
    %1784 = vst [vmem:[#allocation3 + $0xa0] sm:$0xff] %v1720
    %1785 = vst [vmem:[#allocation3 + $0xa8] sm:$0xff] %v1721
    %1786 = vst [vmem:[#allocation3 + $0xb0] sm:$0xff] %v1722
    %1787 = vst [vmem:[#allocation3 + $0xb8] sm:$0xff] %v1723
    %1788 = vst [vmem:[#allocation3 + $0xc0] sm:$0xff] %v1724
    %1789 = vst [vmem:[#allocation3 + $0xc8] sm:$0xff] %v1725
    %1790 = vst [vmem:[#allocation3 + $0xd0] sm:$0xff] %v1726
    %1791 = vst [vmem:[#allocation3 + $0xd8] sm:$0xff] %v1727
    %1792 = vst [vmem:[#allocation3 + $0xe0] sm:$0xff] %v1728
    %1793 = vst [vmem:[#allocation3 + $0xe8] sm:$0xff] %v1729
    %1794 = vst [vmem:[#allocation3 + $0xf0] sm:$0xff] %v1730
    %1795 = vst [vmem:[#allocation3 + $0xf8] sm:$0xff] %v1731
    %1796 = vst [vmem:[#allocation3 + $0x100] sm:$0xff] %v1732
    %1797 = vst [vmem:[#allocation3 + $0x108] sm:$0xff] %v1733
    %1798 = vst [vmem:[#allocation3 + $0x110] sm:$0xff] %v1734
    %1799 = vst [vmem:[#allocation3 + $0x118] sm:$0xff] %v1735
    %1800 = vst [vmem:[#allocation3 + $0x120] sm:$0xff] %v1736
    %1801 = vst [vmem:[#allocation3 + $0x128] sm:$0xff] %v1737
    %1802 = vst [vmem:[#allocation3 + $0x130] sm:$0xff] %v1738
    %1803 = vst [vmem:[#allocation3 + $0x138] sm:$0xff] %v1739
    %1804 = vst [vmem:[#allocation3 + $0x140] sm:$0xff] %v1740
    %1805 = vst [vmem:[#allocation3 + $0x148] sm:$0xff] %v1741
    %1806 = vst [vmem:[#allocation3 + $0x150] sm:$0xff] %v1742
    %1807 = vst [vmem:[#allocation3 + $0x158] sm:$0xff] %v1743
    %1808 = vst [vmem:[#allocation3 + $0x160] sm:$0xff] %v1744
    %1809 = vst [vmem:[#allocation3 + $0x168] sm:$0xff] %v1745
    %1810 = vst [vmem:[#allocation3 + $0x170] sm:$0xff] %v1746
    %1811 = vst [vmem:[#allocation3 + $0x178] sm:$0xff] %v1747
    %1812 = vst [vmem:[#allocation3 + $0x180] sm:$0xff] %v1748
    %1813 = vst [vmem:[#allocation3 + $0x188] sm:$0xff] %v1749
    %1814 = vst [vmem:[#allocation3 + $0x190] sm:$0xff] %v1750
    %1815 = vst [vmem:[#allocation3 + $0x198] sm:$0xff] %v1751
    %1816 = vst [vmem:[#allocation3 + $0x1a0] sm:$0xff] %v1752
    %1817 = vst [vmem:[#allocation3 + $0x1a8] sm:$0xff] %v1753
    %1818 = vst [vmem:[#allocation3 + $0x1b0] sm:$0xff] %v1754
    %1819 = vst [vmem:[#allocation3 + $0x1b8] sm:$0xff] %v1755
    %1820 = vst [vmem:[#allocation3 + $0x1c0] sm:$0xff] %v1756
    %1821 = vst [vmem:[#allocation3 + $0x1c8] sm:$0xff] %v1757
    %1822 = vst [vmem:[#allocation3 + $0x1d0] sm:$0xff] %v1758
    %1823 = vst [vmem:[#allocation3 + $0x1d8] sm:$0xff] %v1759
    %1824 = vst [vmem:[#allocation3 + $0x1e0] sm:$0xff] %v1760
    %1825 = vst [vmem:[#allocation3 + $0x1e8] sm:$0xff] %v1761
    %1826 = vst [vmem:[#allocation3 + $0x1f0] sm:$0xff] %v1762
    %1827 = vst [vmem:[#allocation3 + $0x1f8] sm:$0xff] %v1763
    %v1828 = vld [vmem:[#allocation2 + $0x1] sm:$0xff]
    %v1829 = vld [vmem:[#allocation2 + $0x9] sm:$0xff]
    %v1830 = vld [vmem:[#allocation2 + $0x19] sm:$0xff]
    %v1831 = vld [vmem:[#allocation2 + $0x21] sm:$0xff]
    %v1832 = vld [vmem:[#allocation2 + $0x31] sm:$0xff]
    %v1833 = vld [vmem:[#allocation2 + $0x39] sm:$0xff]
    %v1834 = vld [vmem:[#allocation2 + $0x49] sm:$0xff]
    %v1835 = vld [vmem:[#allocation2 + $0x51] sm:$0xff]
    %v1836 = vld [vmem:[#allocation2 + $0x61] sm:$0xff]
    %v1837 = vld [vmem:[#allocation2 + $0x69] sm:$0xff]
    %v1838 = vld [vmem:[#allocation2 + $0x79] sm:$0xff]
    %v1839 = vld [vmem:[#allocation2 + $0x81] sm:$0xff]
    %v1840 = vld [vmem:[#allocation2 + $0x91] sm:$0xff]
    %v1841 = vld [vmem:[#allocation2 + $0x99] sm:$0xff]
    %v1842 = vld [vmem:[#allocation2 + $0xa9] sm:$0xff]
    %v1843 = vld [vmem:[#allocation2 + $0xb1] sm:$0xff]
    %v1844 = vld [vmem:[#allocation2 + $0xc1] sm:$0xff]
    %v1845 = vld [vmem:[#allocation2 + $0xc9] sm:$0xff]
    %v1846 = vld [vmem:[#allocation2 + $0xd9] sm:$0xff]
    %v1847 = vld [vmem:[#allocation2 + $0xe1] sm:$0xff]
    %v1848 = vld [vmem:[#allocation2 + $0xf1] sm:$0xff]
    %v1849 = vld [vmem:[#allocation2 + $0xf9] sm:$0xff]
    %v1850 = vld [vmem:[#allocation2 + $0x109] sm:$0xff]
    %v1851 = vld [vmem:[#allocation2 + $0x111] sm:$0xff]
    %v1852 = vld [vmem:[#allocation2 + $0x121] sm:$0xff]
    %v1853 = vld [vmem:[#allocation2 + $0x129] sm:$0xff]
    %v1854 = vld [vmem:[#allocation2 + $0x139] sm:$0xff]
    %v1855 = vld [vmem:[#allocation2 + $0x141] sm:$0xff]
    %v1856 = vld [vmem:[#allocation2 + $0x151] sm:$0xff]
    %v1857 = vld [vmem:[#allocation2 + $0x159] sm:$0xff]
    %v1858 = vld [vmem:[#allocation2 + $0x169] sm:$0xff]
    %v1859 = vld [vmem:[#allocation2 + $0x171] sm:$0xff]
    %v1860 = vld [vmem:[#allocation2 + $0x1b1] sm:$0xff]
    %v1861 = vld [vmem:[#allocation2 + $0x1b9] sm:$0xff]
    %v1862 = vld [vmem:[#allocation2 + $0x1c9] sm:$0xff]
    %v1863 = vld [vmem:[#allocation2 + $0x1d1] sm:$0xff]
    %v1864 = vld [vmem:[#allocation2 + $0x1e1] sm:$0xff]
    %v1865 = vld [vmem:[#allocation2 + $0x1e9] sm:$0xff]
    %v1866 = vld [vmem:[#allocation2 + $0x1f9] sm:$0xff]
    %v1867 = vld [vmem:[#allocation2 + $0x201] sm:$0xff]
    %v1868 = vld [vmem:[#allocation2 + $0x211] sm:$0xff]
    %v1869 = vld [vmem:[#allocation2 + $0x219] sm:$0xff]
    %v1870 = vld [vmem:[#allocation2 + $0x229] sm:$0xff]
    %v1871 = vld [vmem:[#allocation2 + $0x231] sm:$0xff]
    %v1872 = vld [vmem:[#allocation2 + $0x241] sm:$0xff]
    %v1873 = vld [vmem:[#allocation2 + $0x249] sm:$0xff]
    %v1874 = vld [vmem:[#allocation2 + $0x259] sm:$0xff]
    %v1875 = vld [vmem:[#allocation2 + $0x261] sm:$0xff]
    %v1876 = vld [vmem:[#allocation2 + $0x271] sm:$0xff]
    %v1877 = vld [vmem:[#allocation2 + $0x279] sm:$0xff]
    %v1878 = vld [vmem:[#allocation2 + $0x289] sm:$0xff]
    %v1879 = vld [vmem:[#allocation2 + $0x291] sm:$0xff]
    %v1880 = vld [vmem:[#allocation2 + $0x2a1] sm:$0xff]
    %v1881 = vld [vmem:[#allocation2 + $0x2a9] sm:$0xff]
    %v1882 = vld [vmem:[#allocation2 + $0x2b9] sm:$0xff]
    %v1883 = vld [vmem:[#allocation2 + $0x2c1] sm:$0xff]
    %v1884 = vld [vmem:[#allocation2 + $0x2d1] sm:$0xff]
    %v1885 = vld [vmem:[#allocation2 + $0x2d9] sm:$0xff]
    %v1886 = vld [vmem:[#allocation2 + $0x2e9] sm:$0xff]
    %v1887 = vld [vmem:[#allocation2 + $0x2f1] sm:$0xff]
    %v1888 = vld [vmem:[#allocation2 + $0x301] sm:$0xff]
    %v1889 = vld [vmem:[#allocation2 + $0x309] sm:$0xff]
    %v1890 = vld [vmem:[#allocation2 + $0x319] sm:$0xff]
    %v1891 = vld [vmem:[#allocation2 + $0x321] sm:$0xff]
    %v1892 = vld [vmem:[#allocation3] sm:$0xff]
    %v1893 = vld [vmem:[#allocation3 + $0x8] sm:$0xff]
    %v1894 = vld [vmem:[#allocation3 + $0x10] sm:$0xff]
    %v1895 = vld [vmem:[#allocation3 + $0x18] sm:$0xff]
    %v1896 = vld [vmem:[#allocation3 + $0x20] sm:$0xff]
    %v1897 = vld [vmem:[#allocation3 + $0x28] sm:$0xff]
    %v1898 = vld [vmem:[#allocation3 + $0x30] sm:$0xff]
    %v1899 = vld [vmem:[#allocation3 + $0x38] sm:$0xff]
    %v1900 = vld [vmem:[#allocation3 + $0x40] sm:$0xff]
    %v1901 = vld [vmem:[#allocation3 + $0x48] sm:$0xff]
    %v1902 = vld [vmem:[#allocation3 + $0x50] sm:$0xff]
    %v1903 = vld [vmem:[#allocation3 + $0x58] sm:$0xff]
    %v1904 = vld [vmem:[#allocation3 + $0x60] sm:$0xff]
    %v1905 = vld [vmem:[#allocation3 + $0x68] sm:$0xff]
    %v1906 = vld [vmem:[#allocation3 + $0x70] sm:$0xff]
    %v1907 = vld [vmem:[#allocation3 + $0x78] sm:$0xff]
    %v1908 = vld [vmem:[#allocation3 + $0x80] sm:$0xff]
    %v1909 = vld [vmem:[#allocation3 + $0x88] sm:$0xff]
    %v1910 = vld [vmem:[#allocation3 + $0x90] sm:$0xff]
    %v1911 = vld [vmem:[#allocation3 + $0x98] sm:$0xff]
    %v1912 = vld [vmem:[#allocation3 + $0xa0] sm:$0xff]
    %v1913 = vld [vmem:[#allocation3 + $0xa8] sm:$0xff]
    %v1914 = vld [vmem:[#allocation3 + $0xb0] sm:$0xff]
    %v1915 = vld [vmem:[#allocation3 + $0xb8] sm:$0xff]
    %v1916 = vld [vmem:[#allocation3 + $0xc0] sm:$0xff]
    %v1917 = vld [vmem:[#allocation3 + $0xc8] sm:$0xff]
    %v1918 = vld [vmem:[#allocation3 + $0xd0] sm:$0xff]
    %v1919 = vld [vmem:[#allocation3 + $0xd8] sm:$0xff]
    %v1920 = vld [vmem:[#allocation3 + $0xe0] sm:$0xff]
    %v1921 = vld [vmem:[#allocation3 + $0xe8] sm:$0xff]
    %v1922 = vld [vmem:[#allocation3 + $0xf0] sm:$0xff]
    %v1923 = vld [vmem:[#allocation3 + $0xf8] sm:$0xff]
    %v1924 = vld [vmem:[#allocation3 + $0x100] sm:$0xff]
    %v1925 = vld [vmem:[#allocation3 + $0x108] sm:$0xff]
    %v1926 = vld [vmem:[#allocation3 + $0x110] sm:$0xff]
    %v1927 = vld [vmem:[#allocation3 + $0x118] sm:$0xff]
    %v1928 = vld [vmem:[#allocation3 + $0x120] sm:$0xff]
    %v1929 = vld [vmem:[#allocation3 + $0x128] sm:$0xff]
    %v1930 = vld [vmem:[#allocation3 + $0x130] sm:$0xff]
    %v1931 = vld [vmem:[#allocation3 + $0x138] sm:$0xff]
    %v1932 = vld [vmem:[#allocation3 + $0x140] sm:$0xff]
    %v1933 = vld [vmem:[#allocation3 + $0x148] sm:$0xff]
    %v1934 = vld [vmem:[#allocation3 + $0x150] sm:$0xff]
    %v1935 = vld [vmem:[#allocation3 + $0x158] sm:$0xff]
    %v1936 = vld [vmem:[#allocation3 + $0x160] sm:$0xff]
    %v1937 = vld [vmem:[#allocation3 + $0x168] sm:$0xff]
    %v1938 = vld [vmem:[#allocation3 + $0x170] sm:$0xff]
    %v1939 = vld [vmem:[#allocation3 + $0x178] sm:$0xff]
    %v1940 = vld [vmem:[#allocation3 + $0x180] sm:$0xff]
    %v1941 = vld [vmem:[#allocation3 + $0x188] sm:$0xff]
    %v1942 = vld [vmem:[#allocation3 + $0x190] sm:$0xff]
    %v1943 = vld [vmem:[#allocation3 + $0x198] sm:$0xff]
    %v1944 = vld [vmem:[#allocation3 + $0x1a0] sm:$0xff]
    %v1945 = vld [vmem:[#allocation3 + $0x1a8] sm:$0xff]
    %v1946 = vld [vmem:[#allocation3 + $0x1b0] sm:$0xff]
    %v1947 = vld [vmem:[#allocation3 + $0x1b8] sm:$0xff]
    %v1948 = vld [vmem:[#allocation3 + $0x1c0] sm:$0xff]
    %v1949 = vld [vmem:[#allocation3 + $0x1c8] sm:$0xff]
    %v1950 = vld [vmem:[#allocation3 + $0x1d0] sm:$0xff]
    %v1951 = vld [vmem:[#allocation3 + $0x1d8] sm:$0xff]
    %v1952 = vld [vmem:[#allocation3 + $0x1e0] sm:$0xff]
    %v1953 = vld [vmem:[#allocation3 + $0x1e8] sm:$0xff]
    %v1954 = vld [vmem:[#allocation3 + $0x1f0] sm:$0xff]
    %v1955 = vld [vmem:[#allocation3 + $0x1f8] sm:$0xff]
    %v1956 = vpack.c.bf16 %v1829, %v1828
    %v1957 = vpack.c.bf16 %v1831, %v1830
    %v1958 = vpack.c.bf16 %v1833, %v1832
    %v1959 = vpack.c.bf16 %v1835, %v1834
    %v1960 = vpack.c.bf16 %v1837, %v1836
    %v1961 = vpack.c.bf16 %v1839, %v1838
    %v1962 = vpack.c.bf16 %v1841, %v1840
    %v1963 = vpack.c.bf16 %v1843, %v1842
    %v1964 = vpack.c.bf16 %v1845, %v1844
    %v1965 = vpack.c.bf16 %v1847, %v1846
    %v1966 = vpack.c.bf16 %v1849, %v1848
    %v1967 = vpack.c.bf16 %v1851, %v1850
    %v1968 = vpack.c.bf16 %v1853, %v1852
    %v1969 = vpack.c.bf16 %v1855, %v1854
    %v1970 = vpack.c.bf16 %v1857, %v1856
    %v1971 = vpack.c.bf16 %v1859, %v1858
    %v1972 = vpack.c.bf16 %v1861, %v1860
    %v1973 = vpack.c.bf16 %v1863, %v1862
    %v1974 = vpack.c.bf16 %v1865, %v1864
    %v1975 = vpack.c.bf16 %v1867, %v1866
    %v1976 = vpack.c.bf16 %v1869, %v1868
    %v1977 = vpack.c.bf16 %v1871, %v1870
    %v1978 = vpack.c.bf16 %v1873, %v1872
    %v1979 = vpack.c.bf16 %v1875, %v1874
    %v1980 = vpack.c.bf16 %v1877, %v1876
    %v1981 = vpack.c.bf16 %v1879, %v1878
    %v1982 = vpack.c.bf16 %v1881, %v1880
    %v1983 = vpack.c.bf16 %v1883, %v1882
    %v1984 = vpack.c.bf16 %v1885, %v1884
    %v1985 = vpack.c.bf16 %v1887, %v1886
    %v1986 = vpack.c.bf16 %v1889, %v1888
    %v1987 = vpack.c.bf16 %v1891, %v1890
    %s1988 = scalar_lea.vmem [#allocation9], 64
    %v1989 = vld [vmem:[%s1988] sm:$0xf]
    %v1990 = vld [vmem:[%s1988 + $0x4] sm:$0xf]
    %v1991 = vld [vmem:[%s1988 + $0x8] sm:$0xf]
    %v1992 = vld [vmem:[%s1988 + $0xc] sm:$0xf]
    %v1993 = vld [vmem:[%s1988 + $0x10] sm:$0xf]
    %v1994 = vld [vmem:[%s1988 + $0x14] sm:$0xf]
    %v1995 = vld [vmem:[%s1988 + $0x18] sm:$0xf]
    %v1996 = vld [vmem:[%s1988 + $0x1c] sm:$0xf]
    %v1997 = vld [vmem:[%s1988 + $0x20] sm:$0xf]
    %v1998 = vld [vmem:[%s1988 + $0x24] sm:$0xf]
    %v1999 = vld [vmem:[%s1988 + $0x28] sm:$0xf]
    %v2000 = vld [vmem:[%s1988 + $0x2c] sm:$0xf]
    %v2001 = vld [vmem:[%s1988 + $0x30] sm:$0xf]
    %v2002 = vld [vmem:[%s1988 + $0x34] sm:$0xf]
    %v2003 = vld [vmem:[%s1988 + $0x38] sm:$0xf]
    %v2004 = vld [vmem:[%s1988 + $0x3c] sm:$0xf]
    %v2021 = vunpack.c.l.b16 %v1989
    %v2022 = vunpack.c.l.b16 %v1990
    %v2023 = vunpack.c.l.b16 %v1991
    %v2024 = vunpack.c.l.b16 %v1992
    %v2025 = vunpack.c.l.b16 %v1993
    %v2026 = vunpack.c.l.b16 %v1994
    %v2027 = vunpack.c.l.b16 %v1995
    %v2028 = vunpack.c.l.b16 %v1996
    %v2029 = vunpack.c.l.b16 %v1997
    %v2030 = vunpack.c.l.b16 %v1998
    %v2031 = vunpack.c.l.b16 %v1999
    %v2032 = vunpack.c.l.b16 %v2000
    %v2033 = vunpack.c.l.b16 %v2001
    %v2034 = vunpack.c.l.b16 %v2002
    %v2035 = vunpack.c.l.b16 %v2003
    %v2036 = vunpack.c.l.b16 %v2004
    %v2037 = vpack.c.b16 %v2022, %v2021
    %v2038 = vpack.c.b16 %v2024, %v2023
    %v2039 = vpack.c.b16 %v2026, %v2025
    %v2040 = vpack.c.b16 %v2028, %v2027
    %v2041 = vpack.c.b16 %v2030, %v2029
    %v2042 = vpack.c.b16 %v2032, %v2031
    %v2043 = vpack.c.b16 %v2034, %v2033
    %v2044 = vpack.c.b16 %v2036, %v2035
    %2053 = vmatprep.subr.bf16.mxu0 0
    %2054 = vmatpush1.bf16.msra.mxu0 %v2037
    %2055 = vmatprep.subr.bf16.mxu0 0
    %2056 = vmatpush1.bf16.msra.mxu0 %v2038
    %2057 = vmatprep.subr.bf16.mxu0 0
    %2058 = vmatpush1.bf16.msra.mxu0 %v2039
    %2059 = vmatprep.subr.bf16.mxu0 0
    %2060 = vmatpush1.bf16.msra.mxu0 %v2040
    %2061 = vmatprep.subr.bf16.mxu0 0
    %2062 = vmatpush1.bf16.msra.mxu0 %v2041
    %2063 = vmatprep.subr.bf16.mxu0 0
    %2064 = vmatpush1.bf16.msra.mxu0 %v2042
    %2065 = vmatprep.subr.bf16.mxu0 0
    %2066 = vmatpush1.bf16.msra.mxu0 %v2043
    %2067 = vmatprep.subr.bf16.mxu0 0
    %2068 = vmatpush1.bf16.msra.mxu0 %v2044
    %2069 = vmatprep.subr.bf16.mxu0 0
    %2070 = vmatpush1.bf16.msra.mxu0 0
    %2071 = vmatprep.subr.bf16.mxu0 0
    %2072 = vmatpush1.bf16.msra.mxu0 0
    %2073 = vmatprep.subr.bf16.mxu0 0
    %2074 = vmatpush1.bf16.msra.mxu0 0
    %2075 = vmatprep.subr.bf16.mxu0 0
    %2076 = vmatpush1.bf16.msra.mxu0 0
    %2077 = vmatprep.subr.bf16.mxu0 0
    %2078 = vmatpush1.bf16.msra.mxu0 0
    %2079 = vmatprep.subr.bf16.mxu0 0
    %2080 = vmatpush1.bf16.msra.mxu0 0
    %2081 = vmatprep.subr.bf16.mxu0 0
    %2082 = vmatpush1.bf16.msra.mxu0 0
    %2083 = vmatprep.subr.bf16.mxu0 0
    %2084 = vmatpush1.bf16.msra.mxu0 0
    %2085 = vmatprep.mubr.bf16.mxu0 0
    %2086 = vmatmul.mubr.bf16.gmra.mrb[0].mxu0 %v1956
    %v2087 = vpop.f32.mrb[0].mxu0
    %v2088 = vadd.f32 0.0, %v2087
    %v2089 = vpop.f32.mrb[0].mxu0
    %v2090 = vpop.f32.mrb[0].mxu0
    %v2091 = vadd.f32 0.0, %v2090
    %v2092 = vpop.f32.mrb[0].mxu0
    %2093 = vmatprep.mubr.bf16.mxu0 0
    %2094 = vmatmul.mubr.bf16.gmra.mrb[0].mxu0 %v1957
    %v2095 = vpop.f32.mrb[0].mxu0
    %v2096 = vadd.f32 0.0, %v2095
    %v2097 = vpop.f32.mrb[0].mxu0
    %v2098 = vpop.f32.mrb[0].mxu0
    %v2099 = vadd.f32 0.0, %v2098
    %v2100 = vpop.f32.mrb[0].mxu0
    %2101 = vmatprep.mubr.bf16.mxu0 0
    %2102 = vmatmul.mubr.bf16.gmra.mrb[0].mxu0 %v1958
    %v2103 = vpop.f32.mrb[0].mxu0
    %v2104 = vadd.f32 0.0, %v2103
    %v2105 = vpop.f32.mrb[0].mxu0
    %v2106 = vpop.f32.mrb[0].mxu0
    %v2107 = vadd.f32 0.0, %v2106
    %v2108 = vpop.f32.mrb[0].mxu0
    %2109 = vmatprep.mubr.bf16.mxu0 0
    %2110 = vmatmul.mubr.bf16.gmra.mrb[0].mxu0 %v1959
    %v2111 = vpop.f32.mrb[0].mxu0
    %v2112 = vadd.f32 0.0, %v2111
    %v2113 = vpop.f32.mrb[0].mxu0
    %v2114 = vpop.f32.mrb[0].mxu0
    %v2115 = vadd.f32 0.0, %v2114
    %v2116 = vpop.f32.mrb[0].mxu0
    %2117 = vmatprep.mubr.bf16.mxu0 0
    %2118 = vmatmul.mubr.bf16.gmra.mrb[0].mxu0 %v1960
    %v2119 = vpop.f32.mrb[0].mxu0
    %v2120 = vadd.f32 0.0, %v2119
    %v2121 = vpop.f32.mrb[0].mxu0
    %v2122 = vpop.f32.mrb[0].mxu0
    %v2123 = vadd.f32 0.0, %v2122
    %v2124 = vpop.f32.mrb[0].mxu0
    %2125 = vmatprep.mubr.bf16.mxu0 0
    %2126 = vmatmul.mubr.bf16.gmra.mrb[0].mxu0 %v1961
    %v2127 = vpop.f32.mrb[0].mxu0
    %v2128 = vadd.f32 0.0, %v2127
    %v2129 = vpop.f32.mrb[0].mxu0
    %v2130 = vpop.f32.mrb[0].mxu0
    %v2131 = vadd.f32 0.0, %v2130
    %v2132 = vpop.f32.mrb[0].mxu0
    %2133 = vmatprep.mubr.bf16.mxu0 0
    %2134 = vmatmul.mubr.bf16.gmra.mrb[0].mxu0 %v1962
    %v2135 = vpop.f32.mrb[0].mxu0
    %v2136 = vadd.f32 0.0, %v2135
    %v2137 = vpop.f32.mrb[0].mxu0
    %v2138 = vpop.f32.mrb[0].mxu0
    %v2139 = vadd.f32 0.0, %v2138
    %v2140 = vpop.f32.mrb[0].mxu0
    %2141 = vmatprep.mubr.bf16.mxu0 0
    %2142 = vmatmul.mubr.bf16.gmra.mrb[0].mxu0 %v1963
    %v2143 = vpop.f32.mrb[0].mxu0
    %v2144 = vadd.f32 0.0, %v2143
    %v2145 = vpop.f32.mrb[0].mxu0
    %v2146 = vpop.f32.mrb[0].mxu0
    %v2147 = vadd.f32 0.0, %v2146
    %v2148 = vpop.f32.mrb[0].mxu0
    %2149 = vmatprep.mubr.bf16.mxu0 0
    %2150 = vmatmul.mubr.bf16.gmra.mrb[0].mxu0 %v1964
    %v2151 = vpop.f32.mrb[0].mxu0
    %v2152 = vadd.f32 0.0, %v2151
    %v2153 = vpop.f32.mrb[0].mxu0
    %v2154 = vpop.f32.mrb[0].mxu0
    %v2155 = vadd.f32 0.0, %v2154
    %v2156 = vpop.f32.mrb[0].mxu0
    %2157 = vmatprep.mubr.bf16.mxu0 0
    %2158 = vmatmul.mubr.bf16.gmra.mrb[0].mxu0 %v1965
    %v2159 = vpop.f32.mrb[0].mxu0
    %v2160 = vadd.f32 0.0, %v2159
    %v2161 = vpop.f32.mrb[0].mxu0
    %v2162 = vpop.f32.mrb[0].mxu0
    %v2163 = vadd.f32 0.0, %v2162
    %v2164 = vpop.f32.mrb[0].mxu0
    %2165 = vmatprep.mubr.bf16.mxu0 0
    %2166 = vmatmul.mubr.bf16.gmra.mrb[0].mxu0 %v1966
    %v2167 = vpop.f32.mrb[0].mxu0
    %v2168 = vadd.f32 0.0, %v2167
    %v2169 = vpop.f32.mrb[0].mxu0
    %v2170 = vpop.f32.mrb[0].mxu0
    %v2171 = vadd.f32 0.0, %v2170
    %v2172 = vpop.f32.mrb[0].mxu0
    %2173 = vmatprep.mubr.bf16.mxu0 0
    %2174 = vmatmul.mubr.bf16.gmra.mrb[0].mxu0 %v1967
    %v2175 = vpop.f32.mrb[0].mxu0
    %v2176 = vadd.f32 0.0, %v2175
    %v2177 = vpop.f32.mrb[0].mxu0
    %v2178 = vpop.f32.mrb[0].mxu0
    %v2179 = vadd.f32 0.0, %v2178
    %v2180 = vpop.f32.mrb[0].mxu0
    %2181 = vmatprep.mubr.bf16.mxu0 0
    %2182 = vmatmul.mubr.bf16.gmra.mrb[0].mxu0 %v1968
    %v2183 = vpop.f32.mrb[0].mxu0
    %v2184 = vadd.f32 0.0, %v2183
    %v2185 = vpop.f32.mrb[0].mxu0
    %v2186 = vpop.f32.mrb[0].mxu0
    %v2187 = vadd.f32 0.0, %v2186
    %v2188 = vpop.f32.mrb[0].mxu0
    %2189 = vmatprep.mubr.bf16.mxu0 0
    %2190 = vmatmul.mubr.bf16.gmra.mrb[0].mxu0 %v1969
    %v2191 = vpop.f32.mrb[0].mxu0
    %v2192 = vadd.f32 0.0, %v2191
    %v2193 = vpop.f32.mrb[0].mxu0
    %v2194 = vpop.f32.mrb[0].mxu0
    %v2195 = vadd.f32 0.0, %v2194
    %v2196 = vpop.f32.mrb[0].mxu0
    %2197 = vmatprep.mubr.bf16.mxu0 0
    %2198 = vmatmul.mubr.bf16.gmra.mrb[0].mxu0 %v1970
    %v2199 = vpop.f32.mrb[0].mxu0
    %v2200 = vadd.f32 0.0, %v2199
    %v2201 = vpop.f32.mrb[0].mxu0
    %v2202 = vpop.f32.mrb[0].mxu0
    %v2203 = vadd.f32 0.0, %v2202
    %v2204 = vpop.f32.mrb[0].mxu0
    %2205 = vmatprep.mubr.bf16.mxu0 0
    %2206 = vmatmul.mubr.bf16.gmra.mrb[0].mxu0 %v1971
    %v2207 = vpop.f32.mrb[0].mxu0
    %v2208 = vadd.f32 0.0, %v2207
    %v2209 = vpop.f32.mrb[0].mxu0
    %v2210 = vpop.f32.mrb[0].mxu0
    %v2211 = vadd.f32 0.0, %v2210
    %v2212 = vpop.f32.mrb[0].mxu0
    %2213 = vmatprep.mubr.bf16.mxu0 0
    %2214 = vmatmul.mubr.bf16.gmra.mrb[0].mxu0 %v1972
    %v2215 = vpop.f32.mrb[0].mxu0
    %v2216 = vadd.f32 0.0, %v2215
    %v2217 = vpop.f32.mrb[0].mxu0
    %v2218 = vpop.f32.mrb[0].mxu0
    %v2219 = vadd.f32 0.0, %v2218
    %v2220 = vpop.f32.mrb[0].mxu0
    %2221 = vmatprep.mubr.bf16.mxu0 0
    %2222 = vmatmul.mubr.bf16.gmra.mrb[0].mxu0 %v1973
    %v2223 = vpop.f32.mrb[0].mxu0
    %v2224 = vadd.f32 0.0, %v2223
    %v2225 = vpop.f32.mrb[0].mxu0
    %v2226 = vpop.f32.mrb[0].mxu0
    %v2227 = vadd.f32 0.0, %v2226
    %v2228 = vpop.f32.mrb[0].mxu0
    %2229 = vmatprep.mubr.bf16.mxu0 0
    %2230 = vmatmul.mubr.bf16.gmra.mrb[0].mxu0 %v1974
    %v2231 = vpop.f32.mrb[0].mxu0
    %v2232 = vadd.f32 0.0, %v2231
    %v2233 = vpop.f32.mrb[0].mxu0
    %v2234 = vpop.f32.mrb[0].mxu0
    %v2235 = vadd.f32 0.0, %v2234
    %v2236 = vpop.f32.mrb[0].mxu0
    %2237 = vmatprep.mubr.bf16.mxu0 0
    %2238 = vmatmul.mubr.bf16.gmra.mrb[0].mxu0 %v1975
    %v2239 = vpop.f32.mrb[0].mxu0
    %v2240 = vadd.f32 0.0, %v2239
    %v2241 = vpop.f32.mrb[0].mxu0
    %v2242 = vpop.f32.mrb[0].mxu0
    %v2243 = vadd.f32 0.0, %v2242
    %v2244 = vpop.f32.mrb[0].mxu0
    %2245 = vmatprep.mubr.bf16.mxu0 0
    %2246 = vmatmul.mubr.bf16.gmra.mrb[0].mxu0 %v1976
    %v2247 = vpop.f32.mrb[0].mxu0
    %v2248 = vadd.f32 0.0, %v2247
    %v2249 = vpop.f32.mrb[0].mxu0
    %v2250 = vpop.f32.mrb[0].mxu0
    %v2251 = vadd.f32 0.0, %v2250
    %v2252 = vpop.f32.mrb[0].mxu0
    %2253 = vmatprep.mubr.bf16.mxu0 0
    %2254 = vmatmul.mubr.bf16.gmra.mrb[0].mxu0 %v1977
    %v2255 = vpop.f32.mrb[0].mxu0
    %v2256 = vadd.f32 0.0, %v2255
    %v2257 = vpop.f32.mrb[0].mxu0
    %v2258 = vpop.f32.mrb[0].mxu0
    %v2259 = vadd.f32 0.0, %v2258
    %v2260 = vpop.f32.mrb[0].mxu0
    %2261 = vmatprep.mubr.bf16.mxu0 0
    %2262 = vmatmul.mubr.bf16.gmra.mrb[0].mxu0 %v1978
    %v2263 = vpop.f32.mrb[0].mxu0
    %v2264 = vadd.f32 0.0, %v2263
    %v2265 = vpop.f32.mrb[0].mxu0
    %v2266 = vpop.f32.mrb[0].mxu0
    %v2267 = vadd.f32 0.0, %v2266
    %v2268 = vpop.f32.mrb[0].mxu0
    %2269 = vmatprep.mubr.bf16.mxu0 0
    %2270 = vmatmul.mubr.bf16.gmra.mrb[0].mxu0 %v1979
    %v2271 = vpop.f32.mrb[0].mxu0
    %v2272 = vadd.f32 0.0, %v2271
    %v2273 = vpop.f32.mrb[0].mxu0
    %v2274 = vpop.f32.mrb[0].mxu0
    %v2275 = vadd.f32 0.0, %v2274
    %v2276 = vpop.f32.mrb[0].mxu0
    %2277 = vmatprep.mubr.bf16.mxu0 0
    %2278 = vmatmul.mubr.bf16.gmra.mrb[0].mxu0 %v1980
    %v2279 = vpop.f32.mrb[0].mxu0
    %v2280 = vadd.f32 0.0, %v2279
    %v2281 = vpop.f32.mrb[0].mxu0
    %v2282 = vpop.f32.mrb[0].mxu0
    %v2283 = vadd.f32 0.0, %v2282
    %v2284 = vpop.f32.mrb[0].mxu0
    %2285 = vmatprep.mubr.bf16.mxu0 0
    %2286 = vmatmul.mubr.bf16.gmra.mrb[0].mxu0 %v1981
    %v2287 = vpop.f32.mrb[0].mxu0
    %v2288 = vadd.f32 0.0, %v2287
    %v2289 = vpop.f32.mrb[0].mxu0
    %v2290 = vpop.f32.mrb[0].mxu0
    %v2291 = vadd.f32 0.0, %v2290
    %v2292 = vpop.f32.mrb[0].mxu0
    %2293 = vmatprep.mubr.bf16.mxu0 0
    %2294 = vmatmul.mubr.bf16.gmra.mrb[0].mxu0 %v1982
    %v2295 = vpop.f32.mrb[0].mxu0
    %v2296 = vadd.f32 0.0, %v2295
    %v2297 = vpop.f32.mrb[0].mxu0
    %v2298 = vpop.f32.mrb[0].mxu0
    %v2299 = vadd.f32 0.0, %v2298
    %v2300 = vpop.f32.mrb[0].mxu0
    %2301 = vmatprep.mubr.bf16.mxu0 0
    %2302 = vmatmul.mubr.bf16.gmra.mrb[0].mxu0 %v1983
    %v2303 = vpop.f32.mrb[0].mxu0
    %v2304 = vadd.f32 0.0, %v2303
    %v2305 = vpop.f32.mrb[0].mxu0
    %v2306 = vpop.f32.mrb[0].mxu0
    %v2307 = vadd.f32 0.0, %v2306
    %v2308 = vpop.f32.mrb[0].mxu0
    %2309 = vmatprep.mubr.bf16.mxu0 0
    %2310 = vmatmul.mubr.bf16.gmra.mrb[0].mxu0 %v1984
    %v2311 = vpop.f32.mrb[0].mxu0
    %v2312 = vadd.f32 0.0, %v2311
    %v2313 = vpop.f32.mrb[0].mxu0
    %v2314 = vpop.f32.mrb[0].mxu0
    %v2315 = vadd.f32 0.0, %v2314
    %v2316 = vpop.f32.mrb[0].mxu0
    %2317 = vmatprep.mubr.bf16.mxu0 0
    %2318 = vmatmul.mubr.bf16.gmra.mrb[0].mxu0 %v1985
    %v2319 = vpop.f32.mrb[0].mxu0
    %v2320 = vadd.f32 0.0, %v2319
    %v2321 = vpop.f32.mrb[0].mxu0
    %v2322 = vpop.f32.mrb[0].mxu0
    %v2323 = vadd.f32 0.0, %v2322
    %v2324 = vpop.f32.mrb[0].mxu0
    %2325 = vmatprep.mubr.bf16.mxu0 0
    %2326 = vmatmul.mubr.bf16.gmra.mrb[0].mxu0 %v1986
    %v2327 = vpop.f32.mrb[0].mxu0
    %v2328 = vadd.f32 0.0, %v2327
    %v2329 = vpop.f32.mrb[0].mxu0
    %v2330 = vpop.f32.mrb[0].mxu0
    %v2331 = vadd.f32 0.0, %v2330
    %v2332 = vpop.f32.mrb[0].mxu0
    %2333 = vmatprep.mubr.bf16.mxu0 0
    %2334 = vmatmul.mubr.bf16.gmra.mrb[0].mxu0 %v1987
    %v2335 = vpop.f32.mrb[0].mxu0
    %v2336 = vadd.f32 0.0, %v2335
    %v2337 = vpop.f32.mrb[0].mxu0
    %v2338 = vpop.f32.mrb[0].mxu0
    %v2339 = vadd.f32 0.0, %v2338
    %v2340 = vpop.f32.mrb[0].mxu0
    %2341 = vdwg.mxu0
    %v2342 = vadd.f32 %v1892, %v2088
    %v2343 = vadd.f32 %v1893, %v2091
    %v2344 = vadd.f32 %v1894, %v2096
    %v2345 = vadd.f32 %v1895, %v2099
    %v2346 = vadd.f32 %v1896, %v2104
    %v2347 = vadd.f32 %v1897, %v2107
    %v2348 = vadd.f32 %v1898, %v2112
    %v2349 = vadd.f32 %v1899, %v2115
    %v2350 = vadd.f32 %v1900, %v2120
    %v2351 = vadd.f32 %v1901, %v2123
    %v2352 = vadd.f32 %v1902, %v2128
    %v2353 = vadd.f32 %v1903, %v2131
    %v2354 = vadd.f32 %v1904, %v2136
    %v2355 = vadd.f32 %v1905, %v2139
    %v2356 = vadd.f32 %v1906, %v2144
    %v2357 = vadd.f32 %v1907, %v2147
    %v2358 = vadd.f32 %v1908, %v2152
    %v2359 = vadd.f32 %v1909, %v2155
    %v2360 = vadd.f32 %v1910, %v2160
    %v2361 = vadd.f32 %v1911, %v2163
    %v2362 = vadd.f32 %v1912, %v2168
    %v2363 = vadd.f32 %v1913, %v2171
    %v2364 = vadd.f32 %v1914, %v2176
    %v2365 = vadd.f32 %v1915, %v2179
    %v2366 = vadd.f32 %v1916, %v2184
    %v2367 = vadd.f32 %v1917, %v2187
    %v2368 = vadd.f32 %v1918, %v2192
    %v2369 = vadd.f32 %v1919, %v2195
    %v2370 = vadd.f32 %v1920, %v2200
    %v2371 = vadd.f32 %v1921, %v2203
    %v2372 = vadd.f32 %v1922, %v2208
    %v2373 = vadd.f32 %v1923, %v2211
    %v2374 = vadd.f32 %v1924, %v2216
    %v2375 = vadd.f32 %v1925, %v2219
    %v2376 = vadd.f32 %v1926, %v2224
    %v2377 = vadd.f32 %v1927, %v2227
    %v2378 = vadd.f32 %v1928, %v2232
    %v2379 = vadd.f32 %v1929, %v2235
    %v2380 = vadd.f32 %v1930, %v2240
    %v2381 = vadd.f32 %v1931, %v2243
    %v2382 = vadd.f32 %v1932, %v2248
    %v2383 = vadd.f32 %v1933, %v2251
    %v2384 = vadd.f32 %v1934, %v2256
    %v2385 = vadd.f32 %v1935, %v2259
    %v2386 = vadd.f32 %v1936, %v2264
    %v2387 = vadd.f32 %v1937, %v2267
    %v2388 = vadd.f32 %v1938, %v2272
    %v2389 = vadd.f32 %v1939, %v2275
    %v2390 = vadd.f32 %v1940, %v2280
    %v2391 = vadd.f32 %v1941, %v2283
    %v2392 = vadd.f32 %v1942, %v2288
    %v2393 = vadd.f32 %v1943, %v2291
    %v2394 = vadd.f32 %v1944, %v2296
    %v2395 = vadd.f32 %v1945, %v2299
    %v2396 = vadd.f32 %v1946, %v2304
    %v2397 = vadd.f32 %v1947, %v2307
    %v2398 = vadd.f32 %v1948, %v2312
    %v2399 = vadd.f32 %v1949, %v2315
    %v2400 = vadd.f32 %v1950, %v2320
    %v2401 = vadd.f32 %v1951, %v2323
    %v2402 = vadd.f32 %v1952, %v2328
    %v2403 = vadd.f32 %v1953, %v2331
    %v2404 = vadd.f32 %v1954, %v2336
    %v2405 = vadd.f32 %v1955, %v2339
    %2406 = vst [vmem:[#allocation3] sm:$0xff] %v2342
    %2407 = vst [vmem:[#allocation3 + $0x8] sm:$0xff] %v2343
    %2408 = vst [vmem:[#allocation3 + $0x10] sm:$0xff] %v2344
    %2409 = vst [vmem:[#allocation3 + $0x18] sm:$0xff] %v2345
    %2410 = vst [vmem:[#allocation3 + $0x20] sm:$0xff] %v2346
    %2411 = vst [vmem:[#allocation3 + $0x28] sm:$0xff] %v2347
    %2412 = vst [vmem:[#allocation3 + $0x30] sm:$0xff] %v2348
    %2413 = vst [vmem:[#allocation3 + $0x38] sm:$0xff] %v2349
    %2414 = vst [vmem:[#allocation3 + $0x40] sm:$0xff] %v2350
    %2415 = vst [vmem:[#allocation3 + $0x48] sm:$0xff] %v2351
    %2416 = vst [vmem:[#allocation3 + $0x50] sm:$0xff] %v2352
    %2417 = vst [vmem:[#allocation3 + $0x58] sm:$0xff] %v2353
    %2418 = vst [vmem:[#allocation3 + $0x60] sm:$0xff] %v2354
    %2419 = vst [vmem:[#allocation3 + $0x68] sm:$0xff] %v2355
    %2420 = vst [vmem:[#allocation3 + $0x70] sm:$0xff] %v2356
    %2421 = vst [vmem:[#allocation3 + $0x78] sm:$0xff] %v2357
    %2422 = vst [vmem:[#allocation3 + $0x80] sm:$0xff] %v2358
    %2423 = vst [vmem:[#allocation3 + $0x88] sm:$0xff] %v2359
    %2424 = vst [vmem:[#allocation3 + $0x90] sm:$0xff] %v2360
    %2425 = vst [vmem:[#allocation3 + $0x98] sm:$0xff] %v2361
    %2426 = vst [vmem:[#allocation3 + $0xa0] sm:$0xff] %v2362
    %2427 = vst [vmem:[#allocation3 + $0xa8] sm:$0xff] %v2363
    %2428 = vst [vmem:[#allocation3 + $0xb0] sm:$0xff] %v2364
    %2429 = vst [vmem:[#allocation3 + $0xb8] sm:$0xff] %v2365
    %2430 = vst [vmem:[#allocation3 + $0xc0] sm:$0xff] %v2366
    %2431 = vst [vmem:[#allocation3 + $0xc8] sm:$0xff] %v2367
    %2432 = vst [vmem:[#allocation3 + $0xd0] sm:$0xff] %v2368
    %2433 = vst [vmem:[#allocation3 + $0xd8] sm:$0xff] %v2369
    %2434 = vst [vmem:[#allocation3 + $0xe0] sm:$0xff] %v2370
    %2435 = vst [vmem:[#allocation3 + $0xe8] sm:$0xff] %v2371
    %2436 = vst [vmem:[#allocation3 + $0xf0] sm:$0xff] %v2372
    %2437 = vst [vmem:[#allocation3 + $0xf8] sm:$0xff] %v2373
    %2438 = vst [vmem:[#allocation3 + $0x100] sm:$0xff] %v2374
    %2439 = vst [vmem:[#allocation3 + $0x108] sm:$0xff] %v2375
    %2440 = vst [vmem:[#allocation3 + $0x110] sm:$0xff] %v2376
    %2441 = vst [vmem:[#allocation3 + $0x118] sm:$0xff] %v2377
    %2442 = vst [vmem:[#allocation3 + $0x120] sm:$0xff] %v2378
    %2443 = vst [vmem:[#allocation3 + $0x128] sm:$0xff] %v2379
    %2444 = vst [vmem:[#allocation3 + $0x130] sm:$0xff] %v2380
    %2445 = vst [vmem:[#allocation3 + $0x138] sm:$0xff] %v2381
    %2446 = vst [vmem:[#allocation3 + $0x140] sm:$0xff] %v2382
    %2447 = vst [vmem:[#allocation3 + $0x148] sm:$0xff] %v2383
    %2448 = vst [vmem:[#allocation3 + $0x150] sm:$0xff] %v2384
    %2449 = vst [vmem:[#allocation3 + $0x158] sm:$0xff] %v2385
    %2450 = vst [vmem:[#allocation3 + $0x160] sm:$0xff] %v2386
    %2451 = vst [vmem:[#allocation3 + $0x168] sm:$0xff] %v2387
    %2452 = vst [vmem:[#allocation3 + $0x170] sm:$0xff] %v2388
    %2453 = vst [vmem:[#allocation3 + $0x178] sm:$0xff] %v2389
    %2454 = vst [vmem:[#allocation3 + $0x180] sm:$0xff] %v2390
    %2455 = vst [vmem:[#allocation3 + $0x188] sm:$0xff] %v2391
    %2456 = vst [vmem:[#allocation3 + $0x190] sm:$0xff] %v2392
    %2457 = vst [vmem:[#allocation3 + $0x198] sm:$0xff] %v2393
    %2458 = vst [vmem:[#allocation3 + $0x1a0] sm:$0xff] %v2394
    %2459 = vst [vmem:[#allocation3 + $0x1a8] sm:$0xff] %v2395
    %2460 = vst [vmem:[#allocation3 + $0x1b0] sm:$0xff] %v2396
    %2461 = vst [vmem:[#allocation3 + $0x1b8] sm:$0xff] %v2397
    %2462 = vst [vmem:[#allocation3 + $0x1c0] sm:$0xff] %v2398
    %2463 = vst [vmem:[#allocation3 + $0x1c8] sm:$0xff] %v2399
    %2464 = vst [vmem:[#allocation3 + $0x1d0] sm:$0xff] %v2400
    %2465 = vst [vmem:[#allocation3 + $0x1d8] sm:$0xff] %v2401
    %2466 = vst [vmem:[#allocation3 + $0x1e0] sm:$0xff] %v2402
    %2467 = vst [vmem:[#allocation3 + $0x1e8] sm:$0xff] %v2403
    %2468 = vst [vmem:[#allocation3 + $0x1f0] sm:$0xff] %v2404
    %2469 = vst [vmem:[#allocation3 + $0x1f8] sm:$0xff] %v2405
    %v2470 = vld [vmem:[#allocation2 + $0x2] sm:$0xff]
    %v2471 = vld [vmem:[#allocation2 + $0xa] sm:$0xff]
    %v2472 = vld [vmem:[#allocation2 + $0x1a] sm:$0xff]
    %v2473 = vld [vmem:[#allocation2 + $0x22] sm:$0xff]
    %v2474 = vld [vmem:[#allocation2 + $0x32] sm:$0xff]
    %v2475 = vld [vmem:[#allocation2 + $0x3a] sm:$0xff]
    %v2476 = vld [vmem:[#allocation2 + $0x4a] sm:$0xff]
    %v2477 = vld [vmem:[#allocation2 + $0x52] sm:$0xff]
    %v2478 = vld [vmem:[#allocation2 + $0x62] sm:$0xff]
    %v2479 = vld [vmem:[#allocation2 + $0x6a] sm:$0xff]
    %v2480 = vld [vmem:[#allocation2 + $0x7a] sm:$0xff]
    %v2481 = vld [vmem:[#allocation2 + $0x82] sm:$0xff]
    %v2482 = vld [vmem:[#allocation2 + $0x92] sm:$0xff]
    %v2483 = vld [vmem:[#allocation2 + $0x9a] sm:$0xff]
    %v2484 = vld [vmem:[#allocation2 + $0xaa] sm:$0xff]
    %v2485 = vld [vmem:[#allocation2 + $0xb2] sm:$0xff]
    %v2486 = vld [vmem:[#allocation2 + $0xc2] sm:$0xff]
    %v2487 = vld [vmem:[#allocation2 + $0xca] sm:$0xff]
    %v2488 = vld [vmem:[#allocation2 + $0xda] sm:$0xff]
    %v2489 = vld [vmem:[#allocation2 + $0xe2] sm:$0xff]
    %v2490 = vld [vmem:[#allocation2 + $0xf2] sm:$0xff]
    %v2491 = vld [vmem:[#allocation2 + $0xfa] sm:$0xff]
    %v2492 = vld [vmem:[#allocation2 + $0x10a] sm:$0xff]
    %v2493 = vld [vmem:[#allocation2 + $0x112] sm:$0xff]
    %v2494 = vld [vmem:[#allocation2 + $0x122] sm:$0xff]
    %v2495 = vld [vmem:[#allocation2 + $0x12a] sm:$0xff]
    %v2496 = vld [vmem:[#allocation2 + $0x13a] sm:$0xff]
    %v2497 = vld [vmem:[#allocation2 + $0x142] sm:$0xff]
    %v2498 = vld [vmem:[#allocation2 + $0x152] sm:$0xff]
    %v2499 = vld [vmem:[#allocation2 + $0x15a] sm:$0xff]
    %v2500 = vld [vmem:[#allocation2 + $0x16a] sm:$0xff]
    %v2501 = vld [vmem:[#allocation2 + $0x172] sm:$0xff]
    %v2502 = vld [vmem:[#allocation2 + $0x1b2] sm:$0xff]
    %v2503 = vld [vmem:[#allocation2 + $0x1ba] sm:$0xff]
    %v2504 = vld [vmem:[#allocation2 + $0x1ca] sm:$0xff]
    %v2505 = vld [vmem:[#allocation2 + $0x1d2] sm:$0xff]
    %v2506 = vld [vmem:[#allocation2 + $0x1e2] sm:$0xff]
    %v2507 = vld [vmem:[#allocation2 + $0x1ea] sm:$0xff]
    %v2508 = vld [vmem:[#allocation2 + $0x1fa] sm:$0xff]
    %v2509 = vld [vmem:[#allocation2 + $0x202] sm:$0xff]
    %v2510 = vld [vmem:[#allocation2 + $0x212] sm:$0xff]
    %v2511 = vld [vmem:[#allocation2 + $0x21a] sm:$0xff]
    %v2512 = vld [vmem:[#allocation2 + $0x22a] sm:$0xff]
    %v2513 = vld [vmem:[#allocation2 + $0x232] sm:$0xff]
    %v2514 = vld [vmem:[#allocation2 + $0x242] sm:$0xff]
    %v2515 = vld [vmem:[#allocation2 + $0x24a] sm:$0xff]
    %v2516 = vld [vmem:[#allocation2 + $0x25a] sm:$0xff]
    %v2517 = vld [vmem:[#allocation2 + $0x262] sm:$0xff]
    %v2518 = vld [vmem:[#allocation2 + $0x272] sm:$0xff]
    %v2519 = vld [vmem:[#allocation2 + $0x27a] sm:$0xff]
    %v2520 = vld [vmem:[#allocation2 + $0x28a] sm:$0xff]
    %v2521 = vld [vmem:[#allocation2 + $0x292] sm:$0xff]
    %v2522 = vld [vmem:[#allocation2 + $0x2a2] sm:$0xff]
    %v2523 = vld [vmem:[#allocation2 + $0x2aa] sm:$0xff]
    %v2524 = vld [vmem:[#allocation2 + $0x2ba] sm:$0xff]
    %v2525 = vld [vmem:[#allocation2 + $0x2c2] sm:$0xff]
    %v2526 = vld [vmem:[#allocation2 + $0x2d2] sm:$0xff]
    %v2527 = vld [vmem:[#allocation2 + $0x2da] sm:$0xff]
    %v2528 = vld [vmem:[#allocation2 + $0x2ea] sm:$0xff]
    %v2529 = vld [vmem:[#allocation2 + $0x2f2] sm:$0xff]
    %v2530 = vld [vmem:[#allocation2 + $0x302] sm:$0xff]
    %v2531 = vld [vmem:[#allocation2 + $0x30a] sm:$0xff]
    %v2532 = vld [vmem:[#allocation2 + $0x31a] sm:$0xff]
    %v2533 = vld [vmem:[#allocation2 + $0x322] sm:$0xff]
    %v2534 = vld [vmem:[#allocation3] sm:$0xff]
    %v2535 = vld [vmem:[#allocation3 + $0x8] sm:$0xff]
    %v2536 = vld [vmem:[#allocation3 + $0x10] sm:$0xff]
    %v2537 = vld [vmem:[#allocation3 + $0x18] sm:$0xff]
    %v2538 = vld [vmem:[#allocation3 + $0x20] sm:$0xff]
    %v2539 = vld [vmem:[#allocation3 + $0x28] sm:$0xff]
    %v2540 = vld [vmem:[#allocation3 + $0x30] sm:$0xff]
    %v2541 = vld [vmem:[#allocation3 + $0x38] sm:$0xff]
    %v2542 = vld [vmem:[#allocation3 + $0x40] sm:$0xff]
    %v2543 = vld [vmem:[#allocation3 + $0x48] sm:$0xff]
    %v2544 = vld [vmem:[#allocation3 + $0x50] sm:$0xff]
    %v2545 = vld [vmem:[#allocation3 + $0x58] sm:$0xff]
    %v2546 = vld [vmem:[#allocation3 + $0x60] sm:$0xff]
    %v2547 = vld [vmem:[#allocation3 + $0x68] sm:$0xff]
    %v2548 = vld [vmem:[#allocation3 + $0x70] sm:$0xff]
    %v2549 = vld [vmem:[#allocation3 + $0x78] sm:$0xff]
    %v2550 = vld [vmem:[#allocation3 + $0x80] sm:$0xff]
    %v2551 = vld [vmem:[#allocation3 + $0x88] sm:$0xff]
    %v2552 = vld [vmem:[#allocation3 + $0x90] sm:$0xff]
    %v2553 = vld [vmem:[#allocation3 + $0x98] sm:$0xff]
    %v2554 = vld [vmem:[#allocation3 + $0xa0] sm:$0xff]
    %v2555 = vld [vmem:[#allocation3 + $0xa8] sm:$0xff]
    %v2556 = vld [vmem:[#allocation3 + $0xb0] sm:$0xff]
    %v2557 = vld [vmem:[#allocation3 + $0xb8] sm:$0xff]
    %v2558 = vld [vmem:[#allocation3 + $0xc0] sm:$0xff]
    %v2559 = vld [vmem:[#allocation3 + $0xc8] sm:$0xff]
    %v2560 = vld [vmem:[#allocation3 + $0xd0] sm:$0xff]
    %v2561 = vld [vmem:[#allocation3 + $0xd8] sm:$0xff]
    %v2562 = vld [vmem:[#allocation3 + $0xe0] sm:$0xff]
    %v2563 = vld [vmem:[#allocation3 + $0xe8] sm:$0xff]
    %v2564 = vld [vmem:[#allocation3 + $0xf0] sm:$0xff]
    %v2565 = vld [vmem:[#allocation3 + $0xf8] sm:$0xff]
    %v2566 = vld [vmem:[#allocation3 + $0x100] sm:$0xff]
    %v2567 = vld [vmem:[#allocation3 + $0x108] sm:$0xff]
    %v2568 = vld [vmem:[#allocation3 + $0x110] sm:$0xff]
    %v2569 = vld [vmem:[#allocation3 + $0x118] sm:$0xff]
    %v2570 = vld [vmem:[#allocation3 + $0x120] sm:$0xff]
    %v2571 = vld [vmem:[#allocation3 + $0x128] sm:$0xff]
    %v2572 = vld [vmem:[#allocation3 + $0x130] sm:$0xff]
    %v2573 = vld [vmem:[#allocation3 + $0x138] sm:$0xff]
    %v2574 = vld [vmem:[#allocation3 + $0x140] sm:$0xff]
    %v2575 = vld [vmem:[#allocation3 + $0x148] sm:$0xff]
    %v2576 = vld [vmem:[#allocation3 + $0x150] sm:$0xff]
    %v2577 = vld [vmem:[#allocation3 + $0x158] sm:$0xff]
    %v2578 = vld [vmem:[#allocation3 + $0x160] sm:$0xff]
    %v2579 = vld [vmem:[#allocation3 + $0x168] sm:$0xff]
    %v2580 = vld [vmem:[#allocation3 + $0x170] sm:$0xff]
    %v2581 = vld [vmem:[#allocation3 + $0x178] sm:$0xff]
    %v2582 = vld [vmem:[#allocation3 + $0x180] sm:$0xff]
    %v2583 = vld [vmem:[#allocation3 + $0x188] sm:$0xff]
    %v2584 = vld [vmem:[#allocation3 + $0x190] sm:$0xff]
    %v2585 = vld [vmem:[#allocation3 + $0x198] sm:$0xff]
    %v2586 = vld [vmem:[#allocation3 + $0x1a0] sm:$0xff]
    %v2587 = vld [vmem:[#allocation3 + $0x1a8] sm:$0xff]
    %v2588 = vld [vmem:[#allocation3 + $0x1b0] sm:$0xff]
    %v2589 = vld [vmem:[#allocation3 + $0x1b8] sm:$0xff]
    %v2590 = vld [vmem:[#allocation3 + $0x1c0] sm:$0xff]
    %v2591 = vld [vmem:[#allocation3 + $0x1c8] sm:$0xff]
    %v2592 = vld [vmem:[#allocation3 + $0x1d0] sm:$0xff]
    %v2593 = vld [vmem:[#allocation3 + $0x1d8] sm:$0xff]
    %v2594 = vld [vmem:[#allocation3 + $0x1e0] sm:$0xff]
    %v2595 = vld [vmem:[#allocation3 + $0x1e8] sm:$0xff]
    %v2596 = vld [vmem:[#allocation3 + $0x1f0] sm:$0xff]
    %v2597 = vld [vmem:[#allocation3 + $0x1f8] sm:$0xff]
    %v2598 = vpack.c.bf16 %v2471, %v2470
    %v2599 = vpack.c.bf16 %v2473, %v2472
    %v2600 = vpack.c.bf16 %v2475, %v2474
    %v2601 = vpack.c.bf16 %v2477, %v2476
    %v2602 = vpack.c.bf16 %v2479, %v2478
    %v2603 = vpack.c.bf16 %v2481, %v2480
    %v2604 = vpack.c.bf16 %v2483, %v2482
    %v2605 = vpack.c.bf16 %v2485, %v2484
    %v2606 = vpack.c.bf16 %v2487, %v2486
    %v2607 = vpack.c.bf16 %v2489, %v2488
    %v2608 = vpack.c.bf16 %v2491, %v2490
    %v2609 = vpack.c.bf16 %v2493, %v2492
    %v2610 = vpack.c.bf16 %v2495, %v2494
    %v2611 = vpack.c.bf16 %v2497, %v2496
    %v2612 = vpack.c.bf16 %v2499, %v2498
    %v2613 = vpack.c.bf16 %v2501, %v2500
    %v2614 = vpack.c.bf16 %v2503, %v2502
    %v2615 = vpack.c.bf16 %v2505, %v2504
    %v2616 = vpack.c.bf16 %v2507, %v2506
    %v2617 = vpack.c.bf16 %v2509, %v2508
    %v2618 = vpack.c.bf16 %v2511, %v2510
    %v2619 = vpack.c.bf16 %v2513, %v2512
    %v2620 = vpack.c.bf16 %v2515, %v2514
    %v2621 = vpack.c.bf16 %v2517, %v2516
    %v2622 = vpack.c.bf16 %v2519, %v2518
    %v2623 = vpack.c.bf16 %v2521, %v2520
    %v2624 = vpack.c.bf16 %v2523, %v2522
    %v2625 = vpack.c.bf16 %v2525, %v2524
    %v2626 = vpack.c.bf16 %v2527, %v2526
    %v2627 = vpack.c.bf16 %v2529, %v2528
    %v2628 = vpack.c.bf16 %v2531, %v2530
    %v2629 = vpack.c.bf16 %v2533, %v2532
    %s2630 = scalar_lea.vmem [#allocation9], 128
    %v2631 = vld [vmem:[%s2630] sm:$0xf]
    %v2632 = vld [vmem:[%s2630 + $0x4] sm:$0xf]
    %v2633 = vld [vmem:[%s2630 + $0x8] sm:$0xf]
    %v2634 = vld [vmem:[%s2630 + $0xc] sm:$0xf]
    %v2635 = vld [vmem:[%s2630 + $0x10] sm:$0xf]
    %v2636 = vld [vmem:[%s2630 + $0x14] sm:$0xf]
    %v2637 = vld [vmem:[%s2630 + $0x18] sm:$0xf]
    %v2638 = vld [vmem:[%s2630 + $0x1c] sm:$0xf]
    %v2639 = vld [vmem:[%s2630 + $0x20] sm:$0xf]
    %v2640 = vld [vmem:[%s2630 + $0x24] sm:$0xf]
    %v2641 = vld [vmem:[%s2630 + $0x28] sm:$0xf]
    %v2642 = vld [vmem:[%s2630 + $0x2c] sm:$0xf]
    %v2643 = vld [vmem:[%s2630 + $0x30] sm:$0xf]
    %v2644 = vld [vmem:[%s2630 + $0x34] sm:$0xf]
    %v2645 = vld [vmem:[%s2630 + $0x38] sm:$0xf]
    %v2646 = vld [vmem:[%s2630 + $0x3c] sm:$0xf]
    %v2663 = vunpack.c.l.b16 %v2631
    %v2664 = vunpack.c.l.b16 %v2632
    %v2665 = vunpack.c.l.b16 %v2633
    %v2666 = vunpack.c.l.b16 %v2634
    %v2667 = vunpack.c.l.b16 %v2635
    %v2668 = vunpack.c.l.b16 %v2636
    %v2669 = vunpack.c.l.b16 %v2637
    %v2670 = vunpack.c.l.b16 %v2638
    %v2671 = vunpack.c.l.b16 %v2639
    %v2672 = vunpack.c.l.b16 %v2640
    %v2673 = vunpack.c.l.b16 %v2641
    %v2674 = vunpack.c.l.b16 %v2642
    %v2675 = vunpack.c.l.b16 %v2643
    %v2676 = vunpack.c.l.b16 %v2644
    %v2677 = vunpack.c.l.b16 %v2645
    %v2678 = vunpack.c.l.b16 %v2646
    %v2679 = vpack.c.b16 %v2664, %v2663
    %v2680 = vpack.c.b16 %v2666, %v2665
    %v2681 = vpack.c.b16 %v2668, %v2667
    %v2682 = vpack.c.b16 %v2670, %v2669
    %v2683 = vpack.c.b16 %v2672, %v2671
    %v2684 = vpack.c.b16 %v2674, %v2673
    %v2685 = vpack.c.b16 %v2676, %v2675
    %v2686 = vpack.c.b16 %v2678, %v2677
    %2695 = vmatprep.subr.bf16.mxu0 0
    %2696 = vmatpush1.bf16.msra.mxu0 %v2679
    %2697 = vmatprep.subr.bf16.mxu0 0
    %2698 = vmatpush1.bf16.msra.mxu0 %v2680
    %2699 = vmatprep.subr.bf16.mxu0 0
    %2700 = vmatpush1.bf16.msra.mxu0 %v2681
    %2701 = vmatprep.subr.bf16.mxu0 0
    %2702 = vmatpush1.bf16.msra.mxu0 %v2682
    %2703 = vmatprep.subr.bf16.mxu0 0
    %2704 = vmatpush1.bf16.msra.mxu0 %v2683
    %2705 = vmatprep.subr.bf16.mxu0 0
    %2706 = vmatpush1.bf16.msra.mxu0 %v2684
    %2707 = vmatprep.subr.bf16.mxu0 0
    %2708 = vmatpush1.bf16.msra.mxu0 %v2685
    %2709 = vmatprep.subr.bf16.mxu0 0
    %2710 = vmatpush1.bf16.msra.mxu0 %v2686
    %2711 = vmatprep.subr.bf16.mxu0 0
    %2712 = vmatpush1.bf16.msra.mxu0 0
    %2713 = vmatprep.subr.bf16.mxu0 0
    %2714 = vmatpush1.bf16.msra.mxu0 0
    %2715 = vmatprep.subr.bf16.mxu0 0
    %2716 = vmatpush1.bf16.msra.mxu0 0
    %2717 = vmatprep.subr.bf16.mxu0 0
    %2718 = vmatpush1.bf16.msra.mxu0 0
    %2719 = vmatprep.subr.bf16.mxu0 0
    %2720 = vmatpush1.bf16.msra.mxu0 0
    %2721 = vmatprep.subr.bf16.mxu0 0
    %2722 = vmatpush1.bf16.msra.mxu0 0
    %2723 = vmatprep.subr.bf16.mxu0 0
    %2724 = vmatpush1.bf16.msra.mxu0 0
    %2725 = vmatprep.subr.bf16.mxu0 0
    %2726 = vmatpush1.bf16.msra.mxu0 0
    %2727 = vmatprep.mubr.bf16.mxu0 0
    %2728 = vmatmul.mubr.bf16.gmra.mrb[0].mxu0 %v2598
    %v2729 = vpop.f32.mrb[0].mxu0
    %v2730 = vadd.f32 0.0, %v2729
    %v2731 = vpop.f32.mrb[0].mxu0
    %v2732 = vpop.f32.mrb[0].mxu0
    %v2733 = vadd.f32 0.0, %v2732
    %v2734 = vpop.f32.mrb[0].mxu0
    %2735 = vmatprep.mubr.bf16.mxu0 0
    %2736 = vmatmul.mubr.bf16.gmra.mrb[0].mxu0 %v2599
    %v2737 = vpop.f32.mrb[0].mxu0
    %v2738 = vadd.f32 0.0, %v2737
    %v2739 = vpop.f32.mrb[0].mxu0
    %v2740 = vpop.f32.mrb[0].mxu0
    %v2741 = vadd.f32 0.0, %v2740
    %v2742 = vpop.f32.mrb[0].mxu0
    %2743 = vmatprep.mubr.bf16.mxu0 0
    %2744 = vmatmul.mubr.bf16.gmra.mrb[0].mxu0 %v2600
    %v2745 = vpop.f32.mrb[0].mxu0
    %v2746 = vadd.f32 0.0, %v2745
    %v2747 = vpop.f32.mrb[0].mxu0
    %v2748 = vpop.f32.mrb[0].mxu0
    %v2749 = vadd.f32 0.0, %v2748
    %v2750 = vpop.f32.mrb[0].mxu0
    %2751 = vmatprep.mubr.bf16.mxu0 0
    %2752 = vmatmul.mubr.bf16.gmra.mrb[0].mxu0 %v2601
    %v2753 = vpop.f32.mrb[0].mxu0
    %v2754 = vadd.f32 0.0, %v2753
    %v2755 = vpop.f32.mrb[0].mxu0
    %v2756 = vpop.f32.mrb[0].mxu0
    %v2757 = vadd.f32 0.0, %v2756
    %v2758 = vpop.f32.mrb[0].mxu0
    %2759 = vmatprep.mubr.bf16.mxu0 0
    %2760 = vmatmul.mubr.bf16.gmra.mrb[0].mxu0 %v2602
    %v2761 = vpop.f32.mrb[0].mxu0
    %v2762 = vadd.f32 0.0, %v2761
    %v2763 = vpop.f32.mrb[0].mxu0
    %v2764 = vpop.f32.mrb[0].mxu0
    %v2765 = vadd.f32 0.0, %v2764
    %v2766 = vpop.f32.mrb[0].mxu0
    %2767 = vmatprep.mubr.bf16.mxu0 0
    %2768 = vmatmul.mubr.bf16.gmra.mrb[0].mxu0 %v2603
    %v2769 = vpop.f32.mrb[0].mxu0
    %v2770 = vadd.f32 0.0, %v2769
    %v2771 = vpop.f32.mrb[0].mxu0
    %v2772 = vpop.f32.mrb[0].mxu0
    %v2773 = vadd.f32 0.0, %v2772
    %v2774 = vpop.f32.mrb[0].mxu0
    %2775 = vmatprep.mubr.bf16.mxu0 0
    %2776 = vmatmul.mubr.bf16.gmra.mrb[0].mxu0 %v2604
    %v2777 = vpop.f32.mrb[0].mxu0
    %v2778 = vadd.f32 0.0, %v2777
    %v2779 = vpop.f32.mrb[0].mxu0
    %v2780 = vpop.f32.mrb[0].mxu0
    %v2781 = vadd.f32 0.0, %v2780
    %v2782 = vpop.f32.mrb[0].mxu0
    %2783 = vmatprep.mubr.bf16.mxu0 0
    %2784 = vmatmul.mubr.bf16.gmra.mrb[0].mxu0 %v2605
    %v2785 = vpop.f32.mrb[0].mxu0
    %v2786 = vadd.f32 0.0, %v2785
    %v2787 = vpop.f32.mrb[0].mxu0
    %v2788 = vpop.f32.mrb[0].mxu0
    %v2789 = vadd.f32 0.0, %v2788
    %v2790 = vpop.f32.mrb[0].mxu0
    %2791 = vmatprep.mubr.bf16.mxu0 0
    %2792 = vmatmul.mubr.bf16.gmra.mrb[0].mxu0 %v2606
    %v2793 = vpop.f32.mrb[0].mxu0
    %v2794 = vadd.f32 0.0, %v2793
    %v2795 = vpop.f32.mrb[0].mxu0
    %v2796 = vpop.f32.mrb[0].mxu0
    %v2797 = vadd.f32 0.0, %v2796
    %v2798 = vpop.f32.mrb[0].mxu0
    %2799 = vmatprep.mubr.bf16.mxu0 0
    %2800 = vmatmul.mubr.bf16.gmra.mrb[0].mxu0 %v2607
    %v2801 = vpop.f32.mrb[0].mxu0
    %v2802 = vadd.f32 0.0, %v2801
    %v2803 = vpop.f32.mrb[0].mxu0
    %v2804 = vpop.f32.mrb[0].mxu0
    %v2805 = vadd.f32 0.0, %v2804
    %v2806 = vpop.f32.mrb[0].mxu0
    %2807 = vmatprep.mubr.bf16.mxu0 0
    %2808 = vmatmul.mubr.bf16.gmra.mrb[0].mxu0 %v2608
    %v2809 = vpop.f32.mrb[0].mxu0
    %v2810 = vadd.f32 0.0, %v2809
    %v2811 = vpop.f32.mrb[0].mxu0
    %v2812 = vpop.f32.mrb[0].mxu0
    %v2813 = vadd.f32 0.0, %v2812
    %v2814 = vpop.f32.mrb[0].mxu0
    %2815 = vmatprep.mubr.bf16.mxu0 0
    %2816 = vmatmul.mubr.bf16.gmra.mrb[0].mxu0 %v2609
    %v2817 = vpop.f32.mrb[0].mxu0
    %v2818 = vadd.f32 0.0, %v2817
    %v2819 = vpop.f32.mrb[0].mxu0
    %v2820 = vpop.f32.mrb[0].mxu0
    %v2821 = vadd.f32 0.0, %v2820
    %v2822 = vpop.f32.mrb[0].mxu0
    %2823 = vmatprep.mubr.bf16.mxu0 0
    %2824 = vmatmul.mubr.bf16.gmra.mrb[0].mxu0 %v2610
    %v2825 = vpop.f32.mrb[0].mxu0
    %v2826 = vadd.f32 0.0, %v2825
    %v2827 = vpop.f32.mrb[0].mxu0
    %v2828 = vpop.f32.mrb[0].mxu0
    %v2829 = vadd.f32 0.0, %v2828
    %v2830 = vpop.f32.mrb[0].mxu0
    %2831 = vmatprep.mubr.bf16.mxu0 0
    %2832 = vmatmul.mubr.bf16.gmra.mrb[0].mxu0 %v2611
    %v2833 = vpop.f32.mrb[0].mxu0
    %v2834 = vadd.f32 0.0, %v2833
    %v2835 = vpop.f32.mrb[0].mxu0
    %v2836 = vpop.f32.mrb[0].mxu0
    %v2837 = vadd.f32 0.0, %v2836
    %v2838 = vpop.f32.mrb[0].mxu0
    %2839 = vmatprep.mubr.bf16.mxu0 0
    %2840 = vmatmul.mubr.bf16.gmra.mrb[0].mxu0 %v2612
    %v2841 = vpop.f32.mrb[0].mxu0
    %v2842 = vadd.f32 0.0, %v2841
    %v2843 = vpop.f32.mrb[0].mxu0
    %v2844 = vpop.f32.mrb[0].mxu0
    %v2845 = vadd.f32 0.0, %v2844
    %v2846 = vpop.f32.mrb[0].mxu0
    %2847 = vmatprep.mubr.bf16.mxu0 0
    %2848 = vmatmul.mubr.bf16.gmra.mrb[0].mxu0 %v2613
    %v2849 = vpop.f32.mrb[0].mxu0
    %v2850 = vadd.f32 0.0, %v2849
    %v2851 = vpop.f32.mrb[0].mxu0
    %v2852 = vpop.f32.mrb[0].mxu0
    %v2853 = vadd.f32 0.0, %v2852
    %v2854 = vpop.f32.mrb[0].mxu0
    %2855 = vmatprep.mubr.bf16.mxu0 0
    %2856 = vmatmul.mubr.bf16.gmra.mrb[0].mxu0 %v2614
    %v2857 = vpop.f32.mrb[0].mxu0
    %v2858 = vadd.f32 0.0, %v2857
    %v2859 = vpop.f32.mrb[0].mxu0
    %v2860 = vpop.f32.mrb[0].mxu0
    %v2861 = vadd.f32 0.0, %v2860
    %v2862 = vpop.f32.mrb[0].mxu0
    %2863 = vmatprep.mubr.bf16.mxu0 0
    %2864 = vmatmul.mubr.bf16.gmra.mrb[0].mxu0 %v2615
    %v2865 = vpop.f32.mrb[0].mxu0
    %v2866 = vadd.f32 0.0, %v2865
    %v2867 = vpop.f32.mrb[0].mxu0
    %v2868 = vpop.f32.mrb[0].mxu0
    %v2869 = vadd.f32 0.0, %v2868
    %v2870 = vpop.f32.mrb[0].mxu0
    %2871 = vmatprep.mubr.bf16.mxu0 0
    %2872 = vmatmul.mubr.bf16.gmra.mrb[0].mxu0 %v2616
    %v2873 = vpop.f32.mrb[0].mxu0
    %v2874 = vadd.f32 0.0, %v2873
    %v2875 = vpop.f32.mrb[0].mxu0
    %v2876 = vpop.f32.mrb[0].mxu0
    %v2877 = vadd.f32 0.0, %v2876
    %v2878 = vpop.f32.mrb[0].mxu0
    %2879 = vmatprep.mubr.bf16.mxu0 0
    %2880 = vmatmul.mubr.bf16.gmra.mrb[0].mxu0 %v2617
    %v2881 = vpop.f32.mrb[0].mxu0
    %v2882 = vadd.f32 0.0, %v2881
    %v2883 = vpop.f32.mrb[0].mxu0
    %v2884 = vpop.f32.mrb[0].mxu0
    %v2885 = vadd.f32 0.0, %v2884
    %v2886 = vpop.f32.mrb[0].mxu0
    %2887 = vmatprep.mubr.bf16.mxu0 0
    %2888 = vmatmul.mubr.bf16.gmra.mrb[0].mxu0 %v2618
    %v2889 = vpop.f32.mrb[0].mxu0
    %v2890 = vadd.f32 0.0, %v2889
    %v2891 = vpop.f32.mrb[0].mxu0
    %v2892 = vpop.f32.mrb[0].mxu0
    %v2893 = vadd.f32 0.0, %v2892
    %v2894 = vpop.f32.mrb[0].mxu0
    %2895 = vmatprep.mubr.bf16.mxu0 0
    %2896 = vmatmul.mubr.bf16.gmra.mrb[0].mxu0 %v2619
    %v2897 = vpop.f32.mrb[0].mxu0
    %v2898 = vadd.f32 0.0, %v2897
    %v2899 = vpop.f32.mrb[0].mxu0
    %v2900 = vpop.f32.mrb[0].mxu0
    %v2901 = vadd.f32 0.0, %v2900
    %v2902 = vpop.f32.mrb[0].mxu0
    %2903 = vmatprep.mubr.bf16.mxu0 0
    %2904 = vmatmul.mubr.bf16.gmra.mrb[0].mxu0 %v2620
    %v2905 = vpop.f32.mrb[0].mxu0
    %v2906 = vadd.f32 0.0, %v2905
    %v2907 = vpop.f32.mrb[0].mxu0
    %v2908 = vpop.f32.mrb[0].mxu0
    %v2909 = vadd.f32 0.0, %v2908
    %v2910 = vpop.f32.mrb[0].mxu0
    %2911 = vmatprep.mubr.bf16.mxu0 0
    %2912 = vmatmul.mubr.bf16.gmra.mrb[0].mxu0 %v2621
    %v2913 = vpop.f32.mrb[0].mxu0
    %v2914 = vadd.f32 0.0, %v2913
    %v2915 = vpop.f32.mrb[0].mxu0
    %v2916 = vpop.f32.mrb[0].mxu0
    %v2917 = vadd.f32 0.0, %v2916
    %v2918 = vpop.f32.mrb[0].mxu0
    %2919 = vmatprep.mubr.bf16.mxu0 0
    %2920 = vmatmul.mubr.bf16.gmra.mrb[0].mxu0 %v2622
    %v2921 = vpop.f32.mrb[0].mxu0
    %v2922 = vadd.f32 0.0, %v2921
    %v2923 = vpop.f32.mrb[0].mxu0
    %v2924 = vpop.f32.mrb[0].mxu0
    %v2925 = vadd.f32 0.0, %v2924
    %v2926 = vpop.f32.mrb[0].mxu0
    %2927 = vmatprep.mubr.bf16.mxu0 0
    %2928 = vmatmul.mubr.bf16.gmra.mrb[0].mxu0 %v2623
    %v2929 = vpop.f32.mrb[0].mxu0
    %v2930 = vadd.f32 0.0, %v2929
    %v2931 = vpop.f32.mrb[0].mxu0
    %v2932 = vpop.f32.mrb[0].mxu0
    %v2933 = vadd.f32 0.0, %v2932
    %v2934 = vpop.f32.mrb[0].mxu0
    %2935 = vmatprep.mubr.bf16.mxu0 0
    %2936 = vmatmul.mubr.bf16.gmra.mrb[0].mxu0 %v2624
    %v2937 = vpop.f32.mrb[0].mxu0
    %v2938 = vadd.f32 0.0, %v2937
    %v2939 = vpop.f32.mrb[0].mxu0
    %v2940 = vpop.f32.mrb[0].mxu0
    %v2941 = vadd.f32 0.0, %v2940
    %v2942 = vpop.f32.mrb[0].mxu0
    %2943 = vmatprep.mubr.bf16.mxu0 0
    %2944 = vmatmul.mubr.bf16.gmra.mrb[0].mxu0 %v2625
    %v2945 = vpop.f32.mrb[0].mxu0
    %v2946 = vadd.f32 0.0, %v2945
    %v2947 = vpop.f32.mrb[0].mxu0
    %v2948 = vpop.f32.mrb[0].mxu0
    %v2949 = vadd.f32 0.0, %v2948
    %v2950 = vpop.f32.mrb[0].mxu0
    %2951 = vmatprep.mubr.bf16.mxu0 0
    %2952 = vmatmul.mubr.bf16.gmra.mrb[0].mxu0 %v2626
    %v2953 = vpop.f32.mrb[0].mxu0
    %v2954 = vadd.f32 0.0, %v2953
    %v2955 = vpop.f32.mrb[0].mxu0
    %v2956 = vpop.f32.mrb[0].mxu0
    %v2957 = vadd.f32 0.0, %v2956
    %v2958 = vpop.f32.mrb[0].mxu0
    %2959 = vmatprep.mubr.bf16.mxu0 0
    %2960 = vmatmul.mubr.bf16.gmra.mrb[0].mxu0 %v2627
    %v2961 = vpop.f32.mrb[0].mxu0
    %v2962 = vadd.f32 0.0, %v2961
    %v2963 = vpop.f32.mrb[0].mxu0
    %v2964 = vpop.f32.mrb[0].mxu0
    %v2965 = vadd.f32 0.0, %v2964
    %v2966 = vpop.f32.mrb[0].mxu0
    %2967 = vmatprep.mubr.bf16.mxu0 0
    %2968 = vmatmul.mubr.bf16.gmra.mrb[0].mxu0 %v2628
    %v2969 = vpop.f32.mrb[0].mxu0
    %v2970 = vadd.f32 0.0, %v2969
    %v2971 = vpop.f32.mrb[0].mxu0
    %v2972 = vpop.f32.mrb[0].mxu0
    %v2973 = vadd.f32 0.0, %v2972
    %v2974 = vpop.f32.mrb[0].mxu0
    %2975 = vmatprep.mubr.bf16.mxu0 0
    %2976 = vmatmul.mubr.bf16.gmra.mrb[0].mxu0 %v2629
    %v2977 = vpop.f32.mrb[0].mxu0
    %v2978 = vadd.f32 0.0, %v2977
    %v2979 = vpop.f32.mrb[0].mxu0
    %v2980 = vpop.f32.mrb[0].mxu0
    %v2981 = vadd.f32 0.0, %v2980
    %v2982 = vpop.f32.mrb[0].mxu0
    %2983 = vdwg.mxu0
    %v2984 = vadd.f32 %v2534, %v2730
    %v2985 = vadd.f32 %v2535, %v2733
    %v2986 = vadd.f32 %v2536, %v2738
    %v2987 = vadd.f32 %v2537, %v2741
    %v2988 = vadd.f32 %v2538, %v2746
    %v2989 = vadd.f32 %v2539, %v2749
    %v2990 = vadd.f32 %v2540, %v2754
    %v2991 = vadd.f32 %v2541, %v2757
    %v2992 = vadd.f32 %v2542, %v2762
    %v2993 = vadd.f32 %v2543, %v2765
    %v2994 = vadd.f32 %v2544, %v2770
    %v2995 = vadd.f32 %v2545, %v2773
    %v2996 = vadd.f32 %v2546, %v2778
    %v2997 = vadd.f32 %v2547, %v2781
    %v2998 = vadd.f32 %v2548, %v2786
    %v2999 = vadd.f32 %v2549, %v2789
    %v3000 = vadd.f32 %v2550, %v2794
    %v3001 = vadd.f32 %v2551, %v2797
    %v3002 = vadd.f32 %v2552, %v2802
    %v3003 = vadd.f32 %v2553, %v2805
    %v3004 = vadd.f32 %v2554, %v2810
    %v3005 = vadd.f32 %v2555, %v2813
    %v3006 = vadd.f32 %v2556, %v2818
    %v3007 = vadd.f32 %v2557, %v2821
    %v3008 = vadd.f32 %v2558, %v2826
    %v3009 = vadd.f32 %v2559, %v2829
    %v3010 = vadd.f32 %v2560, %v2834
    %v3011 = vadd.f32 %v2561, %v2837
    %v3012 = vadd.f32 %v2562, %v2842
    %v3013 = vadd.f32 %v2563, %v2845
    %v3014 = vadd.f32 %v2564, %v2850
    %v3015 = vadd.f32 %v2565, %v2853
    %v3016 = vadd.f32 %v2566, %v2858
    %v3017 = vadd.f32 %v2567, %v2861
    %v3018 = vadd.f32 %v2568, %v2866
    %v3019 = vadd.f32 %v2569, %v2869
    %v3020 = vadd.f32 %v2570, %v2874
    %v3021 = vadd.f32 %v2571, %v2877
    %v3022 = vadd.f32 %v2572, %v2882
    %v3023 = vadd.f32 %v2573, %v2885
    %v3024 = vadd.f32 %v2574, %v2890
    %v3025 = vadd.f32 %v2575, %v2893
    %v3026 = vadd.f32 %v2576, %v2898
    %v3027 = vadd.f32 %v2577, %v2901
    %v3028 = vadd.f32 %v2578, %v2906
    %v3029 = vadd.f32 %v2579, %v2909
    %v3030 = vadd.f32 %v2580, %v2914
    %v3031 = vadd.f32 %v2581, %v2917
    %v3032 = vadd.f32 %v2582, %v2922
    %v3033 = vadd.f32 %v2583, %v2925
    %v3034 = vadd.f32 %v2584, %v2930
    %v3035 = vadd.f32 %v2585, %v2933
    %v3036 = vadd.f32 %v2586, %v2938
    %v3037 = vadd.f32 %v2587, %v2941
    %v3038 = vadd.f32 %v2588, %v2946
    %v3039 = vadd.f32 %v2589, %v2949
    %v3040 = vadd.f32 %v2590, %v2954
    %v3041 = vadd.f32 %v2591, %v2957
    %v3042 = vadd.f32 %v2592, %v2962
    %v3043 = vadd.f32 %v2593, %v2965
    %v3044 = vadd.f32 %v2594, %v2970
    %v3045 = vadd.f32 %v2595, %v2973
    %v3046 = vadd.f32 %v2596, %v2978
    %v3047 = vadd.f32 %v2597, %v2981
    %3048 = vst [vmem:[#allocation3] sm:$0xff] %v2984
    %3049 = vst [vmem:[#allocation3 + $0x8] sm:$0xff] %v2985
    %3050 = vst [vmem:[#allocation3 + $0x10] sm:$0xff] %v2986
    %3051 = vst [vmem:[#allocation3 + $0x18] sm:$0xff] %v2987
    %3052 = vst [vmem:[#allocation3 + $0x20] sm:$0xff] %v2988
    %3053 = vst [vmem:[#allocation3 + $0x28] sm:$0xff] %v2989
    %3054 = vst [vmem:[#allocation3 + $0x30] sm:$0xff] %v2990
    %3055 = vst [vmem:[#allocation3 + $0x38] sm:$0xff] %v2991
    %3056 = vst [vmem:[#allocation3 + $0x40] sm:$0xff] %v2992
    %3057 = vst [vmem:[#allocation3 + $0x48] sm:$0xff] %v2993
    %3058 = vst [vmem:[#allocation3 + $0x50] sm:$0xff] %v2994
    %3059 = vst [vmem:[#allocation3 + $0x58] sm:$0xff] %v2995
    %3060 = vst [vmem:[#allocation3 + $0x60] sm:$0xff] %v2996
    %3061 = vst [vmem:[#allocation3 + $0x68] sm:$0xff] %v2997
    %3062 = vst [vmem:[#allocation3 + $0x70] sm:$0xff] %v2998
    %3063 = vst [vmem:[#allocation3 + $0x78] sm:$0xff] %v2999
    %3064 = vst [vmem:[#allocation3 + $0x80] sm:$0xff] %v3000
    %3065 = vst [vmem:[#allocation3 + $0x88] sm:$0xff] %v3001
    %3066 = vst [vmem:[#allocation3 + $0x90] sm:$0xff] %v3002
    %3067 = vst [vmem:[#allocation3 + $0x98] sm:$0xff] %v3003
    %3068 = vst [vmem:[#allocation3 + $0xa0] sm:$0xff] %v3004
    %3069 = vst [vmem:[#allocation3 + $0xa8] sm:$0xff] %v3005
    %3070 = vst [vmem:[#allocation3 + $0xb0] sm:$0xff] %v3006
    %3071 = vst [vmem:[#allocation3 + $0xb8] sm:$0xff] %v3007
    %3072 = vst [vmem:[#allocation3 + $0xc0] sm:$0xff] %v3008
    %3073 = vst [vmem:[#allocation3 + $0xc8] sm:$0xff] %v3009
    %3074 = vst [vmem:[#allocation3 + $0xd0] sm:$0xff] %v3010
    %3075 = vst [vmem:[#allocation3 + $0xd8] sm:$0xff] %v3011
    %3076 = vst [vmem:[#allocation3 + $0xe0] sm:$0xff] %v3012
    %3077 = vst [vmem:[#allocation3 + $0xe8] sm:$0xff] %v3013
    %3078 = vst [vmem:[#allocation3 + $0xf0] sm:$0xff] %v3014
    %3079 = vst [vmem:[#allocation3 + $0xf8] sm:$0xff] %v3015
    %3080 = vst [vmem:[#allocation3 + $0x100] sm:$0xff] %v3016
    %3081 = vst [vmem:[#allocation3 + $0x108] sm:$0xff] %v3017
    %3082 = vst [vmem:[#allocation3 + $0x110] sm:$0xff] %v3018
    %3083 = vst [vmem:[#allocation3 + $0x118] sm:$0xff] %v3019
    %3084 = vst [vmem:[#allocation3 + $0x120] sm:$0xff] %v3020
    %3085 = vst [vmem:[#allocation3 + $0x128] sm:$0xff] %v3021
    %3086 = vst [vmem:[#allocation3 + $0x130] sm:$0xff] %v3022
    %3087 = vst [vmem:[#allocation3 + $0x138] sm:$0xff] %v3023
    %3088 = vst [vmem:[#allocation3 + $0x140] sm:$0xff] %v3024
    %3089 = vst [vmem:[#allocation3 + $0x148] sm:$0xff] %v3025
    %3090 = vst [vmem:[#allocation3 + $0x150] sm:$0xff] %v3026
    %3091 = vst [vmem:[#allocation3 + $0x158] sm:$0xff] %v3027
    %3092 = vst [vmem:[#allocation3 + $0x160] sm:$0xff] %v3028
    %3093 = vst [vmem:[#allocation3 + $0x168] sm:$0xff] %v3029
    %3094 = vst [vmem:[#allocation3 + $0x170] sm:$0xff] %v3030
    %3095 = vst [vmem:[#allocation3 + $0x178] sm:$0xff] %v3031
    %3096 = vst [vmem:[#allocation3 + $0x180] sm:$0xff] %v3032
    %3097 = vst [vmem:[#allocation3 + $0x188] sm:$0xff] %v3033
    %3098 = vst [vmem:[#allocation3 + $0x190] sm:$0xff] %v3034
    %3099 = vst [vmem:[#allocation3 + $0x198] sm:$0xff] %v3035
    %3100 = vst [vmem:[#allocation3 + $0x1a0] sm:$0xff] %v3036
    %3101 = vst [vmem:[#allocation3 + $0x1a8] sm:$0xff] %v3037
    %3102 = vst [vmem:[#allocation3 + $0x1b0] sm:$0xff] %v3038
    %3103 = vst [vmem:[#allocation3 + $0x1b8] sm:$0xff] %v3039
    %3104 = vst [vmem:[#allocation3 + $0x1c0] sm:$0xff] %v3040
    %3105 = vst [vmem:[#allocation3 + $0x1c8] sm:$0xff] %v3041
    %3106 = vst [vmem:[#allocation3 + $0x1d0] sm:$0xff] %v3042
    %3107 = vst [vmem:[#allocation3 + $0x1d8] sm:$0xff] %v3043
    %3108 = vst [vmem:[#allocation3 + $0x1e0] sm:$0xff] %v3044
    %3109 = vst [vmem:[#allocation3 + $0x1e8] sm:$0xff] %v3045
    %3110 = vst [vmem:[#allocation3 + $0x1f0] sm:$0xff] %v3046
    %3111 = vst [vmem:[#allocation3 + $0x1f8] sm:$0xff] %v3047
    %v3112 = vld [vmem:[%s1058] sm:$0xff]
    %v3113 = vld [vmem:[%s1058 + $0x8] sm:$0xff]
    %v3114 = vld [vmem:[%s1058 + $0x18] sm:$0xff]
    %v3115 = vld [vmem:[%s1058 + $0x20] sm:$0xff]
    %v3116 = vld [vmem:[%s1058 + $0x30] sm:$0xff]
    %v3117 = vld [vmem:[%s1058 + $0x38] sm:$0xff]
    %v3118 = vld [vmem:[%s1058 + $0x48] sm:$0xff]
    %v3119 = vld [vmem:[%s1058 + $0x50] sm:$0xff]
    %v3120 = vld [vmem:[%s1058 + $0x60] sm:$0xff]
    %v3121 = vld [vmem:[%s1058 + $0x68] sm:$0xff]
    %v3122 = vld [vmem:[%s1058 + $0x78] sm:$0xff]
    %v3123 = vld [vmem:[%s1058 + $0x80] sm:$0xff]
    %v3124 = vld [vmem:[%s1058 + $0x90] sm:$0xff]
    %v3125 = vld [vmem:[%s1058 + $0x98] sm:$0xff]
    %v3126 = vld [vmem:[%s1058 + $0xa8] sm:$0xff]
    %v3127 = vld [vmem:[%s1058 + $0xb0] sm:$0xff]
    %v3128 = vld [vmem:[%s1058 + $0xc0] sm:$0xff]
    %v3129 = vld [vmem:[%s1058 + $0xc8] sm:$0xff]
    %v3130 = vld [vmem:[%s1058 + $0xd8] sm:$0xff]
    %v3131 = vld [vmem:[%s1058 + $0xe0] sm:$0xff]
    %v3132 = vld [vmem:[%s1058 + $0xf0] sm:$0xff]
    %v3133 = vld [vmem:[%s1058 + $0xf8] sm:$0xff]
    %v3134 = vld [vmem:[%s1058 + $0x108] sm:$0xff]
    %v3135 = vld [vmem:[%s1058 + $0x110] sm:$0xff]
    %v3136 = vld [vmem:[%s1058 + $0x120] sm:$0xff]
    %v3137 = vld [vmem:[%s1058 + $0x128] sm:$0xff]
    %v3138 = vld [vmem:[%s1058 + $0x138] sm:$0xff]
    %v3139 = vld [vmem:[%s1058 + $0x140] sm:$0xff]
    %v3140 = vld [vmem:[%s1058 + $0x150] sm:$0xff]
    %v3141 = vld [vmem:[%s1058 + $0x158] sm:$0xff]
    %v3142 = vld [vmem:[%s1058 + $0x168] sm:$0xff]
    %v3143 = vld [vmem:[%s1058 + $0x170] sm:$0xff]
    %v3144 = vld [vmem:[%s1058 + $0x1b0] sm:$0xff]
    %v3145 = vld [vmem:[%s1058 + $0x1b8] sm:$0xff]
    %v3146 = vld [vmem:[%s1058 + $0x1c8] sm:$0xff]
    %v3147 = vld [vmem:[%s1058 + $0x1d0] sm:$0xff]
    %v3148 = vld [vmem:[%s1058 + $0x1e0] sm:$0xff]
    %v3149 = vld [vmem:[%s1058 + $0x1e8] sm:$0xff]
    %v3150 = vld [vmem:[%s1058 + $0x1f8] sm:$0xff]
    %v3151 = vld [vmem:[%s1058 + $0x200] sm:$0xff]
    %v3152 = vld [vmem:[%s1058 + $0x210] sm:$0xff]
    %v3153 = vld [vmem:[%s1058 + $0x218] sm:$0xff]
    %v3154 = vld [vmem:[%s1058 + $0x228] sm:$0xff]
    %v3155 = vld [vmem:[%s1058 + $0x230] sm:$0xff]
    %v3156 = vld [vmem:[%s1058 + $0x240] sm:$0xff]
    %v3157 = vld [vmem:[%s1058 + $0x248] sm:$0xff]
    %v3158 = vld [vmem:[%s1058 + $0x258] sm:$0xff]
    %v3159 = vld [vmem:[%s1058 + $0x260] sm:$0xff]
    %v3160 = vld [vmem:[%s1058 + $0x270] sm:$0xff]
    %v3161 = vld [vmem:[%s1058 + $0x278] sm:$0xff]
    %v3162 = vld [vmem:[%s1058 + $0x288] sm:$0xff]
    %v3163 = vld [vmem:[%s1058 + $0x290] sm:$0xff]
    %v3164 = vld [vmem:[%s1058 + $0x2a0] sm:$0xff]
    %v3165 = vld [vmem:[%s1058 + $0x2a8] sm:$0xff]
    %v3166 = vld [vmem:[%s1058 + $0x2b8] sm:$0xff]
    %v3167 = vld [vmem:[%s1058 + $0x2c0] sm:$0xff]
    %v3168 = vld [vmem:[%s1058 + $0x2d0] sm:$0xff]
    %v3169 = vld [vmem:[%s1058 + $0x2d8] sm:$0xff]
    %v3170 = vld [vmem:[%s1058 + $0x2e8] sm:$0xff]
    %v3171 = vld [vmem:[%s1058 + $0x2f0] sm:$0xff]
    %v3172 = vld [vmem:[%s1058 + $0x300] sm:$0xff]
    %v3173 = vld [vmem:[%s1058 + $0x308] sm:$0xff]
    %v3174 = vld [vmem:[%s1058 + $0x318] sm:$0xff]
    %v3175 = vld [vmem:[%s1058 + $0x320] sm:$0xff]
    %v3176 = vld [vmem:[#allocation3] sm:$0xff]
    %v3177 = vld [vmem:[#allocation3 + $0x8] sm:$0xff]
    %v3178 = vld [vmem:[#allocation3 + $0x10] sm:$0xff]
    %v3179 = vld [vmem:[#allocation3 + $0x18] sm:$0xff]
    %v3180 = vld [vmem:[#allocation3 + $0x20] sm:$0xff]
    %v3181 = vld [vmem:[#allocation3 + $0x28] sm:$0xff]
    %v3182 = vld [vmem:[#allocation3 + $0x30] sm:$0xff]
    %v3183 = vld [vmem:[#allocation3 + $0x38] sm:$0xff]
    %v3184 = vld [vmem:[#allocation3 + $0x40] sm:$0xff]
    %v3185 = vld [vmem:[#allocation3 + $0x48] sm:$0xff]
    %v3186 = vld [vmem:[#allocation3 + $0x50] sm:$0xff]
    %v3187 = vld [vmem:[#allocation3 + $0x58] sm:$0xff]
    %v3188 = vld [vmem:[#allocation3 + $0x60] sm:$0xff]
    %v3189 = vld [vmem:[#allocation3 + $0x68] sm:$0xff]
    %v3190 = vld [vmem:[#allocation3 + $0x70] sm:$0xff]
    %v3191 = vld [vmem:[#allocation3 + $0x78] sm:$0xff]
    %v3192 = vld [vmem:[#allocation3 + $0x80] sm:$0xff]
    %v3193 = vld [vmem:[#allocation3 + $0x88] sm:$0xff]
    %v3194 = vld [vmem:[#allocation3 + $0x90] sm:$0xff]
    %v3195 = vld [vmem:[#allocation3 + $0x98] sm:$0xff]
    %v3196 = vld [vmem:[#allocation3 + $0xa0] sm:$0xff]
    %v3197 = vld [vmem:[#allocation3 + $0xa8] sm:$0xff]
    %v3198 = vld [vmem:[#allocation3 + $0xb0] sm:$0xff]
    %v3199 = vld [vmem:[#allocation3 + $0xb8] sm:$0xff]
    %v3200 = vld [vmem:[#allocation3 + $0xc0] sm:$0xff]
    %v3201 = vld [vmem:[#allocation3 + $0xc8] sm:$0xff]
    %v3202 = vld [vmem:[#allocation3 + $0xd0] sm:$0xff]
    %v3203 = vld [vmem:[#allocation3 + $0xd8] sm:$0xff]
    %v3204 = vld [vmem:[#allocation3 + $0xe0] sm:$0xff]
    %v3205 = vld [vmem:[#allocation3 + $0xe8] sm:$0xff]
    %v3206 = vld [vmem:[#allocation3 + $0xf0] sm:$0xff]
    %v3207 = vld [vmem:[#allocation3 + $0xf8] sm:$0xff]
    %v3208 = vld [vmem:[#allocation3 + $0x100] sm:$0xff]
    %v3209 = vld [vmem:[#allocation3 + $0x108] sm:$0xff]
    %v3210 = vld [vmem:[#allocation3 + $0x110] sm:$0xff]
    %v3211 = vld [vmem:[#allocation3 + $0x118] sm:$0xff]
    %v3212 = vld [vmem:[#allocation3 + $0x120] sm:$0xff]
    %v3213 = vld [vmem:[#allocation3 + $0x128] sm:$0xff]
    %v3214 = vld [vmem:[#allocation3 + $0x130] sm:$0xff]
    %v3215 = vld [vmem:[#allocation3 + $0x138] sm:$0xff]
    %v3216 = vld [vmem:[#allocation3 + $0x140] sm:$0xff]
    %v3217 = vld [vmem:[#allocation3 + $0x148] sm:$0xff]
    %v3218 = vld [vmem:[#allocation3 + $0x150] sm:$0xff]
    %v3219 = vld [vmem:[#allocation3 + $0x158] sm:$0xff]
    %v3220 = vld [vmem:[#allocation3 + $0x160] sm:$0xff]
    %v3221 = vld [vmem:[#allocation3 + $0x168] sm:$0xff]
    %v3222 = vld [vmem:[#allocation3 + $0x170] sm:$0xff]
    %v3223 = vld [vmem:[#allocation3 + $0x178] sm:$0xff]
    %v3224 = vld [vmem:[#allocation3 + $0x180] sm:$0xff]
    %v3225 = vld [vmem:[#allocation3 + $0x188] sm:$0xff]
    %v3226 = vld [vmem:[#allocation3 + $0x190] sm:$0xff]
    %v3227 = vld [vmem:[#allocation3 + $0x198] sm:$0xff]
    %v3228 = vld [vmem:[#allocation3 + $0x1a0] sm:$0xff]
    %v3229 = vld [vmem:[#allocation3 + $0x1a8] sm:$0xff]
    %v3230 = vld [vmem:[#allocation3 + $0x1b0] sm:$0xff]
    %v3231 = vld [vmem:[#allocation3 + $0x1b8] sm:$0xff]
    %v3232 = vld [vmem:[#allocation3 + $0x1c0] sm:$0xff]
    %v3233 = vld [vmem:[#allocation3 + $0x1c8] sm:$0xff]
    %v3234 = vld [vmem:[#allocation3 + $0x1d0] sm:$0xff]
    %v3235 = vld [vmem:[#allocation3 + $0x1d8] sm:$0xff]
    %v3236 = vld [vmem:[#allocation3 + $0x1e0] sm:$0xff]
    %v3237 = vld [vmem:[#allocation3 + $0x1e8] sm:$0xff]
    %v3238 = vld [vmem:[#allocation3 + $0x1f0] sm:$0xff]
    %v3239 = vld [vmem:[#allocation3 + $0x1f8] sm:$0xff]
    %v3240 = vpack.c.bf16 %v3113, %v3112
    %v3241 = vpack.c.bf16 %v3115, %v3114
    %v3242 = vpack.c.bf16 %v3117, %v3116
    %v3243 = vpack.c.bf16 %v3119, %v3118
    %v3244 = vpack.c.bf16 %v3121, %v3120
    %v3245 = vpack.c.bf16 %v3123, %v3122
    %v3246 = vpack.c.bf16 %v3125, %v3124
    %v3247 = vpack.c.bf16 %v3127, %v3126
    %v3248 = vpack.c.bf16 %v3129, %v3128
    %v3249 = vpack.c.bf16 %v3131, %v3130
    %v3250 = vpack.c.bf16 %v3133, %v3132
    %v3251 = vpack.c.bf16 %v3135, %v3134
    %v3252 = vpack.c.bf16 %v3137, %v3136
    %v3253 = vpack.c.bf16 %v3139, %v3138
    %v3254 = vpack.c.bf16 %v3141, %v3140
    %v3255 = vpack.c.bf16 %v3143, %v3142
    %v3256 = vpack.c.bf16 %v3145, %v3144
    %v3257 = vpack.c.bf16 %v3147, %v3146
    %v3258 = vpack.c.bf16 %v3149, %v3148
    %v3259 = vpack.c.bf16 %v3151, %v3150
    %v3260 = vpack.c.bf16 %v3153, %v3152
    %v3261 = vpack.c.bf16 %v3155, %v3154
    %v3262 = vpack.c.bf16 %v3157, %v3156
    %v3263 = vpack.c.bf16 %v3159, %v3158
    %v3264 = vpack.c.bf16 %v3161, %v3160
    %v3265 = vpack.c.bf16 %v3163, %v3162
    %v3266 = vpack.c.bf16 %v3165, %v3164
    %v3267 = vpack.c.bf16 %v3167, %v3166
    %v3268 = vpack.c.bf16 %v3169, %v3168
    %v3269 = vpack.c.bf16 %v3171, %v3170
    %v3270 = vpack.c.bf16 %v3173, %v3172
    %v3271 = vpack.c.bf16 %v3175, %v3174
    %s3272 = scalar_lea.vmem [#allocation9], 192
    %v3273 = vld [vmem:[%s3272] sm:$0xf]
    %v3274 = vld [vmem:[%s3272 + $0x4] sm:$0xf]
    %v3275 = vld [vmem:[%s3272 + $0x8] sm:$0xf]
    %v3276 = vld [vmem:[%s3272 + $0xc] sm:$0xf]
    %v3277 = vld [vmem:[%s3272 + $0x10] sm:$0xf]
    %v3278 = vld [vmem:[%s3272 + $0x14] sm:$0xf]
    %v3279 = vld [vmem:[%s3272 + $0x18] sm:$0xf]
    %v3280 = vld [vmem:[%s3272 + $0x1c] sm:$0xf]
    %v3281 = vld [vmem:[%s3272 + $0x20] sm:$0xf]
    %v3282 = vld [vmem:[%s3272 + $0x24] sm:$0xf]
    %v3283 = vld [vmem:[%s3272 + $0x28] sm:$0xf]
    %v3284 = vld [vmem:[%s3272 + $0x2c] sm:$0xf]
    %v3285 = vld [vmem:[%s3272 + $0x30] sm:$0xf]
    %v3286 = vld [vmem:[%s3272 + $0x34] sm:$0xf]
    %v3287 = vld [vmem:[%s3272 + $0x38] sm:$0xf]
    %v3288 = vld [vmem:[%s3272 + $0x3c] sm:$0xf]
    %v3305 = vunpack.c.l.b16 %v3273
    %v3306 = vunpack.c.l.b16 %v3274
    %v3307 = vunpack.c.l.b16 %v3275
    %v3308 = vunpack.c.l.b16 %v3276
    %v3309 = vunpack.c.l.b16 %v3277
    %v3310 = vunpack.c.l.b16 %v3278
    %v3311 = vunpack.c.l.b16 %v3279
    %v3312 = vunpack.c.l.b16 %v3280
    %v3313 = vunpack.c.l.b16 %v3281
    %v3314 = vunpack.c.l.b16 %v3282
    %v3315 = vunpack.c.l.b16 %v3283
    %v3316 = vunpack.c.l.b16 %v3284
    %v3317 = vunpack.c.l.b16 %v3285
    %v3318 = vunpack.c.l.b16 %v3286
    %v3319 = vunpack.c.l.b16 %v3287
    %v3320 = vunpack.c.l.b16 %v3288
    %v3321 = vpack.c.b16 %v3306, %v3305
    %v3322 = vpack.c.b16 %v3308, %v3307
    %v3323 = vpack.c.b16 %v3310, %v3309
    %v3324 = vpack.c.b16 %v3312, %v3311
    %v3325 = vpack.c.b16 %v3314, %v3313
    %v3326 = vpack.c.b16 %v3316, %v3315
    %v3327 = vpack.c.b16 %v3318, %v3317
    %v3328 = vpack.c.b16 %v3320, %v3319
    %3337 = vmatprep.subr.bf16.mxu0 0
    %3338 = vmatpush1.bf16.msra.mxu0 %v3321
    %3339 = vmatprep.subr.bf16.mxu0 0
    %3340 = vmatpush1.bf16.msra.mxu0 %v3322
    %3341 = vmatprep.subr.bf16.mxu0 0
    %3342 = vmatpush1.bf16.msra.mxu0 %v3323
    %3343 = vmatprep.subr.bf16.mxu0 0
    %3344 = vmatpush1.bf16.msra.mxu0 %v3324
    %3345 = vmatprep.subr.bf16.mxu0 0
    %3346 = vmatpush1.bf16.msra.mxu0 %v3325
    %3347 = vmatprep.subr.bf16.mxu0 0
    %3348 = vmatpush1.bf16.msra.mxu0 %v3326
    %3349 = vmatprep.subr.bf16.mxu0 0
    %3350 = vmatpush1.bf16.msra.mxu0 %v3327
    %3351 = vmatprep.subr.bf16.mxu0 0
    %3352 = vmatpush1.bf16.msra.mxu0 %v3328
    %3353 = vmatprep.subr.bf16.mxu0 0
    %3354 = vmatpush1.bf16.msra.mxu0 0
    %3355 = vmatprep.subr.bf16.mxu0 0
    %3356 = vmatpush1.bf16.msra.mxu0 0
    %3357 = vmatprep.subr.bf16.mxu0 0
    %3358 = vmatpush1.bf16.msra.mxu0 0
    %3359 = vmatprep.subr.bf16.mxu0 0
    %3360 = vmatpush1.bf16.msra.mxu0 0
    %3361 = vmatprep.subr.bf16.mxu0 0
    %3362 = vmatpush1.bf16.msra.mxu0 0
    %3363 = vmatprep.subr.bf16.mxu0 0
    %3364 = vmatpush1.bf16.msra.mxu0 0
    %3365 = vmatprep.subr.bf16.mxu0 0
    %3366 = vmatpush1.bf16.msra.mxu0 0
    %3367 = vmatprep.subr.bf16.mxu0 0
    %3368 = vmatpush1.bf16.msra.mxu0 0
    %3369 = vmatprep.mubr.bf16.mxu0 0
    %3370 = vmatmul.mubr.bf16.gmra.mrb[0].mxu0 %v3240
    %v3371 = vpop.f32.mrb[0].mxu0
    %v3372 = vadd.f32 0.0, %v3371
    %v3373 = vpop.f32.mrb[0].mxu0
    %v3374 = vpop.f32.mrb[0].mxu0
    %v3375 = vadd.f32 0.0, %v3374
    %v3376 = vpop.f32.mrb[0].mxu0
    %3377 = vmatprep.mubr.bf16.mxu0 0
    %3378 = vmatmul.mubr.bf16.gmra.mrb[0].mxu0 %v3241
    %v3379 = vpop.f32.mrb[0].mxu0
    %v3380 = vadd.f32 0.0, %v3379
    %v3381 = vpop.f32.mrb[0].mxu0
    %v3382 = vpop.f32.mrb[0].mxu0
    %v3383 = vadd.f32 0.0, %v3382
    %v3384 = vpop.f32.mrb[0].mxu0
    %3385 = vmatprep.mubr.bf16.mxu0 0
    %3386 = vmatmul.mubr.bf16.gmra.mrb[0].mxu0 %v3242
    %v3387 = vpop.f32.mrb[0].mxu0
    %v3388 = vadd.f32 0.0, %v3387
    %v3389 = vpop.f32.mrb[0].mxu0
    %v3390 = vpop.f32.mrb[0].mxu0
    %v3391 = vadd.f32 0.0, %v3390
    %v3392 = vpop.f32.mrb[0].mxu0
    %3393 = vmatprep.mubr.bf16.mxu0 0
    %3394 = vmatmul.mubr.bf16.gmra.mrb[0].mxu0 %v3243
    %v3395 = vpop.f32.mrb[0].mxu0
    %v3396 = vadd.f32 0.0, %v3395
    %v3397 = vpop.f32.mrb[0].mxu0
    %v3398 = vpop.f32.mrb[0].mxu0
    %v3399 = vadd.f32 0.0, %v3398
    %v3400 = vpop.f32.mrb[0].mxu0
    %3401 = vmatprep.mubr.bf16.mxu0 0
    %3402 = vmatmul.mubr.bf16.gmra.mrb[0].mxu0 %v3244
    %v3403 = vpop.f32.mrb[0].mxu0
    %v3404 = vadd.f32 0.0, %v3403
    %v3405 = vpop.f32.mrb[0].mxu0
    %v3406 = vpop.f32.mrb[0].mxu0
    %v3407 = vadd.f32 0.0, %v3406
    %v3408 = vpop.f32.mrb[0].mxu0
    %3409 = vmatprep.mubr.bf16.mxu0 0
    %3410 = vmatmul.mubr.bf16.gmra.mrb[0].mxu0 %v3245
    %v3411 = vpop.f32.mrb[0].mxu0
    %v3412 = vadd.f32 0.0, %v3411
    %v3413 = vpop.f32.mrb[0].mxu0
    %v3414 = vpop.f32.mrb[0].mxu0
    %v3415 = vadd.f32 0.0, %v3414
    %v3416 = vpop.f32.mrb[0].mxu0
    %3417 = vmatprep.mubr.bf16.mxu0 0
    %3418 = vmatmul.mubr.bf16.gmra.mrb[0].mxu0 %v3246
    %v3419 = vpop.f32.mrb[0].mxu0
    %v3420 = vadd.f32 0.0, %v3419
    %v3421 = vpop.f32.mrb[0].mxu0
    %v3422 = vpop.f32.mrb[0].mxu0
    %v3423 = vadd.f32 0.0, %v3422
    %v3424 = vpop.f32.mrb[0].mxu0
    %3425 = vmatprep.mubr.bf16.mxu0 0
    %3426 = vmatmul.mubr.bf16.gmra.mrb[0].mxu0 %v3247
    %v3427 = vpop.f32.mrb[0].mxu0
    %v3428 = vadd.f32 0.0, %v3427
    %v3429 = vpop.f32.mrb[0].mxu0
    %v3430 = vpop.f32.mrb[0].mxu0
    %v3431 = vadd.f32 0.0, %v3430
    %v3432 = vpop.f32.mrb[0].mxu0
    %3433 = vmatprep.mubr.bf16.mxu0 0
    %3434 = vmatmul.mubr.bf16.gmra.mrb[0].mxu0 %v3248
    %v3435 = vpop.f32.mrb[0].mxu0
    %v3436 = vadd.f32 0.0, %v3435
    %v3437 = vpop.f32.mrb[0].mxu0
    %v3438 = vpop.f32.mrb[0].mxu0
    %v3439 = vadd.f32 0.0, %v3438
    %v3440 = vpop.f32.mrb[0].mxu0
    %3441 = vmatprep.mubr.bf16.mxu0 0
    %3442 = vmatmul.mubr.bf16.gmra.mrb[0].mxu0 %v3249
    %v3443 = vpop.f32.mrb[0].mxu0
    %v3444 = vadd.f32 0.0, %v3443
    %v3445 = vpop.f32.mrb[0].mxu0
    %v3446 = vpop.f32.mrb[0].mxu0
    %v3447 = vadd.f32 0.0, %v3446
    %v3448 = vpop.f32.mrb[0].mxu0
    %3449 = vmatprep.mubr.bf16.mxu0 0
    %3450 = vmatmul.mubr.bf16.gmra.mrb[0].mxu0 %v3250
    %v3451 = vpop.f32.mrb[0].mxu0
    %v3452 = vadd.f32 0.0, %v3451
    %v3453 = vpop.f32.mrb[0].mxu0
    %v3454 = vpop.f32.mrb[0].mxu0
    %v3455 = vadd.f32 0.0, %v3454
    %v3456 = vpop.f32.mrb[0].mxu0
    %3457 = vmatprep.mubr.bf16.mxu0 0
    %3458 = vmatmul.mubr.bf16.gmra.mrb[0].mxu0 %v3251
    %v3459 = vpop.f32.mrb[0].mxu0
    %v3460 = vadd.f32 0.0, %v3459
    %v3461 = vpop.f32.mrb[0].mxu0
    %v3462 = vpop.f32.mrb[0].mxu0
    %v3463 = vadd.f32 0.0, %v3462
    %v3464 = vpop.f32.mrb[0].mxu0
    %3465 = vmatprep.mubr.bf16.mxu0 0
    %3466 = vmatmul.mubr.bf16.gmra.mrb[0].mxu0 %v3252
    %v3467 = vpop.f32.mrb[0].mxu0
    %v3468 = vadd.f32 0.0, %v3467
    %v3469 = vpop.f32.mrb[0].mxu0
    %v3470 = vpop.f32.mrb[0].mxu0
    %v3471 = vadd.f32 0.0, %v3470
    %v3472 = vpop.f32.mrb[0].mxu0
    %3473 = vmatprep.mubr.bf16.mxu0 0
    %3474 = vmatmul.mubr.bf16.gmra.mrb[0].mxu0 %v3253
    %v3475 = vpop.f32.mrb[0].mxu0
    %v3476 = vadd.f32 0.0, %v3475
    %v3477 = vpop.f32.mrb[0].mxu0
    %v3478 = vpop.f32.mrb[0].mxu0
    %v3479 = vadd.f32 0.0, %v3478
    %v3480 = vpop.f32.mrb[0].mxu0
    %3481 = vmatprep.mubr.bf16.mxu0 0
    %3482 = vmatmul.mubr.bf16.gmra.mrb[0].mxu0 %v3254
    %v3483 = vpop.f32.mrb[0].mxu0
    %v3484 = vadd.f32 0.0, %v3483
    %v3485 = vpop.f32.mrb[0].mxu0
    %v3486 = vpop.f32.mrb[0].mxu0
    %v3487 = vadd.f32 0.0, %v3486
    %v3488 = vpop.f32.mrb[0].mxu0
    %3489 = vmatprep.mubr.bf16.mxu0 0
    %3490 = vmatmul.mubr.bf16.gmra.mrb[0].mxu0 %v3255
    %v3491 = vpop.f32.mrb[0].mxu0
    %v3492 = vadd.f32 0.0, %v3491
    %v3493 = vpop.f32.mrb[0].mxu0
    %v3494 = vpop.f32.mrb[0].mxu0
    %v3495 = vadd.f32 0.0, %v3494
    %v3496 = vpop.f32.mrb[0].mxu0
    %3497 = vmatprep.mubr.bf16.mxu0 0
    %3498 = vmatmul.mubr.bf16.gmra.mrb[0].mxu0 %v3256
    %v3499 = vpop.f32.mrb[0].mxu0
    %v3500 = vadd.f32 0.0, %v3499
    %v3501 = vpop.f32.mrb[0].mxu0
    %v3502 = vpop.f32.mrb[0].mxu0
    %v3503 = vadd.f32 0.0, %v3502
    %v3504 = vpop.f32.mrb[0].mxu0
    %3505 = vmatprep.mubr.bf16.mxu0 0
    %3506 = vmatmul.mubr.bf16.gmra.mrb[0].mxu0 %v3257
    %v3507 = vpop.f32.mrb[0].mxu0
    %v3508 = vadd.f32 0.0, %v3507
    %v3509 = vpop.f32.mrb[0].mxu0
    %v3510 = vpop.f32.mrb[0].mxu0
    %v3511 = vadd.f32 0.0, %v3510
    %v3512 = vpop.f32.mrb[0].mxu0
    %3513 = vmatprep.mubr.bf16.mxu0 0
    %3514 = vmatmul.mubr.bf16.gmra.mrb[0].mxu0 %v3258
    %v3515 = vpop.f32.mrb[0].mxu0
    %v3516 = vadd.f32 0.0, %v3515
    %v3517 = vpop.f32.mrb[0].mxu0
    %v3518 = vpop.f32.mrb[0].mxu0
    %v3519 = vadd.f32 0.0, %v3518
    %v3520 = vpop.f32.mrb[0].mxu0
    %3521 = vmatprep.mubr.bf16.mxu0 0
    %3522 = vmatmul.mubr.bf16.gmra.mrb[0].mxu0 %v3259
    %v3523 = vpop.f32.mrb[0].mxu0
    %v3524 = vadd.f32 0.0, %v3523
    %v3525 = vpop.f32.mrb[0].mxu0
    %v3526 = vpop.f32.mrb[0].mxu0
    %v3527 = vadd.f32 0.0, %v3526
    %v3528 = vpop.f32.mrb[0].mxu0
    %3529 = vmatprep.mubr.bf16.mxu0 0
    %3530 = vmatmul.mubr.bf16.gmra.mrb[0].mxu0 %v3260
    %v3531 = vpop.f32.mrb[0].mxu0
    %v3532 = vadd.f32 0.0, %v3531
    %v3533 = vpop.f32.mrb[0].mxu0
    %v3534 = vpop.f32.mrb[0].mxu0
    %v3535 = vadd.f32 0.0, %v3534
    %v3536 = vpop.f32.mrb[0].mxu0
    %3537 = vmatprep.mubr.bf16.mxu0 0
    %3538 = vmatmul.mubr.bf16.gmra.mrb[0].mxu0 %v3261
    %v3539 = vpop.f32.mrb[0].mxu0
    %v3540 = vadd.f32 0.0, %v3539
    %v3541 = vpop.f32.mrb[0].mxu0
    %v3542 = vpop.f32.mrb[0].mxu0
    %v3543 = vadd.f32 0.0, %v3542
    %v3544 = vpop.f32.mrb[0].mxu0
    %3545 = vmatprep.mubr.bf16.mxu0 0
    %3546 = vmatmul.mubr.bf16.gmra.mrb[0].mxu0 %v3262
    %v3547 = vpop.f32.mrb[0].mxu0
    %v3548 = vadd.f32 0.0, %v3547
    %v3549 = vpop.f32.mrb[0].mxu0
    %v3550 = vpop.f32.mrb[0].mxu0
    %v3551 = vadd.f32 0.0, %v3550
    %v3552 = vpop.f32.mrb[0].mxu0
    %3553 = vmatprep.mubr.bf16.mxu0 0
    %3554 = vmatmul.mubr.bf16.gmra.mrb[0].mxu0 %v3263
    %v3555 = vpop.f32.mrb[0].mxu0
    %v3556 = vadd.f32 0.0, %v3555
    %v3557 = vpop.f32.mrb[0].mxu0
    %v3558 = vpop.f32.mrb[0].mxu0
    %v3559 = vadd.f32 0.0, %v3558
    %v3560 = vpop.f32.mrb[0].mxu0
    %3561 = vmatprep.mubr.bf16.mxu0 0
    %3562 = vmatmul.mubr.bf16.gmra.mrb[0].mxu0 %v3264
    %v3563 = vpop.f32.mrb[0].mxu0
    %v3564 = vadd.f32 0.0, %v3563
    %v3565 = vpop.f32.mrb[0].mxu0
    %v3566 = vpop.f32.mrb[0].mxu0
    %v3567 = vadd.f32 0.0, %v3566
    %v3568 = vpop.f32.mrb[0].mxu0
    %3569 = vmatprep.mubr.bf16.mxu0 0
    %3570 = vmatmul.mubr.bf16.gmra.mrb[0].mxu0 %v3265
    %v3571 = vpop.f32.mrb[0].mxu0
    %v3572 = vadd.f32 0.0, %v3571
    %v3573 = vpop.f32.mrb[0].mxu0
    %v3574 = vpop.f32.mrb[0].mxu0
    %v3575 = vadd.f32 0.0, %v3574
    %v3576 = vpop.f32.mrb[0].mxu0
    %3577 = vmatprep.mubr.bf16.mxu0 0
    %3578 = vmatmul.mubr.bf16.gmra.mrb[0].mxu0 %v3266
    %v3579 = vpop.f32.mrb[0].mxu0
    %v3580 = vadd.f32 0.0, %v3579
    %v3581 = vpop.f32.mrb[0].mxu0
    %v3582 = vpop.f32.mrb[0].mxu0
    %v3583 = vadd.f32 0.0, %v3582
    %v3584 = vpop.f32.mrb[0].mxu0
    %3585 = vmatprep.mubr.bf16.mxu0 0
    %3586 = vmatmul.mubr.bf16.gmra.mrb[0].mxu0 %v3267
    %v3587 = vpop.f32.mrb[0].mxu0
    %v3588 = vadd.f32 0.0, %v3587
    %v3589 = vpop.f32.mrb[0].mxu0
    %v3590 = vpop.f32.mrb[0].mxu0
    %v3591 = vadd.f32 0.0, %v3590
    %v3592 = vpop.f32.mrb[0].mxu0
    %3593 = vmatprep.mubr.bf16.mxu0 0
    %3594 = vmatmul.mubr.bf16.gmra.mrb[0].mxu0 %v3268
    %v3595 = vpop.f32.mrb[0].mxu0
    %v3596 = vadd.f32 0.0, %v3595
    %v3597 = vpop.f32.mrb[0].mxu0
    %v3598 = vpop.f32.mrb[0].mxu0
    %v3599 = vadd.f32 0.0, %v3598
    %v3600 = vpop.f32.mrb[0].mxu0
    %3601 = vmatprep.mubr.bf16.mxu0 0
    %3602 = vmatmul.mubr.bf16.gmra.mrb[0].mxu0 %v3269
    %v3603 = vpop.f32.mrb[0].mxu0
    %v3604 = vadd.f32 0.0, %v3603
    %v3605 = vpop.f32.mrb[0].mxu0
    %v3606 = vpop.f32.mrb[0].mxu0
    %v3607 = vadd.f32 0.0, %v3606
    %v3608 = vpop.f32.mrb[0].mxu0
    %3609 = vmatprep.mubr.bf16.mxu0 0
    %3610 = vmatmul.mubr.bf16.gmra.mrb[0].mxu0 %v3270
    %v3611 = vpop.f32.mrb[0].mxu0
    %v3612 = vadd.f32 0.0, %v3611
    %v3613 = vpop.f32.mrb[0].mxu0
    %v3614 = vpop.f32.mrb[0].mxu0
    %v3615 = vadd.f32 0.0, %v3614
    %v3616 = vpop.f32.mrb[0].mxu0
    %3617 = vmatprep.mubr.bf16.mxu0 0
    %3618 = vmatmul.mubr.bf16.gmra.mrb[0].mxu0 %v3271
    %v3619 = vpop.f32.mrb[0].mxu0
    %v3620 = vadd.f32 0.0, %v3619
    %v3621 = vpop.f32.mrb[0].mxu0
    %v3622 = vpop.f32.mrb[0].mxu0
    %v3623 = vadd.f32 0.0, %v3622
    %v3624 = vpop.f32.mrb[0].mxu0
    %3625 = vdwg.mxu0
    %v3626 = vadd.f32 %v3176, %v3372
    %v3627 = vadd.f32 %v3177, %v3375
    %v3628 = vadd.f32 %v3178, %v3380
    %v3629 = vadd.f32 %v3179, %v3383
    %v3630 = vadd.f32 %v3180, %v3388
    %v3631 = vadd.f32 %v3181, %v3391
    %v3632 = vadd.f32 %v3182, %v3396
    %v3633 = vadd.f32 %v3183, %v3399
    %v3634 = vadd.f32 %v3184, %v3404
    %v3635 = vadd.f32 %v3185, %v3407
    %v3636 = vadd.f32 %v3186, %v3412
    %v3637 = vadd.f32 %v3187, %v3415
    %v3638 = vadd.f32 %v3188, %v3420
    %v3639 = vadd.f32 %v3189, %v3423
    %v3640 = vadd.f32 %v3190, %v3428
    %v3641 = vadd.f32 %v3191, %v3431
    %v3642 = vadd.f32 %v3192, %v3436
    %v3643 = vadd.f32 %v3193, %v3439
    %v3644 = vadd.f32 %v3194, %v3444
    %v3645 = vadd.f32 %v3195, %v3447
    %v3646 = vadd.f32 %v3196, %v3452
    %v3647 = vadd.f32 %v3197, %v3455
    %v3648 = vadd.f32 %v3198, %v3460
    %v3649 = vadd.f32 %v3199, %v3463
    %v3650 = vadd.f32 %v3200, %v3468
    %v3651 = vadd.f32 %v3201, %v3471
    %v3652 = vadd.f32 %v3202, %v3476
    %v3653 = vadd.f32 %v3203, %v3479
    %v3654 = vadd.f32 %v3204, %v3484
    %v3655 = vadd.f32 %v3205, %v3487
    %v3656 = vadd.f32 %v3206, %v3492
    %v3657 = vadd.f32 %v3207, %v3495
    %v3658 = vadd.f32 %v3208, %v3500
    %v3659 = vadd.f32 %v3209, %v3503
    %v3660 = vadd.f32 %v3210, %v3508
    %v3661 = vadd.f32 %v3211, %v3511
    %v3662 = vadd.f32 %v3212, %v3516
    %v3663 = vadd.f32 %v3213, %v3519
    %v3664 = vadd.f32 %v3214, %v3524
    %v3665 = vadd.f32 %v3215, %v3527
    %v3666 = vadd.f32 %v3216, %v3532
    %v3667 = vadd.f32 %v3217, %v3535
    %v3668 = vadd.f32 %v3218, %v3540
    %v3669 = vadd.f32 %v3219, %v3543
    %v3670 = vadd.f32 %v3220, %v3548
    %v3671 = vadd.f32 %v3221, %v3551
    %v3672 = vadd.f32 %v3222, %v3556
    %v3673 = vadd.f32 %v3223, %v3559
    %v3674 = vadd.f32 %v3224, %v3564
    %v3675 = vadd.f32 %v3225, %v3567
    %v3676 = vadd.f32 %v3226, %v3572
    %v3677 = vadd.f32 %v3227, %v3575
    %v3678 = vadd.f32 %v3228, %v3580
    %v3679 = vadd.f32 %v3229, %v3583
    %v3680 = vadd.f32 %v3230, %v3588
    %v3681 = vadd.f32 %v3231, %v3591
    %v3682 = vadd.f32 %v3232, %v3596
    %v3683 = vadd.f32 %v3233, %v3599
    %v3684 = vadd.f32 %v3234, %v3604
    %v3685 = vadd.f32 %v3235, %v3607
    %v3686 = vadd.f32 %v3236, %v3612
    %v3687 = vadd.f32 %v3237, %v3615
    %v3688 = vadd.f32 %v3238, %v3620
    %v3689 = vadd.f32 %v3239, %v3623
    %3690 = vst [vmem:[#allocation3] sm:$0xff] %v3626
    %3691 = vst [vmem:[#allocation3 + $0x8] sm:$0xff] %v3627
    %3692 = vst [vmem:[#allocation3 + $0x10] sm:$0xff] %v3628
    %3693 = vst [vmem:[#allocation3 + $0x18] sm:$0xff] %v3629
    %3694 = vst [vmem:[#allocation3 + $0x20] sm:$0xff] %v3630
    %3695 = vst [vmem:[#allocation3 + $0x28] sm:$0xff] %v3631
    %3696 = vst [vmem:[#allocation3 + $0x30] sm:$0xff] %v3632
    %3697 = vst [vmem:[#allocation3 + $0x38] sm:$0xff] %v3633
    %3698 = vst [vmem:[#allocation3 + $0x40] sm:$0xff] %v3634
    %3699 = vst [vmem:[#allocation3 + $0x48] sm:$0xff] %v3635
    %3700 = vst [vmem:[#allocation3 + $0x50] sm:$0xff] %v3636
    %3701 = vst [vmem:[#allocation3 + $0x58] sm:$0xff] %v3637
    %3702 = vst [vmem:[#allocation3 + $0x60] sm:$0xff] %v3638
    %3703 = vst [vmem:[#allocation3 + $0x68] sm:$0xff] %v3639
    %3704 = vst [vmem:[#allocation3 + $0x70] sm:$0xff] %v3640
    %3705 = vst [vmem:[#allocation3 + $0x78] sm:$0xff] %v3641
    %3706 = vst [vmem:[#allocation3 + $0x80] sm:$0xff] %v3642
    %3707 = vst [vmem:[#allocation3 + $0x88] sm:$0xff] %v3643
    %3708 = vst [vmem:[#allocation3 + $0x90] sm:$0xff] %v3644
    %3709 = vst [vmem:[#allocation3 + $0x98] sm:$0xff] %v3645
    %3710 = vst [vmem:[#allocation3 + $0xa0] sm:$0xff] %v3646
    %3711 = vst [vmem:[#allocation3 + $0xa8] sm:$0xff] %v3647
    %3712 = vst [vmem:[#allocation3 + $0xb0] sm:$0xff] %v3648
    %3713 = vst [vmem:[#allocation3 + $0xb8] sm:$0xff] %v3649
    %3714 = vst [vmem:[#allocation3 + $0xc0] sm:$0xff] %v3650
    %3715 = vst [vmem:[#allocation3 + $0xc8] sm:$0xff] %v3651
    %3716 = vst [vmem:[#allocation3 + $0xd0] sm:$0xff] %v3652
    %3717 = vst [vmem:[#allocation3 + $0xd8] sm:$0xff] %v3653
    %3718 = vst [vmem:[#allocation3 + $0xe0] sm:$0xff] %v3654
    %3719 = vst [vmem:[#allocation3 + $0xe8] sm:$0xff] %v3655
    %3720 = vst [vmem:[#allocation3 + $0xf0] sm:$0xff] %v3656
    %3721 = vst [vmem:[#allocation3 + $0xf8] sm:$0xff] %v3657
    %3722 = vst [vmem:[#allocation3 + $0x100] sm:$0xff] %v3658
    %3723 = vst [vmem:[#allocation3 + $0x108] sm:$0xff] %v3659
    %3724 = vst [vmem:[#allocation3 + $0x110] sm:$0xff] %v3660
    %3725 = vst [vmem:[#allocation3 + $0x118] sm:$0xff] %v3661
    %3726 = vst [vmem:[#allocation3 + $0x120] sm:$0xff] %v3662
    %3727 = vst [vmem:[#allocation3 + $0x128] sm:$0xff] %v3663
    %3728 = vst [vmem:[#allocation3 + $0x130] sm:$0xff] %v3664
    %3729 = vst [vmem:[#allocation3 + $0x138] sm:$0xff] %v3665
    %3730 = vst [vmem:[#allocation3 + $0x140] sm:$0xff] %v3666
    %3731 = vst [vmem:[#allocation3 + $0x148] sm:$0xff] %v3667
    %3732 = vst [vmem:[#allocation3 + $0x150] sm:$0xff] %v3668
    %3733 = vst [vmem:[#allocation3 + $0x158] sm:$0xff] %v3669
    %3734 = vst [vmem:[#allocation3 + $0x160] sm:$0xff] %v3670
    %3735 = vst [vmem:[#allocation3 + $0x168] sm:$0xff] %v3671
    %3736 = vst [vmem:[#allocation3 + $0x170] sm:$0xff] %v3672
    %3737 = vst [vmem:[#allocation3 + $0x178] sm:$0xff] %v3673
    %3738 = vst [vmem:[#allocation3 + $0x180] sm:$0xff] %v3674
    %3739 = vst [vmem:[#allocation3 + $0x188] sm:$0xff] %v3675
    %3740 = vst [vmem:[#allocation3 + $0x190] sm:$0xff] %v3676
    %3741 = vst [vmem:[#allocation3 + $0x198] sm:$0xff] %v3677
    %3742 = vst [vmem:[#allocation3 + $0x1a0] sm:$0xff] %v3678
    %3743 = vst [vmem:[#allocation3 + $0x1a8] sm:$0xff] %v3679
    %3744 = vst [vmem:[#allocation3 + $0x1b0] sm:$0xff] %v3680
    %3745 = vst [vmem:[#allocation3 + $0x1b8] sm:$0xff] %v3681
    %3746 = vst [vmem:[#allocation3 + $0x1c0] sm:$0xff] %v3682
    %3747 = vst [vmem:[#allocation3 + $0x1c8] sm:$0xff] %v3683
    %3748 = vst [vmem:[#allocation3 + $0x1d0] sm:$0xff] %v3684
    %3749 = vst [vmem:[#allocation3 + $0x1d8] sm:$0xff] %v3685
    %3750 = vst [vmem:[#allocation3 + $0x1e0] sm:$0xff] %v3686
    %3751 = vst [vmem:[#allocation3 + $0x1e8] sm:$0xff] %v3687
    %3752 = vst [vmem:[#allocation3 + $0x1f0] sm:$0xff] %v3688
    %3753 = vst [vmem:[#allocation3 + $0x1f8] sm:$0xff] %v3689
    %v3754 = vld [vmem:[%s1058 + $0x1] sm:$0xff]
    %v3755 = vld [vmem:[%s1058 + $0x9] sm:$0xff]
    %v3756 = vld [vmem:[%s1058 + $0x19] sm:$0xff]
    %v3757 = vld [vmem:[%s1058 + $0x21] sm:$0xff]
    %v3758 = vld [vmem:[%s1058 + $0x31] sm:$0xff]
    %v3759 = vld [vmem:[%s1058 + $0x39] sm:$0xff]
    %v3760 = vld [vmem:[%s1058 + $0x49] sm:$0xff]
    %v3761 = vld [vmem:[%s1058 + $0x51] sm:$0xff]
    %v3762 = vld [vmem:[%s1058 + $0x61] sm:$0xff]
    %v3763 = vld [vmem:[%s1058 + $0x69] sm:$0xff]
    %v3764 = vld [vmem:[%s1058 + $0x79] sm:$0xff]
    %v3765 = vld [vmem:[%s1058 + $0x81] sm:$0xff]
    %v3766 = vld [vmem:[%s1058 + $0x91] sm:$0xff]
    %v3767 = vld [vmem:[%s1058 + $0x99] sm:$0xff]
    %v3768 = vld [vmem:[%s1058 + $0xa9] sm:$0xff]
    %v3769 = vld [vmem:[%s1058 + $0xb1] sm:$0xff]
    %v3770 = vld [vmem:[%s1058 + $0xc1] sm:$0xff]
    %v3771 = vld [vmem:[%s1058 + $0xc9] sm:$0xff]
    %v3772 = vld [vmem:[%s1058 + $0xd9] sm:$0xff]
    %v3773 = vld [vmem:[%s1058 + $0xe1] sm:$0xff]
    %v3774 = vld [vmem:[%s1058 + $0xf1] sm:$0xff]
    %v3775 = vld [vmem:[%s1058 + $0xf9] sm:$0xff]
    %v3776 = vld [vmem:[%s1058 + $0x109] sm:$0xff]
    %v3777 = vld [vmem:[%s1058 + $0x111] sm:$0xff]
    %v3778 = vld [vmem:[%s1058 + $0x121] sm:$0xff]
    %v3779 = vld [vmem:[%s1058 + $0x129] sm:$0xff]
    %v3780 = vld [vmem:[%s1058 + $0x139] sm:$0xff]
    %v3781 = vld [vmem:[%s1058 + $0x141] sm:$0xff]
    %v3782 = vld [vmem:[%s1058 + $0x151] sm:$0xff]
    %v3783 = vld [vmem:[%s1058 + $0x159] sm:$0xff]
    %v3784 = vld [vmem:[%s1058 + $0x169] sm:$0xff]
    %v3785 = vld [vmem:[%s1058 + $0x171] sm:$0xff]
    %v3786 = vld [vmem:[%s1058 + $0x1b1] sm:$0xff]
    %v3787 = vld [vmem:[%s1058 + $0x1b9] sm:$0xff]
    %v3788 = vld [vmem:[%s1058 + $0x1c9] sm:$0xff]
    %v3789 = vld [vmem:[%s1058 + $0x1d1] sm:$0xff]
    %v3790 = vld [vmem:[%s1058 + $0x1e1] sm:$0xff]
    %v3791 = vld [vmem:[%s1058 + $0x1e9] sm:$0xff]
    %v3792 = vld [vmem:[%s1058 + $0x1f9] sm:$0xff]
    %v3793 = vld [vmem:[%s1058 + $0x201] sm:$0xff]
    %v3794 = vld [vmem:[%s1058 + $0x211] sm:$0xff]
    %v3795 = vld [vmem:[%s1058 + $0x219] sm:$0xff]
    %v3796 = vld [vmem:[%s1058 + $0x229] sm:$0xff]
    %v3797 = vld [vmem:[%s1058 + $0x231] sm:$0xff]
    %v3798 = vld [vmem:[%s1058 + $0x241] sm:$0xff]
    %v3799 = vld [vmem:[%s1058 + $0x249] sm:$0xff]
    %v3800 = vld [vmem:[%s1058 + $0x259] sm:$0xff]
    %v3801 = vld [vmem:[%s1058 + $0x261] sm:$0xff]
    %v3802 = vld [vmem:[%s1058 + $0x271] sm:$0xff]
    %v3803 = vld [vmem:[%s1058 + $0x279] sm:$0xff]
    %v3804 = vld [vmem:[%s1058 + $0x289] sm:$0xff]
    %v3805 = vld [vmem:[%s1058 + $0x291] sm:$0xff]
    %v3806 = vld [vmem:[%s1058 + $0x2a1] sm:$0xff]
    %v3807 = vld [vmem:[%s1058 + $0x2a9] sm:$0xff]
    %v3808 = vld [vmem:[%s1058 + $0x2b9] sm:$0xff]
    %v3809 = vld [vmem:[%s1058 + $0x2c1] sm:$0xff]
    %v3810 = vld [vmem:[%s1058 + $0x2d1] sm:$0xff]
    %v3811 = vld [vmem:[%s1058 + $0x2d9] sm:$0xff]
    %v3812 = vld [vmem:[%s1058 + $0x2e9] sm:$0xff]
    %v3813 = vld [vmem:[%s1058 + $0x2f1] sm:$0xff]
    %v3814 = vld [vmem:[%s1058 + $0x301] sm:$0xff]
    %v3815 = vld [vmem:[%s1058 + $0x309] sm:$0xff]
    %v3816 = vld [vmem:[%s1058 + $0x319] sm:$0xff]
    %v3817 = vld [vmem:[%s1058 + $0x321] sm:$0xff]
    %v3818 = vld [vmem:[#allocation3] sm:$0xff]
    %v3819 = vld [vmem:[#allocation3 + $0x8] sm:$0xff]
    %v3820 = vld [vmem:[#allocation3 + $0x10] sm:$0xff]
    %v3821 = vld [vmem:[#allocation3 + $0x18] sm:$0xff]
    %v3822 = vld [vmem:[#allocation3 + $0x20] sm:$0xff]
    %v3823 = vld [vmem:[#allocation3 + $0x28] sm:$0xff]
    %v3824 = vld [vmem:[#allocation3 + $0x30] sm:$0xff]
    %v3825 = vld [vmem:[#allocation3 + $0x38] sm:$0xff]
    %v3826 = vld [vmem:[#allocation3 + $0x40] sm:$0xff]
    %v3827 = vld [vmem:[#allocation3 + $0x48] sm:$0xff]
    %v3828 = vld [vmem:[#allocation3 + $0x50] sm:$0xff]
    %v3829 = vld [vmem:[#allocation3 + $0x58] sm:$0xff]
    %v3830 = vld [vmem:[#allocation3 + $0x60] sm:$0xff]
    %v3831 = vld [vmem:[#allocation3 + $0x68] sm:$0xff]
    %v3832 = vld [vmem:[#allocation3 + $0x70] sm:$0xff]
    %v3833 = vld [vmem:[#allocation3 + $0x78] sm:$0xff]
    %v3834 = vld [vmem:[#allocation3 + $0x80] sm:$0xff]
    %v3835 = vld [vmem:[#allocation3 + $0x88] sm:$0xff]
    %v3836 = vld [vmem:[#allocation3 + $0x90] sm:$0xff]
    %v3837 = vld [vmem:[#allocation3 + $0x98] sm:$0xff]
    %v3838 = vld [vmem:[#allocation3 + $0xa0] sm:$0xff]
    %v3839 = vld [vmem:[#allocation3 + $0xa8] sm:$0xff]
    %v3840 = vld [vmem:[#allocation3 + $0xb0] sm:$0xff]
    %v3841 = vld [vmem:[#allocation3 + $0xb8] sm:$0xff]
    %v3842 = vld [vmem:[#allocation3 + $0xc0] sm:$0xff]
    %v3843 = vld [vmem:[#allocation3 + $0xc8] sm:$0xff]
    %v3844 = vld [vmem:[#allocation3 + $0xd0] sm:$0xff]
    %v3845 = vld [vmem:[#allocation3 + $0xd8] sm:$0xff]
    %v3846 = vld [vmem:[#allocation3 + $0xe0] sm:$0xff]
    %v3847 = vld [vmem:[#allocation3 + $0xe8] sm:$0xff]
    %v3848 = vld [vmem:[#allocation3 + $0xf0] sm:$0xff]
    %v3849 = vld [vmem:[#allocation3 + $0xf8] sm:$0xff]
    %v3850 = vld [vmem:[#allocation3 + $0x100] sm:$0xff]
    %v3851 = vld [vmem:[#allocation3 + $0x108] sm:$0xff]
    %v3852 = vld [vmem:[#allocation3 + $0x110] sm:$0xff]
    %v3853 = vld [vmem:[#allocation3 + $0x118] sm:$0xff]
    %v3854 = vld [vmem:[#allocation3 + $0x120] sm:$0xff]
    %v3855 = vld [vmem:[#allocation3 + $0x128] sm:$0xff]
    %v3856 = vld [vmem:[#allocation3 + $0x130] sm:$0xff]
    %v3857 = vld [vmem:[#allocation3 + $0x138] sm:$0xff]
    %v3858 = vld [vmem:[#allocation3 + $0x140] sm:$0xff]
    %v3859 = vld [vmem:[#allocation3 + $0x148] sm:$0xff]
    %v3860 = vld [vmem:[#allocation3 + $0x150] sm:$0xff]
    %v3861 = vld [vmem:[#allocation3 + $0x158] sm:$0xff]
    %v3862 = vld [vmem:[#allocation3 + $0x160] sm:$0xff]
    %v3863 = vld [vmem:[#allocation3 + $0x168] sm:$0xff]
    %v3864 = vld [vmem:[#allocation3 + $0x170] sm:$0xff]
    %v3865 = vld [vmem:[#allocation3 + $0x178] sm:$0xff]
    %v3866 = vld [vmem:[#allocation3 + $0x180] sm:$0xff]
    %v3867 = vld [vmem:[#allocation3 + $0x188] sm:$0xff]
    %v3868 = vld [vmem:[#allocation3 + $0x190] sm:$0xff]
    %v3869 = vld [vmem:[#allocation3 + $0x198] sm:$0xff]
    %v3870 = vld [vmem:[#allocation3 + $0x1a0] sm:$0xff]
    %v3871 = vld [vmem:[#allocation3 + $0x1a8] sm:$0xff]
    %v3872 = vld [vmem:[#allocation3 + $0x1b0] sm:$0xff]
    %v3873 = vld [vmem:[#allocation3 + $0x1b8] sm:$0xff]
    %v3874 = vld [vmem:[#allocation3 + $0x1c0] sm:$0xff]
    %v3875 = vld [vmem:[#allocation3 + $0x1c8] sm:$0xff]
    %v3876 = vld [vmem:[#allocation3 + $0x1d0] sm:$0xff]
    %v3877 = vld [vmem:[#allocation3 + $0x1d8] sm:$0xff]
    %v3878 = vld [vmem:[#allocation3 + $0x1e0] sm:$0xff]
    %v3879 = vld [vmem:[#allocation3 + $0x1e8] sm:$0xff]
    %v3880 = vld [vmem:[#allocation3 + $0x1f0] sm:$0xff]
    %v3881 = vld [vmem:[#allocation3 + $0x1f8] sm:$0xff]
    %v3882 = vpack.c.bf16 %v3755, %v3754
    %v3883 = vpack.c.bf16 %v3757, %v3756
    %v3884 = vpack.c.bf16 %v3759, %v3758
    %v3885 = vpack.c.bf16 %v3761, %v3760
    %v3886 = vpack.c.bf16 %v3763, %v3762
    %v3887 = vpack.c.bf16 %v3765, %v3764
    %v3888 = vpack.c.bf16 %v3767, %v3766
    %v3889 = vpack.c.bf16 %v3769, %v3768
    %v3890 = vpack.c.bf16 %v3771, %v3770
    %v3891 = vpack.c.bf16 %v3773, %v3772
    %v3892 = vpack.c.bf16 %v3775, %v3774
    %v3893 = vpack.c.bf16 %v3777, %v3776
    %v3894 = vpack.c.bf16 %v3779, %v3778
    %v3895 = vpack.c.bf16 %v3781, %v3780
    %v3896 = vpack.c.bf16 %v3783, %v3782
    %v3897 = vpack.c.bf16 %v3785, %v3784
    %v3898 = vpack.c.bf16 %v3787, %v3786
    %v3899 = vpack.c.bf16 %v3789, %v3788
    %v3900 = vpack.c.bf16 %v3791, %v3790
    %v3901 = vpack.c.bf16 %v3793, %v3792
    %v3902 = vpack.c.bf16 %v3795, %v3794
    %v3903 = vpack.c.bf16 %v3797, %v3796
    %v3904 = vpack.c.bf16 %v3799, %v3798
    %v3905 = vpack.c.bf16 %v3801, %v3800
    %v3906 = vpack.c.bf16 %v3803, %v3802
    %v3907 = vpack.c.bf16 %v3805, %v3804
    %v3908 = vpack.c.bf16 %v3807, %v3806
    %v3909 = vpack.c.bf16 %v3809, %v3808
    %v3910 = vpack.c.bf16 %v3811, %v3810
    %v3911 = vpack.c.bf16 %v3813, %v3812
    %v3912 = vpack.c.bf16 %v3815, %v3814
    %v3913 = vpack.c.bf16 %v3817, %v3816
    %s3914 = scalar_lea.vmem [#allocation9], 256
    %v3915 = vld [vmem:[%s3914] sm:$0xf]
    %v3916 = vld [vmem:[%s3914 + $0x4] sm:$0xf]
    %v3917 = vld [vmem:[%s3914 + $0x8] sm:$0xf]
    %v3918 = vld [vmem:[%s3914 + $0xc] sm:$0xf]
    %v3919 = vld [vmem:[%s3914 + $0x10] sm:$0xf]
    %v3920 = vld [vmem:[%s3914 + $0x14] sm:$0xf]
    %v3921 = vld [vmem:[%s3914 + $0x18] sm:$0xf]
    %v3922 = vld [vmem:[%s3914 + $0x1c] sm:$0xf]
    %v3923 = vld [vmem:[%s3914 + $0x20] sm:$0xf]
    %v3924 = vld [vmem:[%s3914 + $0x24] sm:$0xf]
    %v3925 = vld [vmem:[%s3914 + $0x28] sm:$0xf]
    %v3926 = vld [vmem:[%s3914 + $0x2c] sm:$0xf]
    %v3927 = vld [vmem:[%s3914 + $0x30] sm:$0xf]
    %v3928 = vld [vmem:[%s3914 + $0x34] sm:$0xf]
    %v3929 = vld [vmem:[%s3914 + $0x38] sm:$0xf]
    %v3930 = vld [vmem:[%s3914 + $0x3c] sm:$0xf]
    %v3947 = vunpack.c.l.b16 %v3915
    %v3948 = vunpack.c.l.b16 %v3916
    %v3949 = vunpack.c.l.b16 %v3917
    %v3950 = vunpack.c.l.b16 %v3918
    %v3951 = vunpack.c.l.b16 %v3919
    %v3952 = vunpack.c.l.b16 %v3920
    %v3953 = vunpack.c.l.b16 %v3921
    %v3954 = vunpack.c.l.b16 %v3922
    %v3955 = vunpack.c.l.b16 %v3923
    %v3956 = vunpack.c.l.b16 %v3924
    %v3957 = vunpack.c.l.b16 %v3925
    %v3958 = vunpack.c.l.b16 %v3926
    %v3959 = vunpack.c.l.b16 %v3927
    %v3960 = vunpack.c.l.b16 %v3928
    %v3961 = vunpack.c.l.b16 %v3929
    %v3962 = vunpack.c.l.b16 %v3930
    %v3963 = vpack.c.b16 %v3948, %v3947
    %v3964 = vpack.c.b16 %v3950, %v3949
    %v3965 = vpack.c.b16 %v3952, %v3951
    %v3966 = vpack.c.b16 %v3954, %v3953
    %v3967 = vpack.c.b16 %v3956, %v3955
    %v3968 = vpack.c.b16 %v3958, %v3957
    %v3969 = vpack.c.b16 %v3960, %v3959
    %v3970 = vpack.c.b16 %v3962, %v3961
    %3979 = vmatprep.subr.bf16.mxu0 0
    %3980 = vmatpush1.bf16.msra.mxu0 %v3963
    %3981 = vmatprep.subr.bf16.mxu0 0
    %3982 = vmatpush1.bf16.msra.mxu0 %v3964
    %3983 = vmatprep.subr.bf16.mxu0 0
    %3984 = vmatpush1.bf16.msra.mxu0 %v3965
    %3985 = vmatprep.subr.bf16.mxu0 0
    %3986 = vmatpush1.bf16.msra.mxu0 %v3966
    %3987 = vmatprep.subr.bf16.mxu0 0
    %3988 = vmatpush1.bf16.msra.mxu0 %v3967
    %3989 = vmatprep.subr.bf16.mxu0 0
    %3990 = vmatpush1.bf16.msra.mxu0 %v3968
    %3991 = vmatprep.subr.bf16.mxu0 0
    %3992 = vmatpush1.bf16.msra.mxu0 %v3969
    %3993 = vmatprep.subr.bf16.mxu0 0
    %3994 = vmatpush1.bf16.msra.mxu0 %v3970
    %3995 = vmatprep.subr.bf16.mxu0 0
    %3996 = vmatpush1.bf16.msra.mxu0 0
    %3997 = vmatprep.subr.bf16.mxu0 0
    %3998 = vmatpush1.bf16.msra.mxu0 0
    %3999 = vmatprep.subr.bf16.mxu0 0
    %4000 = vmatpush1.bf16.msra.mxu0 0
    %4001 = vmatprep.subr.bf16.mxu0 0
    %4002 = vmatpush1.bf16.msra.mxu0 0
    %4003 = vmatprep.subr.bf16.mxu0 0
    %4004 = vmatpush1.bf16.msra.mxu0 0
    %4005 = vmatprep.subr.bf16.mxu0 0
    %4006 = vmatpush1.bf16.msra.mxu0 0
    %4007 = vmatprep.subr.bf16.mxu0 0
    %4008 = vmatpush1.bf16.msra.mxu0 0
    %4009 = vmatprep.subr.bf16.mxu0 0
    %4010 = vmatpush1.bf16.msra.mxu0 0
    %4011 = vmatprep.mubr.bf16.mxu0 0
    %4012 = vmatmul.mubr.bf16.gmra.mrb[0].mxu0 %v3882
    %v4013 = vpop.f32.mrb[0].mxu0
    %v4014 = vadd.f32 0.0, %v4013
    %v4015 = vpop.f32.mrb[0].mxu0
    %v4016 = vpop.f32.mrb[0].mxu0
    %v4017 = vadd.f32 0.0, %v4016
    %v4018 = vpop.f32.mrb[0].mxu0
    %4019 = vmatprep.mubr.bf16.mxu0 0
    %4020 = vmatmul.mubr.bf16.gmra.mrb[0].mxu0 %v3883
    %v4021 = vpop.f32.mrb[0].mxu0
    %v4022 = vadd.f32 0.0, %v4021
    %v4023 = vpop.f32.mrb[0].mxu0
    %v4024 = vpop.f32.mrb[0].mxu0
    %v4025 = vadd.f32 0.0, %v4024
    %v4026 = vpop.f32.mrb[0].mxu0
    %4027 = vmatprep.mubr.bf16.mxu0 0
    %4028 = vmatmul.mubr.bf16.gmra.mrb[0].mxu0 %v3884
    %v4029 = vpop.f32.mrb[0].mxu0
    %v4030 = vadd.f32 0.0, %v4029
    %v4031 = vpop.f32.mrb[0].mxu0
    %v4032 = vpop.f32.mrb[0].mxu0
    %v4033 = vadd.f32 0.0, %v4032
    %v4034 = vpop.f32.mrb[0].mxu0
    %4035 = vmatprep.mubr.bf16.mxu0 0
    %4036 = vmatmul.mubr.bf16.gmra.mrb[0].mxu0 %v3885
    %v4037 = vpop.f32.mrb[0].mxu0
    %v4038 = vadd.f32 0.0, %v4037
    %v4039 = vpop.f32.mrb[0].mxu0
    %v4040 = vpop.f32.mrb[0].mxu0
    %v4041 = vadd.f32 0.0, %v4040
    %v4042 = vpop.f32.mrb[0].mxu0
    %4043 = vmatprep.mubr.bf16.mxu0 0
    %4044 = vmatmul.mubr.bf16.gmra.mrb[0].mxu0 %v3886
    %v4045 = vpop.f32.mrb[0].mxu0
    %v4046 = vadd.f32 0.0, %v4045
    %v4047 = vpop.f32.mrb[0].mxu0
    %v4048 = vpop.f32.mrb[0].mxu0
    %v4049 = vadd.f32 0.0, %v4048
    %v4050 = vpop.f32.mrb[0].mxu0
    %4051 = vmatprep.mubr.bf16.mxu0 0
    %4052 = vmatmul.mubr.bf16.gmra.mrb[0].mxu0 %v3887
    %v4053 = vpop.f32.mrb[0].mxu0
    %v4054 = vadd.f32 0.0, %v4053
    %v4055 = vpop.f32.mrb[0].mxu0
    %v4056 = vpop.f32.mrb[0].mxu0
    %v4057 = vadd.f32 0.0, %v4056
    %v4058 = vpop.f32.mrb[0].mxu0
    %4059 = vmatprep.mubr.bf16.mxu0 0
    %4060 = vmatmul.mubr.bf16.gmra.mrb[0].mxu0 %v3888
    %v4061 = vpop.f32.mrb[0].mxu0
    %v4062 = vadd.f32 0.0, %v4061
    %v4063 = vpop.f32.mrb[0].mxu0
    %v4064 = vpop.f32.mrb[0].mxu0
    %v4065 = vadd.f32 0.0, %v4064
    %v4066 = vpop.f32.mrb[0].mxu0
    %4067 = vmatprep.mubr.bf16.mxu0 0
    %4068 = vmatmul.mubr.bf16.gmra.mrb[0].mxu0 %v3889
    %v4069 = vpop.f32.mrb[0].mxu0
    %v4070 = vadd.f32 0.0, %v4069
    %v4071 = vpop.f32.mrb[0].mxu0
    %v4072 = vpop.f32.mrb[0].mxu0
    %v4073 = vadd.f32 0.0, %v4072
    %v4074 = vpop.f32.mrb[0].mxu0
    %4075 = vmatprep.mubr.bf16.mxu0 0
    %4076 = vmatmul.mubr.bf16.gmra.mrb[0].mxu0 %v3890
    %v4077 = vpop.f32.mrb[0].mxu0
    %v4078 = vadd.f32 0.0, %v4077
    %v4079 = vpop.f32.mrb[0].mxu0
    %v4080 = vpop.f32.mrb[0].mxu0
    %v4081 = vadd.f32 0.0, %v4080
    %v4082 = vpop.f32.mrb[0].mxu0
    %4083 = vmatprep.mubr.bf16.mxu0 0
    %4084 = vmatmul.mubr.bf16.gmra.mrb[0].mxu0 %v3891
    %v4085 = vpop.f32.mrb[0].mxu0
    %v4086 = vadd.f32 0.0, %v4085
    %v4087 = vpop.f32.mrb[0].mxu0
    %v4088 = vpop.f32.mrb[0].mxu0
    %v4089 = vadd.f32 0.0, %v4088
    %v4090 = vpop.f32.mrb[0].mxu0
    %4091 = vmatprep.mubr.bf16.mxu0 0
    %4092 = vmatmul.mubr.bf16.gmra.mrb[0].mxu0 %v3892
    %v4093 = vpop.f32.mrb[0].mxu0
    %v4094 = vadd.f32 0.0, %v4093
    %v4095 = vpop.f32.mrb[0].mxu0
    %v4096 = vpop.f32.mrb[0].mxu0
    %v4097 = vadd.f32 0.0, %v4096
    %v4098 = vpop.f32.mrb[0].mxu0
    %4099 = vmatprep.mubr.bf16.mxu0 0
    %4100 = vmatmul.mubr.bf16.gmra.mrb[0].mxu0 %v3893
    %v4101 = vpop.f32.mrb[0].mxu0
    %v4102 = vadd.f32 0.0, %v4101
    %v4103 = vpop.f32.mrb[0].mxu0
    %v4104 = vpop.f32.mrb[0].mxu0
    %v4105 = vadd.f32 0.0, %v4104
    %v4106 = vpop.f32.mrb[0].mxu0
    %4107 = vmatprep.mubr.bf16.mxu0 0
    %4108 = vmatmul.mubr.bf16.gmra.mrb[0].mxu0 %v3894
    %v4109 = vpop.f32.mrb[0].mxu0
    %v4110 = vadd.f32 0.0, %v4109
    %v4111 = vpop.f32.mrb[0].mxu0
    %v4112 = vpop.f32.mrb[0].mxu0
    %v4113 = vadd.f32 0.0, %v4112
    %v4114 = vpop.f32.mrb[0].mxu0
    %4115 = vmatprep.mubr.bf16.mxu0 0
    %4116 = vmatmul.mubr.bf16.gmra.mrb[0].mxu0 %v3895
    %v4117 = vpop.f32.mrb[0].mxu0
    %v4118 = vadd.f32 0.0, %v4117
    %v4119 = vpop.f32.mrb[0].mxu0
    %v4120 = vpop.f32.mrb[0].mxu0
    %v4121 = vadd.f32 0.0, %v4120
    %v4122 = vpop.f32.mrb[0].mxu0
    %4123 = vmatprep.mubr.bf16.mxu0 0
    %4124 = vmatmul.mubr.bf16.gmra.mrb[0].mxu0 %v3896
    %v4125 = vpop.f32.mrb[0].mxu0
    %v4126 = vadd.f32 0.0, %v4125
    %v4127 = vpop.f32.mrb[0].mxu0
    %v4128 = vpop.f32.mrb[0].mxu0
    %v4129 = vadd.f32 0.0, %v4128
    %v4130 = vpop.f32.mrb[0].mxu0
    %4131 = vmatprep.mubr.bf16.mxu0 0
    %4132 = vmatmul.mubr.bf16.gmra.mrb[0].mxu0 %v3897
    %v4133 = vpop.f32.mrb[0].mxu0
    %v4134 = vadd.f32 0.0, %v4133
    %v4135 = vpop.f32.mrb[0].mxu0
    %v4136 = vpop.f32.mrb[0].mxu0
    %v4137 = vadd.f32 0.0, %v4136
    %v4138 = vpop.f32.mrb[0].mxu0
    %4139 = vmatprep.mubr.bf16.mxu0 0
    %4140 = vmatmul.mubr.bf16.gmra.mrb[0].mxu0 %v3898
    %v4141 = vpop.f32.mrb[0].mxu0
    %v4142 = vadd.f32 0.0, %v4141
    %v4143 = vpop.f32.mrb[0].mxu0
    %v4144 = vpop.f32.mrb[0].mxu0
    %v4145 = vadd.f32 0.0, %v4144
    %v4146 = vpop.f32.mrb[0].mxu0
    %4147 = vmatprep.mubr.bf16.mxu0 0
    %4148 = vmatmul.mubr.bf16.gmra.mrb[0].mxu0 %v3899
    %v4149 = vpop.f32.mrb[0].mxu0
    %v4150 = vadd.f32 0.0, %v4149
    %v4151 = vpop.f32.mrb[0].mxu0
    %v4152 = vpop.f32.mrb[0].mxu0
    %v4153 = vadd.f32 0.0, %v4152
    %v4154 = vpop.f32.mrb[0].mxu0
    %4155 = vmatprep.mubr.bf16.mxu0 0
    %4156 = vmatmul.mubr.bf16.gmra.mrb[0].mxu0 %v3900
    %v4157 = vpop.f32.mrb[0].mxu0
    %v4158 = vadd.f32 0.0, %v4157
    %v4159 = vpop.f32.mrb[0].mxu0
    %v4160 = vpop.f32.mrb[0].mxu0
    %v4161 = vadd.f32 0.0, %v4160
    %v4162 = vpop.f32.mrb[0].mxu0
    %4163 = vmatprep.mubr.bf16.mxu0 0
    %4164 = vmatmul.mubr.bf16.gmra.mrb[0].mxu0 %v3901
    %v4165 = vpop.f32.mrb[0].mxu0
    %v4166 = vadd.f32 0.0, %v4165
    %v4167 = vpop.f32.mrb[0].mxu0
    %v4168 = vpop.f32.mrb[0].mxu0
    %v4169 = vadd.f32 0.0, %v4168
    %v4170 = vpop.f32.mrb[0].mxu0
    %4171 = vmatprep.mubr.bf16.mxu0 0
    %4172 = vmatmul.mubr.bf16.gmra.mrb[0].mxu0 %v3902
    %v4173 = vpop.f32.mrb[0].mxu0
    %v4174 = vadd.f32 0.0, %v4173
    %v4175 = vpop.f32.mrb[0].mxu0
    %v4176 = vpop.f32.mrb[0].mxu0
    %v4177 = vadd.f32 0.0, %v4176
    %v4178 = vpop.f32.mrb[0].mxu0
    %4179 = vmatprep.mubr.bf16.mxu0 0
    %4180 = vmatmul.mubr.bf16.gmra.mrb[0].mxu0 %v3903
    %v4181 = vpop.f32.mrb[0].mxu0
    %v4182 = vadd.f32 0.0, %v4181
    %v4183 = vpop.f32.mrb[0].mxu0
    %v4184 = vpop.f32.mrb[0].mxu0
    %v4185 = vadd.f32 0.0, %v4184
    %v4186 = vpop.f32.mrb[0].mxu0
    %4187 = vmatprep.mubr.bf16.mxu0 0
    %4188 = vmatmul.mubr.bf16.gmra.mrb[0].mxu0 %v3904
    %v4189 = vpop.f32.mrb[0].mxu0
    %v4190 = vadd.f32 0.0, %v4189
    %v4191 = vpop.f32.mrb[0].mxu0
    %v4192 = vpop.f32.mrb[0].mxu0
    %v4193 = vadd.f32 0.0, %v4192
    %v4194 = vpop.f32.mrb[0].mxu0
    %4195 = vmatprep.mubr.bf16.mxu0 0
    %4196 = vmatmul.mubr.bf16.gmra.mrb[0].mxu0 %v3905
    %v4197 = vpop.f32.mrb[0].mxu0
    %v4198 = vadd.f32 0.0, %v4197
    %v4199 = vpop.f32.mrb[0].mxu0
    %v4200 = vpop.f32.mrb[0].mxu0
    %v4201 = vadd.f32 0.0, %v4200
    %v4202 = vpop.f32.mrb[0].mxu0
    %4203 = vmatprep.mubr.bf16.mxu0 0
    %4204 = vmatmul.mubr.bf16.gmra.mrb[0].mxu0 %v3906
    %v4205 = vpop.f32.mrb[0].mxu0
    %v4206 = vadd.f32 0.0, %v4205
    %v4207 = vpop.f32.mrb[0].mxu0
    %v4208 = vpop.f32.mrb[0].mxu0
    %v4209 = vadd.f32 0.0, %v4208
    %v4210 = vpop.f32.mrb[0].mxu0
    %4211 = vmatprep.mubr.bf16.mxu0 0
    %4212 = vmatmul.mubr.bf16.gmra.mrb[0].mxu0 %v3907
    %v4213 = vpop.f32.mrb[0].mxu0
    %v4214 = vadd.f32 0.0, %v4213
    %v4215 = vpop.f32.mrb[0].mxu0
    %v4216 = vpop.f32.mrb[0].mxu0
    %v4217 = vadd.f32 0.0, %v4216
    %v4218 = vpop.f32.mrb[0].mxu0
    %4219 = vmatprep.mubr.bf16.mxu0 0
    %4220 = vmatmul.mubr.bf16.gmra.mrb[0].mxu0 %v3908
    %v4221 = vpop.f32.mrb[0].mxu0
    %v4222 = vadd.f32 0.0, %v4221
    %v4223 = vpop.f32.mrb[0].mxu0
    %v4224 = vpop.f32.mrb[0].mxu0
    %v4225 = vadd.f32 0.0, %v4224
    %v4226 = vpop.f32.mrb[0].mxu0
    %4227 = vmatprep.mubr.bf16.mxu0 0
    %4228 = vmatmul.mubr.bf16.gmra.mrb[0].mxu0 %v3909
    %v4229 = vpop.f32.mrb[0].mxu0
    %v4230 = vadd.f32 0.0, %v4229
    %v4231 = vpop.f32.mrb[0].mxu0
    %v4232 = vpop.f32.mrb[0].mxu0
    %v4233 = vadd.f32 0.0, %v4232
    %v4234 = vpop.f32.mrb[0].mxu0
    %4235 = vmatprep.mubr.bf16.mxu0 0
    %4236 = vmatmul.mubr.bf16.gmra.mrb[0].mxu0 %v3910
    %v4237 = vpop.f32.mrb[0].mxu0
    %v4238 = vadd.f32 0.0, %v4237
    %v4239 = vpop.f32.mrb[0].mxu0
    %v4240 = vpop.f32.mrb[0].mxu0
    %v4241 = vadd.f32 0.0, %v4240
    %v4242 = vpop.f32.mrb[0].mxu0
    %4243 = vmatprep.mubr.bf16.mxu0 0
    %4244 = vmatmul.mubr.bf16.gmra.mrb[0].mxu0 %v3911
    %v4245 = vpop.f32.mrb[0].mxu0
    %v4246 = vadd.f32 0.0, %v4245
    %v4247 = vpop.f32.mrb[0].mxu0
    %v4248 = vpop.f32.mrb[0].mxu0
    %v4249 = vadd.f32 0.0, %v4248
    %v4250 = vpop.f32.mrb[0].mxu0
    %4251 = vmatprep.mubr.bf16.mxu0 0
    %4252 = vmatmul.mubr.bf16.gmra.mrb[0].mxu0 %v3912
    %v4253 = vpop.f32.mrb[0].mxu0
    %v4254 = vadd.f32 0.0, %v4253
    %v4255 = vpop.f32.mrb[0].mxu0
    %v4256 = vpop.f32.mrb[0].mxu0
    %v4257 = vadd.f32 0.0, %v4256
    %v4258 = vpop.f32.mrb[0].mxu0
    %4259 = vmatprep.mubr.bf16.mxu0 0
    %4260 = vmatmul.mubr.bf16.gmra.mrb[0].mxu0 %v3913
    %v4261 = vpop.f32.mrb[0].mxu0
    %v4262 = vadd.f32 0.0, %v4261
    %v4263 = vpop.f32.mrb[0].mxu0
    %v4264 = vpop.f32.mrb[0].mxu0
    %v4265 = vadd.f32 0.0, %v4264
    %v4266 = vpop.f32.mrb[0].mxu0
    %4267 = vdwg.mxu0
    %v4268 = vadd.f32 %v3818, %v4014
    %v4269 = vadd.f32 %v3819, %v4017
    %v4270 = vadd.f32 %v3820, %v4022
    %v4271 = vadd.f32 %v3821, %v4025
    %v4272 = vadd.f32 %v3822, %v4030
    %v4273 = vadd.f32 %v3823, %v4033
    %v4274 = vadd.f32 %v3824, %v4038
    %v4275 = vadd.f32 %v3825, %v4041
    %v4276 = vadd.f32 %v3826, %v4046
    %v4277 = vadd.f32 %v3827, %v4049
    %v4278 = vadd.f32 %v3828, %v4054
    %v4279 = vadd.f32 %v3829, %v4057
    %v4280 = vadd.f32 %v3830, %v4062
    %v4281 = vadd.f32 %v3831, %v4065
    %v4282 = vadd.f32 %v3832, %v4070
    %v4283 = vadd.f32 %v3833, %v4073
    %v4284 = vadd.f32 %v3834, %v4078
    %v4285 = vadd.f32 %v3835, %v4081
    %v4286 = vadd.f32 %v3836, %v4086
    %v4287 = vadd.f32 %v3837, %v4089
    %v4288 = vadd.f32 %v3838, %v4094
    %v4289 = vadd.f32 %v3839, %v4097
    %v4290 = vadd.f32 %v3840, %v4102
    %v4291 = vadd.f32 %v3841, %v4105
    %v4292 = vadd.f32 %v3842, %v4110
    %v4293 = vadd.f32 %v3843, %v4113
    %v4294 = vadd.f32 %v3844, %v4118
    %v4295 = vadd.f32 %v3845, %v4121
    %v4296 = vadd.f32 %v3846, %v4126
    %v4297 = vadd.f32 %v3847, %v4129
    %v4298 = vadd.f32 %v3848, %v4134
    %v4299 = vadd.f32 %v3849, %v4137
    %v4300 = vadd.f32 %v3850, %v4142
    %v4301 = vadd.f32 %v3851, %v4145
    %v4302 = vadd.f32 %v3852, %v4150
    %v4303 = vadd.f32 %v3853, %v4153
    %v4304 = vadd.f32 %v3854, %v4158
    %v4305 = vadd.f32 %v3855, %v4161
    %v4306 = vadd.f32 %v3856, %v4166
    %v4307 = vadd.f32 %v3857, %v4169
    %v4308 = vadd.f32 %v3858, %v4174
    %v4309 = vadd.f32 %v3859, %v4177
    %v4310 = vadd.f32 %v3860, %v4182
    %v4311 = vadd.f32 %v3861, %v4185
    %v4312 = vadd.f32 %v3862, %v4190
    %v4313 = vadd.f32 %v3863, %v4193
    %v4314 = vadd.f32 %v3864, %v4198
    %v4315 = vadd.f32 %v3865, %v4201
    %v4316 = vadd.f32 %v3866, %v4206
    %v4317 = vadd.f32 %v3867, %v4209
    %v4318 = vadd.f32 %v3868, %v4214
    %v4319 = vadd.f32 %v3869, %v4217
    %v4320 = vadd.f32 %v3870, %v4222
    %v4321 = vadd.f32 %v3871, %v4225
    %v4322 = vadd.f32 %v3872, %v4230
    %v4323 = vadd.f32 %v3873, %v4233
    %v4324 = vadd.f32 %v3874, %v4238
    %v4325 = vadd.f32 %v3875, %v4241
    %v4326 = vadd.f32 %v3876, %v4246
    %v4327 = vadd.f32 %v3877, %v4249
    %v4328 = vadd.f32 %v3878, %v4254
    %v4329 = vadd.f32 %v3879, %v4257
    %v4330 = vadd.f32 %v3880, %v4262
    %v4331 = vadd.f32 %v3881, %v4265
    %4332 = vst [vmem:[#allocation3] sm:$0xff] %v4268
    %4333 = vst [vmem:[#allocation3 + $0x8] sm:$0xff] %v4269
    %4334 = vst [vmem:[#allocation3 + $0x10] sm:$0xff] %v4270
    %4335 = vst [vmem:[#allocation3 + $0x18] sm:$0xff] %v4271
    %4336 = vst [vmem:[#allocation3 + $0x20] sm:$0xff] %v4272
    %4337 = vst [vmem:[#allocation3 + $0x28] sm:$0xff] %v4273
    %4338 = vst [vmem:[#allocation3 + $0x30] sm:$0xff] %v4274
    %4339 = vst [vmem:[#allocation3 + $0x38] sm:$0xff] %v4275
    %4340 = vst [vmem:[#allocation3 + $0x40] sm:$0xff] %v4276
    %4341 = vst [vmem:[#allocation3 + $0x48] sm:$0xff] %v4277
    %4342 = vst [vmem:[#allocation3 + $0x50] sm:$0xff] %v4278
    %4343 = vst [vmem:[#allocation3 + $0x58] sm:$0xff] %v4279
    %4344 = vst [vmem:[#allocation3 + $0x60] sm:$0xff] %v4280
    %4345 = vst [vmem:[#allocation3 + $0x68] sm:$0xff] %v4281
    %4346 = vst [vmem:[#allocation3 + $0x70] sm:$0xff] %v4282
    %4347 = vst [vmem:[#allocation3 + $0x78] sm:$0xff] %v4283
    %4348 = vst [vmem:[#allocation3 + $0x80] sm:$0xff] %v4284
    %4349 = vst [vmem:[#allocation3 + $0x88] sm:$0xff] %v4285
    %4350 = vst [vmem:[#allocation3 + $0x90] sm:$0xff] %v4286
    %4351 = vst [vmem:[#allocation3 + $0x98] sm:$0xff] %v4287
    %4352 = vst [vmem:[#allocation3 + $0xa0] sm:$0xff] %v4288
    %4353 = vst [vmem:[#allocation3 + $0xa8] sm:$0xff] %v4289
    %4354 = vst [vmem:[#allocation3 + $0xb0] sm:$0xff] %v4290
    %4355 = vst [vmem:[#allocation3 + $0xb8] sm:$0xff] %v4291
    %4356 = vst [vmem:[#allocation3 + $0xc0] sm:$0xff] %v4292
    %4357 = vst [vmem:[#allocation3 + $0xc8] sm:$0xff] %v4293
    %4358 = vst [vmem:[#allocation3 + $0xd0] sm:$0xff] %v4294
    %4359 = vst [vmem:[#allocation3 + $0xd8] sm:$0xff] %v4295
    %4360 = vst [vmem:[#allocation3 + $0xe0] sm:$0xff] %v4296
    %4361 = vst [vmem:[#allocation3 + $0xe8] sm:$0xff] %v4297
    %4362 = vst [vmem:[#allocation3 + $0xf0] sm:$0xff] %v4298
    %4363 = vst [vmem:[#allocation3 + $0xf8] sm:$0xff] %v4299
    %4364 = vst [vmem:[#allocation3 + $0x100] sm:$0xff] %v4300
    %4365 = vst [vmem:[#allocation3 + $0x108] sm:$0xff] %v4301
    %4366 = vst [vmem:[#allocation3 + $0x110] sm:$0xff] %v4302
    %4367 = vst [vmem:[#allocation3 + $0x118] sm:$0xff] %v4303
    %4368 = vst [vmem:[#allocation3 + $0x120] sm:$0xff] %v4304
    %4369 = vst [vmem:[#allocation3 + $0x128] sm:$0xff] %v4305
    %4370 = vst [vmem:[#allocation3 + $0x130] sm:$0xff] %v4306
    %4371 = vst [vmem:[#allocation3 + $0x138] sm:$0xff] %v4307
    %4372 = vst [vmem:[#allocation3 + $0x140] sm:$0xff] %v4308
    %4373 = vst [vmem:[#allocation3 + $0x148] sm:$0xff] %v4309
    %4374 = vst [vmem:[#allocation3 + $0x150] sm:$0xff] %v4310
    %4375 = vst [vmem:[#allocation3 + $0x158] sm:$0xff] %v4311
    %4376 = vst [vmem:[#allocation3 + $0x160] sm:$0xff] %v4312
    %4377 = vst [vmem:[#allocation3 + $0x168] sm:$0xff] %v4313
    %4378 = vst [vmem:[#allocation3 + $0x170] sm:$0xff] %v4314
    %4379 = vst [vmem:[#allocation3 + $0x178] sm:$0xff] %v4315
    %4380 = vst [vmem:[#allocation3 + $0x180] sm:$0xff] %v4316
    %4381 = vst [vmem:[#allocation3 + $0x188] sm:$0xff] %v4317
    %4382 = vst [vmem:[#allocation3 + $0x190] sm:$0xff] %v4318
    %4383 = vst [vmem:[#allocation3 + $0x198] sm:$0xff] %v4319
    %4384 = vst [vmem:[#allocation3 + $0x1a0] sm:$0xff] %v4320
    %4385 = vst [vmem:[#allocation3 + $0x1a8] sm:$0xff] %v4321
    %4386 = vst [vmem:[#allocation3 + $0x1b0] sm:$0xff] %v4322
    %4387 = vst [vmem:[#allocation3 + $0x1b8] sm:$0xff] %v4323
    %4388 = vst [vmem:[#allocation3 + $0x1c0] sm:$0xff] %v4324
    %4389 = vst [vmem:[#allocation3 + $0x1c8] sm:$0xff] %v4325
    %4390 = vst [vmem:[#allocation3 + $0x1d0] sm:$0xff] %v4326
    %4391 = vst [vmem:[#allocation3 + $0x1d8] sm:$0xff] %v4327
    %4392 = vst [vmem:[#allocation3 + $0x1e0] sm:$0xff] %v4328
    %4393 = vst [vmem:[#allocation3 + $0x1e8] sm:$0xff] %v4329
    %4394 = vst [vmem:[#allocation3 + $0x1f0] sm:$0xff] %v4330
    %4395 = vst [vmem:[#allocation3 + $0x1f8] sm:$0xff] %v4331
    %v4396 = vld [vmem:[%s1058 + $0x2] sm:$0xff]
    %v4397 = vld [vmem:[%s1058 + $0xa] sm:$0xff]
    %v4398 = vld [vmem:[%s1058 + $0x1a] sm:$0xff]
    %v4399 = vld [vmem:[%s1058 + $0x22] sm:$0xff]
    %v4400 = vld [vmem:[%s1058 + $0x32] sm:$0xff]
    %v4401 = vld [vmem:[%s1058 + $0x3a] sm:$0xff]
    %v4402 = vld [vmem:[%s1058 + $0x4a] sm:$0xff]
    %v4403 = vld [vmem:[%s1058 + $0x52] sm:$0xff]
    %v4404 = vld [vmem:[%s1058 + $0x62] sm:$0xff]
    %v4405 = vld [vmem:[%s1058 + $0x6a] sm:$0xff]
    %v4406 = vld [vmem:[%s1058 + $0x7a] sm:$0xff]
    %v4407 = vld [vmem:[%s1058 + $0x82] sm:$0xff]
    %v4408 = vld [vmem:[%s1058 + $0x92] sm:$0xff]
    %v4409 = vld [vmem:[%s1058 + $0x9a] sm:$0xff]
    %v4410 = vld [vmem:[%s1058 + $0xaa] sm:$0xff]
    %v4411 = vld [vmem:[%s1058 + $0xb2] sm:$0xff]
    %v4412 = vld [vmem:[%s1058 + $0xc2] sm:$0xff]
    %v4413 = vld [vmem:[%s1058 + $0xca] sm:$0xff]
    %v4414 = vld [vmem:[%s1058 + $0xda] sm:$0xff]
    %v4415 = vld [vmem:[%s1058 + $0xe2] sm:$0xff]
    %v4416 = vld [vmem:[%s1058 + $0xf2] sm:$0xff]
    %v4417 = vld [vmem:[%s1058 + $0xfa] sm:$0xff]
    %v4418 = vld [vmem:[%s1058 + $0x10a] sm:$0xff]
    %v4419 = vld [vmem:[%s1058 + $0x112] sm:$0xff]
    %v4420 = vld [vmem:[%s1058 + $0x122] sm:$0xff]
    %v4421 = vld [vmem:[%s1058 + $0x12a] sm:$0xff]
    %v4422 = vld [vmem:[%s1058 + $0x13a] sm:$0xff]
    %v4423 = vld [vmem:[%s1058 + $0x142] sm:$0xff]
    %v4424 = vld [vmem:[%s1058 + $0x152] sm:$0xff]
    %v4425 = vld [vmem:[%s1058 + $0x15a] sm:$0xff]
    %v4426 = vld [vmem:[%s1058 + $0x16a] sm:$0xff]
    %v4427 = vld [vmem:[%s1058 + $0x172] sm:$0xff]
    %v4428 = vld [vmem:[%s1058 + $0x1b2] sm:$0xff]
    %v4429 = vld [vmem:[%s1058 + $0x1ba] sm:$0xff]
    %v4430 = vld [vmem:[%s1058 + $0x1ca] sm:$0xff]
    %v4431 = vld [vmem:[%s1058 + $0x1d2] sm:$0xff]
    %v4432 = vld [vmem:[%s1058 + $0x1e2] sm:$0xff]
    %v4433 = vld [vmem:[%s1058 + $0x1ea] sm:$0xff]
    %v4434 = vld [vmem:[%s1058 + $0x1fa] sm:$0xff]
    %v4435 = vld [vmem:[%s1058 + $0x202] sm:$0xff]
    %v4436 = vld [vmem:[%s1058 + $0x212] sm:$0xff]
    %v4437 = vld [vmem:[%s1058 + $0x21a] sm:$0xff]
    %v4438 = vld [vmem:[%s1058 + $0x22a] sm:$0xff]
    %v4439 = vld [vmem:[%s1058 + $0x232] sm:$0xff]
    %v4440 = vld [vmem:[%s1058 + $0x242] sm:$0xff]
    %v4441 = vld [vmem:[%s1058 + $0x24a] sm:$0xff]
    %v4442 = vld [vmem:[%s1058 + $0x25a] sm:$0xff]
    %v4443 = vld [vmem:[%s1058 + $0x262] sm:$0xff]
    %v4444 = vld [vmem:[%s1058 + $0x272] sm:$0xff]
    %v4445 = vld [vmem:[%s1058 + $0x27a] sm:$0xff]
    %v4446 = vld [vmem:[%s1058 + $0x28a] sm:$0xff]
    %v4447 = vld [vmem:[%s1058 + $0x292] sm:$0xff]
    %v4448 = vld [vmem:[%s1058 + $0x2a2] sm:$0xff]
    %v4449 = vld [vmem:[%s1058 + $0x2aa] sm:$0xff]
    %v4450 = vld [vmem:[%s1058 + $0x2ba] sm:$0xff]
    %v4451 = vld [vmem:[%s1058 + $0x2c2] sm:$0xff]
    %v4452 = vld [vmem:[%s1058 + $0x2d2] sm:$0xff]
    %v4453 = vld [vmem:[%s1058 + $0x2da] sm:$0xff]
    %v4454 = vld [vmem:[%s1058 + $0x2ea] sm:$0xff]
    %v4455 = vld [vmem:[%s1058 + $0x2f2] sm:$0xff]
    %v4456 = vld [vmem:[%s1058 + $0x302] sm:$0xff]
    %v4457 = vld [vmem:[%s1058 + $0x30a] sm:$0xff]
    %v4458 = vld [vmem:[%s1058 + $0x31a] sm:$0xff]
    %v4459 = vld [vmem:[%s1058 + $0x322] sm:$0xff]
    %v4460 = vld [vmem:[#allocation3] sm:$0xff]
    %v4461 = vld [vmem:[#allocation3 + $0x8] sm:$0xff]
    %v4462 = vld [vmem:[#allocation3 + $0x10] sm:$0xff]
    %v4463 = vld [vmem:[#allocation3 + $0x18] sm:$0xff]
    %v4464 = vld [vmem:[#allocation3 + $0x20] sm:$0xff]
    %v4465 = vld [vmem:[#allocation3 + $0x28] sm:$0xff]
    %v4466 = vld [vmem:[#allocation3 + $0x30] sm:$0xff]
    %v4467 = vld [vmem:[#allocation3 + $0x38] sm:$0xff]
    %v4468 = vld [vmem:[#allocation3 + $0x40] sm:$0xff]
    %v4469 = vld [vmem:[#allocation3 + $0x48] sm:$0xff]
    %v4470 = vld [vmem:[#allocation3 + $0x50] sm:$0xff]
    %v4471 = vld [vmem:[#allocation3 + $0x58] sm:$0xff]
    %v4472 = vld [vmem:[#allocation3 + $0x60] sm:$0xff]
    %v4473 = vld [vmem:[#allocation3 + $0x68] sm:$0xff]
    %v4474 = vld [vmem:[#allocation3 + $0x70] sm:$0xff]
    %v4475 = vld [vmem:[#allocation3 + $0x78] sm:$0xff]
    %v4476 = vld [vmem:[#allocation3 + $0x80] sm:$0xff]
    %v4477 = vld [vmem:[#allocation3 + $0x88] sm:$0xff]
    %v4478 = vld [vmem:[#allocation3 + $0x90] sm:$0xff]
    %v4479 = vld [vmem:[#allocation3 + $0x98] sm:$0xff]
    %v4480 = vld [vmem:[#allocation3 + $0xa0] sm:$0xff]
    %v4481 = vld [vmem:[#allocation3 + $0xa8] sm:$0xff]
    %v4482 = vld [vmem:[#allocation3 + $0xb0] sm:$0xff]
    %v4483 = vld [vmem:[#allocation3 + $0xb8] sm:$0xff]
    %v4484 = vld [vmem:[#allocation3 + $0xc0] sm:$0xff]
    %v4485 = vld [vmem:[#allocation3 + $0xc8] sm:$0xff]
    %v4486 = vld [vmem:[#allocation3 + $0xd0] sm:$0xff]
    %v4487 = vld [vmem:[#allocation3 + $0xd8] sm:$0xff]
    %v4488 = vld [vmem:[#allocation3 + $0xe0] sm:$0xff]
    %v4489 = vld [vmem:[#allocation3 + $0xe8] sm:$0xff]
    %v4490 = vld [vmem:[#allocation3 + $0xf0] sm:$0xff]
    %v4491 = vld [vmem:[#allocation3 + $0xf8] sm:$0xff]
    %v4492 = vld [vmem:[#allocation3 + $0x100] sm:$0xff]
    %v4493 = vld [vmem:[#allocation3 + $0x108] sm:$0xff]
    %v4494 = vld [vmem:[#allocation3 + $0x110] sm:$0xff]
    %v4495 = vld [vmem:[#allocation3 + $0x118] sm:$0xff]
    %v4496 = vld [vmem:[#allocation3 + $0x120] sm:$0xff]
    %v4497 = vld [vmem:[#allocation3 + $0x128] sm:$0xff]
    %v4498 = vld [vmem:[#allocation3 + $0x130] sm:$0xff]
    %v4499 = vld [vmem:[#allocation3 + $0x138] sm:$0xff]
    %v4500 = vld [vmem:[#allocation3 + $0x140] sm:$0xff]
    %v4501 = vld [vmem:[#allocation3 + $0x148] sm:$0xff]
    %v4502 = vld [vmem:[#allocation3 + $0x150] sm:$0xff]
    %v4503 = vld [vmem:[#allocation3 + $0x158] sm:$0xff]
    %v4504 = vld [vmem:[#allocation3 + $0x160] sm:$0xff]
    %v4505 = vld [vmem:[#allocation3 + $0x168] sm:$0xff]
    %v4506 = vld [vmem:[#allocation3 + $0x170] sm:$0xff]
    %v4507 = vld [vmem:[#allocation3 + $0x178] sm:$0xff]
    %v4508 = vld [vmem:[#allocation3 + $0x180] sm:$0xff]
    %v4509 = vld [vmem:[#allocation3 + $0x188] sm:$0xff]
    %v4510 = vld [vmem:[#allocation3 + $0x190] sm:$0xff]
    %v4511 = vld [vmem:[#allocation3 + $0x198] sm:$0xff]
    %v4512 = vld [vmem:[#allocation3 + $0x1a0] sm:$0xff]
    %v4513 = vld [vmem:[#allocation3 + $0x1a8] sm:$0xff]
    %v4514 = vld [vmem:[#allocation3 + $0x1b0] sm:$0xff]
    %v4515 = vld [vmem:[#allocation3 + $0x1b8] sm:$0xff]
    %v4516 = vld [vmem:[#allocation3 + $0x1c0] sm:$0xff]
    %v4517 = vld [vmem:[#allocation3 + $0x1c8] sm:$0xff]
    %v4518 = vld [vmem:[#allocation3 + $0x1d0] sm:$0xff]
    %v4519 = vld [vmem:[#allocation3 + $0x1d8] sm:$0xff]
    %v4520 = vld [vmem:[#allocation3 + $0x1e0] sm:$0xff]
    %v4521 = vld [vmem:[#allocation3 + $0x1e8] sm:$0xff]
    %v4522 = vld [vmem:[#allocation3 + $0x1f0] sm:$0xff]
    %v4523 = vld [vmem:[#allocation3 + $0x1f8] sm:$0xff]
    %v4524 = vpack.c.bf16 %v4397, %v4396
    %v4525 = vpack.c.bf16 %v4399, %v4398
    %v4526 = vpack.c.bf16 %v4401, %v4400
    %v4527 = vpack.c.bf16 %v4403, %v4402
    %v4528 = vpack.c.bf16 %v4405, %v4404
    %v4529 = vpack.c.bf16 %v4407, %v4406
    %v4530 = vpack.c.bf16 %v4409, %v4408
    %v4531 = vpack.c.bf16 %v4411, %v4410
    %v4532 = vpack.c.bf16 %v4413, %v4412
    %v4533 = vpack.c.bf16 %v4415, %v4414
    %v4534 = vpack.c.bf16 %v4417, %v4416
    %v4535 = vpack.c.bf16 %v4419, %v4418
    %v4536 = vpack.c.bf16 %v4421, %v4420
    %v4537 = vpack.c.bf16 %v4423, %v4422
    %v4538 = vpack.c.bf16 %v4425, %v4424
    %v4539 = vpack.c.bf16 %v4427, %v4426
    %v4540 = vpack.c.bf16 %v4429, %v4428
    %v4541 = vpack.c.bf16 %v4431, %v4430
    %v4542 = vpack.c.bf16 %v4433, %v4432
    %v4543 = vpack.c.bf16 %v4435, %v4434
    %v4544 = vpack.c.bf16 %v4437, %v4436
    %v4545 = vpack.c.bf16 %v4439, %v4438
    %v4546 = vpack.c.bf16 %v4441, %v4440
    %v4547 = vpack.c.bf16 %v4443, %v4442
    %v4548 = vpack.c.bf16 %v4445, %v4444
    %v4549 = vpack.c.bf16 %v4447, %v4446
    %v4550 = vpack.c.bf16 %v4449, %v4448
    %v4551 = vpack.c.bf16 %v4451, %v4450
    %v4552 = vpack.c.bf16 %v4453, %v4452
    %v4553 = vpack.c.bf16 %v4455, %v4454
    %v4554 = vpack.c.bf16 %v4457, %v4456
    %v4555 = vpack.c.bf16 %v4459, %v4458
    %s4556 = scalar_lea.vmem [#allocation9], 320
    %v4557 = vld [vmem:[%s4556] sm:$0xf]
    %v4558 = vld [vmem:[%s4556 + $0x4] sm:$0xf]
    %v4559 = vld [vmem:[%s4556 + $0x8] sm:$0xf]
    %v4560 = vld [vmem:[%s4556 + $0xc] sm:$0xf]
    %v4561 = vld [vmem:[%s4556 + $0x10] sm:$0xf]
    %v4562 = vld [vmem:[%s4556 + $0x14] sm:$0xf]
    %v4563 = vld [vmem:[%s4556 + $0x18] sm:$0xf]
    %v4564 = vld [vmem:[%s4556 + $0x1c] sm:$0xf]
    %v4565 = vld [vmem:[%s4556 + $0x20] sm:$0xf]
    %v4566 = vld [vmem:[%s4556 + $0x24] sm:$0xf]
    %v4567 = vld [vmem:[%s4556 + $0x28] sm:$0xf]
    %v4568 = vld [vmem:[%s4556 + $0x2c] sm:$0xf]
    %v4569 = vld [vmem:[%s4556 + $0x30] sm:$0xf]
    %v4570 = vld [vmem:[%s4556 + $0x34] sm:$0xf]
    %v4571 = vld [vmem:[%s4556 + $0x38] sm:$0xf]
    %v4572 = vld [vmem:[%s4556 + $0x3c] sm:$0xf]
    %v4589 = vunpack.c.l.b16 %v4557
    %v4590 = vunpack.c.l.b16 %v4558
    %v4591 = vunpack.c.l.b16 %v4559
    %v4592 = vunpack.c.l.b16 %v4560
    %v4593 = vunpack.c.l.b16 %v4561
    %v4594 = vunpack.c.l.b16 %v4562
    %v4595 = vunpack.c.l.b16 %v4563
    %v4596 = vunpack.c.l.b16 %v4564
    %v4597 = vunpack.c.l.b16 %v4565
    %v4598 = vunpack.c.l.b16 %v4566
    %v4599 = vunpack.c.l.b16 %v4567
    %v4600 = vunpack.c.l.b16 %v4568
    %v4601 = vunpack.c.l.b16 %v4569
    %v4602 = vunpack.c.l.b16 %v4570
    %v4603 = vunpack.c.l.b16 %v4571
    %v4604 = vunpack.c.l.b16 %v4572
    %v4605 = vpack.c.b16 %v4590, %v4589
    %v4606 = vpack.c.b16 %v4592, %v4591
    %v4607 = vpack.c.b16 %v4594, %v4593
    %v4608 = vpack.c.b16 %v4596, %v4595
    %v4609 = vpack.c.b16 %v4598, %v4597
    %v4610 = vpack.c.b16 %v4600, %v4599
    %v4611 = vpack.c.b16 %v4602, %v4601
    %v4612 = vpack.c.b16 %v4604, %v4603
    %4621 = vmatprep.subr.bf16.mxu0 0
    %4622 = vmatpush1.bf16.msra.mxu0 %v4605
    %4623 = vmatprep.subr.bf16.mxu0 0
    %4624 = vmatpush1.bf16.msra.mxu0 %v4606
    %4625 = vmatprep.subr.bf16.mxu0 0
    %4626 = vmatpush1.bf16.msra.mxu0 %v4607
    %4627 = vmatprep.subr.bf16.mxu0 0
    %4628 = vmatpush1.bf16.msra.mxu0 %v4608
    %4629 = vmatprep.subr.bf16.mxu0 0
    %4630 = vmatpush1.bf16.msra.mxu0 %v4609
    %4631 = vmatprep.subr.bf16.mxu0 0
    %4632 = vmatpush1.bf16.msra.mxu0 %v4610
    %4633 = vmatprep.subr.bf16.mxu0 0
    %4634 = vmatpush1.bf16.msra.mxu0 %v4611
    %4635 = vmatprep.subr.bf16.mxu0 0
    %4636 = vmatpush1.bf16.msra.mxu0 %v4612
    %4637 = vmatprep.subr.bf16.mxu0 0
    %4638 = vmatpush1.bf16.msra.mxu0 0
    %4639 = vmatprep.subr.bf16.mxu0 0
    %4640 = vmatpush1.bf16.msra.mxu0 0
    %4641 = vmatprep.subr.bf16.mxu0 0
    %4642 = vmatpush1.bf16.msra.mxu0 0
    %4643 = vmatprep.subr.bf16.mxu0 0
    %4644 = vmatpush1.bf16.msra.mxu0 0
    %4645 = vmatprep.subr.bf16.mxu0 0
    %4646 = vmatpush1.bf16.msra.mxu0 0
    %4647 = vmatprep.subr.bf16.mxu0 0
    %4648 = vmatpush1.bf16.msra.mxu0 0
    %4649 = vmatprep.subr.bf16.mxu0 0
    %4650 = vmatpush1.bf16.msra.mxu0 0
    %4651 = vmatprep.subr.bf16.mxu0 0
    %4652 = vmatpush1.bf16.msra.mxu0 0
    %4653 = vmatprep.mubr.bf16.mxu0 0
    %4654 = vmatmul.mubr.bf16.gmra.mrb[0].mxu0 %v4524
    %v4655 = vpop.f32.mrb[0].mxu0
    %v4656 = vadd.f32 0.0, %v4655
    %v4657 = vpop.f32.mrb[0].mxu0
    %v4658 = vpop.f32.mrb[0].mxu0
    %v4659 = vadd.f32 0.0, %v4658
    %v4660 = vpop.f32.mrb[0].mxu0
    %4661 = vmatprep.mubr.bf16.mxu0 0
    %4662 = vmatmul.mubr.bf16.gmra.mrb[0].mxu0 %v4525
    %v4663 = vpop.f32.mrb[0].mxu0
    %v4664 = vadd.f32 0.0, %v4663
    %v4665 = vpop.f32.mrb[0].mxu0
    %v4666 = vpop.f32.mrb[0].mxu0
    %v4667 = vadd.f32 0.0, %v4666
    %v4668 = vpop.f32.mrb[0].mxu0
    %4669 = vmatprep.mubr.bf16.mxu0 0
    %4670 = vmatmul.mubr.bf16.gmra.mrb[0].mxu0 %v4526
    %v4671 = vpop.f32.mrb[0].mxu0
    %v4672 = vadd.f32 0.0, %v4671
    %v4673 = vpop.f32.mrb[0].mxu0
    %v4674 = vpop.f32.mrb[0].mxu0
    %v4675 = vadd.f32 0.0, %v4674
    %v4676 = vpop.f32.mrb[0].mxu0
    %4677 = vmatprep.mubr.bf16.mxu0 0
    %4678 = vmatmul.mubr.bf16.gmra.mrb[0].mxu0 %v4527
    %v4679 = vpop.f32.mrb[0].mxu0
    %v4680 = vadd.f32 0.0, %v4679
    %v4681 = vpop.f32.mrb[0].mxu0
    %v4682 = vpop.f32.mrb[0].mxu0
    %v4683 = vadd.f32 0.0, %v4682
    %v4684 = vpop.f32.mrb[0].mxu0
    %4685 = vmatprep.mubr.bf16.mxu0 0
    %4686 = vmatmul.mubr.bf16.gmra.mrb[0].mxu0 %v4528
    %v4687 = vpop.f32.mrb[0].mxu0
    %v4688 = vadd.f32 0.0, %v4687
    %v4689 = vpop.f32.mrb[0].mxu0
    %v4690 = vpop.f32.mrb[0].mxu0
    %v4691 = vadd.f32 0.0, %v4690
    %v4692 = vpop.f32.mrb[0].mxu0
    %4693 = vmatprep.mubr.bf16.mxu0 0
    %4694 = vmatmul.mubr.bf16.gmra.mrb[0].mxu0 %v4529
    %v4695 = vpop.f32.mrb[0].mxu0
    %v4696 = vadd.f32 0.0, %v4695
    %v4697 = vpop.f32.mrb[0].mxu0
    %v4698 = vpop.f32.mrb[0].mxu0
    %v4699 = vadd.f32 0.0, %v4698
    %v4700 = vpop.f32.mrb[0].mxu0
    %4701 = vmatprep.mubr.bf16.mxu0 0
    %4702 = vmatmul.mubr.bf16.gmra.mrb[0].mxu0 %v4530
    %v4703 = vpop.f32.mrb[0].mxu0
    %v4704 = vadd.f32 0.0, %v4703
    %v4705 = vpop.f32.mrb[0].mxu0
    %v4706 = vpop.f32.mrb[0].mxu0
    %v4707 = vadd.f32 0.0, %v4706
    %v4708 = vpop.f32.mrb[0].mxu0
    %4709 = vmatprep.mubr.bf16.mxu0 0
    %4710 = vmatmul.mubr.bf16.gmra.mrb[0].mxu0 %v4531
    %v4711 = vpop.f32.mrb[0].mxu0
    %v4712 = vadd.f32 0.0, %v4711
    %v4713 = vpop.f32.mrb[0].mxu0
    %v4714 = vpop.f32.mrb[0].mxu0
    %v4715 = vadd.f32 0.0, %v4714
    %v4716 = vpop.f32.mrb[0].mxu0
    %4717 = vmatprep.mubr.bf16.mxu0 0
    %4718 = vmatmul.mubr.bf16.gmra.mrb[0].mxu0 %v4532
    %v4719 = vpop.f32.mrb[0].mxu0
    %v4720 = vadd.f32 0.0, %v4719
    %v4721 = vpop.f32.mrb[0].mxu0
    %v4722 = vpop.f32.mrb[0].mxu0
    %v4723 = vadd.f32 0.0, %v4722
    %v4724 = vpop.f32.mrb[0].mxu0
    %4725 = vmatprep.mubr.bf16.mxu0 0
    %4726 = vmatmul.mubr.bf16.gmra.mrb[0].mxu0 %v4533
    %v4727 = vpop.f32.mrb[0].mxu0
    %v4728 = vadd.f32 0.0, %v4727
    %v4729 = vpop.f32.mrb[0].mxu0
    %v4730 = vpop.f32.mrb[0].mxu0
    %v4731 = vadd.f32 0.0, %v4730
    %v4732 = vpop.f32.mrb[0].mxu0
    %4733 = vmatprep.mubr.bf16.mxu0 0
    %4734 = vmatmul.mubr.bf16.gmra.mrb[0].mxu0 %v4534
    %v4735 = vpop.f32.mrb[0].mxu0
    %v4736 = vadd.f32 0.0, %v4735
    %v4737 = vpop.f32.mrb[0].mxu0
    %v4738 = vpop.f32.mrb[0].mxu0
    %v4739 = vadd.f32 0.0, %v4738
    %v4740 = vpop.f32.mrb[0].mxu0
    %4741 = vmatprep.mubr.bf16.mxu0 0
    %4742 = vmatmul.mubr.bf16.gmra.mrb[0].mxu0 %v4535
    %v4743 = vpop.f32.mrb[0].mxu0
    %v4744 = vadd.f32 0.0, %v4743
    %v4745 = vpop.f32.mrb[0].mxu0
    %v4746 = vpop.f32.mrb[0].mxu0
    %v4747 = vadd.f32 0.0, %v4746
    %v4748 = vpop.f32.mrb[0].mxu0
    %4749 = vmatprep.mubr.bf16.mxu0 0
    %4750 = vmatmul.mubr.bf16.gmra.mrb[0].mxu0 %v4536
    %v4751 = vpop.f32.mrb[0].mxu0
    %v4752 = vadd.f32 0.0, %v4751
    %v4753 = vpop.f32.mrb[0].mxu0
    %v4754 = vpop.f32.mrb[0].mxu0
    %v4755 = vadd.f32 0.0, %v4754
    %v4756 = vpop.f32.mrb[0].mxu0
    %4757 = vmatprep.mubr.bf16.mxu0 0
    %4758 = vmatmul.mubr.bf16.gmra.mrb[0].mxu0 %v4537
    %v4759 = vpop.f32.mrb[0].mxu0
    %v4760 = vadd.f32 0.0, %v4759
    %v4761 = vpop.f32.mrb[0].mxu0
    %v4762 = vpop.f32.mrb[0].mxu0
    %v4763 = vadd.f32 0.0, %v4762
    %v4764 = vpop.f32.mrb[0].mxu0
    %4765 = vmatprep.mubr.bf16.mxu0 0
    %4766 = vmatmul.mubr.bf16.gmra.mrb[0].mxu0 %v4538
    %v4767 = vpop.f32.mrb[0].mxu0
    %v4768 = vadd.f32 0.0, %v4767
    %v4769 = vpop.f32.mrb[0].mxu0
    %v4770 = vpop.f32.mrb[0].mxu0
    %v4771 = vadd.f32 0.0, %v4770
    %v4772 = vpop.f32.mrb[0].mxu0
    %4773 = vmatprep.mubr.bf16.mxu0 0
    %4774 = vmatmul.mubr.bf16.gmra.mrb[0].mxu0 %v4539
    %v4775 = vpop.f32.mrb[0].mxu0
    %v4776 = vadd.f32 0.0, %v4775
    %v4777 = vpop.f32.mrb[0].mxu0
    %v4778 = vpop.f32.mrb[0].mxu0
    %v4779 = vadd.f32 0.0, %v4778
    %v4780 = vpop.f32.mrb[0].mxu0
    %4781 = vmatprep.mubr.bf16.mxu0 0
    %4782 = vmatmul.mubr.bf16.gmra.mrb[0].mxu0 %v4540
    %v4783 = vpop.f32.mrb[0].mxu0
    %v4784 = vadd.f32 0.0, %v4783
    %v4785 = vpop.f32.mrb[0].mxu0
    %v4786 = vpop.f32.mrb[0].mxu0
    %v4787 = vadd.f32 0.0, %v4786
    %v4788 = vpop.f32.mrb[0].mxu0
    %4789 = vmatprep.mubr.bf16.mxu0 0
    %4790 = vmatmul.mubr.bf16.gmra.mrb[0].mxu0 %v4541
    %v4791 = vpop.f32.mrb[0].mxu0
    %v4792 = vadd.f32 0.0, %v4791
    %v4793 = vpop.f32.mrb[0].mxu0
    %v4794 = vpop.f32.mrb[0].mxu0
    %v4795 = vadd.f32 0.0, %v4794
    %v4796 = vpop.f32.mrb[0].mxu0
    %4797 = vmatprep.mubr.bf16.mxu0 0
    %4798 = vmatmul.mubr.bf16.gmra.mrb[0].mxu0 %v4542
    %v4799 = vpop.f32.mrb[0].mxu0
    %v4800 = vadd.f32 0.0, %v4799
    %v4801 = vpop.f32.mrb[0].mxu0
    %v4802 = vpop.f32.mrb[0].mxu0
    %v4803 = vadd.f32 0.0, %v4802
    %v4804 = vpop.f32.mrb[0].mxu0
    %4805 = vmatprep.mubr.bf16.mxu0 0
    %4806 = vmatmul.mubr.bf16.gmra.mrb[0].mxu0 %v4543
    %v4807 = vpop.f32.mrb[0].mxu0
    %v4808 = vadd.f32 0.0, %v4807
    %v4809 = vpop.f32.mrb[0].mxu0
    %v4810 = vpop.f32.mrb[0].mxu0
    %v4811 = vadd.f32 0.0, %v4810
    %v4812 = vpop.f32.mrb[0].mxu0
    %4813 = vmatprep.mubr.bf16.mxu0 0
    %4814 = vmatmul.mubr.bf16.gmra.mrb[0].mxu0 %v4544
    %v4815 = vpop.f32.mrb[0].mxu0
    %v4816 = vadd.f32 0.0, %v4815
    %v4817 = vpop.f32.mrb[0].mxu0
    %v4818 = vpop.f32.mrb[0].mxu0
    %v4819 = vadd.f32 0.0, %v4818
    %v4820 = vpop.f32.mrb[0].mxu0
    %4821 = vmatprep.mubr.bf16.mxu0 0
    %4822 = vmatmul.mubr.bf16.gmra.mrb[0].mxu0 %v4545
    %v4823 = vpop.f32.mrb[0].mxu0
    %v4824 = vadd.f32 0.0, %v4823
    %v4825 = vpop.f32.mrb[0].mxu0
    %v4826 = vpop.f32.mrb[0].mxu0
    %v4827 = vadd.f32 0.0, %v4826
    %v4828 = vpop.f32.mrb[0].mxu0
    %4829 = vmatprep.mubr.bf16.mxu0 0
    %4830 = vmatmul.mubr.bf16.gmra.mrb[0].mxu0 %v4546
    %v4831 = vpop.f32.mrb[0].mxu0
    %v4832 = vadd.f32 0.0, %v4831
    %v4833 = vpop.f32.mrb[0].mxu0
    %v4834 = vpop.f32.mrb[0].mxu0
    %v4835 = vadd.f32 0.0, %v4834
    %v4836 = vpop.f32.mrb[0].mxu0
    %4837 = vmatprep.mubr.bf16.mxu0 0
    %4838 = vmatmul.mubr.bf16.gmra.mrb[0].mxu0 %v4547
    %v4839 = vpop.f32.mrb[0].mxu0
    %v4840 = vadd.f32 0.0, %v4839
    %v4841 = vpop.f32.mrb[0].mxu0
    %v4842 = vpop.f32.mrb[0].mxu0
    %v4843 = vadd.f32 0.0, %v4842
    %v4844 = vpop.f32.mrb[0].mxu0
    %4845 = vmatprep.mubr.bf16.mxu0 0
    %4846 = vmatmul.mubr.bf16.gmra.mrb[0].mxu0 %v4548
    %v4847 = vpop.f32.mrb[0].mxu0
    %v4848 = vadd.f32 0.0, %v4847
    %v4849 = vpop.f32.mrb[0].mxu0
    %v4850 = vpop.f32.mrb[0].mxu0
    %v4851 = vadd.f32 0.0, %v4850
    %v4852 = vpop.f32.mrb[0].mxu0
    %4853 = vmatprep.mubr.bf16.mxu0 0
    %4854 = vmatmul.mubr.bf16.gmra.mrb[0].mxu0 %v4549
    %v4855 = vpop.f32.mrb[0].mxu0
    %v4856 = vadd.f32 0.0, %v4855
    %v4857 = vpop.f32.mrb[0].mxu0
    %v4858 = vpop.f32.mrb[0].mxu0
    %v4859 = vadd.f32 0.0, %v4858
    %v4860 = vpop.f32.mrb[0].mxu0
    %4861 = vmatprep.mubr.bf16.mxu0 0
    %4862 = vmatmul.mubr.bf16.gmra.mrb[0].mxu0 %v4550
    %v4863 = vpop.f32.mrb[0].mxu0
    %v4864 = vadd.f32 0.0, %v4863
    %v4865 = vpop.f32.mrb[0].mxu0
    %v4866 = vpop.f32.mrb[0].mxu0
    %v4867 = vadd.f32 0.0, %v4866
    %v4868 = vpop.f32.mrb[0].mxu0
    %4869 = vmatprep.mubr.bf16.mxu0 0
    %4870 = vmatmul.mubr.bf16.gmra.mrb[0].mxu0 %v4551
    %v4871 = vpop.f32.mrb[0].mxu0
    %v4872 = vadd.f32 0.0, %v4871
    %v4873 = vpop.f32.mrb[0].mxu0
    %v4874 = vpop.f32.mrb[0].mxu0
    %v4875 = vadd.f32 0.0, %v4874
    %v4876 = vpop.f32.mrb[0].mxu0
    %4877 = vmatprep.mubr.bf16.mxu0 0
    %4878 = vmatmul.mubr.bf16.gmra.mrb[0].mxu0 %v4552
    %v4879 = vpop.f32.mrb[0].mxu0
    %v4880 = vadd.f32 0.0, %v4879
    %v4881 = vpop.f32.mrb[0].mxu0
    %v4882 = vpop.f32.mrb[0].mxu0
    %v4883 = vadd.f32 0.0, %v4882
    %v4884 = vpop.f32.mrb[0].mxu0
    %4885 = vmatprep.mubr.bf16.mxu0 0
    %4886 = vmatmul.mubr.bf16.gmra.mrb[0].mxu0 %v4553
    %v4887 = vpop.f32.mrb[0].mxu0
    %v4888 = vadd.f32 0.0, %v4887
    %v4889 = vpop.f32.mrb[0].mxu0
    %v4890 = vpop.f32.mrb[0].mxu0
    %v4891 = vadd.f32 0.0, %v4890
    %v4892 = vpop.f32.mrb[0].mxu0
    %4893 = vmatprep.mubr.bf16.mxu0 0
    %4894 = vmatmul.mubr.bf16.gmra.mrb[0].mxu0 %v4554
    %v4895 = vpop.f32.mrb[0].mxu0
    %v4896 = vadd.f32 0.0, %v4895
    %v4897 = vpop.f32.mrb[0].mxu0
    %v4898 = vpop.f32.mrb[0].mxu0
    %v4899 = vadd.f32 0.0, %v4898
    %v4900 = vpop.f32.mrb[0].mxu0
    %4901 = vmatprep.mubr.bf16.mxu0 0
    %4902 = vmatmul.mubr.bf16.gmra.mrb[0].mxu0 %v4555
    %v4903 = vpop.f32.mrb[0].mxu0
    %v4904 = vadd.f32 0.0, %v4903
    %v4905 = vpop.f32.mrb[0].mxu0
    %v4906 = vpop.f32.mrb[0].mxu0
    %v4907 = vadd.f32 0.0, %v4906
    %v4908 = vpop.f32.mrb[0].mxu0
    %4909 = vdwg.mxu0
    %v4910 = vadd.f32 %v4460, %v4656
    %v4911 = vadd.f32 %v4461, %v4659
    %v4912 = vadd.f32 %v4462, %v4664
    %v4913 = vadd.f32 %v4463, %v4667
    %v4914 = vadd.f32 %v4464, %v4672
    %v4915 = vadd.f32 %v4465, %v4675
    %v4916 = vadd.f32 %v4466, %v4680
    %v4917 = vadd.f32 %v4467, %v4683
    %v4918 = vadd.f32 %v4468, %v4688
    %v4919 = vadd.f32 %v4469, %v4691
    %v4920 = vadd.f32 %v4470, %v4696
    %v4921 = vadd.f32 %v4471, %v4699
    %v4922 = vadd.f32 %v4472, %v4704
    %v4923 = vadd.f32 %v4473, %v4707
    %v4924 = vadd.f32 %v4474, %v4712
    %v4925 = vadd.f32 %v4475, %v4715
    %v4926 = vadd.f32 %v4476, %v4720
    %v4927 = vadd.f32 %v4477, %v4723
    %v4928 = vadd.f32 %v4478, %v4728
    %v4929 = vadd.f32 %v4479, %v4731
    %v4930 = vadd.f32 %v4480, %v4736
    %v4931 = vadd.f32 %v4481, %v4739
    %v4932 = vadd.f32 %v4482, %v4744
    %v4933 = vadd.f32 %v4483, %v4747
    %v4934 = vadd.f32 %v4484, %v4752
    %v4935 = vadd.f32 %v4485, %v4755
    %v4936 = vadd.f32 %v4486, %v4760
    %v4937 = vadd.f32 %v4487, %v4763
    %v4938 = vadd.f32 %v4488, %v4768
    %v4939 = vadd.f32 %v4489, %v4771
    %v4940 = vadd.f32 %v4490, %v4776
    %v4941 = vadd.f32 %v4491, %v4779
    %v4942 = vadd.f32 %v4492, %v4784
    %v4943 = vadd.f32 %v4493, %v4787
    %v4944 = vadd.f32 %v4494, %v4792
    %v4945 = vadd.f32 %v4495, %v4795
    %v4946 = vadd.f32 %v4496, %v4800
    %v4947 = vadd.f32 %v4497, %v4803
    %v4948 = vadd.f32 %v4498, %v4808
    %v4949 = vadd.f32 %v4499, %v4811
    %v4950 = vadd.f32 %v4500, %v4816
    %v4951 = vadd.f32 %v4501, %v4819
    %v4952 = vadd.f32 %v4502, %v4824
    %v4953 = vadd.f32 %v4503, %v4827
    %v4954 = vadd.f32 %v4504, %v4832
    %v4955 = vadd.f32 %v4505, %v4835
    %v4956 = vadd.f32 %v4506, %v4840
    %v4957 = vadd.f32 %v4507, %v4843
    %v4958 = vadd.f32 %v4508, %v4848
    %v4959 = vadd.f32 %v4509, %v4851
    %v4960 = vadd.f32 %v4510, %v4856
    %v4961 = vadd.f32 %v4511, %v4859
    %v4962 = vadd.f32 %v4512, %v4864
    %v4963 = vadd.f32 %v4513, %v4867
    %v4964 = vadd.f32 %v4514, %v4872
    %v4965 = vadd.f32 %v4515, %v4875
    %v4966 = vadd.f32 %v4516, %v4880
    %v4967 = vadd.f32 %v4517, %v4883
    %v4968 = vadd.f32 %v4518, %v4888
    %v4969 = vadd.f32 %v4519, %v4891
    %v4970 = vadd.f32 %v4520, %v4896
    %v4971 = vadd.f32 %v4521, %v4899
    %v4972 = vadd.f32 %v4522, %v4904
    %v4973 = vadd.f32 %v4523, %v4907
    %4974 = vst [vmem:[#allocation3] sm:$0xff] %v4910
    %4975 = vst [vmem:[#allocation3 + $0x8] sm:$0xff] %v4911
    %4976 = vst [vmem:[#allocation3 + $0x10] sm:$0xff] %v4912
    %4977 = vst [vmem:[#allocation3 + $0x18] sm:$0xff] %v4913
    %4978 = vst [vmem:[#allocation3 + $0x20] sm:$0xff] %v4914
    %4979 = vst [vmem:[#allocation3 + $0x28] sm:$0xff] %v4915
    %4980 = vst [vmem:[#allocation3 + $0x30] sm:$0xff] %v4916
    %4981 = vst [vmem:[#allocation3 + $0x38] sm:$0xff] %v4917
    %4982 = vst [vmem:[#allocation3 + $0x40] sm:$0xff] %v4918
    %4983 = vst [vmem:[#allocation3 + $0x48] sm:$0xff] %v4919
    %4984 = vst [vmem:[#allocation3 + $0x50] sm:$0xff] %v4920
    %4985 = vst [vmem:[#allocation3 + $0x58] sm:$0xff] %v4921
    %4986 = vst [vmem:[#allocation3 + $0x60] sm:$0xff] %v4922
    %4987 = vst [vmem:[#allocation3 + $0x68] sm:$0xff] %v4923
    %4988 = vst [vmem:[#allocation3 + $0x70] sm:$0xff] %v4924
    %4989 = vst [vmem:[#allocation3 + $0x78] sm:$0xff] %v4925
    %4990 = vst [vmem:[#allocation3 + $0x80] sm:$0xff] %v4926
    %4991 = vst [vmem:[#allocation3 + $0x88] sm:$0xff] %v4927
    %4992 = vst [vmem:[#allocation3 + $0x90] sm:$0xff] %v4928
    %4993 = vst [vmem:[#allocation3 + $0x98] sm:$0xff] %v4929
    %4994 = vst [vmem:[#allocation3 + $0xa0] sm:$0xff] %v4930
    %4995 = vst [vmem:[#allocation3 + $0xa8] sm:$0xff] %v4931
    %4996 = vst [vmem:[#allocation3 + $0xb0] sm:$0xff] %v4932
    %4997 = vst [vmem:[#allocation3 + $0xb8] sm:$0xff] %v4933
    %4998 = vst [vmem:[#allocation3 + $0xc0] sm:$0xff] %v4934
    %4999 = vst [vmem:[#allocation3 + $0xc8] sm:$0xff] %v4935
    %5000 = vst [vmem:[#allocation3 + $0xd0] sm:$0xff] %v4936
    %5001 = vst [vmem:[#allocation3 + $0xd8] sm:$0xff] %v4937
    %5002 = vst [vmem:[#allocation3 + $0xe0] sm:$0xff] %v4938
    %5003 = vst [vmem:[#allocation3 + $0xe8] sm:$0xff] %v4939
    %5004 = vst [vmem:[#allocation3 + $0xf0] sm:$0xff] %v4940
    %5005 = vst [vmem:[#allocation3 + $0xf8] sm:$0xff] %v4941
    %5006 = vst [vmem:[#allocation3 + $0x100] sm:$0xff] %v4942
    %5007 = vst [vmem:[#allocation3 + $0x108] sm:$0xff] %v4943
    %5008 = vst [vmem:[#allocation3 + $0x110] sm:$0xff] %v4944
    %5009 = vst [vmem:[#allocation3 + $0x118] sm:$0xff] %v4945
    %5010 = vst [vmem:[#allocation3 + $0x120] sm:$0xff] %v4946
    %5011 = vst [vmem:[#allocation3 + $0x128] sm:$0xff] %v4947
    %5012 = vst [vmem:[#allocation3 + $0x130] sm:$0xff] %v4948
    %5013 = vst [vmem:[#allocation3 + $0x138] sm:$0xff] %v4949
    %5014 = vst [vmem:[#allocation3 + $0x140] sm:$0xff] %v4950
    %5015 = vst [vmem:[#allocation3 + $0x148] sm:$0xff] %v4951
    %5016 = vst [vmem:[#allocation3 + $0x150] sm:$0xff] %v4952
    %5017 = vst [vmem:[#allocation3 + $0x158] sm:$0xff] %v4953
    %5018 = vst [vmem:[#allocation3 + $0x160] sm:$0xff] %v4954
    %5019 = vst [vmem:[#allocation3 + $0x168] sm:$0xff] %v4955
    %5020 = vst [vmem:[#allocation3 + $0x170] sm:$0xff] %v4956
    %5021 = vst [vmem:[#allocation3 + $0x178] sm:$0xff] %v4957
    %5022 = vst [vmem:[#allocation3 + $0x180] sm:$0xff] %v4958
    %5023 = vst [vmem:[#allocation3 + $0x188] sm:$0xff] %v4959
    %5024 = vst [vmem:[#allocation3 + $0x190] sm:$0xff] %v4960
    %5025 = vst [vmem:[#allocation3 + $0x198] sm:$0xff] %v4961
    %5026 = vst [vmem:[#allocation3 + $0x1a0] sm:$0xff] %v4962
    %5027 = vst [vmem:[#allocation3 + $0x1a8] sm:$0xff] %v4963
    %5028 = vst [vmem:[#allocation3 + $0x1b0] sm:$0xff] %v4964
    %5029 = vst [vmem:[#allocation3 + $0x1b8] sm:$0xff] %v4965
    %5030 = vst [vmem:[#allocation3 + $0x1c0] sm:$0xff] %v4966
    %5031 = vst [vmem:[#allocation3 + $0x1c8] sm:$0xff] %v4967
    %5032 = vst [vmem:[#allocation3 + $0x1d0] sm:$0xff] %v4968
    %5033 = vst [vmem:[#allocation3 + $0x1d8] sm:$0xff] %v4969
    %5034 = vst [vmem:[#allocation3 + $0x1e0] sm:$0xff] %v4970
    %5035 = vst [vmem:[#allocation3 + $0x1e8] sm:$0xff] %v4971
    %5036 = vst [vmem:[#allocation3 + $0x1f0] sm:$0xff] %v4972
    %5037 = vst [vmem:[#allocation3 + $0x1f8] sm:$0xff] %v4973
    %s5038 = scalar_lea.vmem [#allocation2], 48
    %v5039 = vld [vmem:[%s5038] sm:$0xff]
    %v5040 = vld [vmem:[%s5038 + $0x8] sm:$0xff]
    %v5041 = vld [vmem:[%s5038 + $0x18] sm:$0xff]
    %v5042 = vld [vmem:[%s5038 + $0x20] sm:$0xff]
    %v5043 = vld [vmem:[%s5038 + $0x30] sm:$0xff]
    %v5044 = vld [vmem:[%s5038 + $0x38] sm:$0xff]
    %v5045 = vld [vmem:[%s5038 + $0x48] sm:$0xff]
    %v5046 = vld [vmem:[%s5038 + $0x50] sm:$0xff]
    %v5047 = vld [vmem:[%s5038 + $0x60] sm:$0xff]
    %v5048 = vld [vmem:[%s5038 + $0x68] sm:$0xff]
    %v5049 = vld [vmem:[%s5038 + $0x78] sm:$0xff]
    %v5050 = vld [vmem:[%s5038 + $0x80] sm:$0xff]
    %v5051 = vld [vmem:[%s5038 + $0x90] sm:$0xff]
    %v5052 = vld [vmem:[%s5038 + $0x98] sm:$0xff]
    %v5053 = vld [vmem:[%s5038 + $0xa8] sm:$0xff]
    %v5054 = vld [vmem:[%s5038 + $0xb0] sm:$0xff]
    %v5055 = vld [vmem:[%s5038 + $0xc0] sm:$0xff]
    %v5056 = vld [vmem:[%s5038 + $0xc8] sm:$0xff]
    %v5057 = vld [vmem:[%s5038 + $0xd8] sm:$0xff]
    %v5058 = vld [vmem:[%s5038 + $0xe0] sm:$0xff]
    %v5059 = vld [vmem:[%s5038 + $0xf0] sm:$0xff]
    %v5060 = vld [vmem:[%s5038 + $0xf8] sm:$0xff]
    %v5061 = vld [vmem:[%s5038 + $0x108] sm:$0xff]
    %v5062 = vld [vmem:[%s5038 + $0x110] sm:$0xff]
    %v5063 = vld [vmem:[%s5038 + $0x120] sm:$0xff]
    %v5064 = vld [vmem:[%s5038 + $0x128] sm:$0xff]
    %v5065 = vld [vmem:[%s5038 + $0x138] sm:$0xff]
    %v5066 = vld [vmem:[%s5038 + $0x140] sm:$0xff]
    %v5067 = vld [vmem:[%s5038 + $0x150] sm:$0xff]
    %v5068 = vld [vmem:[%s5038 + $0x158] sm:$0xff]
    %v5069 = vld [vmem:[%s5038 + $0x168] sm:$0xff]
    %v5070 = vld [vmem:[%s5038 + $0x170] sm:$0xff]
    %v5071 = vld [vmem:[%s5038 + $0x1b0] sm:$0xff]
    %v5072 = vld [vmem:[%s5038 + $0x1b8] sm:$0xff]
    %v5073 = vld [vmem:[%s5038 + $0x1c8] sm:$0xff]
    %v5074 = vld [vmem:[%s5038 + $0x1d0] sm:$0xff]
    %v5075 = vld [vmem:[%s5038 + $0x1e0] sm:$0xff]
    %v5076 = vld [vmem:[%s5038 + $0x1e8] sm:$0xff]
    %v5077 = vld [vmem:[%s5038 + $0x1f8] sm:$0xff]
    %v5078 = vld [vmem:[%s5038 + $0x200] sm:$0xff]
    %v5079 = vld [vmem:[%s5038 + $0x210] sm:$0xff]
    %v5080 = vld [vmem:[%s5038 + $0x218] sm:$0xff]
    %v5081 = vld [vmem:[%s5038 + $0x228] sm:$0xff]
    %v5082 = vld [vmem:[%s5038 + $0x230] sm:$0xff]
    %v5083 = vld [vmem:[%s5038 + $0x240] sm:$0xff]
    %v5084 = vld [vmem:[%s5038 + $0x248] sm:$0xff]
    %v5085 = vld [vmem:[%s5038 + $0x258] sm:$0xff]
    %v5086 = vld [vmem:[%s5038 + $0x260] sm:$0xff]
    %v5087 = vld [vmem:[%s5038 + $0x270] sm:$0xff]
    %v5088 = vld [vmem:[%s5038 + $0x278] sm:$0xff]
    %v5089 = vld [vmem:[%s5038 + $0x288] sm:$0xff]
    %v5090 = vld [vmem:[%s5038 + $0x290] sm:$0xff]
    %v5091 = vld [vmem:[%s5038 + $0x2a0] sm:$0xff]
    %v5092 = vld [vmem:[%s5038 + $0x2a8] sm:$0xff]
    %v5093 = vld [vmem:[%s5038 + $0x2b8] sm:$0xff]
    %v5094 = vld [vmem:[%s5038 + $0x2c0] sm:$0xff]
    %v5095 = vld [vmem:[%s5038 + $0x2d0] sm:$0xff]
    %v5096 = vld [vmem:[%s5038 + $0x2d8] sm:$0xff]
    %v5097 = vld [vmem:[%s5038 + $0x2e8] sm:$0xff]
    %v5098 = vld [vmem:[%s5038 + $0x2f0] sm:$0xff]
    %v5099 = vld [vmem:[%s5038 + $0x300] sm:$0xff]
    %v5100 = vld [vmem:[%s5038 + $0x308] sm:$0xff]
    %v5101 = vld [vmem:[%s5038 + $0x318] sm:$0xff]
    %v5102 = vld [vmem:[%s5038 + $0x320] sm:$0xff]
    %v5103 = vld [vmem:[#allocation3] sm:$0xff]
    %v5104 = vld [vmem:[#allocation3 + $0x8] sm:$0xff]
    %v5105 = vld [vmem:[#allocation3 + $0x10] sm:$0xff]
    %v5106 = vld [vmem:[#allocation3 + $0x18] sm:$0xff]
    %v5107 = vld [vmem:[#allocation3 + $0x20] sm:$0xff]
    %v5108 = vld [vmem:[#allocation3 + $0x28] sm:$0xff]
    %v5109 = vld [vmem:[#allocation3 + $0x30] sm:$0xff]
    %v5110 = vld [vmem:[#allocation3 + $0x38] sm:$0xff]
    %v5111 = vld [vmem:[#allocation3 + $0x40] sm:$0xff]
    %v5112 = vld [vmem:[#allocation3 + $0x48] sm:$0xff]
    %v5113 = vld [vmem:[#allocation3 + $0x50] sm:$0xff]
    %v5114 = vld [vmem:[#allocation3 + $0x58] sm:$0xff]
    %v5115 = vld [vmem:[#allocation3 + $0x60] sm:$0xff]
    %v5116 = vld [vmem:[#allocation3 + $0x68] sm:$0xff]
    %v5117 = vld [vmem:[#allocation3 + $0x70] sm:$0xff]
    %v5118 = vld [vmem:[#allocation3 + $0x78] sm:$0xff]
    %v5119 = vld [vmem:[#allocation3 + $0x80] sm:$0xff]
    %v5120 = vld [vmem:[#allocation3 + $0x88] sm:$0xff]
    %v5121 = vld [vmem:[#allocation3 + $0x90] sm:$0xff]
    %v5122 = vld [vmem:[#allocation3 + $0x98] sm:$0xff]
    %v5123 = vld [vmem:[#allocation3 + $0xa0] sm:$0xff]
    %v5124 = vld [vmem:[#allocation3 + $0xa8] sm:$0xff]
    %v5125 = vld [vmem:[#allocation3 + $0xb0] sm:$0xff]
    %v5126 = vld [vmem:[#allocation3 + $0xb8] sm:$0xff]
    %v5127 = vld [vmem:[#allocation3 + $0xc0] sm:$0xff]
    %v5128 = vld [vmem:[#allocation3 + $0xc8] sm:$0xff]
    %v5129 = vld [vmem:[#allocation3 + $0xd0] sm:$0xff]
    %v5130 = vld [vmem:[#allocation3 + $0xd8] sm:$0xff]
    %v5131 = vld [vmem:[#allocation3 + $0xe0] sm:$0xff]
    %v5132 = vld [vmem:[#allocation3 + $0xe8] sm:$0xff]
    %v5133 = vld [vmem:[#allocation3 + $0xf0] sm:$0xff]
    %v5134 = vld [vmem:[#allocation3 + $0xf8] sm:$0xff]
    %v5135 = vld [vmem:[#allocation3 + $0x100] sm:$0xff]
    %v5136 = vld [vmem:[#allocation3 + $0x108] sm:$0xff]
    %v5137 = vld [vmem:[#allocation3 + $0x110] sm:$0xff]
    %v5138 = vld [vmem:[#allocation3 + $0x118] sm:$0xff]
    %v5139 = vld [vmem:[#allocation3 + $0x120] sm:$0xff]
    %v5140 = vld [vmem:[#allocation3 + $0x128] sm:$0xff]
    %v5141 = vld [vmem:[#allocation3 + $0x130] sm:$0xff]
    %v5142 = vld [vmem:[#allocation3 + $0x138] sm:$0xff]
    %v5143 = vld [vmem:[#allocation3 + $0x140] sm:$0xff]
    %v5144 = vld [vmem:[#allocation3 + $0x148] sm:$0xff]
    %v5145 = vld [vmem:[#allocation3 + $0x150] sm:$0xff]
    %v5146 = vld [vmem:[#allocation3 + $0x158] sm:$0xff]
    %v5147 = vld [vmem:[#allocation3 + $0x160] sm:$0xff]
    %v5148 = vld [vmem:[#allocation3 + $0x168] sm:$0xff]
    %v5149 = vld [vmem:[#allocation3 + $0x170] sm:$0xff]
    %v5150 = vld [vmem:[#allocation3 + $0x178] sm:$0xff]
    %v5151 = vld [vmem:[#allocation3 + $0x180] sm:$0xff]
    %v5152 = vld [vmem:[#allocation3 + $0x188] sm:$0xff]
    %v5153 = vld [vmem:[#allocation3 + $0x190] sm:$0xff]
    %v5154 = vld [vmem:[#allocation3 + $0x198] sm:$0xff]
    %v5155 = vld [vmem:[#allocation3 + $0x1a0] sm:$0xff]
    %v5156 = vld [vmem:[#allocation3 + $0x1a8] sm:$0xff]
    %v5157 = vld [vmem:[#allocation3 + $0x1b0] sm:$0xff]
    %v5158 = vld [vmem:[#allocation3 + $0x1b8] sm:$0xff]
    %v5159 = vld [vmem:[#allocation3 + $0x1c0] sm:$0xff]
    %v5160 = vld [vmem:[#allocation3 + $0x1c8] sm:$0xff]
    %v5161 = vld [vmem:[#allocation3 + $0x1d0] sm:$0xff]
    %v5162 = vld [vmem:[#allocation3 + $0x1d8] sm:$0xff]
    %v5163 = vld [vmem:[#allocation3 + $0x1e0] sm:$0xff]
    %v5164 = vld [vmem:[#allocation3 + $0x1e8] sm:$0xff]
    %v5165 = vld [vmem:[#allocation3 + $0x1f0] sm:$0xff]
    %v5166 = vld [vmem:[#allocation3 + $0x1f8] sm:$0xff]
    %v5167 = vpack.c.bf16 %v5040, %v5039
    %v5168 = vpack.c.bf16 %v5042, %v5041
    %v5169 = vpack.c.bf16 %v5044, %v5043
    %v5170 = vpack.c.bf16 %v5046, %v5045
    %v5171 = vpack.c.bf16 %v5048, %v5047
    %v5172 = vpack.c.bf16 %v5050, %v5049
    %v5173 = vpack.c.bf16 %v5052, %v5051
    %v5174 = vpack.c.bf16 %v5054, %v5053
    %v5175 = vpack.c.bf16 %v5056, %v5055
    %v5176 = vpack.c.bf16 %v5058, %v5057
    %v5177 = vpack.c.bf16 %v5060, %v5059
    %v5178 = vpack.c.bf16 %v5062, %v5061
    %v5179 = vpack.c.bf16 %v5064, %v5063
    %v5180 = vpack.c.bf16 %v5066, %v5065
    %v5181 = vpack.c.bf16 %v5068, %v5067
    %v5182 = vpack.c.bf16 %v5070, %v5069
    %v5183 = vpack.c.bf16 %v5072, %v5071
    %v5184 = vpack.c.bf16 %v5074, %v5073
    %v5185 = vpack.c.bf16 %v5076, %v5075
    %v5186 = vpack.c.bf16 %v5078, %v5077
    %v5187 = vpack.c.bf16 %v5080, %v5079
    %v5188 = vpack.c.bf16 %v5082, %v5081
    %v5189 = vpack.c.bf16 %v5084, %v5083
    %v5190 = vpack.c.bf16 %v5086, %v5085
    %v5191 = vpack.c.bf16 %v5088, %v5087
    %v5192 = vpack.c.bf16 %v5090, %v5089
    %v5193 = vpack.c.bf16 %v5092, %v5091
    %v5194 = vpack.c.bf16 %v5094, %v5093
    %v5195 = vpack.c.bf16 %v5096, %v5095
    %v5196 = vpack.c.bf16 %v5098, %v5097
    %v5197 = vpack.c.bf16 %v5100, %v5099
    %v5198 = vpack.c.bf16 %v5102, %v5101
    %s5199 = scalar_lea.vmem [#allocation9], 384
    %v5200 = vld [vmem:[%s5199] sm:$0xf]
    %v5201 = vld [vmem:[%s5199 + $0x4] sm:$0xf]
    %v5202 = vld [vmem:[%s5199 + $0x8] sm:$0xf]
    %v5203 = vld [vmem:[%s5199 + $0xc] sm:$0xf]
    %v5204 = vld [vmem:[%s5199 + $0x10] sm:$0xf]
    %v5205 = vld [vmem:[%s5199 + $0x14] sm:$0xf]
    %v5206 = vld [vmem:[%s5199 + $0x18] sm:$0xf]
    %v5207 = vld [vmem:[%s5199 + $0x1c] sm:$0xf]
    %v5208 = vld [vmem:[%s5199 + $0x20] sm:$0xf]
    %v5209 = vld [vmem:[%s5199 + $0x24] sm:$0xf]
    %v5210 = vld [vmem:[%s5199 + $0x28] sm:$0xf]
    %v5211 = vld [vmem:[%s5199 + $0x2c] sm:$0xf]
    %v5212 = vld [vmem:[%s5199 + $0x30] sm:$0xf]
    %v5213 = vld [vmem:[%s5199 + $0x34] sm:$0xf]
    %v5214 = vld [vmem:[%s5199 + $0x38] sm:$0xf]
    %v5215 = vld [vmem:[%s5199 + $0x3c] sm:$0xf]
    %v5232 = vunpack.c.l.b16 %v5200
    %v5233 = vunpack.c.l.b16 %v5201
    %v5234 = vunpack.c.l.b16 %v5202
    %v5235 = vunpack.c.l.b16 %v5203
    %v5236 = vunpack.c.l.b16 %v5204
    %v5237 = vunpack.c.l.b16 %v5205
    %v5238 = vunpack.c.l.b16 %v5206
    %v5239 = vunpack.c.l.b16 %v5207
    %v5240 = vunpack.c.l.b16 %v5208
    %v5241 = vunpack.c.l.b16 %v5209
    %v5242 = vunpack.c.l.b16 %v5210
    %v5243 = vunpack.c.l.b16 %v5211
    %v5244 = vunpack.c.l.b16 %v5212
    %v5245 = vunpack.c.l.b16 %v5213
    %v5246 = vunpack.c.l.b16 %v5214
    %v5247 = vunpack.c.l.b16 %v5215
    %v5248 = vpack.c.b16 %v5233, %v5232
    %v5249 = vpack.c.b16 %v5235, %v5234
    %v5250 = vpack.c.b16 %v5237, %v5236
    %v5251 = vpack.c.b16 %v5239, %v5238
    %v5252 = vpack.c.b16 %v5241, %v5240
    %v5253 = vpack.c.b16 %v5243, %v5242
    %v5254 = vpack.c.b16 %v5245, %v5244
    %v5255 = vpack.c.b16 %v5247, %v5246
    %5264 = vmatprep.subr.bf16.mxu0 0
    %5265 = vmatpush1.bf16.msra.mxu0 %v5248
    %5266 = vmatprep.subr.bf16.mxu0 0
    %5267 = vmatpush1.bf16.msra.mxu0 %v5249
    %5268 = vmatprep.subr.bf16.mxu0 0
    %5269 = vmatpush1.bf16.msra.mxu0 %v5250
    %5270 = vmatprep.subr.bf16.mxu0 0
    %5271 = vmatpush1.bf16.msra.mxu0 %v5251
    %5272 = vmatprep.subr.bf16.mxu0 0
    %5273 = vmatpush1.bf16.msra.mxu0 %v5252
    %5274 = vmatprep.subr.bf16.mxu0 0
    %5275 = vmatpush1.bf16.msra.mxu0 %v5253
    %5276 = vmatprep.subr.bf16.mxu0 0
    %5277 = vmatpush1.bf16.msra.mxu0 %v5254
    %5278 = vmatprep.subr.bf16.mxu0 0
    %5279 = vmatpush1.bf16.msra.mxu0 %v5255
    %5280 = vmatprep.subr.bf16.mxu0 0
    %5281 = vmatpush1.bf16.msra.mxu0 0
    %5282 = vmatprep.subr.bf16.mxu0 0
    %5283 = vmatpush1.bf16.msra.mxu0 0
    %5284 = vmatprep.subr.bf16.mxu0 0
    %5285 = vmatpush1.bf16.msra.mxu0 0
    %5286 = vmatprep.subr.bf16.mxu0 0
    %5287 = vmatpush1.bf16.msra.mxu0 0
    %5288 = vmatprep.subr.bf16.mxu0 0
    %5289 = vmatpush1.bf16.msra.mxu0 0
    %5290 = vmatprep.subr.bf16.mxu0 0
    %5291 = vmatpush1.bf16.msra.mxu0 0
    %5292 = vmatprep.subr.bf16.mxu0 0
    %5293 = vmatpush1.bf16.msra.mxu0 0
    %5294 = vmatprep.subr.bf16.mxu0 0
    %5295 = vmatpush1.bf16.msra.mxu0 0
    %5296 = vmatprep.mubr.bf16.mxu0 0
    %5297 = vmatmul.mubr.bf16.gmra.mrb[0].mxu0 %v5167
    %v5298 = vpop.f32.mrb[0].mxu0
    %v5299 = vadd.f32 0.0, %v5298
    %v5300 = vpop.f32.mrb[0].mxu0
    %v5301 = vpop.f32.mrb[0].mxu0
    %v5302 = vadd.f32 0.0, %v5301
    %v5303 = vpop.f32.mrb[0].mxu0
    %5304 = vmatprep.mubr.bf16.mxu0 0
    %5305 = vmatmul.mubr.bf16.gmra.mrb[0].mxu0 %v5168
    %v5306 = vpop.f32.mrb[0].mxu0
    %v5307 = vadd.f32 0.0, %v5306
    %v5308 = vpop.f32.mrb[0].mxu0
    %v5309 = vpop.f32.mrb[0].mxu0
    %v5310 = vadd.f32 0.0, %v5309
    %v5311 = vpop.f32.mrb[0].mxu0
    %5312 = vmatprep.mubr.bf16.mxu0 0
    %5313 = vmatmul.mubr.bf16.gmra.mrb[0].mxu0 %v5169
    %v5314 = vpop.f32.mrb[0].mxu0
    %v5315 = vadd.f32 0.0, %v5314
    %v5316 = vpop.f32.mrb[0].mxu0
    %v5317 = vpop.f32.mrb[0].mxu0
    %v5318 = vadd.f32 0.0, %v5317
    %v5319 = vpop.f32.mrb[0].mxu0
    %5320 = vmatprep.mubr.bf16.mxu0 0
    %5321 = vmatmul.mubr.bf16.gmra.mrb[0].mxu0 %v5170
    %v5322 = vpop.f32.mrb[0].mxu0
    %v5323 = vadd.f32 0.0, %v5322
    %v5324 = vpop.f32.mrb[0].mxu0
    %v5325 = vpop.f32.mrb[0].mxu0
    %v5326 = vadd.f32 0.0, %v5325
    %v5327 = vpop.f32.mrb[0].mxu0
    %5328 = vmatprep.mubr.bf16.mxu0 0
    %5329 = vmatmul.mubr.bf16.gmra.mrb[0].mxu0 %v5171
    %v5330 = vpop.f32.mrb[0].mxu0
    %v5331 = vadd.f32 0.0, %v5330
    %v5332 = vpop.f32.mrb[0].mxu0
    %v5333 = vpop.f32.mrb[0].mxu0
    %v5334 = vadd.f32 0.0, %v5333
    %v5335 = vpop.f32.mrb[0].mxu0
    %5336 = vmatprep.mubr.bf16.mxu0 0
    %5337 = vmatmul.mubr.bf16.gmra.mrb[0].mxu0 %v5172
    %v5338 = vpop.f32.mrb[0].mxu0
    %v5339 = vadd.f32 0.0, %v5338
    %v5340 = vpop.f32.mrb[0].mxu0
    %v5341 = vpop.f32.mrb[0].mxu0
    %v5342 = vadd.f32 0.0, %v5341
    %v5343 = vpop.f32.mrb[0].mxu0
    %5344 = vmatprep.mubr.bf16.mxu0 0
    %5345 = vmatmul.mubr.bf16.gmra.mrb[0].mxu0 %v5173
    %v5346 = vpop.f32.mrb[0].mxu0
    %v5347 = vadd.f32 0.0, %v5346
    %v5348 = vpop.f32.mrb[0].mxu0
    %v5349 = vpop.f32.mrb[0].mxu0
    %v5350 = vadd.f32 0.0, %v5349
    %v5351 = vpop.f32.mrb[0].mxu0
    %5352 = vmatprep.mubr.bf16.mxu0 0
    %5353 = vmatmul.mubr.bf16.gmra.mrb[0].mxu0 %v5174
    %v5354 = vpop.f32.mrb[0].mxu0
    %v5355 = vadd.f32 0.0, %v5354
    %v5356 = vpop.f32.mrb[0].mxu0
    %v5357 = vpop.f32.mrb[0].mxu0
    %v5358 = vadd.f32 0.0, %v5357
    %v5359 = vpop.f32.mrb[0].mxu0
    %5360 = vmatprep.mubr.bf16.mxu0 0
    %5361 = vmatmul.mubr.bf16.gmra.mrb[0].mxu0 %v5175
    %v5362 = vpop.f32.mrb[0].mxu0
    %v5363 = vadd.f32 0.0, %v5362
    %v5364 = vpop.f32.mrb[0].mxu0
    %v5365 = vpop.f32.mrb[0].mxu0
    %v5366 = vadd.f32 0.0, %v5365
    %v5367 = vpop.f32.mrb[0].mxu0
    %5368 = vmatprep.mubr.bf16.mxu0 0
    %5369 = vmatmul.mubr.bf16.gmra.mrb[0].mxu0 %v5176
    %v5370 = vpop.f32.mrb[0].mxu0
    %v5371 = vadd.f32 0.0, %v5370
    %v5372 = vpop.f32.mrb[0].mxu0
    %v5373 = vpop.f32.mrb[0].mxu0
    %v5374 = vadd.f32 0.0, %v5373
    %v5375 = vpop.f32.mrb[0].mxu0
    %5376 = vmatprep.mubr.bf16.mxu0 0
    %5377 = vmatmul.mubr.bf16.gmra.mrb[0].mxu0 %v5177
    %v5378 = vpop.f32.mrb[0].mxu0
    %v5379 = vadd.f32 0.0, %v5378
    %v5380 = vpop.f32.mrb[0].mxu0
    %v5381 = vpop.f32.mrb[0].mxu0
    %v5382 = vadd.f32 0.0, %v5381
    %v5383 = vpop.f32.mrb[0].mxu0
    %5384 = vmatprep.mubr.bf16.mxu0 0
    %5385 = vmatmul.mubr.bf16.gmra.mrb[0].mxu0 %v5178
    %v5386 = vpop.f32.mrb[0].mxu0
    %v5387 = vadd.f32 0.0, %v5386
    %v5388 = vpop.f32.mrb[0].mxu0
    %v5389 = vpop.f32.mrb[0].mxu0
    %v5390 = vadd.f32 0.0, %v5389
    %v5391 = vpop.f32.mrb[0].mxu0
    %5392 = vmatprep.mubr.bf16.mxu0 0
    %5393 = vmatmul.mubr.bf16.gmra.mrb[0].mxu0 %v5179
    %v5394 = vpop.f32.mrb[0].mxu0
    %v5395 = vadd.f32 0.0, %v5394
    %v5396 = vpop.f32.mrb[0].mxu0
    %v5397 = vpop.f32.mrb[0].mxu0
    %v5398 = vadd.f32 0.0, %v5397
    %v5399 = vpop.f32.mrb[0].mxu0
    %5400 = vmatprep.mubr.bf16.mxu0 0
    %5401 = vmatmul.mubr.bf16.gmra.mrb[0].mxu0 %v5180
    %v5402 = vpop.f32.mrb[0].mxu0
    %v5403 = vadd.f32 0.0, %v5402
    %v5404 = vpop.f32.mrb[0].mxu0
    %v5405 = vpop.f32.mrb[0].mxu0
    %v5406 = vadd.f32 0.0, %v5405
    %v5407 = vpop.f32.mrb[0].mxu0
    %5408 = vmatprep.mubr.bf16.mxu0 0
    %5409 = vmatmul.mubr.bf16.gmra.mrb[0].mxu0 %v5181
    %v5410 = vpop.f32.mrb[0].mxu0
    %v5411 = vadd.f32 0.0, %v5410
    %v5412 = vpop.f32.mrb[0].mxu0
    %v5413 = vpop.f32.mrb[0].mxu0
    %v5414 = vadd.f32 0.0, %v5413
    %v5415 = vpop.f32.mrb[0].mxu0
    %5416 = vmatprep.mubr.bf16.mxu0 0
    %5417 = vmatmul.mubr.bf16.gmra.mrb[0].mxu0 %v5182
    %v5418 = vpop.f32.mrb[0].mxu0
    %v5419 = vadd.f32 0.0, %v5418
    %v5420 = vpop.f32.mrb[0].mxu0
    %v5421 = vpop.f32.mrb[0].mxu0
    %v5422 = vadd.f32 0.0, %v5421
    %v5423 = vpop.f32.mrb[0].mxu0
    %5424 = vmatprep.mubr.bf16.mxu0 0
    %5425 = vmatmul.mubr.bf16.gmra.mrb[0].mxu0 %v5183
    %v5426 = vpop.f32.mrb[0].mxu0
    %v5427 = vadd.f32 0.0, %v5426
    %v5428 = vpop.f32.mrb[0].mxu0
    %v5429 = vpop.f32.mrb[0].mxu0
    %v5430 = vadd.f32 0.0, %v5429
    %v5431 = vpop.f32.mrb[0].mxu0
    %5432 = vmatprep.mubr.bf16.mxu0 0
    %5433 = vmatmul.mubr.bf16.gmra.mrb[0].mxu0 %v5184
    %v5434 = vpop.f32.mrb[0].mxu0
    %v5435 = vadd.f32 0.0, %v5434
    %v5436 = vpop.f32.mrb[0].mxu0
    %v5437 = vpop.f32.mrb[0].mxu0
    %v5438 = vadd.f32 0.0, %v5437
    %v5439 = vpop.f32.mrb[0].mxu0
    %5440 = vmatprep.mubr.bf16.mxu0 0
    %5441 = vmatmul.mubr.bf16.gmra.mrb[0].mxu0 %v5185
    %v5442 = vpop.f32.mrb[0].mxu0
    %v5443 = vadd.f32 0.0, %v5442
    %v5444 = vpop.f32.mrb[0].mxu0
    %v5445 = vpop.f32.mrb[0].mxu0
    %v5446 = vadd.f32 0.0, %v5445
    %v5447 = vpop.f32.mrb[0].mxu0
    %5448 = vmatprep.mubr.bf16.mxu0 0
    %5449 = vmatmul.mubr.bf16.gmra.mrb[0].mxu0 %v5186
    %v5450 = vpop.f32.mrb[0].mxu0
    %v5451 = vadd.f32 0.0, %v5450
    %v5452 = vpop.f32.mrb[0].mxu0
    %v5453 = vpop.f32.mrb[0].mxu0
    %v5454 = vadd.f32 0.0, %v5453
    %v5455 = vpop.f32.mrb[0].mxu0
    %5456 = vmatprep.mubr.bf16.mxu0 0
    %5457 = vmatmul.mubr.bf16.gmra.mrb[0].mxu0 %v5187
    %v5458 = vpop.f32.mrb[0].mxu0
    %v5459 = vadd.f32 0.0, %v5458
    %v5460 = vpop.f32.mrb[0].mxu0
    %v5461 = vpop.f32.mrb[0].mxu0
    %v5462 = vadd.f32 0.0, %v5461
    %v5463 = vpop.f32.mrb[0].mxu0
    %5464 = vmatprep.mubr.bf16.mxu0 0
    %5465 = vmatmul.mubr.bf16.gmra.mrb[0].mxu0 %v5188
    %v5466 = vpop.f32.mrb[0].mxu0
    %v5467 = vadd.f32 0.0, %v5466
    %v5468 = vpop.f32.mrb[0].mxu0
    %v5469 = vpop.f32.mrb[0].mxu0
    %v5470 = vadd.f32 0.0, %v5469
    %v5471 = vpop.f32.mrb[0].mxu0
    %5472 = vmatprep.mubr.bf16.mxu0 0
    %5473 = vmatmul.mubr.bf16.gmra.mrb[0].mxu0 %v5189
    %v5474 = vpop.f32.mrb[0].mxu0
    %v5475 = vadd.f32 0.0, %v5474
    %v5476 = vpop.f32.mrb[0].mxu0
    %v5477 = vpop.f32.mrb[0].mxu0
    %v5478 = vadd.f32 0.0, %v5477
    %v5479 = vpop.f32.mrb[0].mxu0
    %5480 = vmatprep.mubr.bf16.mxu0 0
    %5481 = vmatmul.mubr.bf16.gmra.mrb[0].mxu0 %v5190
    %v5482 = vpop.f32.mrb[0].mxu0
    %v5483 = vadd.f32 0.0, %v5482
    %v5484 = vpop.f32.mrb[0].mxu0
    %v5485 = vpop.f32.mrb[0].mxu0
    %v5486 = vadd.f32 0.0, %v5485
    %v5487 = vpop.f32.mrb[0].mxu0
    %5488 = vmatprep.mubr.bf16.mxu0 0
    %5489 = vmatmul.mubr.bf16.gmra.mrb[0].mxu0 %v5191
    %v5490 = vpop.f32.mrb[0].mxu0
    %v5491 = vadd.f32 0.0, %v5490
    %v5492 = vpop.f32.mrb[0].mxu0
    %v5493 = vpop.f32.mrb[0].mxu0
    %v5494 = vadd.f32 0.0, %v5493
    %v5495 = vpop.f32.mrb[0].mxu0
    %5496 = vmatprep.mubr.bf16.mxu0 0
    %5497 = vmatmul.mubr.bf16.gmra.mrb[0].mxu0 %v5192
    %v5498 = vpop.f32.mrb[0].mxu0
    %v5499 = vadd.f32 0.0, %v5498
    %v5500 = vpop.f32.mrb[0].mxu0
    %v5501 = vpop.f32.mrb[0].mxu0
    %v5502 = vadd.f32 0.0, %v5501
    %v5503 = vpop.f32.mrb[0].mxu0
    %5504 = vmatprep.mubr.bf16.mxu0 0
    %5505 = vmatmul.mubr.bf16.gmra.mrb[0].mxu0 %v5193
    %v5506 = vpop.f32.mrb[0].mxu0
    %v5507 = vadd.f32 0.0, %v5506
    %v5508 = vpop.f32.mrb[0].mxu0
    %v5509 = vpop.f32.mrb[0].mxu0
    %v5510 = vadd.f32 0.0, %v5509
    %v5511 = vpop.f32.mrb[0].mxu0
    %5512 = vmatprep.mubr.bf16.mxu0 0
    %5513 = vmatmul.mubr.bf16.gmra.mrb[0].mxu0 %v5194
    %v5514 = vpop.f32.mrb[0].mxu0
    %v5515 = vadd.f32 0.0, %v5514
    %v5516 = vpop.f32.mrb[0].mxu0
    %v5517 = vpop.f32.mrb[0].mxu0
    %v5518 = vadd.f32 0.0, %v5517
    %v5519 = vpop.f32.mrb[0].mxu0
    %5520 = vmatprep.mubr.bf16.mxu0 0
    %5521 = vmatmul.mubr.bf16.gmra.mrb[0].mxu0 %v5195
    %v5522 = vpop.f32.mrb[0].mxu0
    %v5523 = vadd.f32 0.0, %v5522
    %v5524 = vpop.f32.mrb[0].mxu0
    %v5525 = vpop.f32.mrb[0].mxu0
    %v5526 = vadd.f32 0.0, %v5525
    %v5527 = vpop.f32.mrb[0].mxu0
    %5528 = vmatprep.mubr.bf16.mxu0 0
    %5529 = vmatmul.mubr.bf16.gmra.mrb[0].mxu0 %v5196
    %v5530 = vpop.f32.mrb[0].mxu0
    %v5531 = vadd.f32 0.0, %v5530
    %v5532 = vpop.f32.mrb[0].mxu0
    %v5533 = vpop.f32.mrb[0].mxu0
    %v5534 = vadd.f32 0.0, %v5533
    %v5535 = vpop.f32.mrb[0].mxu0
    %5536 = vmatprep.mubr.bf16.mxu0 0
    %5537 = vmatmul.mubr.bf16.gmra.mrb[0].mxu0 %v5197
    %v5538 = vpop.f32.mrb[0].mxu0
    %v5539 = vadd.f32 0.0, %v5538
    %v5540 = vpop.f32.mrb[0].mxu0
    %v5541 = vpop.f32.mrb[0].mxu0
    %v5542 = vadd.f32 0.0, %v5541
    %v5543 = vpop.f32.mrb[0].mxu0
    %5544 = vmatprep.mubr.bf16.mxu0 0
    %5545 = vmatmul.mubr.bf16.gmra.mrb[0].mxu0 %v5198
    %v5546 = vpop.f32.mrb[0].mxu0
    %v5547 = vadd.f32 0.0, %v5546
    %v5548 = vpop.f32.mrb[0].mxu0
    %v5549 = vpop.f32.mrb[0].mxu0
    %v5550 = vadd.f32 0.0, %v5549
    %v5551 = vpop.f32.mrb[0].mxu0
    %5552 = vdwg.mxu0
    %v5553 = vadd.f32 %v5103, %v5299
    %v5554 = vadd.f32 %v5104, %v5302
    %v5555 = vadd.f32 %v5105, %v5307
    %v5556 = vadd.f32 %v5106, %v5310
    %v5557 = vadd.f32 %v5107, %v5315
    %v5558 = vadd.f32 %v5108, %v5318
    %v5559 = vadd.f32 %v5109, %v5323
    %v5560 = vadd.f32 %v5110, %v5326
    %v5561 = vadd.f32 %v5111, %v5331
    %v5562 = vadd.f32 %v5112, %v5334
    %v5563 = vadd.f32 %v5113, %v5339
    %v5564 = vadd.f32 %v5114, %v5342
    %v5565 = vadd.f32 %v5115, %v5347
    %v5566 = vadd.f32 %v5116, %v5350
    %v5567 = vadd.f32 %v5117, %v5355
    %v5568 = vadd.f32 %v5118, %v5358
    %v5569 = vadd.f32 %v5119, %v5363
    %v5570 = vadd.f32 %v5120, %v5366
    %v5571 = vadd.f32 %v5121, %v5371
    %v5572 = vadd.f32 %v5122, %v5374
    %v5573 = vadd.f32 %v5123, %v5379
    %v5574 = vadd.f32 %v5124, %v5382
    %v5575 = vadd.f32 %v5125, %v5387
    %v5576 = vadd.f32 %v5126, %v5390
    %v5577 = vadd.f32 %v5127, %v5395
    %v5578 = vadd.f32 %v5128, %v5398
    %v5579 = vadd.f32 %v5129, %v5403
    %v5580 = vadd.f32 %v5130, %v5406
    %v5581 = vadd.f32 %v5131, %v5411
    %v5582 = vadd.f32 %v5132, %v5414
    %v5583 = vadd.f32 %v5133, %v5419
    %v5584 = vadd.f32 %v5134, %v5422
    %v5585 = vadd.f32 %v5135, %v5427
    %v5586 = vadd.f32 %v5136, %v5430
    %v5587 = vadd.f32 %v5137, %v5435
    %v5588 = vadd.f32 %v5138, %v5438
    %v5589 = vadd.f32 %v5139, %v5443
    %v5590 = vadd.f32 %v5140, %v5446
    %v5591 = vadd.f32 %v5141, %v5451
    %v5592 = vadd.f32 %v5142, %v5454
    %v5593 = vadd.f32 %v5143, %v5459
    %v5594 = vadd.f32 %v5144, %v5462
    %v5595 = vadd.f32 %v5145, %v5467
    %v5596 = vadd.f32 %v5146, %v5470
    %v5597 = vadd.f32 %v5147, %v5475
    %v5598 = vadd.f32 %v5148, %v5478
    %v5599 = vadd.f32 %v5149, %v5483
    %v5600 = vadd.f32 %v5150, %v5486
    %v5601 = vadd.f32 %v5151, %v5491
    %v5602 = vadd.f32 %v5152, %v5494
    %v5603 = vadd.f32 %v5153, %v5499
    %v5604 = vadd.f32 %v5154, %v5502
    %v5605 = vadd.f32 %v5155, %v5507
    %v5606 = vadd.f32 %v5156, %v5510
    %v5607 = vadd.f32 %v5157, %v5515
    %v5608 = vadd.f32 %v5158, %v5518
    %v5609 = vadd.f32 %v5159, %v5523
    %v5610 = vadd.f32 %v5160, %v5526
    %v5611 = vadd.f32 %v5161, %v5531
    %v5612 = vadd.f32 %v5162, %v5534
    %v5613 = vadd.f32 %v5163, %v5539
    %v5614 = vadd.f32 %v5164, %v5542
    %v5615 = vadd.f32 %v5165, %v5547
    %v5616 = vadd.f32 %v5166, %v5550
    %5617 = vst [vmem:[#allocation3] sm:$0xff] %v5553
    %5618 = vst [vmem:[#allocation3 + $0x8] sm:$0xff] %v5554
    %5619 = vst [vmem:[#allocation3 + $0x10] sm:$0xff] %v5555
    %5620 = vst [vmem:[#allocation3 + $0x18] sm:$0xff] %v5556
    %5621 = vst [vmem:[#allocation3 + $0x20] sm:$0xff] %v5557
    %5622 = vst [vmem:[#allocation3 + $0x28] sm:$0xff] %v5558
    %5623 = vst [vmem:[#allocation3 + $0x30] sm:$0xff] %v5559
    %5624 = vst [vmem:[#allocation3 + $0x38] sm:$0xff] %v5560
    %5625 = vst [vmem:[#allocation3 + $0x40] sm:$0xff] %v5561
    %5626 = vst [vmem:[#allocation3 + $0x48] sm:$0xff] %v5562
    %5627 = vst [vmem:[#allocation3 + $0x50] sm:$0xff] %v5563
    %5628 = vst [vmem:[#allocation3 + $0x58] sm:$0xff] %v5564
    %5629 = vst [vmem:[#allocation3 + $0x60] sm:$0xff] %v5565
    %5630 = vst [vmem:[#allocation3 + $0x68] sm:$0xff] %v5566
    %5631 = vst [vmem:[#allocation3 + $0x70] sm:$0xff] %v5567
    %5632 = vst [vmem:[#allocation3 + $0x78] sm:$0xff] %v5568
    %5633 = vst [vmem:[#allocation3 + $0x80] sm:$0xff] %v5569
    %5634 = vst [vmem:[#allocation3 + $0x88] sm:$0xff] %v5570
    %5635 = vst [vmem:[#allocation3 + $0x90] sm:$0xff] %v5571
    %5636 = vst [vmem:[#allocation3 + $0x98] sm:$0xff] %v5572
    %5637 = vst [vmem:[#allocation3 + $0xa0] sm:$0xff] %v5573
    %5638 = vst [vmem:[#allocation3 + $0xa8] sm:$0xff] %v5574
    %5639 = vst [vmem:[#allocation3 + $0xb0] sm:$0xff] %v5575
    %5640 = vst [vmem:[#allocation3 + $0xb8] sm:$0xff] %v5576
    %5641 = vst [vmem:[#allocation3 + $0xc0] sm:$0xff] %v5577
    %5642 = vst [vmem:[#allocation3 + $0xc8] sm:$0xff] %v5578
    %5643 = vst [vmem:[#allocation3 + $0xd0] sm:$0xff] %v5579
    %5644 = vst [vmem:[#allocation3 + $0xd8] sm:$0xff] %v5580
    %5645 = vst [vmem:[#allocation3 + $0xe0] sm:$0xff] %v5581
    %5646 = vst [vmem:[#allocation3 + $0xe8] sm:$0xff] %v5582
    %5647 = vst [vmem:[#allocation3 + $0xf0] sm:$0xff] %v5583
    %5648 = vst [vmem:[#allocation3 + $0xf8] sm:$0xff] %v5584
    %5649 = vst [vmem:[#allocation3 + $0x100] sm:$0xff] %v5585
    %5650 = vst [vmem:[#allocation3 + $0x108] sm:$0xff] %v5586
    %5651 = vst [vmem:[#allocation3 + $0x110] sm:$0xff] %v5587
    %5652 = vst [vmem:[#allocation3 + $0x118] sm:$0xff] %v5588
    %5653 = vst [vmem:[#allocation3 + $0x120] sm:$0xff] %v5589
    %5654 = vst [vmem:[#allocation3 + $0x128] sm:$0xff] %v5590
    %5655 = vst [vmem:[#allocation3 + $0x130] sm:$0xff] %v5591
    %5656 = vst [vmem:[#allocation3 + $0x138] sm:$0xff] %v5592
    %5657 = vst [vmem:[#allocation3 + $0x140] sm:$0xff] %v5593
    %5658 = vst [vmem:[#allocation3 + $0x148] sm:$0xff] %v5594
    %5659 = vst [vmem:[#allocation3 + $0x150] sm:$0xff] %v5595
    %5660 = vst [vmem:[#allocation3 + $0x158] sm:$0xff] %v5596
    %5661 = vst [vmem:[#allocation3 + $0x160] sm:$0xff] %v5597
    %5662 = vst [vmem:[#allocation3 + $0x168] sm:$0xff] %v5598
    %5663 = vst [vmem:[#allocation3 + $0x170] sm:$0xff] %v5599
    %5664 = vst [vmem:[#allocation3 + $0x178] sm:$0xff] %v5600
    %5665 = vst [vmem:[#allocation3 + $0x180] sm:$0xff] %v5601
    %5666 = vst [vmem:[#allocation3 + $0x188] sm:$0xff] %v5602
    %5667 = vst [vmem:[#allocation3 + $0x190] sm:$0xff] %v5603
    %5668 = vst [vmem:[#allocation3 + $0x198] sm:$0xff] %v5604
    %5669 = vst [vmem:[#allocation3 + $0x1a0] sm:$0xff] %v5605
    %5670 = vst [vmem:[#allocation3 + $0x1a8] sm:$0xff] %v5606
    %5671 = vst [vmem:[#allocation3 + $0x1b0] sm:$0xff] %v5607
    %5672 = vst [vmem:[#allocation3 + $0x1b8] sm:$0xff] %v5608
    %5673 = vst [vmem:[#allocation3 + $0x1c0] sm:$0xff] %v5609
    %5674 = vst [vmem:[#allocation3 + $0x1c8] sm:$0xff] %v5610
    %5675 = vst [vmem:[#allocation3 + $0x1d0] sm:$0xff] %v5611
    %5676 = vst [vmem:[#allocation3 + $0x1d8] sm:$0xff] %v5612
    %5677 = vst [vmem:[#allocation3 + $0x1e0] sm:$0xff] %v5613
    %5678 = vst [vmem:[#allocation3 + $0x1e8] sm:$0xff] %v5614
    %5679 = vst [vmem:[#allocation3 + $0x1f0] sm:$0xff] %v5615
    %5680 = vst [vmem:[#allocation3 + $0x1f8] sm:$0xff] %v5616
    %v5681 = vld [vmem:[%s5038 + $0x1] sm:$0xff]
    %v5682 = vld [vmem:[%s5038 + $0x9] sm:$0xff]
    %v5683 = vld [vmem:[%s5038 + $0x19] sm:$0xff]
    %v5684 = vld [vmem:[%s5038 + $0x21] sm:$0xff]
    %v5685 = vld [vmem:[%s5038 + $0x31] sm:$0xff]
    %v5686 = vld [vmem:[%s5038 + $0x39] sm:$0xff]
    %v5687 = vld [vmem:[%s5038 + $0x49] sm:$0xff]
    %v5688 = vld [vmem:[%s5038 + $0x51] sm:$0xff]
    %v5689 = vld [vmem:[%s5038 + $0x61] sm:$0xff]
    %v5690 = vld [vmem:[%s5038 + $0x69] sm:$0xff]
    %v5691 = vld [vmem:[%s5038 + $0x79] sm:$0xff]
    %v5692 = vld [vmem:[%s5038 + $0x81] sm:$0xff]
    %v5693 = vld [vmem:[%s5038 + $0x91] sm:$0xff]
    %v5694 = vld [vmem:[%s5038 + $0x99] sm:$0xff]
    %v5695 = vld [vmem:[%s5038 + $0xa9] sm:$0xff]
    %v5696 = vld [vmem:[%s5038 + $0xb1] sm:$0xff]
    %v5697 = vld [vmem:[%s5038 + $0xc1] sm:$0xff]
    %v5698 = vld [vmem:[%s5038 + $0xc9] sm:$0xff]
    %v5699 = vld [vmem:[%s5038 + $0xd9] sm:$0xff]
    %v5700 = vld [vmem:[%s5038 + $0xe1] sm:$0xff]
    %v5701 = vld [vmem:[%s5038 + $0xf1] sm:$0xff]
    %v5702 = vld [vmem:[%s5038 + $0xf9] sm:$0xff]
    %v5703 = vld [vmem:[%s5038 + $0x109] sm:$0xff]
    %v5704 = vld [vmem:[%s5038 + $0x111] sm:$0xff]
    %v5705 = vld [vmem:[%s5038 + $0x121] sm:$0xff]
    %v5706 = vld [vmem:[%s5038 + $0x129] sm:$0xff]
    %v5707 = vld [vmem:[%s5038 + $0x139] sm:$0xff]
    %v5708 = vld [vmem:[%s5038 + $0x141] sm:$0xff]
    %v5709 = vld [vmem:[%s5038 + $0x151] sm:$0xff]
    %v5710 = vld [vmem:[%s5038 + $0x159] sm:$0xff]
    %v5711 = vld [vmem:[%s5038 + $0x169] sm:$0xff]
    %v5712 = vld [vmem:[%s5038 + $0x171] sm:$0xff]
    %v5713 = vld [vmem:[%s5038 + $0x1b1] sm:$0xff]
    %v5714 = vld [vmem:[%s5038 + $0x1b9] sm:$0xff]
    %v5715 = vld [vmem:[%s5038 + $0x1c9] sm:$0xff]
    %v5716 = vld [vmem:[%s5038 + $0x1d1] sm:$0xff]
    %v5717 = vld [vmem:[%s5038 + $0x1e1] sm:$0xff]
    %v5718 = vld [vmem:[%s5038 + $0x1e9] sm:$0xff]
    %v5719 = vld [vmem:[%s5038 + $0x1f9] sm:$0xff]
    %v5720 = vld [vmem:[%s5038 + $0x201] sm:$0xff]
    %v5721 = vld [vmem:[%s5038 + $0x211] sm:$0xff]
    %v5722 = vld [vmem:[%s5038 + $0x219] sm:$0xff]
    %v5723 = vld [vmem:[%s5038 + $0x229] sm:$0xff]
    %v5724 = vld [vmem:[%s5038 + $0x231] sm:$0xff]
    %v5725 = vld [vmem:[%s5038 + $0x241] sm:$0xff]
    %v5726 = vld [vmem:[%s5038 + $0x249] sm:$0xff]
    %v5727 = vld [vmem:[%s5038 + $0x259] sm:$0xff]
    %v5728 = vld [vmem:[%s5038 + $0x261] sm:$0xff]
    %v5729 = vld [vmem:[%s5038 + $0x271] sm:$0xff]
    %v5730 = vld [vmem:[%s5038 + $0x279] sm:$0xff]
    %v5731 = vld [vmem:[%s5038 + $0x289] sm:$0xff]
    %v5732 = vld [vmem:[%s5038 + $0x291] sm:$0xff]
    %v5733 = vld [vmem:[%s5038 + $0x2a1] sm:$0xff]
    %v5734 = vld [vmem:[%s5038 + $0x2a9] sm:$0xff]
    %v5735 = vld [vmem:[%s5038 + $0x2b9] sm:$0xff]
    %v5736 = vld [vmem:[%s5038 + $0x2c1] sm:$0xff]
    %v5737 = vld [vmem:[%s5038 + $0x2d1] sm:$0xff]
    %v5738 = vld [vmem:[%s5038 + $0x2d9] sm:$0xff]
    %v5739 = vld [vmem:[%s5038 + $0x2e9] sm:$0xff]
    %v5740 = vld [vmem:[%s5038 + $0x2f1] sm:$0xff]
    %v5741 = vld [vmem:[%s5038 + $0x301] sm:$0xff]
    %v5742 = vld [vmem:[%s5038 + $0x309] sm:$0xff]
    %v5743 = vld [vmem:[%s5038 + $0x319] sm:$0xff]
    %v5744 = vld [vmem:[%s5038 + $0x321] sm:$0xff]
    %v5745 = vld [vmem:[#allocation3] sm:$0xff]
    %v5746 = vld [vmem:[#allocation3 + $0x8] sm:$0xff]
    %v5747 = vld [vmem:[#allocation3 + $0x10] sm:$0xff]
    %v5748 = vld [vmem:[#allocation3 + $0x18] sm:$0xff]
    %v5749 = vld [vmem:[#allocation3 + $0x20] sm:$0xff]
    %v5750 = vld [vmem:[#allocation3 + $0x28] sm:$0xff]
    %v5751 = vld [vmem:[#allocation3 + $0x30] sm:$0xff]
    %v5752 = vld [vmem:[#allocation3 + $0x38] sm:$0xff]
    %v5753 = vld [vmem:[#allocation3 + $0x40] sm:$0xff]
    %v5754 = vld [vmem:[#allocation3 + $0x48] sm:$0xff]
    %v5755 = vld [vmem:[#allocation3 + $0x50] sm:$0xff]
    %v5756 = vld [vmem:[#allocation3 + $0x58] sm:$0xff]
    %v5757 = vld [vmem:[#allocation3 + $0x60] sm:$0xff]
    %v5758 = vld [vmem:[#allocation3 + $0x68] sm:$0xff]
    %v5759 = vld [vmem:[#allocation3 + $0x70] sm:$0xff]
    %v5760 = vld [vmem:[#allocation3 + $0x78] sm:$0xff]
    %v5761 = vld [vmem:[#allocation3 + $0x80] sm:$0xff]
    %v5762 = vld [vmem:[#allocation3 + $0x88] sm:$0xff]
    %v5763 = vld [vmem:[#allocation3 + $0x90] sm:$0xff]
    %v5764 = vld [vmem:[#allocation3 + $0x98] sm:$0xff]
    %v5765 = vld [vmem:[#allocation3 + $0xa0] sm:$0xff]
    %v5766 = vld [vmem:[#allocation3 + $0xa8] sm:$0xff]
    %v5767 = vld [vmem:[#allocation3 + $0xb0] sm:$0xff]
    %v5768 = vld [vmem:[#allocation3 + $0xb8] sm:$0xff]
    %v5769 = vld [vmem:[#allocation3 + $0xc0] sm:$0xff]
    %v5770 = vld [vmem:[#allocation3 + $0xc8] sm:$0xff]
    %v5771 = vld [vmem:[#allocation3 + $0xd0] sm:$0xff]
    %v5772 = vld [vmem:[#allocation3 + $0xd8] sm:$0xff]
    %v5773 = vld [vmem:[#allocation3 + $0xe0] sm:$0xff]
    %v5774 = vld [vmem:[#allocation3 + $0xe8] sm:$0xff]
    %v5775 = vld [vmem:[#allocation3 + $0xf0] sm:$0xff]
    %v5776 = vld [vmem:[#allocation3 + $0xf8] sm:$0xff]
    %v5777 = vld [vmem:[#allocation3 + $0x100] sm:$0xff]
    %v5778 = vld [vmem:[#allocation3 + $0x108] sm:$0xff]
    %v5779 = vld [vmem:[#allocation3 + $0x110] sm:$0xff]
    %v5780 = vld [vmem:[#allocation3 + $0x118] sm:$0xff]
    %v5781 = vld [vmem:[#allocation3 + $0x120] sm:$0xff]
    %v5782 = vld [vmem:[#allocation3 + $0x128] sm:$0xff]
    %v5783 = vld [vmem:[#allocation3 + $0x130] sm:$0xff]
    %v5784 = vld [vmem:[#allocation3 + $0x138] sm:$0xff]
    %v5785 = vld [vmem:[#allocation3 + $0x140] sm:$0xff]
    %v5786 = vld [vmem:[#allocation3 + $0x148] sm:$0xff]
    %v5787 = vld [vmem:[#allocation3 + $0x150] sm:$0xff]
    %v5788 = vld [vmem:[#allocation3 + $0x158] sm:$0xff]
    %v5789 = vld [vmem:[#allocation3 + $0x160] sm:$0xff]
    %v5790 = vld [vmem:[#allocation3 + $0x168] sm:$0xff]
    %v5791 = vld [vmem:[#allocation3 + $0x170] sm:$0xff]
    %v5792 = vld [vmem:[#allocation3 + $0x178] sm:$0xff]
    %v5793 = vld [vmem:[#allocation3 + $0x180] sm:$0xff]
    %v5794 = vld [vmem:[#allocation3 + $0x188] sm:$0xff]
    %v5795 = vld [vmem:[#allocation3 + $0x190] sm:$0xff]
    %v5796 = vld [vmem:[#allocation3 + $0x198] sm:$0xff]
    %v5797 = vld [vmem:[#allocation3 + $0x1a0] sm:$0xff]
    %v5798 = vld [vmem:[#allocation3 + $0x1a8] sm:$0xff]
    %v5799 = vld [vmem:[#allocation3 + $0x1b0] sm:$0xff]
    %v5800 = vld [vmem:[#allocation3 + $0x1b8] sm:$0xff]
    %v5801 = vld [vmem:[#allocation3 + $0x1c0] sm:$0xff]
    %v5802 = vld [vmem:[#allocation3 + $0x1c8] sm:$0xff]
    %v5803 = vld [vmem:[#allocation3 + $0x1d0] sm:$0xff]
    %v5804 = vld [vmem:[#allocation3 + $0x1d8] sm:$0xff]
    %v5805 = vld [vmem:[#allocation3 + $0x1e0] sm:$0xff]
    %v5806 = vld [vmem:[#allocation3 + $0x1e8] sm:$0xff]
    %v5807 = vld [vmem:[#allocation3 + $0x1f0] sm:$0xff]
    %v5808 = vld [vmem:[#allocation3 + $0x1f8] sm:$0xff]
    %v5809 = vpack.c.bf16 %v5682, %v5681
    %v5810 = vpack.c.bf16 %v5684, %v5683
    %v5811 = vpack.c.bf16 %v5686, %v5685
    %v5812 = vpack.c.bf16 %v5688, %v5687
    %v5813 = vpack.c.bf16 %v5690, %v5689
    %v5814 = vpack.c.bf16 %v5692, %v5691
    %v5815 = vpack.c.bf16 %v5694, %v5693
    %v5816 = vpack.c.bf16 %v5696, %v5695
    %v5817 = vpack.c.bf16 %v5698, %v5697
    %v5818 = vpack.c.bf16 %v5700, %v5699
    %v5819 = vpack.c.bf16 %v5702, %v5701
    %v5820 = vpack.c.bf16 %v5704, %v5703
    %v5821 = vpack.c.bf16 %v5706, %v5705
    %v5822 = vpack.c.bf16 %v5708, %v5707
    %v5823 = vpack.c.bf16 %v5710, %v5709
    %v5824 = vpack.c.bf16 %v5712, %v5711
    %v5825 = vpack.c.bf16 %v5714, %v5713
    %v5826 = vpack.c.bf16 %v5716, %v5715
    %v5827 = vpack.c.bf16 %v5718, %v5717
    %v5828 = vpack.c.bf16 %v5720, %v5719
    %v5829 = vpack.c.bf16 %v5722, %v5721
    %v5830 = vpack.c.bf16 %v5724, %v5723
    %v5831 = vpack.c.bf16 %v5726, %v5725
    %v5832 = vpack.c.bf16 %v5728, %v5727
    %v5833 = vpack.c.bf16 %v5730, %v5729
    %v5834 = vpack.c.bf16 %v5732, %v5731
    %v5835 = vpack.c.bf16 %v5734, %v5733
    %v5836 = vpack.c.bf16 %v5736, %v5735
    %v5837 = vpack.c.bf16 %v5738, %v5737
    %v5838 = vpack.c.bf16 %v5740, %v5739
    %v5839 = vpack.c.bf16 %v5742, %v5741
    %v5840 = vpack.c.bf16 %v5744, %v5743
    %s5841 = scalar_lea.vmem [#allocation9], 448
    %v5842 = vld [vmem:[%s5841] sm:$0xf]
    %v5843 = vld [vmem:[%s5841 + $0x4] sm:$0xf]
    %v5844 = vld [vmem:[%s5841 + $0x8] sm:$0xf]
    %v5845 = vld [vmem:[%s5841 + $0xc] sm:$0xf]
    %v5846 = vld [vmem:[%s5841 + $0x10] sm:$0xf]
    %v5847 = vld [vmem:[%s5841 + $0x14] sm:$0xf]
    %v5848 = vld [vmem:[%s5841 + $0x18] sm:$0xf]
    %v5849 = vld [vmem:[%s5841 + $0x1c] sm:$0xf]
    %v5850 = vld [vmem:[%s5841 + $0x20] sm:$0xf]
    %v5851 = vld [vmem:[%s5841 + $0x24] sm:$0xf]
    %v5852 = vld [vmem:[%s5841 + $0x28] sm:$0xf]
    %v5853 = vld [vmem:[%s5841 + $0x2c] sm:$0xf]
    %v5854 = vld [vmem:[%s5841 + $0x30] sm:$0xf]
    %v5855 = vld [vmem:[%s5841 + $0x34] sm:$0xf]
    %v5856 = vld [vmem:[%s5841 + $0x38] sm:$0xf]
    %v5857 = vld [vmem:[%s5841 + $0x3c] sm:$0xf]
    %v5874 = vunpack.c.l.b16 %v5842
    %v5875 = vunpack.c.l.b16 %v5843
    %v5876 = vunpack.c.l.b16 %v5844
    %v5877 = vunpack.c.l.b16 %v5845
    %v5878 = vunpack.c.l.b16 %v5846
    %v5879 = vunpack.c.l.b16 %v5847
    %v5880 = vunpack.c.l.b16 %v5848
    %v5881 = vunpack.c.l.b16 %v5849
    %v5882 = vunpack.c.l.b16 %v5850
    %v5883 = vunpack.c.l.b16 %v5851
    %v5884 = vunpack.c.l.b16 %v5852
    %v5885 = vunpack.c.l.b16 %v5853
    %v5886 = vunpack.c.l.b16 %v5854
    %v5887 = vunpack.c.l.b16 %v5855
    %v5888 = vunpack.c.l.b16 %v5856
    %v5889 = vunpack.c.l.b16 %v5857
    %v5890 = vpack.c.b16 %v5875, %v5874
    %v5891 = vpack.c.b16 %v5877, %v5876
    %v5892 = vpack.c.b16 %v5879, %v5878
    %v5893 = vpack.c.b16 %v5881, %v5880
    %v5894 = vpack.c.b16 %v5883, %v5882
    %v5895 = vpack.c.b16 %v5885, %v5884
    %v5896 = vpack.c.b16 %v5887, %v5886
    %v5897 = vpack.c.b16 %v5889, %v5888
    %5906 = vmatprep.subr.bf16.mxu0 0
    %5907 = vmatpush1.bf16.msra.mxu0 %v5890
    %5908 = vmatprep.subr.bf16.mxu0 0
    %5909 = vmatpush1.bf16.msra.mxu0 %v5891
    %5910 = vmatprep.subr.bf16.mxu0 0
    %5911 = vmatpush1.bf16.msra.mxu0 %v5892
    %5912 = vmatprep.subr.bf16.mxu0 0
    %5913 = vmatpush1.bf16.msra.mxu0 %v5893
    %5914 = vmatprep.subr.bf16.mxu0 0
    %5915 = vmatpush1.bf16.msra.mxu0 %v5894
    %5916 = vmatprep.subr.bf16.mxu0 0
    %5917 = vmatpush1.bf16.msra.mxu0 %v5895
    %5918 = vmatprep.subr.bf16.mxu0 0
    %5919 = vmatpush1.bf16.msra.mxu0 %v5896
    %5920 = vmatprep.subr.bf16.mxu0 0
    %5921 = vmatpush1.bf16.msra.mxu0 %v5897
    %5922 = vmatprep.subr.bf16.mxu0 0
    %5923 = vmatpush1.bf16.msra.mxu0 0
    %5924 = vmatprep.subr.bf16.mxu0 0
    %5925 = vmatpush1.bf16.msra.mxu0 0
    %5926 = vmatprep.subr.bf16.mxu0 0
    %5927 = vmatpush1.bf16.msra.mxu0 0
    %5928 = vmatprep.subr.bf16.mxu0 0
    %5929 = vmatpush1.bf16.msra.mxu0 0
    %5930 = vmatprep.subr.bf16.mxu0 0
    %5931 = vmatpush1.bf16.msra.mxu0 0
    %5932 = vmatprep.subr.bf16.mxu0 0
    %5933 = vmatpush1.bf16.msra.mxu0 0
    %5934 = vmatprep.subr.bf16.mxu0 0
    %5935 = vmatpush1.bf16.msra.mxu0 0
    %5936 = vmatprep.subr.bf16.mxu0 0
    %5937 = vmatpush1.bf16.msra.mxu0 0
    %5938 = vmatprep.mubr.bf16.mxu0 0
    %5939 = vmatmul.mubr.bf16.gmra.mrb[0].mxu0 %v5809
    %v5940 = vpop.f32.mrb[0].mxu0
    %v5941 = vadd.f32 0.0, %v5940
    %v5942 = vpop.f32.mrb[0].mxu0
    %v5943 = vpop.f32.mrb[0].mxu0
    %v5944 = vadd.f32 0.0, %v5943
    %v5945 = vpop.f32.mrb[0].mxu0
    %5946 = vmatprep.mubr.bf16.mxu0 0
    %5947 = vmatmul.mubr.bf16.gmra.mrb[0].mxu0 %v5810
    %v5948 = vpop.f32.mrb[0].mxu0
    %v5949 = vadd.f32 0.0, %v5948
    %v5950 = vpop.f32.mrb[0].mxu0
    %v5951 = vpop.f32.mrb[0].mxu0
    %v5952 = vadd.f32 0.0, %v5951
    %v5953 = vpop.f32.mrb[0].mxu0
    %5954 = vmatprep.mubr.bf16.mxu0 0
    %5955 = vmatmul.mubr.bf16.gmra.mrb[0].mxu0 %v5811
    %v5956 = vpop.f32.mrb[0].mxu0
    %v5957 = vadd.f32 0.0, %v5956
    %v5958 = vpop.f32.mrb[0].mxu0
    %v5959 = vpop.f32.mrb[0].mxu0
    %v5960 = vadd.f32 0.0, %v5959
    %v5961 = vpop.f32.mrb[0].mxu0
    %5962 = vmatprep.mubr.bf16.mxu0 0
    %5963 = vmatmul.mubr.bf16.gmra.mrb[0].mxu0 %v5812
    %v5964 = vpop.f32.mrb[0].mxu0
    %v5965 = vadd.f32 0.0, %v5964
    %v5966 = vpop.f32.mrb[0].mxu0
    %v5967 = vpop.f32.mrb[0].mxu0
    %v5968 = vadd.f32 0.0, %v5967
    %v5969 = vpop.f32.mrb[0].mxu0
    %5970 = vmatprep.mubr.bf16.mxu0 0
    %5971 = vmatmul.mubr.bf16.gmra.mrb[0].mxu0 %v5813
    %v5972 = vpop.f32.mrb[0].mxu0
    %v5973 = vadd.f32 0.0, %v5972
    %v5974 = vpop.f32.mrb[0].mxu0
    %v5975 = vpop.f32.mrb[0].mxu0
    %v5976 = vadd.f32 0.0, %v5975
    %v5977 = vpop.f32.mrb[0].mxu0
    %5978 = vmatprep.mubr.bf16.mxu0 0
    %5979 = vmatmul.mubr.bf16.gmra.mrb[0].mxu0 %v5814
    %v5980 = vpop.f32.mrb[0].mxu0
    %v5981 = vadd.f32 0.0, %v5980
    %v5982 = vpop.f32.mrb[0].mxu0
    %v5983 = vpop.f32.mrb[0].mxu0
    %v5984 = vadd.f32 0.0, %v5983
    %v5985 = vpop.f32.mrb[0].mxu0
    %5986 = vmatprep.mubr.bf16.mxu0 0
    %5987 = vmatmul.mubr.bf16.gmra.mrb[0].mxu0 %v5815
    %v5988 = vpop.f32.mrb[0].mxu0
    %v5989 = vadd.f32 0.0, %v5988
    %v5990 = vpop.f32.mrb[0].mxu0
    %v5991 = vpop.f32.mrb[0].mxu0
    %v5992 = vadd.f32 0.0, %v5991
    %v5993 = vpop.f32.mrb[0].mxu0
    %5994 = vmatprep.mubr.bf16.mxu0 0
    %5995 = vmatmul.mubr.bf16.gmra.mrb[0].mxu0 %v5816
    %v5996 = vpop.f32.mrb[0].mxu0
    %v5997 = vadd.f32 0.0, %v5996
    %v5998 = vpop.f32.mrb[0].mxu0
    %v5999 = vpop.f32.mrb[0].mxu0
    %v6000 = vadd.f32 0.0, %v5999
    %v6001 = vpop.f32.mrb[0].mxu0
    %6002 = vmatprep.mubr.bf16.mxu0 0
    %6003 = vmatmul.mubr.bf16.gmra.mrb[0].mxu0 %v5817
    %v6004 = vpop.f32.mrb[0].mxu0
    %v6005 = vadd.f32 0.0, %v6004
    %v6006 = vpop.f32.mrb[0].mxu0
    %v6007 = vpop.f32.mrb[0].mxu0
    %v6008 = vadd.f32 0.0, %v6007
    %v6009 = vpop.f32.mrb[0].mxu0
    %6010 = vmatprep.mubr.bf16.mxu0 0
    %6011 = vmatmul.mubr.bf16.gmra.mrb[0].mxu0 %v5818
    %v6012 = vpop.f32.mrb[0].mxu0
    %v6013 = vadd.f32 0.0, %v6012
    %v6014 = vpop.f32.mrb[0].mxu0
    %v6015 = vpop.f32.mrb[0].mxu0
    %v6016 = vadd.f32 0.0, %v6015
    %v6017 = vpop.f32.mrb[0].mxu0
    %6018 = vmatprep.mubr.bf16.mxu0 0
    %6019 = vmatmul.mubr.bf16.gmra.mrb[0].mxu0 %v5819
    %v6020 = vpop.f32.mrb[0].mxu0
    %v6021 = vadd.f32 0.0, %v6020
    %v6022 = vpop.f32.mrb[0].mxu0
    %v6023 = vpop.f32.mrb[0].mxu0
    %v6024 = vadd.f32 0.0, %v6023
    %v6025 = vpop.f32.mrb[0].mxu0
    %6026 = vmatprep.mubr.bf16.mxu0 0
    %6027 = vmatmul.mubr.bf16.gmra.mrb[0].mxu0 %v5820
    %v6028 = vpop.f32.mrb[0].mxu0
    %v6029 = vadd.f32 0.0, %v6028
    %v6030 = vpop.f32.mrb[0].mxu0
    %v6031 = vpop.f32.mrb[0].mxu0
    %v6032 = vadd.f32 0.0, %v6031
    %v6033 = vpop.f32.mrb[0].mxu0
    %6034 = vmatprep.mubr.bf16.mxu0 0
    %6035 = vmatmul.mubr.bf16.gmra.mrb[0].mxu0 %v5821
    %v6036 = vpop.f32.mrb[0].mxu0
    %v6037 = vadd.f32 0.0, %v6036
    %v6038 = vpop.f32.mrb[0].mxu0
    %v6039 = vpop.f32.mrb[0].mxu0
    %v6040 = vadd.f32 0.0, %v6039
    %v6041 = vpop.f32.mrb[0].mxu0
    %6042 = vmatprep.mubr.bf16.mxu0 0
    %6043 = vmatmul.mubr.bf16.gmra.mrb[0].mxu0 %v5822
    %v6044 = vpop.f32.mrb[0].mxu0
    %v6045 = vadd.f32 0.0, %v6044
    %v6046 = vpop.f32.mrb[0].mxu0
    %v6047 = vpop.f32.mrb[0].mxu0
    %v6048 = vadd.f32 0.0, %v6047
    %v6049 = vpop.f32.mrb[0].mxu0
    %6050 = vmatprep.mubr.bf16.mxu0 0
    %6051 = vmatmul.mubr.bf16.gmra.mrb[0].mxu0 %v5823
    %v6052 = vpop.f32.mrb[0].mxu0
    %v6053 = vadd.f32 0.0, %v6052
    %v6054 = vpop.f32.mrb[0].mxu0
    %v6055 = vpop.f32.mrb[0].mxu0
    %v6056 = vadd.f32 0.0, %v6055
    %v6057 = vpop.f32.mrb[0].mxu0
    %6058 = vmatprep.mubr.bf16.mxu0 0
    %6059 = vmatmul.mubr.bf16.gmra.mrb[0].mxu0 %v5824
    %v6060 = vpop.f32.mrb[0].mxu0
    %v6061 = vadd.f32 0.0, %v6060
    %v6062 = vpop.f32.mrb[0].mxu0
    %v6063 = vpop.f32.mrb[0].mxu0
    %v6064 = vadd.f32 0.0, %v6063
    %v6065 = vpop.f32.mrb[0].mxu0
    %6066 = vmatprep.mubr.bf16.mxu0 0
    %6067 = vmatmul.mubr.bf16.gmra.mrb[0].mxu0 %v5825
    %v6068 = vpop.f32.mrb[0].mxu0
    %v6069 = vadd.f32 0.0, %v6068
    %v6070 = vpop.f32.mrb[0].mxu0
    %v6071 = vpop.f32.mrb[0].mxu0
    %v6072 = vadd.f32 0.0, %v6071
    %v6073 = vpop.f32.mrb[0].mxu0
    %6074 = vmatprep.mubr.bf16.mxu0 0
    %6075 = vmatmul.mubr.bf16.gmra.mrb[0].mxu0 %v5826
    %v6076 = vpop.f32.mrb[0].mxu0
    %v6077 = vadd.f32 0.0, %v6076
    %v6078 = vpop.f32.mrb[0].mxu0
    %v6079 = vpop.f32.mrb[0].mxu0
    %v6080 = vadd.f32 0.0, %v6079
    %v6081 = vpop.f32.mrb[0].mxu0
    %6082 = vmatprep.mubr.bf16.mxu0 0
    %6083 = vmatmul.mubr.bf16.gmra.mrb[0].mxu0 %v5827
    %v6084 = vpop.f32.mrb[0].mxu0
    %v6085 = vadd.f32 0.0, %v6084
    %v6086 = vpop.f32.mrb[0].mxu0
    %v6087 = vpop.f32.mrb[0].mxu0
    %v6088 = vadd.f32 0.0, %v6087
    %v6089 = vpop.f32.mrb[0].mxu0
    %6090 = vmatprep.mubr.bf16.mxu0 0
    %6091 = vmatmul.mubr.bf16.gmra.mrb[0].mxu0 %v5828
    %v6092 = vpop.f32.mrb[0].mxu0
    %v6093 = vadd.f32 0.0, %v6092
    %v6094 = vpop.f32.mrb[0].mxu0
    %v6095 = vpop.f32.mrb[0].mxu0
    %v6096 = vadd.f32 0.0, %v6095
    %v6097 = vpop.f32.mrb[0].mxu0
    %6098 = vmatprep.mubr.bf16.mxu0 0
    %6099 = vmatmul.mubr.bf16.gmra.mrb[0].mxu0 %v5829
    %v6100 = vpop.f32.mrb[0].mxu0
    %v6101 = vadd.f32 0.0, %v6100
    %v6102 = vpop.f32.mrb[0].mxu0
    %v6103 = vpop.f32.mrb[0].mxu0
    %v6104 = vadd.f32 0.0, %v6103
    %v6105 = vpop.f32.mrb[0].mxu0
    %6106 = vmatprep.mubr.bf16.mxu0 0
    %6107 = vmatmul.mubr.bf16.gmra.mrb[0].mxu0 %v5830
    %v6108 = vpop.f32.mrb[0].mxu0
    %v6109 = vadd.f32 0.0, %v6108
    %v6110 = vpop.f32.mrb[0].mxu0
    %v6111 = vpop.f32.mrb[0].mxu0
    %v6112 = vadd.f32 0.0, %v6111
    %v6113 = vpop.f32.mrb[0].mxu0
    %6114 = vmatprep.mubr.bf16.mxu0 0
    %6115 = vmatmul.mubr.bf16.gmra.mrb[0].mxu0 %v5831
    %v6116 = vpop.f32.mrb[0].mxu0
    %v6117 = vadd.f32 0.0, %v6116
    %v6118 = vpop.f32.mrb[0].mxu0
    %v6119 = vpop.f32.mrb[0].mxu0
    %v6120 = vadd.f32 0.0, %v6119
    %v6121 = vpop.f32.mrb[0].mxu0
    %6122 = vmatprep.mubr.bf16.mxu0 0
    %6123 = vmatmul.mubr.bf16.gmra.mrb[0].mxu0 %v5832
    %v6124 = vpop.f32.mrb[0].mxu0
    %v6125 = vadd.f32 0.0, %v6124
    %v6126 = vpop.f32.mrb[0].mxu0
    %v6127 = vpop.f32.mrb[0].mxu0
    %v6128 = vadd.f32 0.0, %v6127
    %v6129 = vpop.f32.mrb[0].mxu0
    %6130 = vmatprep.mubr.bf16.mxu0 0
    %6131 = vmatmul.mubr.bf16.gmra.mrb[0].mxu0 %v5833
    %v6132 = vpop.f32.mrb[0].mxu0
    %v6133 = vadd.f32 0.0, %v6132
    %v6134 = vpop.f32.mrb[0].mxu0
    %v6135 = vpop.f32.mrb[0].mxu0
    %v6136 = vadd.f32 0.0, %v6135
    %v6137 = vpop.f32.mrb[0].mxu0
    %6138 = vmatprep.mubr.bf16.mxu0 0
    %6139 = vmatmul.mubr.bf16.gmra.mrb[0].mxu0 %v5834
    %v6140 = vpop.f32.mrb[0].mxu0
    %v6141 = vadd.f32 0.0, %v6140
    %v6142 = vpop.f32.mrb[0].mxu0
    %v6143 = vpop.f32.mrb[0].mxu0
    %v6144 = vadd.f32 0.0, %v6143
    %v6145 = vpop.f32.mrb[0].mxu0
    %6146 = vmatprep.mubr.bf16.mxu0 0
    %6147 = vmatmul.mubr.bf16.gmra.mrb[0].mxu0 %v5835
    %v6148 = vpop.f32.mrb[0].mxu0
    %v6149 = vadd.f32 0.0, %v6148
    %v6150 = vpop.f32.mrb[0].mxu0
    %v6151 = vpop.f32.mrb[0].mxu0
    %v6152 = vadd.f32 0.0, %v6151
    %v6153 = vpop.f32.mrb[0].mxu0
    %6154 = vmatprep.mubr.bf16.mxu0 0
    %6155 = vmatmul.mubr.bf16.gmra.mrb[0].mxu0 %v5836
    %v6156 = vpop.f32.mrb[0].mxu0
    %v6157 = vadd.f32 0.0, %v6156
    %v6158 = vpop.f32.mrb[0].mxu0
    %v6159 = vpop.f32.mrb[0].mxu0
    %v6160 = vadd.f32 0.0, %v6159
    %v6161 = vpop.f32.mrb[0].mxu0
    %6162 = vmatprep.mubr.bf16.mxu0 0
    %6163 = vmatmul.mubr.bf16.gmra.mrb[0].mxu0 %v5837
    %v6164 = vpop.f32.mrb[0].mxu0
    %v6165 = vadd.f32 0.0, %v6164
    %v6166 = vpop.f32.mrb[0].mxu0
    %v6167 = vpop.f32.mrb[0].mxu0
    %v6168 = vadd.f32 0.0, %v6167
    %v6169 = vpop.f32.mrb[0].mxu0
    %6170 = vmatprep.mubr.bf16.mxu0 0
    %6171 = vmatmul.mubr.bf16.gmra.mrb[0].mxu0 %v5838
    %v6172 = vpop.f32.mrb[0].mxu0
    %v6173 = vadd.f32 0.0, %v6172
    %v6174 = vpop.f32.mrb[0].mxu0
    %v6175 = vpop.f32.mrb[0].mxu0
    %v6176 = vadd.f32 0.0, %v6175
    %v6177 = vpop.f32.mrb[0].mxu0
    %6178 = vmatprep.mubr.bf16.mxu0 0
    %6179 = vmatmul.mubr.bf16.gmra.mrb[0].mxu0 %v5839
    %v6180 = vpop.f32.mrb[0].mxu0
    %v6181 = vadd.f32 0.0, %v6180
    %v6182 = vpop.f32.mrb[0].mxu0
    %v6183 = vpop.f32.mrb[0].mxu0
    %v6184 = vadd.f32 0.0, %v6183
    %v6185 = vpop.f32.mrb[0].mxu0
    %6186 = vmatprep.mubr.bf16.mxu0 0
    %6187 = vmatmul.mubr.bf16.gmra.mrb[0].mxu0 %v5840
    %v6188 = vpop.f32.mrb[0].mxu0
    %v6189 = vadd.f32 0.0, %v6188
    %v6190 = vpop.f32.mrb[0].mxu0
    %v6191 = vpop.f32.mrb[0].mxu0
    %v6192 = vadd.f32 0.0, %v6191
    %v6193 = vpop.f32.mrb[0].mxu0
    %6194 = vdwg.mxu0
    %v6195 = vadd.f32 %v5745, %v5941
    %v6196 = vadd.f32 %v5746, %v5944
    %v6197 = vadd.f32 %v5747, %v5949
    %v6198 = vadd.f32 %v5748, %v5952
    %v6199 = vadd.f32 %v5749, %v5957
    %v6200 = vadd.f32 %v5750, %v5960
    %v6201 = vadd.f32 %v5751, %v5965
    %v6202 = vadd.f32 %v5752, %v5968
    %v6203 = vadd.f32 %v5753, %v5973
    %v6204 = vadd.f32 %v5754, %v5976
    %v6205 = vadd.f32 %v5755, %v5981
    %v6206 = vadd.f32 %v5756, %v5984
    %v6207 = vadd.f32 %v5757, %v5989
    %v6208 = vadd.f32 %v5758, %v5992
    %v6209 = vadd.f32 %v5759, %v5997
    %v6210 = vadd.f32 %v5760, %v6000
    %v6211 = vadd.f32 %v5761, %v6005
    %v6212 = vadd.f32 %v5762, %v6008
    %v6213 = vadd.f32 %v5763, %v6013
    %v6214 = vadd.f32 %v5764, %v6016
    %v6215 = vadd.f32 %v5765, %v6021
    %v6216 = vadd.f32 %v5766, %v6024
    %v6217 = vadd.f32 %v5767, %v6029
    %v6218 = vadd.f32 %v5768, %v6032
    %v6219 = vadd.f32 %v5769, %v6037
    %v6220 = vadd.f32 %v5770, %v6040
    %v6221 = vadd.f32 %v5771, %v6045
    %v6222 = vadd.f32 %v5772, %v6048
    %v6223 = vadd.f32 %v5773, %v6053
    %v6224 = vadd.f32 %v5774, %v6056
    %v6225 = vadd.f32 %v5775, %v6061
    %v6226 = vadd.f32 %v5776, %v6064
    %v6227 = vadd.f32 %v5777, %v6069
    %v6228 = vadd.f32 %v5778, %v6072
    %v6229 = vadd.f32 %v5779, %v6077
    %v6230 = vadd.f32 %v5780, %v6080
    %v6231 = vadd.f32 %v5781, %v6085
    %v6232 = vadd.f32 %v5782, %v6088
    %v6233 = vadd.f32 %v5783, %v6093
    %v6234 = vadd.f32 %v5784, %v6096
    %v6235 = vadd.f32 %v5785, %v6101
    %v6236 = vadd.f32 %v5786, %v6104
    %v6237 = vadd.f32 %v5787, %v6109
    %v6238 = vadd.f32 %v5788, %v6112
    %v6239 = vadd.f32 %v5789, %v6117
    %v6240 = vadd.f32 %v5790, %v6120
    %v6241 = vadd.f32 %v5791, %v6125
    %v6242 = vadd.f32 %v5792, %v6128
    %v6243 = vadd.f32 %v5793, %v6133
    %v6244 = vadd.f32 %v5794, %v6136
    %v6245 = vadd.f32 %v5795, %v6141
    %v6246 = vadd.f32 %v5796, %v6144
    %v6247 = vadd.f32 %v5797, %v6149
    %v6248 = vadd.f32 %v5798, %v6152
    %v6249 = vadd.f32 %v5799, %v6157
    %v6250 = vadd.f32 %v5800, %v6160
    %v6251 = vadd.f32 %v5801, %v6165
    %v6252 = vadd.f32 %v5802, %v6168
    %v6253 = vadd.f32 %v5803, %v6173
    %v6254 = vadd.f32 %v5804, %v6176
    %v6255 = vadd.f32 %v5805, %v6181
    %v6256 = vadd.f32 %v5806, %v6184
    %v6257 = vadd.f32 %v5807, %v6189
    %v6258 = vadd.f32 %v5808, %v6192
    %6259 = vst [vmem:[#allocation3] sm:$0xff] %v6195
    %6260 = vst [vmem:[#allocation3 + $0x8] sm:$0xff] %v6196
    %6261 = vst [vmem:[#allocation3 + $0x10] sm:$0xff] %v6197
    %6262 = vst [vmem:[#allocation3 + $0x18] sm:$0xff] %v6198
    %6263 = vst [vmem:[#allocation3 + $0x20] sm:$0xff] %v6199
    %6264 = vst [vmem:[#allocation3 + $0x28] sm:$0xff] %v6200
    %6265 = vst [vmem:[#allocation3 + $0x30] sm:$0xff] %v6201
    %6266 = vst [vmem:[#allocation3 + $0x38] sm:$0xff] %v6202
    %6267 = vst [vmem:[#allocation3 + $0x40] sm:$0xff] %v6203
    %6268 = vst [vmem:[#allocation3 + $0x48] sm:$0xff] %v6204
    %6269 = vst [vmem:[#allocation3 + $0x50] sm:$0xff] %v6205
    %6270 = vst [vmem:[#allocation3 + $0x58] sm:$0xff] %v6206
    %6271 = vst [vmem:[#allocation3 + $0x60] sm:$0xff] %v6207
    %6272 = vst [vmem:[#allocation3 + $0x68] sm:$0xff] %v6208
    %6273 = vst [vmem:[#allocation3 + $0x70] sm:$0xff] %v6209
    %6274 = vst [vmem:[#allocation3 + $0x78] sm:$0xff] %v6210
    %6275 = vst [vmem:[#allocation3 + $0x80] sm:$0xff] %v6211
    %6276 = vst [vmem:[#allocation3 + $0x88] sm:$0xff] %v6212
    %6277 = vst [vmem:[#allocation3 + $0x90] sm:$0xff] %v6213
    %6278 = vst [vmem:[#allocation3 + $0x98] sm:$0xff] %v6214
    %6279 = vst [vmem:[#allocation3 + $0xa0] sm:$0xff] %v6215
    %6280 = vst [vmem:[#allocation3 + $0xa8] sm:$0xff] %v6216
    %6281 = vst [vmem:[#allocation3 + $0xb0] sm:$0xff] %v6217
    %6282 = vst [vmem:[#allocation3 + $0xb8] sm:$0xff] %v6218
    %6283 = vst [vmem:[#allocation3 + $0xc0] sm:$0xff] %v6219
    %6284 = vst [vmem:[#allocation3 + $0xc8] sm:$0xff] %v6220
    %6285 = vst [vmem:[#allocation3 + $0xd0] sm:$0xff] %v6221
    %6286 = vst [vmem:[#allocation3 + $0xd8] sm:$0xff] %v6222
    %6287 = vst [vmem:[#allocation3 + $0xe0] sm:$0xff] %v6223
    %6288 = vst [vmem:[#allocation3 + $0xe8] sm:$0xff] %v6224
    %6289 = vst [vmem:[#allocation3 + $0xf0] sm:$0xff] %v6225
    %6290 = vst [vmem:[#allocation3 + $0xf8] sm:$0xff] %v6226
    %6291 = vst [vmem:[#allocation3 + $0x100] sm:$0xff] %v6227
    %6292 = vst [vmem:[#allocation3 + $0x108] sm:$0xff] %v6228
    %6293 = vst [vmem:[#allocation3 + $0x110] sm:$0xff] %v6229
    %6294 = vst [vmem:[#allocation3 + $0x118] sm:$0xff] %v6230
    %6295 = vst [vmem:[#allocation3 + $0x120] sm:$0xff] %v6231
    %6296 = vst [vmem:[#allocation3 + $0x128] sm:$0xff] %v6232
    %6297 = vst [vmem:[#allocation3 + $0x130] sm:$0xff] %v6233
    %6298 = vst [vmem:[#allocation3 + $0x138] sm:$0xff] %v6234
    %6299 = vst [vmem:[#allocation3 + $0x140] sm:$0xff] %v6235
    %6300 = vst [vmem:[#allocation3 + $0x148] sm:$0xff] %v6236
    %6301 = vst [vmem:[#allocation3 + $0x150] sm:$0xff] %v6237
    %6302 = vst [vmem:[#allocation3 + $0x158] sm:$0xff] %v6238
    %6303 = vst [vmem:[#allocation3 + $0x160] sm:$0xff] %v6239
    %6304 = vst [vmem:[#allocation3 + $0x168] sm:$0xff] %v6240
    %6305 = vst [vmem:[#allocation3 + $0x170] sm:$0xff] %v6241
    %6306 = vst [vmem:[#allocation3 + $0x178] sm:$0xff] %v6242
    %6307 = vst [vmem:[#allocation3 + $0x180] sm:$0xff] %v6243
    %6308 = vst [vmem:[#allocation3 + $0x188] sm:$0xff] %v6244
    %6309 = vst [vmem:[#allocation3 + $0x190] sm:$0xff] %v6245
    %6310 = vst [vmem:[#allocation3 + $0x198] sm:$0xff] %v6246
    %6311 = vst [vmem:[#allocation3 + $0x1a0] sm:$0xff] %v6247
    %6312 = vst [vmem:[#allocation3 + $0x1a8] sm:$0xff] %v6248
    %6313 = vst [vmem:[#allocation3 + $0x1b0] sm:$0xff] %v6249
    %6314 = vst [vmem:[#allocation3 + $0x1b8] sm:$0xff] %v6250
    %6315 = vst [vmem:[#allocation3 + $0x1c0] sm:$0xff] %v6251
    %6316 = vst [vmem:[#allocation3 + $0x1c8] sm:$0xff] %v6252
    %6317 = vst [vmem:[#allocation3 + $0x1d0] sm:$0xff] %v6253
    %6318 = vst [vmem:[#allocation3 + $0x1d8] sm:$0xff] %v6254
    %6319 = vst [vmem:[#allocation3 + $0x1e0] sm:$0xff] %v6255
    %6320 = vst [vmem:[#allocation3 + $0x1e8] sm:$0xff] %v6256
    %6321 = vst [vmem:[#allocation3 + $0x1f0] sm:$0xff] %v6257
    %6322 = vst [vmem:[#allocation3 + $0x1f8] sm:$0xff] %v6258
    %v6323 = vld [vmem:[%s5038 + $0x2] sm:$0xff]
    %v6324 = vld [vmem:[%s5038 + $0xa] sm:$0xff]
    %v6325 = vld [vmem:[%s5038 + $0x1a] sm:$0xff]
    %v6326 = vld [vmem:[%s5038 + $0x22] sm:$0xff]
    %v6327 = vld [vmem:[%s5038 + $0x32] sm:$0xff]
    %v6328 = vld [vmem:[%s5038 + $0x3a] sm:$0xff]
    %v6329 = vld [vmem:[%s5038 + $0x4a] sm:$0xff]
    %v6330 = vld [vmem:[%s5038 + $0x52] sm:$0xff]
    %v6331 = vld [vmem:[%s5038 + $0x62] sm:$0xff]
    %v6332 = vld [vmem:[%s5038 + $0x6a] sm:$0xff]
    %v6333 = vld [vmem:[%s5038 + $0x7a] sm:$0xff]
    %v6334 = vld [vmem:[%s5038 + $0x82] sm:$0xff]
    %v6335 = vld [vmem:[%s5038 + $0x92] sm:$0xff]
    %v6336 = vld [vmem:[%s5038 + $0x9a] sm:$0xff]
    %v6337 = vld [vmem:[%s5038 + $0xaa] sm:$0xff]
    %v6338 = vld [vmem:[%s5038 + $0xb2] sm:$0xff]
    %v6339 = vld [vmem:[%s5038 + $0xc2] sm:$0xff]
    %v6340 = vld [vmem:[%s5038 + $0xca] sm:$0xff]
    %v6341 = vld [vmem:[%s5038 + $0xda] sm:$0xff]
    %v6342 = vld [vmem:[%s5038 + $0xe2] sm:$0xff]
    %v6343 = vld [vmem:[%s5038 + $0xf2] sm:$0xff]
    %v6344 = vld [vmem:[%s5038 + $0xfa] sm:$0xff]
    %v6345 = vld [vmem:[%s5038 + $0x10a] sm:$0xff]
    %v6346 = vld [vmem:[%s5038 + $0x112] sm:$0xff]
    %v6347 = vld [vmem:[%s5038 + $0x122] sm:$0xff]
    %v6348 = vld [vmem:[%s5038 + $0x12a] sm:$0xff]
    %v6349 = vld [vmem:[%s5038 + $0x13a] sm:$0xff]
    %v6350 = vld [vmem:[%s5038 + $0x142] sm:$0xff]
    %v6351 = vld [vmem:[%s5038 + $0x152] sm:$0xff]
    %v6352 = vld [vmem:[%s5038 + $0x15a] sm:$0xff]
    %v6353 = vld [vmem:[%s5038 + $0x16a] sm:$0xff]
    %v6354 = vld [vmem:[%s5038 + $0x172] sm:$0xff]
    %v6355 = vld [vmem:[%s5038 + $0x1b2] sm:$0xff]
    %v6356 = vld [vmem:[%s5038 + $0x1ba] sm:$0xff]
    %v6357 = vld [vmem:[%s5038 + $0x1ca] sm:$0xff]
    %v6358 = vld [vmem:[%s5038 + $0x1d2] sm:$0xff]
    %v6359 = vld [vmem:[%s5038 + $0x1e2] sm:$0xff]
    %v6360 = vld [vmem:[%s5038 + $0x1ea] sm:$0xff]
    %v6361 = vld [vmem:[%s5038 + $0x1fa] sm:$0xff]
    %v6362 = vld [vmem:[%s5038 + $0x202] sm:$0xff]
    %v6363 = vld [vmem:[%s5038 + $0x212] sm:$0xff]
    %v6364 = vld [vmem:[%s5038 + $0x21a] sm:$0xff]
    %v6365 = vld [vmem:[%s5038 + $0x22a] sm:$0xff]
    %v6366 = vld [vmem:[%s5038 + $0x232] sm:$0xff]
    %v6367 = vld [vmem:[%s5038 + $0x242] sm:$0xff]
    %v6368 = vld [vmem:[%s5038 + $0x24a] sm:$0xff]
    %v6369 = vld [vmem:[%s5038 + $0x25a] sm:$0xff]
    %v6370 = vld [vmem:[%s5038 + $0x262] sm:$0xff]
    %v6371 = vld [vmem:[%s5038 + $0x272] sm:$0xff]
    %v6372 = vld [vmem:[%s5038 + $0x27a] sm:$0xff]
    %v6373 = vld [vmem:[%s5038 + $0x28a] sm:$0xff]
    %v6374 = vld [vmem:[%s5038 + $0x292] sm:$0xff]
    %v6375 = vld [vmem:[%s5038 + $0x2a2] sm:$0xff]
    %v6376 = vld [vmem:[%s5038 + $0x2aa] sm:$0xff]
    %v6377 = vld [vmem:[%s5038 + $0x2ba] sm:$0xff]
    %v6378 = vld [vmem:[%s5038 + $0x2c2] sm:$0xff]
    %v6379 = vld [vmem:[%s5038 + $0x2d2] sm:$0xff]
    %v6380 = vld [vmem:[%s5038 + $0x2da] sm:$0xff]
    %v6381 = vld [vmem:[%s5038 + $0x2ea] sm:$0xff]
    %v6382 = vld [vmem:[%s5038 + $0x2f2] sm:$0xff]
    %v6383 = vld [vmem:[%s5038 + $0x302] sm:$0xff]
    %v6384 = vld [vmem:[%s5038 + $0x30a] sm:$0xff]
    %v6385 = vld [vmem:[%s5038 + $0x31a] sm:$0xff]
    %v6386 = vld [vmem:[%s5038 + $0x322] sm:$0xff]
    %v6387 = vld [vmem:[#allocation3] sm:$0xff]
    %v6388 = vld [vmem:[#allocation3 + $0x8] sm:$0xff]
    %v6389 = vld [vmem:[#allocation3 + $0x10] sm:$0xff]
    %v6390 = vld [vmem:[#allocation3 + $0x18] sm:$0xff]
    %v6391 = vld [vmem:[#allocation3 + $0x20] sm:$0xff]
    %v6392 = vld [vmem:[#allocation3 + $0x28] sm:$0xff]
    %v6393 = vld [vmem:[#allocation3 + $0x30] sm:$0xff]
    %v6394 = vld [vmem:[#allocation3 + $0x38] sm:$0xff]
    %v6395 = vld [vmem:[#allocation3 + $0x40] sm:$0xff]
    %v6396 = vld [vmem:[#allocation3 + $0x48] sm:$0xff]
    %v6397 = vld [vmem:[#allocation3 + $0x50] sm:$0xff]
    %v6398 = vld [vmem:[#allocation3 + $0x58] sm:$0xff]
    %v6399 = vld [vmem:[#allocation3 + $0x60] sm:$0xff]
    %v6400 = vld [vmem:[#allocation3 + $0x68] sm:$0xff]
    %v6401 = vld [vmem:[#allocation3 + $0x70] sm:$0xff]
    %v6402 = vld [vmem:[#allocation3 + $0x78] sm:$0xff]
    %v6403 = vld [vmem:[#allocation3 + $0x80] sm:$0xff]
    %v6404 = vld [vmem:[#allocation3 + $0x88] sm:$0xff]
    %v6405 = vld [vmem:[#allocation3 + $0x90] sm:$0xff]
    %v6406 = vld [vmem:[#allocation3 + $0x98] sm:$0xff]
    %v6407 = vld [vmem:[#allocation3 + $0xa0] sm:$0xff]
    %v6408 = vld [vmem:[#allocation3 + $0xa8] sm:$0xff]
    %v6409 = vld [vmem:[#allocation3 + $0xb0] sm:$0xff]
    %v6410 = vld [vmem:[#allocation3 + $0xb8] sm:$0xff]
    %v6411 = vld [vmem:[#allocation3 + $0xc0] sm:$0xff]
    %v6412 = vld [vmem:[#allocation3 + $0xc8] sm:$0xff]
    %v6413 = vld [vmem:[#allocation3 + $0xd0] sm:$0xff]
    %v6414 = vld [vmem:[#allocation3 + $0xd8] sm:$0xff]
    %v6415 = vld [vmem:[#allocation3 + $0xe0] sm:$0xff]
    %v6416 = vld [vmem:[#allocation3 + $0xe8] sm:$0xff]
    %v6417 = vld [vmem:[#allocation3 + $0xf0] sm:$0xff]
    %v6418 = vld [vmem:[#allocation3 + $0xf8] sm:$0xff]
    %v6419 = vld [vmem:[#allocation3 + $0x100] sm:$0xff]
    %v6420 = vld [vmem:[#allocation3 + $0x108] sm:$0xff]
    %v6421 = vld [vmem:[#allocation3 + $0x110] sm:$0xff]
    %v6422 = vld [vmem:[#allocation3 + $0x118] sm:$0xff]
    %v6423 = vld [vmem:[#allocation3 + $0x120] sm:$0xff]
    %v6424 = vld [vmem:[#allocation3 + $0x128] sm:$0xff]
    %v6425 = vld [vmem:[#allocation3 + $0x130] sm:$0xff]
    %v6426 = vld [vmem:[#allocation3 + $0x138] sm:$0xff]
    %v6427 = vld [vmem:[#allocation3 + $0x140] sm:$0xff]
    %v6428 = vld [vmem:[#allocation3 + $0x148] sm:$0xff]
    %v6429 = vld [vmem:[#allocation3 + $0x150] sm:$0xff]
    %v6430 = vld [vmem:[#allocation3 + $0x158] sm:$0xff]
    %v6431 = vld [vmem:[#allocation3 + $0x160] sm:$0xff]
    %v6432 = vld [vmem:[#allocation3 + $0x168] sm:$0xff]
    %v6433 = vld [vmem:[#allocation3 + $0x170] sm:$0xff]
    %v6434 = vld [vmem:[#allocation3 + $0x178] sm:$0xff]
    %v6435 = vld [vmem:[#allocation3 + $0x180] sm:$0xff]
    %v6436 = vld [vmem:[#allocation3 + $0x188] sm:$0xff]
    %v6437 = vld [vmem:[#allocation3 + $0x190] sm:$0xff]
    %v6438 = vld [vmem:[#allocation3 + $0x198] sm:$0xff]
    %v6439 = vld [vmem:[#allocation3 + $0x1a0] sm:$0xff]
    %v6440 = vld [vmem:[#allocation3 + $0x1a8] sm:$0xff]
    %v6441 = vld [vmem:[#allocation3 + $0x1b0] sm:$0xff]
    %v6442 = vld [vmem:[#allocation3 + $0x1b8] sm:$0xff]
    %v6443 = vld [vmem:[#allocation3 + $0x1c0] sm:$0xff]
    %v6444 = vld [vmem:[#allocation3 + $0x1c8] sm:$0xff]
    %v6445 = vld [vmem:[#allocation3 + $0x1d0] sm:$0xff]
    %v6446 = vld [vmem:[#allocation3 + $0x1d8] sm:$0xff]
    %v6447 = vld [vmem:[#allocation3 + $0x1e0] sm:$0xff]
    %v6448 = vld [vmem:[#allocation3 + $0x1e8] sm:$0xff]
    %v6449 = vld [vmem:[#allocation3 + $0x1f0] sm:$0xff]
    %v6450 = vld [vmem:[#allocation3 + $0x1f8] sm:$0xff]
    %v6451 = vpack.c.bf16 %v6324, %v6323
    %v6452 = vpack.c.bf16 %v6326, %v6325
    %v6453 = vpack.c.bf16 %v6328, %v6327
    %v6454 = vpack.c.bf16 %v6330, %v6329
    %v6455 = vpack.c.bf16 %v6332, %v6331
    %v6456 = vpack.c.bf16 %v6334, %v6333
    %v6457 = vpack.c.bf16 %v6336, %v6335
    %v6458 = vpack.c.bf16 %v6338, %v6337
    %v6459 = vpack.c.bf16 %v6340, %v6339
    %v6460 = vpack.c.bf16 %v6342, %v6341
    %v6461 = vpack.c.bf16 %v6344, %v6343
    %v6462 = vpack.c.bf16 %v6346, %v6345
    %v6463 = vpack.c.bf16 %v6348, %v6347
    %v6464 = vpack.c.bf16 %v6350, %v6349
    %v6465 = vpack.c.bf16 %v6352, %v6351
    %v6466 = vpack.c.bf16 %v6354, %v6353
    %v6467 = vpack.c.bf16 %v6356, %v6355
    %v6468 = vpack.c.bf16 %v6358, %v6357
    %v6469 = vpack.c.bf16 %v6360, %v6359
    %v6470 = vpack.c.bf16 %v6362, %v6361
    %v6471 = vpack.c.bf16 %v6364, %v6363
    %v6472 = vpack.c.bf16 %v6366, %v6365
    %v6473 = vpack.c.bf16 %v6368, %v6367
    %v6474 = vpack.c.bf16 %v6370, %v6369
    %v6475 = vpack.c.bf16 %v6372, %v6371
    %v6476 = vpack.c.bf16 %v6374, %v6373
    %v6477 = vpack.c.bf16 %v6376, %v6375
    %v6478 = vpack.c.bf16 %v6378, %v6377
    %v6479 = vpack.c.bf16 %v6380, %v6379
    %v6480 = vpack.c.bf16 %v6382, %v6381
    %v6481 = vpack.c.bf16 %v6384, %v6383
    %v6482 = vpack.c.bf16 %v6386, %v6385
    %s6483 = scalar_lea.vmem [#allocation9], 512
    %v6484 = vld [vmem:[%s6483] sm:$0xf]
    %v6485 = vld [vmem:[%s6483 + $0x4] sm:$0xf]
    %v6486 = vld [vmem:[%s6483 + $0x8] sm:$0xf]
    %v6487 = vld [vmem:[%s6483 + $0xc] sm:$0xf]
    %v6488 = vld [vmem:[%s6483 + $0x10] sm:$0xf]
    %v6489 = vld [vmem:[%s6483 + $0x14] sm:$0xf]
    %v6490 = vld [vmem:[%s6483 + $0x18] sm:$0xf]
    %v6491 = vld [vmem:[%s6483 + $0x1c] sm:$0xf]
    %v6492 = vld [vmem:[%s6483 + $0x20] sm:$0xf]
    %v6493 = vld [vmem:[%s6483 + $0x24] sm:$0xf]
    %v6494 = vld [vmem:[%s6483 + $0x28] sm:$0xf]
    %v6495 = vld [vmem:[%s6483 + $0x2c] sm:$0xf]
    %v6496 = vld [vmem:[%s6483 + $0x30] sm:$0xf]
    %v6497 = vld [vmem:[%s6483 + $0x34] sm:$0xf]
    %v6498 = vld [vmem:[%s6483 + $0x38] sm:$0xf]
    %v6499 = vld [vmem:[%s6483 + $0x3c] sm:$0xf]
    %v6516 = vunpack.c.l.b16 %v6484
    %v6517 = vunpack.c.l.b16 %v6485
    %v6518 = vunpack.c.l.b16 %v6486
    %v6519 = vunpack.c.l.b16 %v6487
    %v6520 = vunpack.c.l.b16 %v6488
    %v6521 = vunpack.c.l.b16 %v6489
    %v6522 = vunpack.c.l.b16 %v6490
    %v6523 = vunpack.c.l.b16 %v6491
    %v6524 = vunpack.c.l.b16 %v6492
    %v6525 = vunpack.c.l.b16 %v6493
    %v6526 = vunpack.c.l.b16 %v6494
    %v6527 = vunpack.c.l.b16 %v6495
    %v6528 = vunpack.c.l.b16 %v6496
    %v6529 = vunpack.c.l.b16 %v6497
    %v6530 = vunpack.c.l.b16 %v6498
    %v6531 = vunpack.c.l.b16 %v6499
    %v6532 = vpack.c.b16 %v6517, %v6516
    %v6533 = vpack.c.b16 %v6519, %v6518
    %v6534 = vpack.c.b16 %v6521, %v6520
    %v6535 = vpack.c.b16 %v6523, %v6522
    %v6536 = vpack.c.b16 %v6525, %v6524
    %v6537 = vpack.c.b16 %v6527, %v6526
    %v6538 = vpack.c.b16 %v6529, %v6528
    %v6539 = vpack.c.b16 %v6531, %v6530
    %6548 = vmatprep.subr.bf16.mxu0 0
    %6549 = vmatpush1.bf16.msra.mxu0 %v6532
    %6550 = vmatprep.subr.bf16.mxu0 0
    %6551 = vmatpush1.bf16.msra.mxu0 %v6533
    %6552 = vmatprep.subr.bf16.mxu0 0
    %6553 = vmatpush1.bf16.msra.mxu0 %v6534
    %6554 = vmatprep.subr.bf16.mxu0 0
    %6555 = vmatpush1.bf16.msra.mxu0 %v6535
    %6556 = vmatprep.subr.bf16.mxu0 0
    %6557 = vmatpush1.bf16.msra.mxu0 %v6536
    %6558 = vmatprep.subr.bf16.mxu0 0
    %6559 = vmatpush1.bf16.msra.mxu0 %v6537
    %6560 = vmatprep.subr.bf16.mxu0 0
    %6561 = vmatpush1.bf16.msra.mxu0 %v6538
    %6562 = vmatprep.subr.bf16.mxu0 0
    %6563 = vmatpush1.bf16.msra.mxu0 %v6539
    %6564 = vmatprep.subr.bf16.mxu0 0
    %6565 = vmatpush1.bf16.msra.mxu0 0
    %6566 = vmatprep.subr.bf16.mxu0 0
    %6567 = vmatpush1.bf16.msra.mxu0 0
    %6568 = vmatprep.subr.bf16.mxu0 0
    %6569 = vmatpush1.bf16.msra.mxu0 0
    %6570 = vmatprep.subr.bf16.mxu0 0
    %6571 = vmatpush1.bf16.msra.mxu0 0
    %6572 = vmatprep.subr.bf16.mxu0 0
    %6573 = vmatpush1.bf16.msra.mxu0 0
    %6574 = vmatprep.subr.bf16.mxu0 0
    %6575 = vmatpush1.bf16.msra.mxu0 0
    %6576 = vmatprep.subr.bf16.mxu0 0
    %6577 = vmatpush1.bf16.msra.mxu0 0
    %6578 = vmatprep.subr.bf16.mxu0 0
    %6579 = vmatpush1.bf16.msra.mxu0 0
    %6580 = vmatprep.mubr.bf16.mxu0 0
    %6581 = vmatmul.mubr.bf16.gmra.mrb[0].mxu0 %v6451
    %v6582 = vpop.f32.mrb[0].mxu0
    %v6583 = vadd.f32 0.0, %v6582
    %v6584 = vpop.f32.mrb[0].mxu0
    %v6585 = vpop.f32.mrb[0].mxu0
    %v6586 = vadd.f32 0.0, %v6585
    %v6587 = vpop.f32.mrb[0].mxu0
    %6588 = vmatprep.mubr.bf16.mxu0 0
    %6589 = vmatmul.mubr.bf16.gmra.mrb[0].mxu0 %v6452
    %v6590 = vpop.f32.mrb[0].mxu0
    %v6591 = vadd.f32 0.0, %v6590
    %v6592 = vpop.f32.mrb[0].mxu0
    %v6593 = vpop.f32.mrb[0].mxu0
    %v6594 = vadd.f32 0.0, %v6593
    %v6595 = vpop.f32.mrb[0].mxu0
    %6596 = vmatprep.mubr.bf16.mxu0 0
    %6597 = vmatmul.mubr.bf16.gmra.mrb[0].mxu0 %v6453
    %v6598 = vpop.f32.mrb[0].mxu0
    %v6599 = vadd.f32 0.0, %v6598
    %v6600 = vpop.f32.mrb[0].mxu0
    %v6601 = vpop.f32.mrb[0].mxu0
    %v6602 = vadd.f32 0.0, %v6601
    %v6603 = vpop.f32.mrb[0].mxu0
    %6604 = vmatprep.mubr.bf16.mxu0 0
    %6605 = vmatmul.mubr.bf16.gmra.mrb[0].mxu0 %v6454
    %v6606 = vpop.f32.mrb[0].mxu0
    %v6607 = vadd.f32 0.0, %v6606
    %v6608 = vpop.f32.mrb[0].mxu0
    %v6609 = vpop.f32.mrb[0].mxu0
    %v6610 = vadd.f32 0.0, %v6609
    %v6611 = vpop.f32.mrb[0].mxu0
    %6612 = vmatprep.mubr.bf16.mxu0 0
    %6613 = vmatmul.mubr.bf16.gmra.mrb[0].mxu0 %v6455
    %v6614 = vpop.f32.mrb[0].mxu0
    %v6615 = vadd.f32 0.0, %v6614
    %v6616 = vpop.f32.mrb[0].mxu0
    %v6617 = vpop.f32.mrb[0].mxu0
    %v6618 = vadd.f32 0.0, %v6617
    %v6619 = vpop.f32.mrb[0].mxu0
    %6620 = vmatprep.mubr.bf16.mxu0 0
    %6621 = vmatmul.mubr.bf16.gmra.mrb[0].mxu0 %v6456
    %v6622 = vpop.f32.mrb[0].mxu0
    %v6623 = vadd.f32 0.0, %v6622
    %v6624 = vpop.f32.mrb[0].mxu0
    %v6625 = vpop.f32.mrb[0].mxu0
    %v6626 = vadd.f32 0.0, %v6625
    %v6627 = vpop.f32.mrb[0].mxu0
    %6628 = vmatprep.mubr.bf16.mxu0 0
    %6629 = vmatmul.mubr.bf16.gmra.mrb[0].mxu0 %v6457
    %v6630 = vpop.f32.mrb[0].mxu0
    %v6631 = vadd.f32 0.0, %v6630
    %v6632 = vpop.f32.mrb[0].mxu0
    %v6633 = vpop.f32.mrb[0].mxu0
    %v6634 = vadd.f32 0.0, %v6633
    %v6635 = vpop.f32.mrb[0].mxu0
    %6636 = vmatprep.mubr.bf16.mxu0 0
    %6637 = vmatmul.mubr.bf16.gmra.mrb[0].mxu0 %v6458
    %v6638 = vpop.f32.mrb[0].mxu0
    %v6639 = vadd.f32 0.0, %v6638
    %v6640 = vpop.f32.mrb[0].mxu0
    %v6641 = vpop.f32.mrb[0].mxu0
    %v6642 = vadd.f32 0.0, %v6641
    %v6643 = vpop.f32.mrb[0].mxu0
    %6644 = vmatprep.mubr.bf16.mxu0 0
    %6645 = vmatmul.mubr.bf16.gmra.mrb[0].mxu0 %v6459
    %v6646 = vpop.f32.mrb[0].mxu0
    %v6647 = vadd.f32 0.0, %v6646
    %v6648 = vpop.f32.mrb[0].mxu0
    %v6649 = vpop.f32.mrb[0].mxu0
    %v6650 = vadd.f32 0.0, %v6649
    %v6651 = vpop.f32.mrb[0].mxu0
    %6652 = vmatprep.mubr.bf16.mxu0 0
    %6653 = vmatmul.mubr.bf16.gmra.mrb[0].mxu0 %v6460
    %v6654 = vpop.f32.mrb[0].mxu0
    %v6655 = vadd.f32 0.0, %v6654
    %v6656 = vpop.f32.mrb[0].mxu0
    %v6657 = vpop.f32.mrb[0].mxu0
    %v6658 = vadd.f32 0.0, %v6657
    %v6659 = vpop.f32.mrb[0].mxu0
    %6660 = vmatprep.mubr.bf16.mxu0 0
    %6661 = vmatmul.mubr.bf16.gmra.mrb[0].mxu0 %v6461
    %v6662 = vpop.f32.mrb[0].mxu0
    %v6663 = vadd.f32 0.0, %v6662
    %v6664 = vpop.f32.mrb[0].mxu0
    %v6665 = vpop.f32.mrb[0].mxu0
    %v6666 = vadd.f32 0.0, %v6665
    %v6667 = vpop.f32.mrb[0].mxu0
    %6668 = vmatprep.mubr.bf16.mxu0 0
    %6669 = vmatmul.mubr.bf16.gmra.mrb[0].mxu0 %v6462
    %v6670 = vpop.f32.mrb[0].mxu0
    %v6671 = vadd.f32 0.0, %v6670
    %v6672 = vpop.f32.mrb[0].mxu0
    %v6673 = vpop.f32.mrb[0].mxu0
    %v6674 = vadd.f32 0.0, %v6673
    %v6675 = vpop.f32.mrb[0].mxu0
    %6676 = vmatprep.mubr.bf16.mxu0 0
    %6677 = vmatmul.mubr.bf16.gmra.mrb[0].mxu0 %v6463
    %v6678 = vpop.f32.mrb[0].mxu0
    %v6679 = vadd.f32 0.0, %v6678
    %v6680 = vpop.f32.mrb[0].mxu0
    %v6681 = vpop.f32.mrb[0].mxu0
    %v6682 = vadd.f32 0.0, %v6681
    %v6683 = vpop.f32.mrb[0].mxu0
    %6684 = vmatprep.mubr.bf16.mxu0 0
    %6685 = vmatmul.mubr.bf16.gmra.mrb[0].mxu0 %v6464
    %v6686 = vpop.f32.mrb[0].mxu0
    %v6687 = vadd.f32 0.0, %v6686
    %v6688 = vpop.f32.mrb[0].mxu0
    %v6689 = vpop.f32.mrb[0].mxu0
    %v6690 = vadd.f32 0.0, %v6689
    %v6691 = vpop.f32.mrb[0].mxu0
    %6692 = vmatprep.mubr.bf16.mxu0 0
    %6693 = vmatmul.mubr.bf16.gmra.mrb[0].mxu0 %v6465
    %v6694 = vpop.f32.mrb[0].mxu0
    %v6695 = vadd.f32 0.0, %v6694
    %v6696 = vpop.f32.mrb[0].mxu0
    %v6697 = vpop.f32.mrb[0].mxu0
    %v6698 = vadd.f32 0.0, %v6697
    %v6699 = vpop.f32.mrb[0].mxu0
    %6700 = vmatprep.mubr.bf16.mxu0 0
    %6701 = vmatmul.mubr.bf16.gmra.mrb[0].mxu0 %v6466
    %v6702 = vpop.f32.mrb[0].mxu0
    %v6703 = vadd.f32 0.0, %v6702
    %v6704 = vpop.f32.mrb[0].mxu0
    %v6705 = vpop.f32.mrb[0].mxu0
    %v6706 = vadd.f32 0.0, %v6705
    %v6707 = vpop.f32.mrb[0].mxu0
    %6708 = vmatprep.mubr.bf16.mxu0 0
    %6709 = vmatmul.mubr.bf16.gmra.mrb[0].mxu0 %v6467
    %v6710 = vpop.f32.mrb[0].mxu0
    %v6711 = vadd.f32 0.0, %v6710
    %v6712 = vpop.f32.mrb[0].mxu0
    %v6713 = vpop.f32.mrb[0].mxu0
    %v6714 = vadd.f32 0.0, %v6713
    %v6715 = vpop.f32.mrb[0].mxu0
    %6716 = vmatprep.mubr.bf16.mxu0 0
    %6717 = vmatmul.mubr.bf16.gmra.mrb[0].mxu0 %v6468
    %v6718 = vpop.f32.mrb[0].mxu0
    %v6719 = vadd.f32 0.0, %v6718
    %v6720 = vpop.f32.mrb[0].mxu0
    %v6721 = vpop.f32.mrb[0].mxu0
    %v6722 = vadd.f32 0.0, %v6721
    %v6723 = vpop.f32.mrb[0].mxu0
    %6724 = vmatprep.mubr.bf16.mxu0 0
    %6725 = vmatmul.mubr.bf16.gmra.mrb[0].mxu0 %v6469
    %v6726 = vpop.f32.mrb[0].mxu0
    %v6727 = vadd.f32 0.0, %v6726
    %v6728 = vpop.f32.mrb[0].mxu0
    %v6729 = vpop.f32.mrb[0].mxu0
    %v6730 = vadd.f32 0.0, %v6729
    %v6731 = vpop.f32.mrb[0].mxu0
    %6732 = vmatprep.mubr.bf16.mxu0 0
    %6733 = vmatmul.mubr.bf16.gmra.mrb[0].mxu0 %v6470
    %v6734 = vpop.f32.mrb[0].mxu0
    %v6735 = vadd.f32 0.0, %v6734
    %v6736 = vpop.f32.mrb[0].mxu0
    %v6737 = vpop.f32.mrb[0].mxu0
    %v6738 = vadd.f32 0.0, %v6737
    %v6739 = vpop.f32.mrb[0].mxu0
    %6740 = vmatprep.mubr.bf16.mxu0 0
    %6741 = vmatmul.mubr.bf16.gmra.mrb[0].mxu0 %v6471
    %v6742 = vpop.f32.mrb[0].mxu0
    %v6743 = vadd.f32 0.0, %v6742
    %v6744 = vpop.f32.mrb[0].mxu0
    %v6745 = vpop.f32.mrb[0].mxu0
    %v6746 = vadd.f32 0.0, %v6745
    %v6747 = vpop.f32.mrb[0].mxu0
    %6748 = vmatprep.mubr.bf16.mxu0 0
    %6749 = vmatmul.mubr.bf16.gmra.mrb[0].mxu0 %v6472
    %v6750 = vpop.f32.mrb[0].mxu0
    %v6751 = vadd.f32 0.0, %v6750
    %v6752 = vpop.f32.mrb[0].mxu0
    %v6753 = vpop.f32.mrb[0].mxu0
    %v6754 = vadd.f32 0.0, %v6753
    %v6755 = vpop.f32.mrb[0].mxu0
    %6756 = vmatprep.mubr.bf16.mxu0 0
    %6757 = vmatmul.mubr.bf16.gmra.mrb[0].mxu0 %v6473
    %v6758 = vpop.f32.mrb[0].mxu0
    %v6759 = vadd.f32 0.0, %v6758
    %v6760 = vpop.f32.mrb[0].mxu0
    %v6761 = vpop.f32.mrb[0].mxu0
    %v6762 = vadd.f32 0.0, %v6761
    %v6763 = vpop.f32.mrb[0].mxu0
    %6764 = vmatprep.mubr.bf16.mxu0 0
    %6765 = vmatmul.mubr.bf16.gmra.mrb[0].mxu0 %v6474
    %v6766 = vpop.f32.mrb[0].mxu0
    %v6767 = vadd.f32 0.0, %v6766
    %v6768 = vpop.f32.mrb[0].mxu0
    %v6769 = vpop.f32.mrb[0].mxu0
    %v6770 = vadd.f32 0.0, %v6769
    %v6771 = vpop.f32.mrb[0].mxu0
    %6772 = vmatprep.mubr.bf16.mxu0 0
    %6773 = vmatmul.mubr.bf16.gmra.mrb[0].mxu0 %v6475
    %v6774 = vpop.f32.mrb[0].mxu0
    %v6775 = vadd.f32 0.0, %v6774
    %v6776 = vpop.f32.mrb[0].mxu0
    %v6777 = vpop.f32.mrb[0].mxu0
    %v6778 = vadd.f32 0.0, %v6777
    %v6779 = vpop.f32.mrb[0].mxu0
    %6780 = vmatprep.mubr.bf16.mxu0 0
    %6781 = vmatmul.mubr.bf16.gmra.mrb[0].mxu0 %v6476
    %v6782 = vpop.f32.mrb[0].mxu0
    %v6783 = vadd.f32 0.0, %v6782
    %v6784 = vpop.f32.mrb[0].mxu0
    %v6785 = vpop.f32.mrb[0].mxu0
    %v6786 = vadd.f32 0.0, %v6785
    %v6787 = vpop.f32.mrb[0].mxu0
    %6788 = vmatprep.mubr.bf16.mxu0 0
    %6789 = vmatmul.mubr.bf16.gmra.mrb[0].mxu0 %v6477
    %v6790 = vpop.f32.mrb[0].mxu0
    %v6791 = vadd.f32 0.0, %v6790
    %v6792 = vpop.f32.mrb[0].mxu0
    %v6793 = vpop.f32.mrb[0].mxu0
    %v6794 = vadd.f32 0.0, %v6793
    %v6795 = vpop.f32.mrb[0].mxu0
    %6796 = vmatprep.mubr.bf16.mxu0 0
    %6797 = vmatmul.mubr.bf16.gmra.mrb[0].mxu0 %v6478
    %v6798 = vpop.f32.mrb[0].mxu0
    %v6799 = vadd.f32 0.0, %v6798
    %v6800 = vpop.f32.mrb[0].mxu0
    %v6801 = vpop.f32.mrb[0].mxu0
    %v6802 = vadd.f32 0.0, %v6801
    %v6803 = vpop.f32.mrb[0].mxu0
    %6804 = vmatprep.mubr.bf16.mxu0 0
    %6805 = vmatmul.mubr.bf16.gmra.mrb[0].mxu0 %v6479
    %v6806 = vpop.f32.mrb[0].mxu0
    %v6807 = vadd.f32 0.0, %v6806
    %v6808 = vpop.f32.mrb[0].mxu0
    %v6809 = vpop.f32.mrb[0].mxu0
    %v6810 = vadd.f32 0.0, %v6809
    %v6811 = vpop.f32.mrb[0].mxu0
    %6812 = vmatprep.mubr.bf16.mxu0 0
    %6813 = vmatmul.mubr.bf16.gmra.mrb[0].mxu0 %v6480
    %v6814 = vpop.f32.mrb[0].mxu0
    %v6815 = vadd.f32 0.0, %v6814
    %v6816 = vpop.f32.mrb[0].mxu0
    %v6817 = vpop.f32.mrb[0].mxu0
    %v6818 = vadd.f32 0.0, %v6817
    %v6819 = vpop.f32.mrb[0].mxu0
    %6820 = vmatprep.mubr.bf16.mxu0 0
    %6821 = vmatmul.mubr.bf16.gmra.mrb[0].mxu0 %v6481
    %v6822 = vpop.f32.mrb[0].mxu0
    %v6823 = vadd.f32 0.0, %v6822
    %v6824 = vpop.f32.mrb[0].mxu0
    %v6825 = vpop.f32.mrb[0].mxu0
    %v6826 = vadd.f32 0.0, %v6825
    %v6827 = vpop.f32.mrb[0].mxu0
    %6828 = vmatprep.mubr.bf16.mxu0 0
    %6829 = vmatmul.mubr.bf16.gmra.mrb[0].mxu0 %v6482
    %v6830 = vpop.f32.mrb[0].mxu0
    %v6831 = vadd.f32 0.0, %v6830
    %v6832 = vpop.f32.mrb[0].mxu0
    %v6833 = vpop.f32.mrb[0].mxu0
    %v6834 = vadd.f32 0.0, %v6833
    %v6835 = vpop.f32.mrb[0].mxu0
    %6836 = vdwg.mxu0
    %v6837 = vadd.f32 %v6387, %v6583
    %v6838 = vadd.f32 %v6388, %v6586
    %v6839 = vadd.f32 %v6389, %v6591
    %v6840 = vadd.f32 %v6390, %v6594
    %v6841 = vadd.f32 %v6391, %v6599
    %v6842 = vadd.f32 %v6392, %v6602
    %v6843 = vadd.f32 %v6393, %v6607
    %v6844 = vadd.f32 %v6394, %v6610
    %v6845 = vadd.f32 %v6395, %v6615
    %v6846 = vadd.f32 %v6396, %v6618
    %v6847 = vadd.f32 %v6397, %v6623
    %v6848 = vadd.f32 %v6398, %v6626
    %v6849 = vadd.f32 %v6399, %v6631
    %v6850 = vadd.f32 %v6400, %v6634
    %v6851 = vadd.f32 %v6401, %v6639
    %v6852 = vadd.f32 %v6402, %v6642
    %v6853 = vadd.f32 %v6403, %v6647
    %v6854 = vadd.f32 %v6404, %v6650
    %v6855 = vadd.f32 %v6405, %v6655
    %v6856 = vadd.f32 %v6406, %v6658
    %v6857 = vadd.f32 %v6407, %v6663
    %v6858 = vadd.f32 %v6408, %v6666
    %v6859 = vadd.f32 %v6409, %v6671
    %v6860 = vadd.f32 %v6410, %v6674
    %v6861 = vadd.f32 %v6411, %v6679
    %v6862 = vadd.f32 %v6412, %v6682
    %v6863 = vadd.f32 %v6413, %v6687
    %v6864 = vadd.f32 %v6414, %v6690
    %v6865 = vadd.f32 %v6415, %v6695
    %v6866 = vadd.f32 %v6416, %v6698
    %v6867 = vadd.f32 %v6417, %v6703
    %v6868 = vadd.f32 %v6418, %v6706
    %v6869 = vadd.f32 %v6419, %v6711
    %v6870 = vadd.f32 %v6420, %v6714
    %v6871 = vadd.f32 %v6421, %v6719
    %v6872 = vadd.f32 %v6422, %v6722
    %v6873 = vadd.f32 %v6423, %v6727
    %v6874 = vadd.f32 %v6424, %v6730
    %v6875 = vadd.f32 %v6425, %v6735
    %v6876 = vadd.f32 %v6426, %v6738
    %v6877 = vadd.f32 %v6427, %v6743
    %v6878 = vadd.f32 %v6428, %v6746
    %v6879 = vadd.f32 %v6429, %v6751
    %v6880 = vadd.f32 %v6430, %v6754
    %v6881 = vadd.f32 %v6431, %v6759
    %v6882 = vadd.f32 %v6432, %v6762
    %v6883 = vadd.f32 %v6433, %v6767
    %v6884 = vadd.f32 %v6434, %v6770
    %v6885 = vadd.f32 %v6435, %v6775
    %v6886 = vadd.f32 %v6436, %v6778
    %v6887 = vadd.f32 %v6437, %v6783
    %v6888 = vadd.f32 %v6438, %v6786
    %v6889 = vadd.f32 %v6439, %v6791
    %v6890 = vadd.f32 %v6440, %v6794
    %v6891 = vadd.f32 %v6441, %v6799
    %v6892 = vadd.f32 %v6442, %v6802
    %v6893 = vadd.f32 %v6443, %v6807
    %v6894 = vadd.f32 %v6444, %v6810
    %v6895 = vadd.f32 %v6445, %v6815
    %v6896 = vadd.f32 %v6446, %v6818
    %v6897 = vadd.f32 %v6447, %v6823
    %v6898 = vadd.f32 %v6448, %v6826
    %v6899 = vadd.f32 %v6449, %v6831
    %v6900 = vadd.f32 %v6450, %v6834
    %6901 = vst [vmem:[#allocation3] sm:$0xff] %v6837
    %6902 = vst [vmem:[#allocation3 + $0x8] sm:$0xff] %v6838
    %6903 = vst [vmem:[#allocation3 + $0x10] sm:$0xff] %v6839
    %6904 = vst [vmem:[#allocation3 + $0x18] sm:$0xff] %v6840
    %6905 = vst [vmem:[#allocation3 + $0x20] sm:$0xff] %v6841
    %6906 = vst [vmem:[#allocation3 + $0x28] sm:$0xff] %v6842
    %6907 = vst [vmem:[#allocation3 + $0x30] sm:$0xff] %v6843
    %6908 = vst [vmem:[#allocation3 + $0x38] sm:$0xff] %v6844
    %6909 = vst [vmem:[#allocation3 + $0x40] sm:$0xff] %v6845
    %6910 = vst [vmem:[#allocation3 + $0x48] sm:$0xff] %v6846
    %6911 = vst [vmem:[#allocation3 + $0x50] sm:$0xff] %v6847
    %6912 = vst [vmem:[#allocation3 + $0x58] sm:$0xff] %v6848
    %6913 = vst [vmem:[#allocation3 + $0x60] sm:$0xff] %v6849
    %6914 = vst [vmem:[#allocation3 + $0x68] sm:$0xff] %v6850
    %6915 = vst [vmem:[#allocation3 + $0x70] sm:$0xff] %v6851
    %6916 = vst [vmem:[#allocation3 + $0x78] sm:$0xff] %v6852
    %6917 = vst [vmem:[#allocation3 + $0x80] sm:$0xff] %v6853
    %6918 = vst [vmem:[#allocation3 + $0x88] sm:$0xff] %v6854
    %6919 = vst [vmem:[#allocation3 + $0x90] sm:$0xff] %v6855
    %6920 = vst [vmem:[#allocation3 + $0x98] sm:$0xff] %v6856
    %6921 = vst [vmem:[#allocation3 + $0xa0] sm:$0xff] %v6857
    %6922 = vst [vmem:[#allocation3 + $0xa8] sm:$0xff] %v6858
    %6923 = vst [vmem:[#allocation3 + $0xb0] sm:$0xff] %v6859
    %6924 = vst [vmem:[#allocation3 + $0xb8] sm:$0xff] %v6860
    %6925 = vst [vmem:[#allocation3 + $0xc0] sm:$0xff] %v6861
    %6926 = vst [vmem:[#allocation3 + $0xc8] sm:$0xff] %v6862
    %6927 = vst [vmem:[#allocation3 + $0xd0] sm:$0xff] %v6863
    %6928 = vst [vmem:[#allocation3 + $0xd8] sm:$0xff] %v6864
    %6929 = vst [vmem:[#allocation3 + $0xe0] sm:$0xff] %v6865
    %6930 = vst [vmem:[#allocation3 + $0xe8] sm:$0xff] %v6866
    %6931 = vst [vmem:[#allocation3 + $0xf0] sm:$0xff] %v6867
    %6932 = vst [vmem:[#allocation3 + $0xf8] sm:$0xff] %v6868
    %6933 = vst [vmem:[#allocation3 + $0x100] sm:$0xff] %v6869
    %6934 = vst [vmem:[#allocation3 + $0x108] sm:$0xff] %v6870
    %6935 = vst [vmem:[#allocation3 + $0x110] sm:$0xff] %v6871
    %6936 = vst [vmem:[#allocation3 + $0x118] sm:$0xff] %v6872
    %6937 = vst [vmem:[#allocation3 + $0x120] sm:$0xff] %v6873
    %6938 = vst [vmem:[#allocation3 + $0x128] sm:$0xff] %v6874
    %6939 = vst [vmem:[#allocation3 + $0x130] sm:$0xff] %v6875
    %6940 = vst [vmem:[#allocation3 + $0x138] sm:$0xff] %v6876
    %6941 = vst [vmem:[#allocation3 + $0x140] sm:$0xff] %v6877
    %6942 = vst [vmem:[#allocation3 + $0x148] sm:$0xff] %v6878
    %6943 = vst [vmem:[#allocation3 + $0x150] sm:$0xff] %v6879
    %6944 = vst [vmem:[#allocation3 + $0x158] sm:$0xff] %v6880
    %6945 = vst [vmem:[#allocation3 + $0x160] sm:$0xff] %v6881
    %6946 = vst [vmem:[#allocation3 + $0x168] sm:$0xff] %v6882
    %6947 = vst [vmem:[#allocation3 + $0x170] sm:$0xff] %v6883
    %6948 = vst [vmem:[#allocation3 + $0x178] sm:$0xff] %v6884
    %6949 = vst [vmem:[#allocation3 + $0x180] sm:$0xff] %v6885
    %6950 = vst [vmem:[#allocation3 + $0x188] sm:$0xff] %v6886
    %6951 = vst [vmem:[#allocation3 + $0x190] sm:$0xff] %v6887
    %6952 = vst [vmem:[#allocation3 + $0x198] sm:$0xff] %v6888
    %6953 = vst [vmem:[#allocation3 + $0x1a0] sm:$0xff] %v6889
    %6954 = vst [vmem:[#allocation3 + $0x1a8] sm:$0xff] %v6890
    %6955 = vst [vmem:[#allocation3 + $0x1b0] sm:$0xff] %v6891
    %6956 = vst [vmem:[#allocation3 + $0x1b8] sm:$0xff] %v6892
    %6957 = vst [vmem:[#allocation3 + $0x1c0] sm:$0xff] %v6893
    %6958 = vst [vmem:[#allocation3 + $0x1c8] sm:$0xff] %v6894
    %6959 = vst [vmem:[#allocation3 + $0x1d0] sm:$0xff] %v6895
    %6960 = vst [vmem:[#allocation3 + $0x1d8] sm:$0xff] %v6896
    %6961 = vst [vmem:[#allocation3 + $0x1e0] sm:$0xff] %v6897
    %6962 = vst [vmem:[#allocation3 + $0x1e8] sm:$0xff] %v6898
    %6963 = vst [vmem:[#allocation3 + $0x1f0] sm:$0xff] %v6899
    %6964 = vst [vmem:[#allocation3 + $0x1f8] sm:$0xff] %v6900
    %v6965 = vld [vmem:[#allocation3] sm:$0xff]
    %v6966 = vld [vmem:[#allocation3 + $0x8] sm:$0xff]
    %v6967 = vld [vmem:[#allocation3 + $0x10] sm:$0xff]
    %v6968 = vld [vmem:[#allocation3 + $0x18] sm:$0xff]
    %v6969 = vld [vmem:[#allocation3 + $0x20] sm:$0xff]
    %v6970 = vld [vmem:[#allocation3 + $0x28] sm:$0xff]
    %v6971 = vld [vmem:[#allocation3 + $0x30] sm:$0xff]
    %v6972 = vld [vmem:[#allocation3 + $0x38] sm:$0xff]
    %v6973 = vld [vmem:[#allocation3 + $0x40] sm:$0xff]
    %v6974 = vld [vmem:[#allocation3 + $0x48] sm:$0xff]
    %v6975 = vld [vmem:[#allocation3 + $0x50] sm:$0xff]
    %v6976 = vld [vmem:[#allocation3 + $0x58] sm:$0xff]
    %v6977 = vld [vmem:[#allocation3 + $0x60] sm:$0xff]
    %v6978 = vld [vmem:[#allocation3 + $0x68] sm:$0xff]
    %v6979 = vld [vmem:[#allocation3 + $0x70] sm:$0xff]
    %v6980 = vld [vmem:[#allocation3 + $0x78] sm:$0xff]
    %v6981 = vld [vmem:[#allocation3 + $0x80] sm:$0xff]
    %v6982 = vld [vmem:[#allocation3 + $0x88] sm:$0xff]
    %v6983 = vld [vmem:[#allocation3 + $0x90] sm:$0xff]
    %v6984 = vld [vmem:[#allocation3 + $0x98] sm:$0xff]
    %v6985 = vld [vmem:[#allocation3 + $0xa0] sm:$0xff]
    %v6986 = vld [vmem:[#allocation3 + $0xa8] sm:$0xff]
    %v6987 = vld [vmem:[#allocation3 + $0xb0] sm:$0xff]
    %v6988 = vld [vmem:[#allocation3 + $0xb8] sm:$0xff]
    %v6989 = vld [vmem:[#allocation3 + $0xc0] sm:$0xff]
    %v6990 = vld [vmem:[#allocation3 + $0xc8] sm:$0xff]
    %v6991 = vld [vmem:[#allocation3 + $0xd0] sm:$0xff]
    %v6992 = vld [vmem:[#allocation3 + $0xd8] sm:$0xff]
    %v6993 = vld [vmem:[#allocation3 + $0xe0] sm:$0xff]
    %v6994 = vld [vmem:[#allocation3 + $0xe8] sm:$0xff]
    %v6995 = vld [vmem:[#allocation3 + $0xf0] sm:$0xff]
    %v6996 = vld [vmem:[#allocation3 + $0xf8] sm:$0xff]
    %v6997 = vld [vmem:[#allocation3 + $0x100] sm:$0xff]
    %v6998 = vld [vmem:[#allocation3 + $0x108] sm:$0xff]
    %v6999 = vld [vmem:[#allocation3 + $0x110] sm:$0xff]
    %v7000 = vld [vmem:[#allocation3 + $0x118] sm:$0xff]
    %v7001 = vld [vmem:[#allocation3 + $0x120] sm:$0xff]
    %v7002 = vld [vmem:[#allocation3 + $0x128] sm:$0xff]
    %v7003 = vld [vmem:[#allocation3 + $0x130] sm:$0xff]
    %v7004 = vld [vmem:[#allocation3 + $0x138] sm:$0xff]
    %v7005 = vld [vmem:[#allocation3 + $0x140] sm:$0xff]
    %v7006 = vld [vmem:[#allocation3 + $0x148] sm:$0xff]
    %v7007 = vld [vmem:[#allocation3 + $0x150] sm:$0xff]
    %v7008 = vld [vmem:[#allocation3 + $0x158] sm:$0xff]
    %v7009 = vld [vmem:[#allocation3 + $0x160] sm:$0xff]
    %v7010 = vld [vmem:[#allocation3 + $0x168] sm:$0xff]
    %v7011 = vld [vmem:[#allocation3 + $0x170] sm:$0xff]
    %v7012 = vld [vmem:[#allocation3 + $0x178] sm:$0xff]
    %v7013 = vld [vmem:[#allocation3 + $0x180] sm:$0xff]
    %v7014 = vld [vmem:[#allocation3 + $0x188] sm:$0xff]
    %v7015 = vld [vmem:[#allocation3 + $0x190] sm:$0xff]
    %v7016 = vld [vmem:[#allocation3 + $0x198] sm:$0xff]
    %v7017 = vld [vmem:[#allocation3 + $0x1a0] sm:$0xff]
    %v7018 = vld [vmem:[#allocation3 + $0x1a8] sm:$0xff]
    %v7019 = vld [vmem:[#allocation3 + $0x1b0] sm:$0xff]
    %v7020 = vld [vmem:[#allocation3 + $0x1b8] sm:$0xff]
    %v7021 = vld [vmem:[#allocation3 + $0x1c0] sm:$0xff]
    %v7022 = vld [vmem:[#allocation3 + $0x1c8] sm:$0xff]
    %v7023 = vld [vmem:[#allocation3 + $0x1d0] sm:$0xff]
    %v7024 = vld [vmem:[#allocation3 + $0x1d8] sm:$0xff]
    %v7025 = vld [vmem:[#allocation3 + $0x1e0] sm:$0xff]
    %v7026 = vld [vmem:[#allocation3 + $0x1e8] sm:$0xff]
    %v7027 = vld [vmem:[#allocation3 + $0x1f0] sm:$0xff]
    %v7028 = vld [vmem:[#allocation3 + $0x1f8] sm:$0xff]
    %v7029 = vld [vmem:[#allocation12 + $0x2] sm:$0x1]
    %v7030 = vld [vmem:[#allocation12 + $0x3] sm:$0x1]
    %v7031 = vadd.f32 %v6965, %v6966
    %v7032 = vadd.f32 %v7031, %v6967
    %v7033 = vadd.f32 %v7032, %v6968
    %v7034 = vadd.f32 %v7033, %v6969
    %v7035 = vadd.f32 %v7034, %v6970
    %v7036 = vadd.f32 %v7035, %v6971
    %v7037 = vadd.f32 %v7036, %v6972
    %v7038 = vadd.f32 %v7037, %v6973
    %v7039 = vadd.f32 %v7038, %v6974
    %v7040 = vadd.f32 %v7039, %v6975
    %v7041 = vadd.f32 %v7040, %v6976
    %v7042 = vadd.f32 %v7041, %v6977
    %v7043 = vadd.f32 %v7042, %v6978
    %v7044 = vadd.f32 %v7043, %v6979
    %v7045 = vadd.f32 %v7044, %v6980
    %v7046 = vadd.f32 %v7045, %v6981
    %v7047 = vadd.f32 %v7046, %v6982
    %v7048 = vadd.f32 %v7047, %v6983
    %v7049 = vadd.f32 %v7048, %v6984
    %v7050 = vadd.f32 %v7049, %v6985
    %v7051 = vadd.f32 %v7050, %v6986
    %v7052 = vadd.f32 %v7051, %v6987
    %v7053 = vadd.f32 %v7052, %v6988
    %v7054 = vadd.f32 %v7053, %v6989
    %v7055 = vadd.f32 %v7054, %v6990
    %v7056 = vadd.f32 %v7055, %v6991
    %v7057 = vadd.f32 %v7056, %v6992
    %v7058 = vadd.f32 %v7057, %v6993
    %v7059 = vadd.f32 %v7058, %v6994
    %v7060 = vadd.f32 %v7059, %v6995
    %v7061 = vadd.f32 %v7060, %v6996
    %v7062 = vadd.f32 %v7061, %v6997
    %v7063 = vadd.f32 %v7062, %v6998
    %v7064 = vadd.f32 %v7063, %v6999
    %v7065 = vadd.f32 %v7064, %v7000
    %v7066 = vadd.f32 %v7065, %v7001
    %v7067 = vadd.f32 %v7066, %v7002
    %v7068 = vadd.f32 %v7067, %v7003
    %v7069 = vadd.f32 %v7068, %v7004
    %v7070 = vadd.f32 %v7069, %v7005
    %v7071 = vadd.f32 %v7070, %v7006
    %v7072 = vadd.f32 %v7071, %v7007
    %v7073 = vadd.f32 %v7072, %v7008
    %v7074 = vadd.f32 %v7073, %v7009
    %v7075 = vadd.f32 %v7074, %v7010
    %v7076 = vadd.f32 %v7075, %v7011
    %v7077 = vadd.f32 %v7076, %v7012
    %v7078 = vadd.f32 %v7077, %v7013
    %v7079 = vadd.f32 %v7078, %v7014
    %v7080 = vadd.f32 %v7079, %v7015
    %v7081 = vadd.f32 %v7080, %v7016
    %v7082 = vadd.f32 %v7081, %v7017
    %v7083 = vadd.f32 %v7082, %v7018
    %v7084 = vadd.f32 %v7083, %v7019
    %v7085 = vadd.f32 %v7084, %v7020
    %v7086 = vadd.f32 %v7085, %v7021
    %v7087 = vadd.f32 %v7086, %v7022
    %v7088 = vadd.f32 %v7087, %v7023
    %v7089 = vadd.f32 %v7088, %v7024
    %v7090 = vadd.f32 %v7089, %v7025
    %v7091 = vadd.f32 %v7090, %v7026
    %v7092 = vadd.f32 %v7091, %v7027
    %v7093 = vadd.f32 %v7092, %v7028
    %v7094 = vrot.slane %v7093, 4
    %v7095 = vadd.f32 %v7093, %v7094
    %v7096 = vrot.slane %v7095, 2
    %v7097 = vadd.f32 %v7095, %v7096
    %v7098 = vrot.slane %v7097, 1
    %v7099 = vadd.f32 %v7097, %v7098
    %v7100 = vmul.f32 %v6965, %v6965
    %v7101 = vmul.f32 %v6966, %v6966
    %v7102 = vmul.f32 %v6967, %v6967
    %v7103 = vmul.f32 %v6968, %v6968
    %v7104 = vmul.f32 %v6969, %v6969
    %v7105 = vmul.f32 %v6970, %v6970
    %v7106 = vmul.f32 %v6971, %v6971
    %v7107 = vmul.f32 %v6972, %v6972
    %v7108 = vmul.f32 %v6973, %v6973
    %v7109 = vmul.f32 %v6974, %v6974
    %v7110 = vmul.f32 %v6975, %v6975
    %v7111 = vmul.f32 %v6976, %v6976
    %v7112 = vmul.f32 %v6977, %v6977
    %v7113 = vmul.f32 %v6978, %v6978
    %v7114 = vmul.f32 %v6979, %v6979
    %v7115 = vmul.f32 %v6980, %v6980
    %v7116 = vmul.f32 %v6981, %v6981
    %v7117 = vmul.f32 %v6982, %v6982
    %v7118 = vmul.f32 %v6983, %v6983
    %v7119 = vmul.f32 %v6984, %v6984
    %v7120 = vmul.f32 %v6985, %v6985
    %v7121 = vmul.f32 %v6986, %v6986
    %v7122 = vmul.f32 %v6987, %v6987
    %v7123 = vmul.f32 %v6988, %v6988
    %v7124 = vmul.f32 %v6989, %v6989
    %v7125 = vmul.f32 %v6990, %v6990
    %v7126 = vmul.f32 %v6991, %v6991
    %v7127 = vmul.f32 %v6992, %v6992
    %v7128 = vmul.f32 %v6993, %v6993
    %v7129 = vmul.f32 %v6994, %v6994
    %v7130 = vmul.f32 %v6995, %v6995
    %v7131 = vmul.f32 %v6996, %v6996
    %v7132 = vmul.f32 %v6997, %v6997
    %v7133 = vmul.f32 %v6998, %v6998
    %v7134 = vmul.f32 %v6999, %v6999
    %v7135 = vmul.f32 %v7000, %v7000
    %v7136 = vmul.f32 %v7001, %v7001
    %v7137 = vmul.f32 %v7002, %v7002
    %v7138 = vmul.f32 %v7003, %v7003
    %v7139 = vmul.f32 %v7004, %v7004
    %v7140 = vmul.f32 %v7005, %v7005
    %v7141 = vmul.f32 %v7006, %v7006
    %v7142 = vmul.f32 %v7007, %v7007
    %v7143 = vmul.f32 %v7008, %v7008
    %v7144 = vmul.f32 %v7009, %v7009
    %v7145 = vmul.f32 %v7010, %v7010
    %v7146 = vmul.f32 %v7011, %v7011
    %v7147 = vmul.f32 %v7012, %v7012
    %v7148 = vmul.f32 %v7013, %v7013
    %v7149 = vmul.f32 %v7014, %v7014
    %v7150 = vmul.f32 %v7015, %v7015
    %v7151 = vmul.f32 %v7016, %v7016
    %v7152 = vmul.f32 %v7017, %v7017
    %v7153 = vmul.f32 %v7018, %v7018
    %v7154 = vmul.f32 %v7019, %v7019
    %v7155 = vmul.f32 %v7020, %v7020
    %v7156 = vmul.f32 %v7021, %v7021
    %v7157 = vmul.f32 %v7022, %v7022
    %v7158 = vmul.f32 %v7023, %v7023
    %v7159 = vmul.f32 %v7024, %v7024
    %v7160 = vmul.f32 %v7025, %v7025
    %v7161 = vmul.f32 %v7026, %v7026
    %v7162 = vmul.f32 %v7027, %v7027
    %v7163 = vmul.f32 %v7028, %v7028
    %v7164 = vadd.f32 %v7100, %v7101
    %v7165 = vadd.f32 %v7164, %v7102
    %v7166 = vadd.f32 %v7165, %v7103
    %v7167 = vadd.f32 %v7166, %v7104
    %v7168 = vadd.f32 %v7167, %v7105
    %v7169 = vadd.f32 %v7168, %v7106
    %v7170 = vadd.f32 %v7169, %v7107
    %v7171 = vadd.f32 %v7170, %v7108
    %v7172 = vadd.f32 %v7171, %v7109
    %v7173 = vadd.f32 %v7172, %v7110
    %v7174 = vadd.f32 %v7173, %v7111
    %v7175 = vadd.f32 %v7174, %v7112
    %v7176 = vadd.f32 %v7175, %v7113
    %v7177 = vadd.f32 %v7176, %v7114
    %v7178 = vadd.f32 %v7177, %v7115
    %v7179 = vadd.f32 %v7178, %v7116
    %v7180 = vadd.f32 %v7179, %v7117
    %v7181 = vadd.f32 %v7180, %v7118
    %v7182 = vadd.f32 %v7181, %v7119
    %v7183 = vadd.f32 %v7182, %v7120
    %v7184 = vadd.f32 %v7183, %v7121
    %v7185 = vadd.f32 %v7184, %v7122
    %v7186 = vadd.f32 %v7185, %v7123
    %v7187 = vadd.f32 %v7186, %v7124
    %v7188 = vadd.f32 %v7187, %v7125
    %v7189 = vadd.f32 %v7188, %v7126
    %v7190 = vadd.f32 %v7189, %v7127
    %v7191 = vadd.f32 %v7190, %v7128
    %v7192 = vadd.f32 %v7191, %v7129
    %v7193 = vadd.f32 %v7192, %v7130
    %v7194 = vadd.f32 %v7193, %v7131
    %v7195 = vadd.f32 %v7194, %v7132
    %v7196 = vadd.f32 %v7195, %v7133
    %v7197 = vadd.f32 %v7196, %v7134
    %v7198 = vadd.f32 %v7197, %v7135
    %v7199 = vadd.f32 %v7198, %v7136
    %v7200 = vadd.f32 %v7199, %v7137
    %v7201 = vadd.f32 %v7200, %v7138
    %v7202 = vadd.f32 %v7201, %v7139
    %v7203 = vadd.f32 %v7202, %v7140
    %v7204 = vadd.f32 %v7203, %v7141
    %v7205 = vadd.f32 %v7204, %v7142
    %v7206 = vadd.f32 %v7205, %v7143
    %v7207 = vadd.f32 %v7206, %v7144
    %v7208 = vadd.f32 %v7207, %v7145
    %v7209 = vadd.f32 %v7208, %v7146
    %v7210 = vadd.f32 %v7209, %v7147
    %v7211 = vadd.f32 %v7210, %v7148
    %v7212 = vadd.f32 %v7211, %v7149
    %v7213 = vadd.f32 %v7212, %v7150
    %v7214 = vadd.f32 %v7213, %v7151
    %v7215 = vadd.f32 %v7214, %v7152
    %v7216 = vadd.f32 %v7215, %v7153
    %v7217 = vadd.f32 %v7216, %v7154
    %v7218 = vadd.f32 %v7217, %v7155
    %v7219 = vadd.f32 %v7218, %v7156
    %v7220 = vadd.f32 %v7219, %v7157
    %v7221 = vadd.f32 %v7220, %v7158
    %v7222 = vadd.f32 %v7221, %v7159
    %v7223 = vadd.f32 %v7222, %v7160
    %v7224 = vadd.f32 %v7223, %v7161
    %v7225 = vadd.f32 %v7224, %v7162
    %v7226 = vadd.f32 %v7225, %v7163
    %v7227 = vrot.slane %v7226, 4
    %v7228 = vadd.f32 %v7226, %v7227
    %v7229 = vrot.slane %v7228, 2
    %v7230 = vadd.f32 %v7228, %v7229
    %v7231 = vrot.slane %v7230, 1
    %v7232 = vadd.f32 %v7230, %v7231
    %v7233 = vmul.f32 %v7099, 0.001953125
    %v7234 = vmul.f32 %v7232, 0.001953125
    %v7235 = vmul.f32 %v7233, %v7233
    %v7236 = vsub.f32 %v7234, %v7235
    %v7237 = vadd.f32 %v7236, 1e-05
    %v7238 = vrsqrt.pop %v7237
    %v7239 = vmul.f32 %v7029, %v7238
    %v7240 = vmul.f32 %v7233, %v7239
    %v7241 = vsub.f32 %v7030, %v7240
    %v7242 = vlaneseq
    %v7243 = vshrl.u32 %v7242, 7
    %v7244 = vsub.s32 0, %v7243
    %v7245 = vrot.slane %v7239, %v7244
    %v7246 = vmul.f32 %v6965, %v7245
    %v7247 = vmul.f32 %v6966, %v7245
    %v7248 = vmul.f32 %v6967, %v7245
    %v7249 = vmul.f32 %v6968, %v7245
    %v7250 = vmul.f32 %v6969, %v7245
    %v7251 = vmul.f32 %v6970, %v7245
    %v7252 = vmul.f32 %v6971, %v7245
    %v7253 = vmul.f32 %v6972, %v7245
    %v7254 = vmul.f32 %v6973, %v7245
    %v7255 = vmul.f32 %v6974, %v7245
    %v7256 = vmul.f32 %v6975, %v7245
    %v7257 = vmul.f32 %v6976, %v7245
    %v7258 = vmul.f32 %v6977, %v7245
    %v7259 = vmul.f32 %v6978, %v7245
    %v7260 = vmul.f32 %v6979, %v7245
    %v7261 = vmul.f32 %v6980, %v7245
    %v7262 = vmul.f32 %v6981, %v7245
    %v7263 = vmul.f32 %v6982, %v7245
    %v7264 = vmul.f32 %v6983, %v7245
    %v7265 = vmul.f32 %v6984, %v7245
    %v7266 = vmul.f32 %v6985, %v7245
    %v7267 = vmul.f32 %v6986, %v7245
    %v7268 = vmul.f32 %v6987, %v7245
    %v7269 = vmul.f32 %v6988, %v7245
    %v7270 = vmul.f32 %v6989, %v7245
    %v7271 = vmul.f32 %v6990, %v7245
    %v7272 = vmul.f32 %v6991, %v7245
    %v7273 = vmul.f32 %v6992, %v7245
    %v7274 = vmul.f32 %v6993, %v7245
    %v7275 = vmul.f32 %v6994, %v7245
    %v7276 = vmul.f32 %v6995, %v7245
    %v7277 = vmul.f32 %v6996, %v7245
    %v7278 = vmul.f32 %v6997, %v7245
    %v7279 = vmul.f32 %v6998, %v7245
    %v7280 = vmul.f32 %v6999, %v7245
    %v7281 = vmul.f32 %v7000, %v7245
    %v7282 = vmul.f32 %v7001, %v7245
    %v7283 = vmul.f32 %v7002, %v7245
    %v7284 = vmul.f32 %v7003, %v7245
    %v7285 = vmul.f32 %v7004, %v7245
    %v7286 = vmul.f32 %v7005, %v7245
    %v7287 = vmul.f32 %v7006, %v7245
    %v7288 = vmul.f32 %v7007, %v7245
    %v7289 = vmul.f32 %v7008, %v7245
    %v7290 = vmul.f32 %v7009, %v7245
    %v7291 = vmul.f32 %v7010, %v7245
    %v7292 = vmul.f32 %v7011, %v7245
    %v7293 = vmul.f32 %v7012, %v7245
    %v7294 = vmul.f32 %v7013, %v7245
    %v7295 = vmul.f32 %v7014, %v7245
    %v7296 = vmul.f32 %v7015, %v7245
    %v7297 = vmul.f32 %v7016, %v7245
    %v7298 = vmul.f32 %v7017, %v7245
    %v7299 = vmul.f32 %v7018, %v7245
    %v7300 = vmul.f32 %v7019, %v7245
    %v7301 = vmul.f32 %v7020, %v7245
    %v7302 = vmul.f32 %v7021, %v7245
    %v7303 = vmul.f32 %v7022, %v7245
    %v7304 = vmul.f32 %v7023, %v7245
    %v7305 = vmul.f32 %v7024, %v7245
    %v7306 = vmul.f32 %v7025, %v7245
    %v7307 = vmul.f32 %v7026, %v7245
    %v7308 = vmul.f32 %v7027, %v7245
    %v7309 = vmul.f32 %v7028, %v7245
    %v7310 = vlaneseq
    %v7311 = vshrl.u32 %v7310, 7
    %v7312 = vsub.s32 0, %v7311
    %v7313 = vrot.slane %v7241, %v7312
    %v7314 = vadd.f32 %v7246, %v7313
    %v7315 = vadd.f32 %v7247, %v7313
    %v7316 = vadd.f32 %v7248, %v7313
    %v7317 = vadd.f32 %v7249, %v7313
    %v7318 = vadd.f32 %v7250, %v7313
    %v7319 = vadd.f32 %v7251, %v7313
    %v7320 = vadd.f32 %v7252, %v7313
    %v7321 = vadd.f32 %v7253, %v7313
    %v7322 = vadd.f32 %v7254, %v7313
    %v7323 = vadd.f32 %v7255, %v7313
    %v7324 = vadd.f32 %v7256, %v7313
    %v7325 = vadd.f32 %v7257, %v7313
    %v7326 = vadd.f32 %v7258, %v7313
    %v7327 = vadd.f32 %v7259, %v7313
    %v7328 = vadd.f32 %v7260, %v7313
    %v7329 = vadd.f32 %v7261, %v7313
    %v7330 = vadd.f32 %v7262, %v7313
    %v7331 = vadd.f32 %v7263, %v7313
    %v7332 = vadd.f32 %v7264, %v7313
    %v7333 = vadd.f32 %v7265, %v7313
    %v7334 = vadd.f32 %v7266, %v7313
    %v7335 = vadd.f32 %v7267, %v7313
    %v7336 = vadd.f32 %v7268, %v7313
    %v7337 = vadd.f32 %v7269, %v7313
    %v7338 = vadd.f32 %v7270, %v7313
    %v7339 = vadd.f32 %v7271, %v7313
    %v7340 = vadd.f32 %v7272, %v7313
    %v7341 = vadd.f32 %v7273, %v7313
    %v7342 = vadd.f32 %v7274, %v7313
    %v7343 = vadd.f32 %v7275, %v7313
    %v7344 = vadd.f32 %v7276, %v7313
    %v7345 = vadd.f32 %v7277, %v7313
    %v7346 = vadd.f32 %v7278, %v7313
    %v7347 = vadd.f32 %v7279, %v7313
    %v7348 = vadd.f32 %v7280, %v7313
    %v7349 = vadd.f32 %v7281, %v7313
    %v7350 = vadd.f32 %v7282, %v7313
    %v7351 = vadd.f32 %v7283, %v7313
    %v7352 = vadd.f32 %v7284, %v7313
    %v7353 = vadd.f32 %v7285, %v7313
    %v7354 = vadd.f32 %v7286, %v7313
    %v7355 = vadd.f32 %v7287, %v7313
    %v7356 = vadd.f32 %v7288, %v7313
    %v7357 = vadd.f32 %v7289, %v7313
    %v7358 = vadd.f32 %v7290, %v7313
    %v7359 = vadd.f32 %v7291, %v7313
    %v7360 = vadd.f32 %v7292, %v7313
    %v7361 = vadd.f32 %v7293, %v7313
    %v7362 = vadd.f32 %v7294, %v7313
    %v7363 = vadd.f32 %v7295, %v7313
    %v7364 = vadd.f32 %v7296, %v7313
    %v7365 = vadd.f32 %v7297, %v7313
    %v7366 = vadd.f32 %v7298, %v7313
    %v7367 = vadd.f32 %v7299, %v7313
    %v7368 = vadd.f32 %v7300, %v7313
    %v7369 = vadd.f32 %v7301, %v7313
    %v7370 = vadd.f32 %v7302, %v7313
    %v7371 = vadd.f32 %v7303, %v7313
    %v7372 = vadd.f32 %v7304, %v7313
    %v7373 = vadd.f32 %v7305, %v7313
    %v7374 = vadd.f32 %v7306, %v7313
    %v7375 = vadd.f32 %v7307, %v7313
    %v7376 = vadd.f32 %v7308, %v7313
    %v7377 = vadd.f32 %v7309, %v7313
    %v7378 = vmax.f32 %v7314, 0.0
    %v7379 = vmax.f32 %v7315, 0.0
    %v7380 = vmax.f32 %v7316, 0.0
    %v7381 = vmax.f32 %v7317, 0.0
    %v7382 = vmax.f32 %v7318, 0.0
    %v7383 = vmax.f32 %v7319, 0.0
    %v7384 = vmax.f32 %v7320, 0.0
    %v7385 = vmax.f32 %v7321, 0.0
    %v7386 = vmax.f32 %v7322, 0.0
    %v7387 = vmax.f32 %v7323, 0.0
    %v7388 = vmax.f32 %v7324, 0.0
    %v7389 = vmax.f32 %v7325, 0.0
    %v7390 = vmax.f32 %v7326, 0.0
    %v7391 = vmax.f32 %v7327, 0.0
    %v7392 = vmax.f32 %v7328, 0.0
    %v7393 = vmax.f32 %v7329, 0.0
    %v7394 = vmax.f32 %v7330, 0.0
    %v7395 = vmax.f32 %v7331, 0.0
    %v7396 = vmax.f32 %v7332, 0.0
    %v7397 = vmax.f32 %v7333, 0.0
    %v7398 = vmax.f32 %v7334, 0.0
    %v7399 = vmax.f32 %v7335, 0.0
    %v7400 = vmax.f32 %v7336, 0.0
    %v7401 = vmax.f32 %v7337, 0.0
    %v7402 = vmax.f32 %v7338, 0.0
    %v7403 = vmax.f32 %v7339, 0.0
    %v7404 = vmax.f32 %v7340, 0.0
    %v7405 = vmax.f32 %v7341, 0.0
    %v7406 = vmax.f32 %v7342, 0.0
    %v7407 = vmax.f32 %v7343, 0.0
    %v7408 = vmax.f32 %v7344, 0.0
    %v7409 = vmax.f32 %v7345, 0.0
    %v7410 = vmax.f32 %v7346, 0.0
    %v7411 = vmax.f32 %v7347, 0.0
    %v7412 = vmax.f32 %v7348, 0.0
    %v7413 = vmax.f32 %v7349, 0.0
    %v7414 = vmax.f32 %v7350, 0.0
    %v7415 = vmax.f32 %v7351, 0.0
    %v7416 = vmax.f32 %v7352, 0.0
    %v7417 = vmax.f32 %v7353, 0.0
    %v7418 = vmax.f32 %v7354, 0.0
    %v7419 = vmax.f32 %v7355, 0.0
    %v7420 = vmax.f32 %v7356, 0.0
    %v7421 = vmax.f32 %v7357, 0.0
    %v7422 = vmax.f32 %v7358, 0.0
    %v7423 = vmax.f32 %v7359, 0.0
    %v7424 = vmax.f32 %v7360, 0.0
    %v7425 = vmax.f32 %v7361, 0.0
    %v7426 = vmax.f32 %v7362, 0.0
    %v7427 = vmax.f32 %v7363, 0.0
    %v7428 = vmax.f32 %v7364, 0.0
    %v7429 = vmax.f32 %v7365, 0.0
    %v7430 = vmax.f32 %v7366, 0.0
    %v7431 = vmax.f32 %v7367, 0.0
    %v7432 = vmax.f32 %v7368, 0.0
    %v7433 = vmax.f32 %v7369, 0.0
    %v7434 = vmax.f32 %v7370, 0.0
    %v7435 = vmax.f32 %v7371, 0.0
    %v7436 = vmax.f32 %v7372, 0.0
    %v7437 = vmax.f32 %v7373, 0.0
    %v7438 = vmax.f32 %v7374, 0.0
    %v7439 = vmax.f32 %v7375, 0.0
    %v7440 = vmax.f32 %v7376, 0.0
    %v7441 = vmax.f32 %v7377, 0.0
    %v7442 = vpack.c.bf16 %v7379, %v7378
    %v7443 = vpack.c.bf16 %v7381, %v7380
    %v7444 = vpack.c.bf16 %v7383, %v7382
    %v7445 = vpack.c.bf16 %v7385, %v7384
    %v7446 = vpack.c.bf16 %v7387, %v7386
    %v7447 = vpack.c.bf16 %v7389, %v7388
    %v7448 = vpack.c.bf16 %v7391, %v7390
    %v7449 = vpack.c.bf16 %v7393, %v7392
    %v7450 = vpack.c.bf16 %v7395, %v7394
    %v7451 = vpack.c.bf16 %v7397, %v7396
    %v7452 = vpack.c.bf16 %v7399, %v7398
    %v7453 = vpack.c.bf16 %v7401, %v7400
    %v7454 = vpack.c.bf16 %v7403, %v7402
    %v7455 = vpack.c.bf16 %v7405, %v7404
    %v7456 = vpack.c.bf16 %v7407, %v7406
    %v7457 = vpack.c.bf16 %v7409, %v7408
    %v7458 = vpack.c.bf16 %v7411, %v7410
    %v7459 = vpack.c.bf16 %v7413, %v7412
    %v7460 = vpack.c.bf16 %v7415, %v7414
    %v7461 = vpack.c.bf16 %v7417, %v7416
    %v7462 = vpack.c.bf16 %v7419, %v7418
    %v7463 = vpack.c.bf16 %v7421, %v7420
    %v7464 = vpack.c.bf16 %v7423, %v7422
    %v7465 = vpack.c.bf16 %v7425, %v7424
    %v7466 = vpack.c.bf16 %v7427, %v7426
    %v7467 = vpack.c.bf16 %v7429, %v7428
    %v7468 = vpack.c.bf16 %v7431, %v7430
    %v7469 = vpack.c.bf16 %v7433, %v7432
    %v7470 = vpack.c.bf16 %v7435, %v7434
    %v7471 = vpack.c.bf16 %v7437, %v7436
    %v7472 = vpack.c.bf16 %v7439, %v7438
    %v7473 = vpack.c.bf16 %v7441, %v7440
    %v7474 = vld [vmem:[#allocation10] sm:$0xf]
    %v7475 = vld [vmem:[#allocation10 + $0x4] sm:$0xf]
    %v7476 = vld [vmem:[#allocation10 + $0x8] sm:$0xf]
    %v7477 = vld [vmem:[#allocation10 + $0xc] sm:$0xf]
    %v7478 = vld [vmem:[#allocation10 + $0x10] sm:$0xf]
    %v7479 = vld [vmem:[#allocation10 + $0x14] sm:$0xf]
    %v7480 = vld [vmem:[#allocation10 + $0x18] sm:$0xf]
    %v7481 = vld [vmem:[#allocation10 + $0x1c] sm:$0xf]
    %v7482 = vld [vmem:[#allocation10 + $0x20] sm:$0xf]
    %v7483 = vld [vmem:[#allocation10 + $0x24] sm:$0xf]
    %v7484 = vld [vmem:[#allocation10 + $0x28] sm:$0xf]
    %v7485 = vld [vmem:[#allocation10 + $0x2c] sm:$0xf]
    %v7486 = vld [vmem:[#allocation10 + $0x30] sm:$0xf]
    %v7487 = vld [vmem:[#allocation10 + $0x34] sm:$0xf]
    %v7488 = vld [vmem:[#allocation10 + $0x38] sm:$0xf]
    %v7489 = vld [vmem:[#allocation10 + $0x3c] sm:$0xf]
    %v7506 = vunpack.c.l.b16 %v7474
    %v7507 = vunpack.c.l.b16 %v7475
    %v7508 = vunpack.c.l.b16 %v7476
    %v7509 = vunpack.c.l.b16 %v7477
    %v7510 = vunpack.c.l.b16 %v7478
    %v7511 = vunpack.c.l.b16 %v7479
    %v7512 = vunpack.c.l.b16 %v7480
    %v7513 = vunpack.c.l.b16 %v7481
    %v7514 = vunpack.c.l.b16 %v7482
    %v7515 = vunpack.c.l.b16 %v7483
    %v7516 = vunpack.c.l.b16 %v7484
    %v7517 = vunpack.c.l.b16 %v7485
    %v7518 = vunpack.c.l.b16 %v7486
    %v7519 = vunpack.c.l.b16 %v7487
    %v7520 = vunpack.c.l.b16 %v7488
    %v7521 = vunpack.c.l.b16 %v7489
    %v7522 = vpack.c.b16 %v7507, %v7506
    %v7523 = vpack.c.b16 %v7509, %v7508
    %v7524 = vpack.c.b16 %v7511, %v7510
    %v7525 = vpack.c.b16 %v7513, %v7512
    %v7526 = vpack.c.b16 %v7515, %v7514
    %v7527 = vpack.c.b16 %v7517, %v7516
    %v7528 = vpack.c.b16 %v7519, %v7518
    %v7529 = vpack.c.b16 %v7521, %v7520
    %7538 = vmatprep.subr.bf16.mxu0 0
    %7539 = vmatpush1.bf16.msra.mxu0 %v7522
    %7540 = vmatprep.subr.bf16.mxu0 0
    %7541 = vmatpush1.bf16.msra.mxu0 %v7523
    %7542 = vmatprep.subr.bf16.mxu0 0
    %7543 = vmatpush1.bf16.msra.mxu0 %v7524
    %7544 = vmatprep.subr.bf16.mxu0 0
    %7545 = vmatpush1.bf16.msra.mxu0 %v7525
    %7546 = vmatprep.subr.bf16.mxu0 0
    %7547 = vmatpush1.bf16.msra.mxu0 %v7526
    %7548 = vmatprep.subr.bf16.mxu0 0
    %7549 = vmatpush1.bf16.msra.mxu0 %v7527
    %7550 = vmatprep.subr.bf16.mxu0 0
    %7551 = vmatpush1.bf16.msra.mxu0 %v7528
    %7552 = vmatprep.subr.bf16.mxu0 0
    %7553 = vmatpush1.bf16.msra.mxu0 %v7529
    %7554 = vmatprep.subr.bf16.mxu0 0
    %7555 = vmatpush1.bf16.msra.mxu0 0
    %7556 = vmatprep.subr.bf16.mxu0 0
    %7557 = vmatpush1.bf16.msra.mxu0 0
    %7558 = vmatprep.subr.bf16.mxu0 0
    %7559 = vmatpush1.bf16.msra.mxu0 0
    %7560 = vmatprep.subr.bf16.mxu0 0
    %7561 = vmatpush1.bf16.msra.mxu0 0
    %7562 = vmatprep.subr.bf16.mxu0 0
    %7563 = vmatpush1.bf16.msra.mxu0 0
    %7564 = vmatprep.subr.bf16.mxu0 0
    %7565 = vmatpush1.bf16.msra.mxu0 0
    %7566 = vmatprep.subr.bf16.mxu0 0
    %7567 = vmatpush1.bf16.msra.mxu0 0
    %7568 = vmatprep.subr.bf16.mxu0 0
    %7569 = vmatpush1.bf16.msra.mxu0 0
    %7570 = vmatprep.mubr.bf16.mxu0 0
    %7571 = vmatmul.mubr.bf16.gmra.mrb[0].mxu0 %v7442
    %v7572 = vpop.f32.mrb[0].mxu0
    %v7573 = vadd.f32 0.0, %v7572
    %v7574 = vpop.f32.mrb[0].mxu0
    %v7575 = vpop.f32.mrb[0].mxu0
    %v7576 = vadd.f32 0.0, %v7575
    %v7577 = vpop.f32.mrb[0].mxu0
    %7578 = vmatprep.mubr.bf16.mxu0 0
    %7579 = vmatmul.mubr.bf16.gmra.mrb[0].mxu0 %v7443
    %v7580 = vpop.f32.mrb[0].mxu0
    %v7581 = vadd.f32 0.0, %v7580
    %v7582 = vpop.f32.mrb[0].mxu0
    %v7583 = vpop.f32.mrb[0].mxu0
    %v7584 = vadd.f32 0.0, %v7583
    %v7585 = vpop.f32.mrb[0].mxu0
    %7586 = vmatprep.mubr.bf16.mxu0 0
    %7587 = vmatmul.mubr.bf16.gmra.mrb[0].mxu0 %v7444
    %v7588 = vpop.f32.mrb[0].mxu0
    %v7589 = vadd.f32 0.0, %v7588
    %v7590 = vpop.f32.mrb[0].mxu0
    %v7591 = vpop.f32.mrb[0].mxu0
    %v7592 = vadd.f32 0.0, %v7591
    %v7593 = vpop.f32.mrb[0].mxu0
    %7594 = vmatprep.mubr.bf16.mxu0 0
    %7595 = vmatmul.mubr.bf16.gmra.mrb[0].mxu0 %v7445
    %v7596 = vpop.f32.mrb[0].mxu0
    %v7597 = vadd.f32 0.0, %v7596
    %v7598 = vpop.f32.mrb[0].mxu0
    %v7599 = vpop.f32.mrb[0].mxu0
    %v7600 = vadd.f32 0.0, %v7599
    %v7601 = vpop.f32.mrb[0].mxu0
    %7602 = vmatprep.mubr.bf16.mxu0 0
    %7603 = vmatmul.mubr.bf16.gmra.mrb[0].mxu0 %v7446
    %v7604 = vpop.f32.mrb[0].mxu0
    %v7605 = vadd.f32 0.0, %v7604
    %v7606 = vpop.f32.mrb[0].mxu0
    %v7607 = vpop.f32.mrb[0].mxu0
    %v7608 = vadd.f32 0.0, %v7607
    %v7609 = vpop.f32.mrb[0].mxu0
    %7610 = vmatprep.mubr.bf16.mxu0 0
    %7611 = vmatmul.mubr.bf16.gmra.mrb[0].mxu0 %v7447
    %v7612 = vpop.f32.mrb[0].mxu0
    %v7613 = vadd.f32 0.0, %v7612
    %v7614 = vpop.f32.mrb[0].mxu0
    %v7615 = vpop.f32.mrb[0].mxu0
    %v7616 = vadd.f32 0.0, %v7615
    %v7617 = vpop.f32.mrb[0].mxu0
    %7618 = vmatprep.mubr.bf16.mxu0 0
    %7619 = vmatmul.mubr.bf16.gmra.mrb[0].mxu0 %v7448
    %v7620 = vpop.f32.mrb[0].mxu0
    %v7621 = vadd.f32 0.0, %v7620
    %v7622 = vpop.f32.mrb[0].mxu0
    %v7623 = vpop.f32.mrb[0].mxu0
    %v7624 = vadd.f32 0.0, %v7623
    %v7625 = vpop.f32.mrb[0].mxu0
    %7626 = vmatprep.mubr.bf16.mxu0 0
    %7627 = vmatmul.mubr.bf16.gmra.mrb[0].mxu0 %v7449
    %v7628 = vpop.f32.mrb[0].mxu0
    %v7629 = vadd.f32 0.0, %v7628
    %v7630 = vpop.f32.mrb[0].mxu0
    %v7631 = vpop.f32.mrb[0].mxu0
    %v7632 = vadd.f32 0.0, %v7631
    %v7633 = vpop.f32.mrb[0].mxu0
    %7634 = vmatprep.mubr.bf16.mxu0 0
    %7635 = vmatmul.mubr.bf16.gmra.mrb[0].mxu0 %v7450
    %v7636 = vpop.f32.mrb[0].mxu0
    %v7637 = vadd.f32 0.0, %v7636
    %v7638 = vpop.f32.mrb[0].mxu0
    %v7639 = vpop.f32.mrb[0].mxu0
    %v7640 = vadd.f32 0.0, %v7639
    %v7641 = vpop.f32.mrb[0].mxu0
    %7642 = vmatprep.mubr.bf16.mxu0 0
    %7643 = vmatmul.mubr.bf16.gmra.mrb[0].mxu0 %v7451
    %v7644 = vpop.f32.mrb[0].mxu0
    %v7645 = vadd.f32 0.0, %v7644
    %v7646 = vpop.f32.mrb[0].mxu0
    %v7647 = vpop.f32.mrb[0].mxu0
    %v7648 = vadd.f32 0.0, %v7647
    %v7649 = vpop.f32.mrb[0].mxu0
    %7650 = vmatprep.mubr.bf16.mxu0 0
    %7651 = vmatmul.mubr.bf16.gmra.mrb[0].mxu0 %v7452
    %v7652 = vpop.f32.mrb[0].mxu0
    %v7653 = vadd.f32 0.0, %v7652
    %v7654 = vpop.f32.mrb[0].mxu0
    %v7655 = vpop.f32.mrb[0].mxu0
    %v7656 = vadd.f32 0.0, %v7655
    %v7657 = vpop.f32.mrb[0].mxu0
    %7658 = vmatprep.mubr.bf16.mxu0 0
    %7659 = vmatmul.mubr.bf16.gmra.mrb[0].mxu0 %v7453
    %v7660 = vpop.f32.mrb[0].mxu0
    %v7661 = vadd.f32 0.0, %v7660
    %v7662 = vpop.f32.mrb[0].mxu0
    %v7663 = vpop.f32.mrb[0].mxu0
    %v7664 = vadd.f32 0.0, %v7663
    %v7665 = vpop.f32.mrb[0].mxu0
    %7666 = vmatprep.mubr.bf16.mxu0 0
    %7667 = vmatmul.mubr.bf16.gmra.mrb[0].mxu0 %v7454
    %v7668 = vpop.f32.mrb[0].mxu0
    %v7669 = vadd.f32 0.0, %v7668
    %v7670 = vpop.f32.mrb[0].mxu0
    %v7671 = vpop.f32.mrb[0].mxu0
    %v7672 = vadd.f32 0.0, %v7671
    %v7673 = vpop.f32.mrb[0].mxu0
    %7674 = vmatprep.mubr.bf16.mxu0 0
    %7675 = vmatmul.mubr.bf16.gmra.mrb[0].mxu0 %v7455
    %v7676 = vpop.f32.mrb[0].mxu0
    %v7677 = vadd.f32 0.0, %v7676
    %v7678 = vpop.f32.mrb[0].mxu0
    %v7679 = vpop.f32.mrb[0].mxu0
    %v7680 = vadd.f32 0.0, %v7679
    %v7681 = vpop.f32.mrb[0].mxu0
    %7682 = vmatprep.mubr.bf16.mxu0 0
    %7683 = vmatmul.mubr.bf16.gmra.mrb[0].mxu0 %v7456
    %v7684 = vpop.f32.mrb[0].mxu0
    %v7685 = vadd.f32 0.0, %v7684
    %v7686 = vpop.f32.mrb[0].mxu0
    %v7687 = vpop.f32.mrb[0].mxu0
    %v7688 = vadd.f32 0.0, %v7687
    %v7689 = vpop.f32.mrb[0].mxu0
    %7690 = vmatprep.mubr.bf16.mxu0 0
    %7691 = vmatmul.mubr.bf16.gmra.mrb[0].mxu0 %v7457
    %v7692 = vpop.f32.mrb[0].mxu0
    %v7693 = vadd.f32 0.0, %v7692
    %v7694 = vpop.f32.mrb[0].mxu0
    %v7695 = vpop.f32.mrb[0].mxu0
    %v7696 = vadd.f32 0.0, %v7695
    %v7697 = vpop.f32.mrb[0].mxu0
    %7698 = vmatprep.mubr.bf16.mxu0 0
    %7699 = vmatmul.mubr.bf16.gmra.mrb[0].mxu0 %v7458
    %v7700 = vpop.f32.mrb[0].mxu0
    %v7701 = vadd.f32 0.0, %v7700
    %v7702 = vpop.f32.mrb[0].mxu0
    %v7703 = vpop.f32.mrb[0].mxu0
    %v7704 = vadd.f32 0.0, %v7703
    %v7705 = vpop.f32.mrb[0].mxu0
    %7706 = vmatprep.mubr.bf16.mxu0 0
    %7707 = vmatmul.mubr.bf16.gmra.mrb[0].mxu0 %v7459
    %v7708 = vpop.f32.mrb[0].mxu0
    %v7709 = vadd.f32 0.0, %v7708
    %v7710 = vpop.f32.mrb[0].mxu0
    %v7711 = vpop.f32.mrb[0].mxu0
    %v7712 = vadd.f32 0.0, %v7711
    %v7713 = vpop.f32.mrb[0].mxu0
    %7714 = vmatprep.mubr.bf16.mxu0 0
    %7715 = vmatmul.mubr.bf16.gmra.mrb[0].mxu0 %v7460
    %v7716 = vpop.f32.mrb[0].mxu0
    %v7717 = vadd.f32 0.0, %v7716
    %v7718 = vpop.f32.mrb[0].mxu0
    %v7719 = vpop.f32.mrb[0].mxu0
    %v7720 = vadd.f32 0.0, %v7719
    %v7721 = vpop.f32.mrb[0].mxu0
    %7722 = vmatprep.mubr.bf16.mxu0 0
    %7723 = vmatmul.mubr.bf16.gmra.mrb[0].mxu0 %v7461
    %v7724 = vpop.f32.mrb[0].mxu0
    %v7725 = vadd.f32 0.0, %v7724
    %v7726 = vpop.f32.mrb[0].mxu0
    %v7727 = vpop.f32.mrb[0].mxu0
    %v7728 = vadd.f32 0.0, %v7727
    %v7729 = vpop.f32.mrb[0].mxu0
    %7730 = vmatprep.mubr.bf16.mxu0 0
    %7731 = vmatmul.mubr.bf16.gmra.mrb[0].mxu0 %v7462
    %v7732 = vpop.f32.mrb[0].mxu0
    %v7733 = vadd.f32 0.0, %v7732
    %v7734 = vpop.f32.mrb[0].mxu0
    %v7735 = vpop.f32.mrb[0].mxu0
    %v7736 = vadd.f32 0.0, %v7735
    %v7737 = vpop.f32.mrb[0].mxu0
    %7738 = vmatprep.mubr.bf16.mxu0 0
    %7739 = vmatmul.mubr.bf16.gmra.mrb[0].mxu0 %v7463
    %v7740 = vpop.f32.mrb[0].mxu0
    %v7741 = vadd.f32 0.0, %v7740
    %v7742 = vpop.f32.mrb[0].mxu0
    %v7743 = vpop.f32.mrb[0].mxu0
    %v7744 = vadd.f32 0.0, %v7743
    %v7745 = vpop.f32.mrb[0].mxu0
    %7746 = vmatprep.mubr.bf16.mxu0 0
    %7747 = vmatmul.mubr.bf16.gmra.mrb[0].mxu0 %v7464
    %v7748 = vpop.f32.mrb[0].mxu0
    %v7749 = vadd.f32 0.0, %v7748
    %v7750 = vpop.f32.mrb[0].mxu0
    %v7751 = vpop.f32.mrb[0].mxu0
    %v7752 = vadd.f32 0.0, %v7751
    %v7753 = vpop.f32.mrb[0].mxu0
    %7754 = vmatprep.mubr.bf16.mxu0 0
    %7755 = vmatmul.mubr.bf16.gmra.mrb[0].mxu0 %v7465
    %v7756 = vpop.f32.mrb[0].mxu0
    %v7757 = vadd.f32 0.0, %v7756
    %v7758 = vpop.f32.mrb[0].mxu0
    %v7759 = vpop.f32.mrb[0].mxu0
    %v7760 = vadd.f32 0.0, %v7759
    %v7761 = vpop.f32.mrb[0].mxu0
    %7762 = vmatprep.mubr.bf16.mxu0 0
    %7763 = vmatmul.mubr.bf16.gmra.mrb[0].mxu0 %v7466
    %v7764 = vpop.f32.mrb[0].mxu0
    %v7765 = vadd.f32 0.0, %v7764
    %v7766 = vpop.f32.mrb[0].mxu0
    %v7767 = vpop.f32.mrb[0].mxu0
    %v7768 = vadd.f32 0.0, %v7767
    %v7769 = vpop.f32.mrb[0].mxu0
    %7770 = vmatprep.mubr.bf16.mxu0 0
    %7771 = vmatmul.mubr.bf16.gmra.mrb[0].mxu0 %v7467
    %v7772 = vpop.f32.mrb[0].mxu0
    %v7773 = vadd.f32 0.0, %v7772
    %v7774 = vpop.f32.mrb[0].mxu0
    %v7775 = vpop.f32.mrb[0].mxu0
    %v7776 = vadd.f32 0.0, %v7775
    %v7777 = vpop.f32.mrb[0].mxu0
    %7778 = vmatprep.mubr.bf16.mxu0 0
    %7779 = vmatmul.mubr.bf16.gmra.mrb[0].mxu0 %v7468
    %v7780 = vpop.f32.mrb[0].mxu0
    %v7781 = vadd.f32 0.0, %v7780
    %v7782 = vpop.f32.mrb[0].mxu0
    %v7783 = vpop.f32.mrb[0].mxu0
    %v7784 = vadd.f32 0.0, %v7783
    %v7785 = vpop.f32.mrb[0].mxu0
    %7786 = vmatprep.mubr.bf16.mxu0 0
    %7787 = vmatmul.mubr.bf16.gmra.mrb[0].mxu0 %v7469
    %v7788 = vpop.f32.mrb[0].mxu0
    %v7789 = vadd.f32 0.0, %v7788
    %v7790 = vpop.f32.mrb[0].mxu0
    %v7791 = vpop.f32.mrb[0].mxu0
    %v7792 = vadd.f32 0.0, %v7791
    %v7793 = vpop.f32.mrb[0].mxu0
    %7794 = vmatprep.mubr.bf16.mxu0 0
    %7795 = vmatmul.mubr.bf16.gmra.mrb[0].mxu0 %v7470
    %v7796 = vpop.f32.mrb[0].mxu0
    %v7797 = vadd.f32 0.0, %v7796
    %v7798 = vpop.f32.mrb[0].mxu0
    %v7799 = vpop.f32.mrb[0].mxu0
    %v7800 = vadd.f32 0.0, %v7799
    %v7801 = vpop.f32.mrb[0].mxu0
    %7802 = vmatprep.mubr.bf16.mxu0 0
    %7803 = vmatmul.mubr.bf16.gmra.mrb[0].mxu0 %v7471
    %v7804 = vpop.f32.mrb[0].mxu0
    %v7805 = vadd.f32 0.0, %v7804
    %v7806 = vpop.f32.mrb[0].mxu0
    %v7807 = vpop.f32.mrb[0].mxu0
    %v7808 = vadd.f32 0.0, %v7807
    %v7809 = vpop.f32.mrb[0].mxu0
    %7810 = vmatprep.mubr.bf16.mxu0 0
    %7811 = vmatmul.mubr.bf16.gmra.mrb[0].mxu0 %v7472
    %v7812 = vpop.f32.mrb[0].mxu0
    %v7813 = vadd.f32 0.0, %v7812
    %v7814 = vpop.f32.mrb[0].mxu0
    %v7815 = vpop.f32.mrb[0].mxu0
    %v7816 = vadd.f32 0.0, %v7815
    %v7817 = vpop.f32.mrb[0].mxu0
    %7818 = vmatprep.mubr.bf16.mxu0 0
    %7819 = vmatmul.mubr.bf16.gmra.mrb[0].mxu0 %v7473
    %v7820 = vpop.f32.mrb[0].mxu0
    %v7821 = vadd.f32 0.0, %v7820
    %v7822 = vpop.f32.mrb[0].mxu0
    %v7823 = vpop.f32.mrb[0].mxu0
    %v7824 = vadd.f32 0.0, %v7823
    %v7825 = vpop.f32.mrb[0].mxu0
    %7826 = vdwg.mxu0
    %v7827 = vld [vmem:[#allocation12 + $0x4] sm:$0x1]
    %v7828 = vld [vmem:[#allocation12 + $0x5] sm:$0x1]
    %v7829 = vadd.f32 %v7573, %v7576
    %v7830 = vadd.f32 %v7829, %v7581
    %v7831 = vadd.f32 %v7830, %v7584
    %v7832 = vadd.f32 %v7831, %v7589
    %v7833 = vadd.f32 %v7832, %v7592
    %v7834 = vadd.f32 %v7833, %v7597
    %v7835 = vadd.f32 %v7834, %v7600
    %v7836 = vadd.f32 %v7835, %v7605
    %v7837 = vadd.f32 %v7836, %v7608
    %v7838 = vadd.f32 %v7837, %v7613
    %v7839 = vadd.f32 %v7838, %v7616
    %v7840 = vadd.f32 %v7839, %v7621
    %v7841 = vadd.f32 %v7840, %v7624
    %v7842 = vadd.f32 %v7841, %v7629
    %v7843 = vadd.f32 %v7842, %v7632
    %v7844 = vadd.f32 %v7843, %v7637
    %v7845 = vadd.f32 %v7844, %v7640
    %v7846 = vadd.f32 %v7845, %v7645
    %v7847 = vadd.f32 %v7846, %v7648
    %v7848 = vadd.f32 %v7847, %v7653
    %v7849 = vadd.f32 %v7848, %v7656
    %v7850 = vadd.f32 %v7849, %v7661
    %v7851 = vadd.f32 %v7850, %v7664
    %v7852 = vadd.f32 %v7851, %v7669
    %v7853 = vadd.f32 %v7852, %v7672
    %v7854 = vadd.f32 %v7853, %v7677
    %v7855 = vadd.f32 %v7854, %v7680
    %v7856 = vadd.f32 %v7855, %v7685
    %v7857 = vadd.f32 %v7856, %v7688
    %v7858 = vadd.f32 %v7857, %v7693
    %v7859 = vadd.f32 %v7858, %v7696
    %v7860 = vadd.f32 %v7859, %v7701
    %v7861 = vadd.f32 %v7860, %v7704
    %v7862 = vadd.f32 %v7861, %v7709
    %v7863 = vadd.f32 %v7862, %v7712
    %v7864 = vadd.f32 %v7863, %v7717
    %v7865 = vadd.f32 %v7864, %v7720
    %v7866 = vadd.f32 %v7865, %v7725
    %v7867 = vadd.f32 %v7866, %v7728
    %v7868 = vadd.f32 %v7867, %v7733
    %v7869 = vadd.f32 %v7868, %v7736
    %v7870 = vadd.f32 %v7869, %v7741
    %v7871 = vadd.f32 %v7870, %v7744
    %v7872 = vadd.f32 %v7871, %v7749
    %v7873 = vadd.f32 %v7872, %v7752
    %v7874 = vadd.f32 %v7873, %v7757
    %v7875 = vadd.f32 %v7874, %v7760
    %v7876 = vadd.f32 %v7875, %v7765
    %v7877 = vadd.f32 %v7876, %v7768
    %v7878 = vadd.f32 %v7877, %v7773
    %v7879 = vadd.f32 %v7878, %v7776
    %v7880 = vadd.f32 %v7879, %v7781
    %v7881 = vadd.f32 %v7880, %v7784
    %v7882 = vadd.f32 %v7881, %v7789
    %v7883 = vadd.f32 %v7882, %v7792
    %v7884 = vadd.f32 %v7883, %v7797
    %v7885 = vadd.f32 %v7884, %v7800
    %v7886 = vadd.f32 %v7885, %v7805
    %v7887 = vadd.f32 %v7886, %v7808
    %v7888 = vadd.f32 %v7887, %v7813
    %v7889 = vadd.f32 %v7888, %v7816
    %v7890 = vadd.f32 %v7889, %v7821
    %v7891 = vadd.f32 %v7890, %v7824
    %v7892 = vrot.slane %v7891, 4
    %v7893 = vadd.f32 %v7891, %v7892
    %v7894 = vrot.slane %v7893, 2
    %v7895 = vadd.f32 %v7893, %v7894
    %v7896 = vrot.slane %v7895, 1
    %v7897 = vadd.f32 %v7895, %v7896
    %v7898 = vmul.f32 %v7573, %v7573
    %v7899 = vmul.f32 %v7576, %v7576
    %v7900 = vmul.f32 %v7581, %v7581
    %v7901 = vmul.f32 %v7584, %v7584
    %v7902 = vmul.f32 %v7589, %v7589
    %v7903 = vmul.f32 %v7592, %v7592
    %v7904 = vmul.f32 %v7597, %v7597
    %v7905 = vmul.f32 %v7600, %v7600
    %v7906 = vmul.f32 %v7605, %v7605
    %v7907 = vmul.f32 %v7608, %v7608
    %v7908 = vmul.f32 %v7613, %v7613
    %v7909 = vmul.f32 %v7616, %v7616
    %v7910 = vmul.f32 %v7621, %v7621
    %v7911 = vmul.f32 %v7624, %v7624
    %v7912 = vmul.f32 %v7629, %v7629
    %v7913 = vmul.f32 %v7632, %v7632
    %v7914 = vmul.f32 %v7637, %v7637
    %v7915 = vmul.f32 %v7640, %v7640
    %v7916 = vmul.f32 %v7645, %v7645
    %v7917 = vmul.f32 %v7648, %v7648
    %v7918 = vmul.f32 %v7653, %v7653
    %v7919 = vmul.f32 %v7656, %v7656
    %v7920 = vmul.f32 %v7661, %v7661
    %v7921 = vmul.f32 %v7664, %v7664
    %v7922 = vmul.f32 %v7669, %v7669
    %v7923 = vmul.f32 %v7672, %v7672
    %v7924 = vmul.f32 %v7677, %v7677
    %v7925 = vmul.f32 %v7680, %v7680
    %v7926 = vmul.f32 %v7685, %v7685
    %v7927 = vmul.f32 %v7688, %v7688
    %v7928 = vmul.f32 %v7693, %v7693
    %v7929 = vmul.f32 %v7696, %v7696
    %v7930 = vmul.f32 %v7701, %v7701
    %v7931 = vmul.f32 %v7704, %v7704
    %v7932 = vmul.f32 %v7709, %v7709
    %v7933 = vmul.f32 %v7712, %v7712
    %v7934 = vmul.f32 %v7717, %v7717
    %v7935 = vmul.f32 %v7720, %v7720
    %v7936 = vmul.f32 %v7725, %v7725
    %v7937 = vmul.f32 %v7728, %v7728
    %v7938 = vmul.f32 %v7733, %v7733
    %v7939 = vmul.f32 %v7736, %v7736
    %v7940 = vmul.f32 %v7741, %v7741
    %v7941 = vmul.f32 %v7744, %v7744
    %v7942 = vmul.f32 %v7749, %v7749
    %v7943 = vmul.f32 %v7752, %v7752
    %v7944 = vmul.f32 %v7757, %v7757
    %v7945 = vmul.f32 %v7760, %v7760
    %v7946 = vmul.f32 %v7765, %v7765
    %v7947 = vmul.f32 %v7768, %v7768
    %v7948 = vmul.f32 %v7773, %v7773
    %v7949 = vmul.f32 %v7776, %v7776
    %v7950 = vmul.f32 %v7781, %v7781
    %v7951 = vmul.f32 %v7784, %v7784
    %v7952 = vmul.f32 %v7789, %v7789
    %v7953 = vmul.f32 %v7792, %v7792
    %v7954 = vmul.f32 %v7797, %v7797
    %v7955 = vmul.f32 %v7800, %v7800
    %v7956 = vmul.f32 %v7805, %v7805
    %v7957 = vmul.f32 %v7808, %v7808
    %v7958 = vmul.f32 %v7813, %v7813
    %v7959 = vmul.f32 %v7816, %v7816
    %v7960 = vmul.f32 %v7821, %v7821
    %v7961 = vmul.f32 %v7824, %v7824
    %v7962 = vadd.f32 %v7898, %v7899
    %v7963 = vadd.f32 %v7962, %v7900
    %v7964 = vadd.f32 %v7963, %v7901
    %v7965 = vadd.f32 %v7964, %v7902
    %v7966 = vadd.f32 %v7965, %v7903
    %v7967 = vadd.f32 %v7966, %v7904
    %v7968 = vadd.f32 %v7967, %v7905
    %v7969 = vadd.f32 %v7968, %v7906
    %v7970 = vadd.f32 %v7969, %v7907
    %v7971 = vadd.f32 %v7970, %v7908
    %v7972 = vadd.f32 %v7971, %v7909
    %v7973 = vadd.f32 %v7972, %v7910
    %v7974 = vadd.f32 %v7973, %v7911
    %v7975 = vadd.f32 %v7974, %v7912
    %v7976 = vadd.f32 %v7975, %v7913
    %v7977 = vadd.f32 %v7976, %v7914
    %v7978 = vadd.f32 %v7977, %v7915
    %v7979 = vadd.f32 %v7978, %v7916
    %v7980 = vadd.f32 %v7979, %v7917
    %v7981 = vadd.f32 %v7980, %v7918
    %v7982 = vadd.f32 %v7981, %v7919
    %v7983 = vadd.f32 %v7982, %v7920
    %v7984 = vadd.f32 %v7983, %v7921
    %v7985 = vadd.f32 %v7984, %v7922
    %v7986 = vadd.f32 %v7985, %v7923
    %v7987 = vadd.f32 %v7986, %v7924
    %v7988 = vadd.f32 %v7987, %v7925
    %v7989 = vadd.f32 %v7988, %v7926
    %v7990 = vadd.f32 %v7989, %v7927
    %v7991 = vadd.f32 %v7990, %v7928
    %v7992 = vadd.f32 %v7991, %v7929
    %v7993 = vadd.f32 %v7992, %v7930
    %v7994 = vadd.f32 %v7993, %v7931
    %v7995 = vadd.f32 %v7994, %v7932
    %v7996 = vadd.f32 %v7995, %v7933
    %v7997 = vadd.f32 %v7996, %v7934
    %v7998 = vadd.f32 %v7997, %v7935
    %v7999 = vadd.f32 %v7998, %v7936
    %v8000 = vadd.f32 %v7999, %v7937
    %v8001 = vadd.f32 %v8000, %v7938
    %v8002 = vadd.f32 %v8001, %v7939
    %v8003 = vadd.f32 %v8002, %v7940
    %v8004 = vadd.f32 %v8003, %v7941
    %v8005 = vadd.f32 %v8004, %v7942
    %v8006 = vadd.f32 %v8005, %v7943
    %v8007 = vadd.f32 %v8006, %v7944
    %v8008 = vadd.f32 %v8007, %v7945
    %v8009 = vadd.f32 %v8008, %v7946
    %v8010 = vadd.f32 %v8009, %v7947
    %v8011 = vadd.f32 %v8010, %v7948
    %v8012 = vadd.f32 %v8011, %v7949
    %v8013 = vadd.f32 %v8012, %v7950
    %v8014 = vadd.f32 %v8013, %v7951
    %v8015 = vadd.f32 %v8014, %v7952
    %v8016 = vadd.f32 %v8015, %v7953
    %v8017 = vadd.f32 %v8016, %v7954
    %v8018 = vadd.f32 %v8017, %v7955
    %v8019 = vadd.f32 %v8018, %v7956
    %v8020 = vadd.f32 %v8019, %v7957
    %v8021 = vadd.f32 %v8020, %v7958
    %v8022 = vadd.f32 %v8021, %v7959
    %v8023 = vadd.f32 %v8022, %v7960
    %v8024 = vadd.f32 %v8023, %v7961
    %v8025 = vrot.slane %v8024, 4
    %v8026 = vadd.f32 %v8024, %v8025
    %v8027 = vrot.slane %v8026, 2
    %v8028 = vadd.f32 %v8026, %v8027
    %v8029 = vrot.slane %v8028, 1
    %v8030 = vadd.f32 %v8028, %v8029
    %v8031 = vmul.f32 %v7897, 0.001953125
    %v8032 = vmul.f32 %v8030, 0.001953125
    %v8033 = vmul.f32 %v8031, %v8031
    %v8034 = vsub.f32 %v8032, %v8033
    %v8035 = vadd.f32 %v8034, 1e-05
    %v8036 = vrsqrt.pop %v8035
    %v8037 = vmul.f32 %v7827, %v8036
    %v8038 = vmul.f32 %v8031, %v8037
    %v8039 = vsub.f32 %v7828, %v8038
    %v8040 = vlaneseq
    %v8041 = vshrl.u32 %v8040, 7
    %v8042 = vsub.s32 0, %v8041
    %v8043 = vrot.slane %v8037, %v8042
    %v8044 = vmul.f32 %v7573, %v8043
    %v8045 = vmul.f32 %v7576, %v8043
    %v8046 = vmul.f32 %v7581, %v8043
    %v8047 = vmul.f32 %v7584, %v8043
    %v8048 = vmul.f32 %v7589, %v8043
    %v8049 = vmul.f32 %v7592, %v8043
    %v8050 = vmul.f32 %v7597, %v8043
    %v8051 = vmul.f32 %v7600, %v8043
    %v8052 = vmul.f32 %v7605, %v8043
    %v8053 = vmul.f32 %v7608, %v8043
    %v8054 = vmul.f32 %v7613, %v8043
    %v8055 = vmul.f32 %v7616, %v8043
    %v8056 = vmul.f32 %v7621, %v8043
    %v8057 = vmul.f32 %v7624, %v8043
    %v8058 = vmul.f32 %v7629, %v8043
    %v8059 = vmul.f32 %v7632, %v8043
    %v8060 = vmul.f32 %v7637, %v8043
    %v8061 = vmul.f32 %v7640, %v8043
    %v8062 = vmul.f32 %v7645, %v8043
    %v8063 = vmul.f32 %v7648, %v8043
    %v8064 = vmul.f32 %v7653, %v8043
    %v8065 = vmul.f32 %v7656, %v8043
    %v8066 = vmul.f32 %v7661, %v8043
    %v8067 = vmul.f32 %v7664, %v8043
    %v8068 = vmul.f32 %v7669, %v8043
    %v8069 = vmul.f32 %v7672, %v8043
    %v8070 = vmul.f32 %v7677, %v8043
    %v8071 = vmul.f32 %v7680, %v8043
    %v8072 = vmul.f32 %v7685, %v8043
    %v8073 = vmul.f32 %v7688, %v8043
    %v8074 = vmul.f32 %v7693, %v8043
    %v8075 = vmul.f32 %v7696, %v8043
    %v8076 = vmul.f32 %v7701, %v8043
    %v8077 = vmul.f32 %v7704, %v8043
    %v8078 = vmul.f32 %v7709, %v8043
    %v8079 = vmul.f32 %v7712, %v8043
    %v8080 = vmul.f32 %v7717, %v8043
    %v8081 = vmul.f32 %v7720, %v8043
    %v8082 = vmul.f32 %v7725, %v8043
    %v8083 = vmul.f32 %v7728, %v8043
    %v8084 = vmul.f32 %v7733, %v8043
    %v8085 = vmul.f32 %v7736, %v8043
    %v8086 = vmul.f32 %v7741, %v8043
    %v8087 = vmul.f32 %v7744, %v8043
    %v8088 = vmul.f32 %v7749, %v8043
    %v8089 = vmul.f32 %v7752, %v8043
    %v8090 = vmul.f32 %v7757, %v8043
    %v8091 = vmul.f32 %v7760, %v8043
    %v8092 = vmul.f32 %v7765, %v8043
    %v8093 = vmul.f32 %v7768, %v8043
    %v8094 = vmul.f32 %v7773, %v8043
    %v8095 = vmul.f32 %v7776, %v8043
    %v8096 = vmul.f32 %v7781, %v8043
    %v8097 = vmul.f32 %v7784, %v8043
    %v8098 = vmul.f32 %v7789, %v8043
    %v8099 = vmul.f32 %v7792, %v8043
    %v8100 = vmul.f32 %v7797, %v8043
    %v8101 = vmul.f32 %v7800, %v8043
    %v8102 = vmul.f32 %v7805, %v8043
    %v8103 = vmul.f32 %v7808, %v8043
    %v8104 = vmul.f32 %v7813, %v8043
    %v8105 = vmul.f32 %v7816, %v8043
    %v8106 = vmul.f32 %v7821, %v8043
    %v8107 = vmul.f32 %v7824, %v8043
    %v8108 = vlaneseq
    %v8109 = vshrl.u32 %v8108, 7
    %v8110 = vsub.s32 0, %v8109
    %v8111 = vrot.slane %v8039, %v8110
    %v8112 = vadd.f32 %v8044, %v8111
    %v8113 = vadd.f32 %v8045, %v8111
    %v8114 = vadd.f32 %v8046, %v8111
    %v8115 = vadd.f32 %v8047, %v8111
    %v8116 = vadd.f32 %v8048, %v8111
    %v8117 = vadd.f32 %v8049, %v8111
    %v8118 = vadd.f32 %v8050, %v8111
    %v8119 = vadd.f32 %v8051, %v8111
    %v8120 = vadd.f32 %v8052, %v8111
    %v8121 = vadd.f32 %v8053, %v8111
    %v8122 = vadd.f32 %v8054, %v8111
    %v8123 = vadd.f32 %v8055, %v8111
    %v8124 = vadd.f32 %v8056, %v8111
    %v8125 = vadd.f32 %v8057, %v8111
    %v8126 = vadd.f32 %v8058, %v8111
    %v8127 = vadd.f32 %v8059, %v8111
    %v8128 = vadd.f32 %v8060, %v8111
    %v8129 = vadd.f32 %v8061, %v8111
    %v8130 = vadd.f32 %v8062, %v8111
    %v8131 = vadd.f32 %v8063, %v8111
    %v8132 = vadd.f32 %v8064, %v8111
    %v8133 = vadd.f32 %v8065, %v8111
    %v8134 = vadd.f32 %v8066, %v8111
    %v8135 = vadd.f32 %v8067, %v8111
    %v8136 = vadd.f32 %v8068, %v8111
    %v8137 = vadd.f32 %v8069, %v8111
    %v8138 = vadd.f32 %v8070, %v8111
    %v8139 = vadd.f32 %v8071, %v8111
    %v8140 = vadd.f32 %v8072, %v8111
    %v8141 = vadd.f32 %v8073, %v8111
    %v8142 = vadd.f32 %v8074, %v8111
    %v8143 = vadd.f32 %v8075, %v8111
    %v8144 = vadd.f32 %v8076, %v8111
    %v8145 = vadd.f32 %v8077, %v8111
    %v8146 = vadd.f32 %v8078, %v8111
    %v8147 = vadd.f32 %v8079, %v8111
    %v8148 = vadd.f32 %v8080, %v8111
    %v8149 = vadd.f32 %v8081, %v8111
    %v8150 = vadd.f32 %v8082, %v8111
    %v8151 = vadd.f32 %v8083, %v8111
    %v8152 = vadd.f32 %v8084, %v8111
    %v8153 = vadd.f32 %v8085, %v8111
    %v8154 = vadd.f32 %v8086, %v8111
    %v8155 = vadd.f32 %v8087, %v8111
    %v8156 = vadd.f32 %v8088, %v8111
    %v8157 = vadd.f32 %v8089, %v8111
    %v8158 = vadd.f32 %v8090, %v8111
    %v8159 = vadd.f32 %v8091, %v8111
    %v8160 = vadd.f32 %v8092, %v8111
    %v8161 = vadd.f32 %v8093, %v8111
    %v8162 = vadd.f32 %v8094, %v8111
    %v8163 = vadd.f32 %v8095, %v8111
    %v8164 = vadd.f32 %v8096, %v8111
    %v8165 = vadd.f32 %v8097, %v8111
    %v8166 = vadd.f32 %v8098, %v8111
    %v8167 = vadd.f32 %v8099, %v8111
    %v8168 = vadd.f32 %v8100, %v8111
    %v8169 = vadd.f32 %v8101, %v8111
    %v8170 = vadd.f32 %v8102, %v8111
    %v8171 = vadd.f32 %v8103, %v8111
    %v8172 = vadd.f32 %v8104, %v8111
    %v8173 = vadd.f32 %v8105, %v8111
    %v8174 = vadd.f32 %v8106, %v8111
    %v8175 = vadd.f32 %v8107, %v8111
    %v8176 = vld [vmem:[#allocation4] sm:$0xff]
    %v8177 = vld [vmem:[#allocation4 + $0x8] sm:$0xff]
    %v8178 = vld [vmem:[#allocation4 + $0x10] sm:$0xff]
    %v8179 = vld [vmem:[#allocation4 + $0x18] sm:$0xff]
    %v8180 = vld [vmem:[#allocation4 + $0x20] sm:$0xff]
    %v8181 = vld [vmem:[#allocation4 + $0x28] sm:$0xff]
    %v8182 = vld [vmem:[#allocation4 + $0x30] sm:$0xff]
    %v8183 = vld [vmem:[#allocation4 + $0x38] sm:$0xff]
    %v8184 = vld [vmem:[#allocation4 + $0x40] sm:$0xff]
    %v8185 = vld [vmem:[#allocation4 + $0x48] sm:$0xff]
    %v8186 = vld [vmem:[#allocation4 + $0x50] sm:$0xff]
    %v8187 = vld [vmem:[#allocation4 + $0x58] sm:$0xff]
    %v8188 = vld [vmem:[#allocation4 + $0x60] sm:$0xff]
    %v8189 = vld [vmem:[#allocation4 + $0x68] sm:$0xff]
    %v8190 = vld [vmem:[#allocation4 + $0x70] sm:$0xff]
    %v8191 = vld [vmem:[#allocation4 + $0x78] sm:$0xff]
    %v8192 = vld [vmem:[#allocation4 + $0x80] sm:$0xff]
    %v8193 = vld [vmem:[#allocation4 + $0x88] sm:$0xff]
    %v8194 = vld [vmem:[#allocation4 + $0x90] sm:$0xff]
    %v8195 = vld [vmem:[#allocation4 + $0x98] sm:$0xff]
    %v8196 = vld [vmem:[#allocation4 + $0xa0] sm:$0xff]
    %v8197 = vld [vmem:[#allocation4 + $0xa8] sm:$0xff]
    %v8198 = vld [vmem:[#allocation4 + $0xb0] sm:$0xff]
    %v8199 = vld [vmem:[#allocation4 + $0xb8] sm:$0xff]
    %v8200 = vld [vmem:[#allocation4 + $0xc0] sm:$0xff]
    %v8201 = vld [vmem:[#allocation4 + $0xc8] sm:$0xff]
    %v8202 = vld [vmem:[#allocation4 + $0xd0] sm:$0xff]
    %v8203 = vld [vmem:[#allocation4 + $0xd8] sm:$0xff]
    %v8204 = vld [vmem:[#allocation4 + $0xe0] sm:$0xff]
    %v8205 = vld [vmem:[#allocation4 + $0xe8] sm:$0xff]
    %v8206 = vld [vmem:[#allocation4 + $0xf0] sm:$0xff]
    %v8207 = vld [vmem:[#allocation4 + $0xf8] sm:$0xff]
    %v8208 = vld [vmem:[#allocation4 + $0x100] sm:$0xff]
    %v8209 = vld [vmem:[#allocation4 + $0x108] sm:$0xff]
    %v8210 = vld [vmem:[#allocation4 + $0x110] sm:$0xff]
    %v8211 = vld [vmem:[#allocation4 + $0x118] sm:$0xff]
    %v8212 = vld [vmem:[#allocation4 + $0x120] sm:$0xff]
    %v8213 = vld [vmem:[#allocation4 + $0x128] sm:$0xff]
    %v8214 = vld [vmem:[#allocation4 + $0x130] sm:$0xff]
    %v8215 = vld [vmem:[#allocation4 + $0x138] sm:$0xff]
    %v8216 = vld [vmem:[#allocation4 + $0x140] sm:$0xff]
    %v8217 = vld [vmem:[#allocation4 + $0x148] sm:$0xff]
    %v8218 = vld [vmem:[#allocation4 + $0x150] sm:$0xff]
    %v8219 = vld [vmem:[#allocation4 + $0x158] sm:$0xff]
    %v8220 = vld [vmem:[#allocation4 + $0x160] sm:$0xff]
    %v8221 = vld [vmem:[#allocation4 + $0x168] sm:$0xff]
    %v8222 = vld [vmem:[#allocation4 + $0x170] sm:$0xff]
    %v8223 = vld [vmem:[#allocation4 + $0x178] sm:$0xff]
    %v8224 = vld [vmem:[#allocation4 + $0x180] sm:$0xff]
    %v8225 = vld [vmem:[#allocation4 + $0x188] sm:$0xff]
    %v8226 = vld [vmem:[#allocation4 + $0x190] sm:$0xff]
    %v8227 = vld [vmem:[#allocation4 + $0x198] sm:$0xff]
    %v8228 = vld [vmem:[#allocation4 + $0x1a0] sm:$0xff]
    %v8229 = vld [vmem:[#allocation4 + $0x1a8] sm:$0xff]
    %v8230 = vld [vmem:[#allocation4 + $0x1b0] sm:$0xff]
    %v8231 = vld [vmem:[#allocation4 + $0x1b8] sm:$0xff]
    %v8232 = vld [vmem:[#allocation4 + $0x1c0] sm:$0xff]
    %v8233 = vld [vmem:[#allocation4 + $0x1c8] sm:$0xff]
    %v8234 = vld [vmem:[#allocation4 + $0x1d0] sm:$0xff]
    %v8235 = vld [vmem:[#allocation4 + $0x1d8] sm:$0xff]
    %v8236 = vld [vmem:[#allocation4 + $0x1e0] sm:$0xff]
    %v8237 = vld [vmem:[#allocation4 + $0x1e8] sm:$0xff]
    %v8238 = vld [vmem:[#allocation4 + $0x1f0] sm:$0xff]
    %v8239 = vld [vmem:[#allocation4 + $0x1f8] sm:$0xff]
    %v8240 = vadd.f32 %v8112, %v8176
    %v8241 = vadd.f32 %v8113, %v8177
    %v8242 = vadd.f32 %v8114, %v8178
    %v8243 = vadd.f32 %v8115, %v8179
    %v8244 = vadd.f32 %v8116, %v8180
    %v8245 = vadd.f32 %v8117, %v8181
    %v8246 = vadd.f32 %v8118, %v8182
    %v8247 = vadd.f32 %v8119, %v8183
    %v8248 = vadd.f32 %v8120, %v8184
    %v8249 = vadd.f32 %v8121, %v8185
    %v8250 = vadd.f32 %v8122, %v8186
    %v8251 = vadd.f32 %v8123, %v8187
    %v8252 = vadd.f32 %v8124, %v8188
    %v8253 = vadd.f32 %v8125, %v8189
    %v8254 = vadd.f32 %v8126, %v8190
    %v8255 = vadd.f32 %v8127, %v8191
    %v8256 = vadd.f32 %v8128, %v8192
    %v8257 = vadd.f32 %v8129, %v8193
    %v8258 = vadd.f32 %v8130, %v8194
    %v8259 = vadd.f32 %v8131, %v8195
    %v8260 = vadd.f32 %v8132, %v8196
    %v8261 = vadd.f32 %v8133, %v8197
    %v8262 = vadd.f32 %v8134, %v8198
    %v8263 = vadd.f32 %v8135, %v8199
    %v8264 = vadd.f32 %v8136, %v8200
    %v8265 = vadd.f32 %v8137, %v8201
    %v8266 = vadd.f32 %v8138, %v8202
    %v8267 = vadd.f32 %v8139, %v8203
    %v8268 = vadd.f32 %v8140, %v8204
    %v8269 = vadd.f32 %v8141, %v8205
    %v8270 = vadd.f32 %v8142, %v8206
    %v8271 = vadd.f32 %v8143, %v8207
    %v8272 = vadd.f32 %v8144, %v8208
    %v8273 = vadd.f32 %v8145, %v8209
    %v8274 = vadd.f32 %v8146, %v8210
    %v8275 = vadd.f32 %v8147, %v8211
    %v8276 = vadd.f32 %v8148, %v8212
    %v8277 = vadd.f32 %v8149, %v8213
    %v8278 = vadd.f32 %v8150, %v8214
    %v8279 = vadd.f32 %v8151, %v8215
    %v8280 = vadd.f32 %v8152, %v8216
    %v8281 = vadd.f32 %v8153, %v8217
    %v8282 = vadd.f32 %v8154, %v8218
    %v8283 = vadd.f32 %v8155, %v8219
    %v8284 = vadd.f32 %v8156, %v8220
    %v8285 = vadd.f32 %v8157, %v8221
    %v8286 = vadd.f32 %v8158, %v8222
    %v8287 = vadd.f32 %v8159, %v8223
    %v8288 = vadd.f32 %v8160, %v8224
    %v8289 = vadd.f32 %v8161, %v8225
    %v8290 = vadd.f32 %v8162, %v8226
    %v8291 = vadd.f32 %v8163, %v8227
    %v8292 = vadd.f32 %v8164, %v8228
    %v8293 = vadd.f32 %v8165, %v8229
    %v8294 = vadd.f32 %v8166, %v8230
    %v8295 = vadd.f32 %v8167, %v8231
    %v8296 = vadd.f32 %v8168, %v8232
    %v8297 = vadd.f32 %v8169, %v8233
    %v8298 = vadd.f32 %v8170, %v8234
    %v8299 = vadd.f32 %v8171, %v8235
    %v8300 = vadd.f32 %v8172, %v8236
    %v8301 = vadd.f32 %v8173, %v8237
    %v8302 = vadd.f32 %v8174, %v8238
    %v8303 = vadd.f32 %v8175, %v8239
    %v8304 = vmax.f32 %v8240, 0.0
    %v8305 = vmax.f32 %v8241, 0.0
    %v8306 = vmax.f32 %v8242, 0.0
    %v8307 = vmax.f32 %v8243, 0.0
    %v8308 = vmax.f32 %v8244, 0.0
    %v8309 = vmax.f32 %v8245, 0.0
    %v8310 = vmax.f32 %v8246, 0.0
    %v8311 = vmax.f32 %v8247, 0.0
    %v8312 = vmax.f32 %v8248, 0.0
    %v8313 = vmax.f32 %v8249, 0.0
    %v8314 = vmax.f32 %v8250, 0.0
    %v8315 = vmax.f32 %v8251, 0.0
    %v8316 = vmax.f32 %v8252, 0.0
    %v8317 = vmax.f32 %v8253, 0.0
    %v8318 = vmax.f32 %v8254, 0.0
    %v8319 = vmax.f32 %v8255, 0.0
    %v8320 = vmax.f32 %v8256, 0.0
    %v8321 = vmax.f32 %v8257, 0.0
    %v8322 = vmax.f32 %v8258, 0.0
    %v8323 = vmax.f32 %v8259, 0.0
    %v8324 = vmax.f32 %v8260, 0.0
    %v8325 = vmax.f32 %v8261, 0.0
    %v8326 = vmax.f32 %v8262, 0.0
    %v8327 = vmax.f32 %v8263, 0.0
    %v8328 = vmax.f32 %v8264, 0.0
    %v8329 = vmax.f32 %v8265, 0.0
    %v8330 = vmax.f32 %v8266, 0.0
    %v8331 = vmax.f32 %v8267, 0.0
    %v8332 = vmax.f32 %v8268, 0.0
    %v8333 = vmax.f32 %v8269, 0.0
    %v8334 = vmax.f32 %v8270, 0.0
    %v8335 = vmax.f32 %v8271, 0.0
    %v8336 = vmax.f32 %v8272, 0.0
    %v8337 = vmax.f32 %v8273, 0.0
    %v8338 = vmax.f32 %v8274, 0.0
    %v8339 = vmax.f32 %v8275, 0.0
    %v8340 = vmax.f32 %v8276, 0.0
    %v8341 = vmax.f32 %v8277, 0.0
    %v8342 = vmax.f32 %v8278, 0.0
    %v8343 = vmax.f32 %v8279, 0.0
    %v8344 = vmax.f32 %v8280, 0.0
    %v8345 = vmax.f32 %v8281, 0.0
    %v8346 = vmax.f32 %v8282, 0.0
    %v8347 = vmax.f32 %v8283, 0.0
    %v8348 = vmax.f32 %v8284, 0.0
    %v8349 = vmax.f32 %v8285, 0.0
    %v8350 = vmax.f32 %v8286, 0.0
    %v8351 = vmax.f32 %v8287, 0.0
    %v8352 = vmax.f32 %v8288, 0.0
    %v8353 = vmax.f32 %v8289, 0.0
    %v8354 = vmax.f32 %v8290, 0.0
    %v8355 = vmax.f32 %v8291, 0.0
    %v8356 = vmax.f32 %v8292, 0.0
    %v8357 = vmax.f32 %v8293, 0.0
    %v8358 = vmax.f32 %v8294, 0.0
    %v8359 = vmax.f32 %v8295, 0.0
    %v8360 = vmax.f32 %v8296, 0.0
    %v8361 = vmax.f32 %v8297, 0.0
    %v8362 = vmax.f32 %v8298, 0.0
    %v8363 = vmax.f32 %v8299, 0.0
    %v8364 = vmax.f32 %v8300, 0.0
    %v8365 = vmax.f32 %v8301, 0.0
    %v8366 = vmax.f32 %v8302, 0.0
    %v8367 = vmax.f32 %v8303, 0.0
    %8368 = vst [vmem:[#allocation13] sm:$0xff] %v8304
    %8369 = vst [vmem:[#allocation13 + $0x8] sm:$0xff] %v8305
    %8370 = vst [vmem:[#allocation13 + $0x10] sm:$0xff] %v8306
    %8371 = vst [vmem:[#allocation13 + $0x18] sm:$0xff] %v8307
    %8372 = vst [vmem:[#allocation13 + $0x20] sm:$0xff] %v8308
    %8373 = vst [vmem:[#allocation13 + $0x28] sm:$0xff] %v8309
    %8374 = vst [vmem:[#allocation13 + $0x30] sm:$0xff] %v8310
    %8375 = vst [vmem:[#allocation13 + $0x38] sm:$0xff] %v8311
    %8376 = vst [vmem:[#allocation13 + $0x40] sm:$0xff] %v8312
    %8377 = vst [vmem:[#allocation13 + $0x48] sm:$0xff] %v8313
    %8378 = vst [vmem:[#allocation13 + $0x50] sm:$0xff] %v8314
    %8379 = vst [vmem:[#allocation13 + $0x58] sm:$0xff] %v8315
    %8380 = vst [vmem:[#allocation13 + $0x60] sm:$0xff] %v8316
    %8381 = vst [vmem:[#allocation13 + $0x68] sm:$0xff] %v8317
    %8382 = vst [vmem:[#allocation13 + $0x70] sm:$0xff] %v8318
    %8383 = vst [vmem:[#allocation13 + $0x78] sm:$0xff] %v8319
    %8384 = vst [vmem:[#allocation13 + $0x80] sm:$0xff] %v8320
    %8385 = vst [vmem:[#allocation13 + $0x88] sm:$0xff] %v8321
    %8386 = vst [vmem:[#allocation13 + $0x90] sm:$0xff] %v8322
    %8387 = vst [vmem:[#allocation13 + $0x98] sm:$0xff] %v8323
    %8388 = vst [vmem:[#allocation13 + $0xa0] sm:$0xff] %v8324
    %8389 = vst [vmem:[#allocation13 + $0xa8] sm:$0xff] %v8325
    %8390 = vst [vmem:[#allocation13 + $0xb0] sm:$0xff] %v8326
    %8391 = vst [vmem:[#allocation13 + $0xb8] sm:$0xff] %v8327
    %8392 = vst [vmem:[#allocation13 + $0xc0] sm:$0xff] %v8328
    %8393 = vst [vmem:[#allocation13 + $0xc8] sm:$0xff] %v8329
    %8394 = vst [vmem:[#allocation13 + $0xd0] sm:$0xff] %v8330
    %8395 = vst [vmem:[#allocation13 + $0xd8] sm:$0xff] %v8331
    %8396 = vst [vmem:[#allocation13 + $0xe0] sm:$0xff] %v8332
    %8397 = vst [vmem:[#allocation13 + $0xe8] sm:$0xff] %v8333
    %8398 = vst [vmem:[#allocation13 + $0xf0] sm:$0xff] %v8334
    %8399 = vst [vmem:[#allocation13 + $0xf8] sm:$0xff] %v8335
    %8400 = vst [vmem:[#allocation13 + $0x100] sm:$0xff] %v8336
    %8401 = vst [vmem:[#allocation13 + $0x108] sm:$0xff] %v8337
    %8402 = vst [vmem:[#allocation13 + $0x110] sm:$0xff] %v8338
    %8403 = vst [vmem:[#allocation13 + $0x118] sm:$0xff] %v8339
    %8404 = vst [vmem:[#allocation13 + $0x120] sm:$0xff] %v8340
    %8405 = vst [vmem:[#allocation13 + $0x128] sm:$0xff] %v8341
    %8406 = vst [vmem:[#allocation13 + $0x130] sm:$0xff] %v8342
    %8407 = vst [vmem:[#allocation13 + $0x138] sm:$0xff] %v8343
    %8408 = vst [vmem:[#allocation13 + $0x140] sm:$0xff] %v8344
    %8409 = vst [vmem:[#allocation13 + $0x148] sm:$0xff] %v8345
    %8410 = vst [vmem:[#allocation13 + $0x150] sm:$0xff] %v8346
    %8411 = vst [vmem:[#allocation13 + $0x158] sm:$0xff] %v8347
    %8412 = vst [vmem:[#allocation13 + $0x160] sm:$0xff] %v8348
    %8413 = vst [vmem:[#allocation13 + $0x168] sm:$0xff] %v8349
    %8414 = vst [vmem:[#allocation13 + $0x170] sm:$0xff] %v8350
    %8415 = vst [vmem:[#allocation13 + $0x178] sm:$0xff] %v8351
    %8416 = vst [vmem:[#allocation13 + $0x180] sm:$0xff] %v8352
    %8417 = vst [vmem:[#allocation13 + $0x188] sm:$0xff] %v8353
    %8418 = vst [vmem:[#allocation13 + $0x190] sm:$0xff] %v8354
    %8419 = vst [vmem:[#allocation13 + $0x198] sm:$0xff] %v8355
    %8420 = vst [vmem:[#allocation13 + $0x1a0] sm:$0xff] %v8356
    %8421 = vst [vmem:[#allocation13 + $0x1a8] sm:$0xff] %v8357
    %8422 = vst [vmem:[#allocation13 + $0x1b0] sm:$0xff] %v8358
    %8423 = vst [vmem:[#allocation13 + $0x1b8] sm:$0xff] %v8359
    %8424 = vst [vmem:[#allocation13 + $0x1c0] sm:$0xff] %v8360
    %8425 = vst [vmem:[#allocation13 + $0x1c8] sm:$0xff] %v8361
    %8426 = vst [vmem:[#allocation13 + $0x1d0] sm:$0xff] %v8362
    %8427 = vst [vmem:[#allocation13 + $0x1d8] sm:$0xff] %v8363
    %8428 = vst [vmem:[#allocation13 + $0x1e0] sm:$0xff] %v8364
    %8429 = vst [vmem:[#allocation13 + $0x1e8] sm:$0xff] %v8365
    %8430 = vst [vmem:[#allocation13 + $0x1f0] sm:$0xff] %v8366
    %8431 = vst [vmem:[#allocation13 + $0x1f8] sm:$0xff] %v8367
    // Predicated region
    $region42: #{tpu_custom_call.1} parent=1 // pred_check
      _
    $region43: #{tpu_custom_call.1} parent=1 // pred_check_branch
      %8433 = sbr.rel (0) target = $region45
    $region44: #{tpu_custom_call.1} parent=1 // pred_region
      %s8435 = ssub.s32 8192, 8192
      %8436 = vsyncadd [#allocation6], %s8435
      %s8437 = sshll.u32 [#allocation13], 4
      %s8438 = int_to_ptr.vmem [resolvable:$true] %s8437
      %8443 = dma.vmem_to_hbm [thread:$0]  %s8438, 8192, %s5, [#allocation6], 128, 128, 8
    $region45: #{tpu_custom_call.1} parent=1 // pred_fallthru
      _
    // Predicated region
    $region46: #{tpu_custom_call.1} parent=1 // pred_check
      _
    $region47: #{tpu_custom_call.1} parent=1 // pred_check_branch
      %8445 = sbr.rel (0) target = $region49
    $region48: #{tpu_custom_call.1} parent=1 // pred_region
      %8446 = dma.done [#allocation6], 8192
    $region49: #{tpu_custom_call.1} parent=1 // pred_fallthru
      _
    %8447 = vsyncpa [#allocation5], 1
    %8448 = vsyncpa [#allocation8], 1
    %8449 = vsyncpa [#allocation11], 1
    %8450 = vsyncpa [#allocation6], 1

</llo_original>
